<compile_context>
chip_gen: v7x
topology: tpu7x:2x2x1
jax: 0.10.0
libtpu: 0.0.40
codegen_flags: <defaults>
</compile_context>

<pallas_src>
import jax
import jax.numpy as jnp
from jax import lax
from jax.experimental import pallas as pl
from jax.experimental.pallas import tpu as pltpu

MM_DTYPE = jnp.bfloat16            # MXU operand / activation-slab storage dtype
VMEM_LIMIT = 48 * 1024 * 1024      # raised scoped-VMEM limit (< v7x 64 MiB physical)
LANE = 128


# ----------------------------------------------------------------------------
# Small static helpers (all Python ints, resolved at trace time)
# ----------------------------------------------------------------------------
def _round_up(x, m):
    return (x + m - 1) // m * m


def _largest_divisor_leq(n, cap):
    for t in range(min(n, cap), 0, -1):
        if n % t == 0:
            return t
    return n          # unreachable (1 always divides); kept for clarity


def _pick_row_tile(m, cap):
    # largest divisor of m that is <= cap and satisfies the (8,128) sublane rule
    for t in range(min(m, cap), 0, -1):
        if m % t == 0 and (t % 8 == 0 or t == m):
            return t
    return m           # fallback: whole array as one block


# ----------------------------------------------------------------------------
# Pallas kernels
# ----------------------------------------------------------------------------
def _inproj_kernel(x_ref, w_ref, b_ref, of_ref, ob_ref):
    """gx_f / gx_b = x @ W[:, :4Hp] / W[:, 4Hp:] + bias  (bf16 out, f32 accumulate).

    The f32 -> bf16 input cast happens in-kernel (hidden under the MXU matmul)."""
    G = of_ref.shape[-1]
    x = x_ref[...].astype(MM_DTYPE)
    of_ref[...] = (jnp.dot(x, w_ref[:, :G], preferred_element_type=jnp.float32)
                   + b_ref[:, :G]).astype(of_ref.dtype)
    ob_ref[...] = (jnp.dot(x, w_ref[:, G:], preferred_element_type=jnp.float32)
                   + b_ref[:, G:]).astype(ob_ref.dtype)


def _inproj2_kernel(a_ref, b_ref, wa_ref, wb_ref, bias_ref, of_ref, ob_ref):
    """Two-operand input projection for layers > 0: out_f @ Wa + out_b @ Wb + bias,
    avoiding a materialized concat([out_f, out_b]) between layers.  Inputs already bf16."""
    G = of_ref.shape[-1]
    a = a_ref[...]
    b = b_ref[...]
    of_ref[...] = (jnp.dot(a, wa_ref[:, :G], preferred_element_type=jnp.float32)
                   + jnp.dot(b, wb_ref[:, :G], preferred_element_type=jnp.float32)
                   + bias_ref[:, :G]).astype(of_ref.dtype)
    ob_ref[...] = (jnp.dot(a, wa_ref[:, G:], preferred_element_type=jnp.float32)
                   + jnp.dot(b, wb_ref[:, G:], preferred_element_type=jnp.float32)
                   + bias_ref[:, G:]).astype(ob_ref.dtype)


def _fc_kernel(a_ref, b_ref, wa_ref, wb_ref, bias_ref, o_ref):
    """Final Linear over the 2N gathered rows (tiny, gridless)."""
    o_ref[...] = (jnp.dot(a_ref[...], wa_ref[...], preferred_element_type=jnp.float32)
                  + jnp.dot(b_ref[...], wb_ref[...], preferred_element_type=jnp.float32)
                  + bias_ref[...])


def _recurrence_kernel(gxf_ref, gxb_ref, whf_ref, whb_ref, of_ref, ob_ref,
                       hf_s, cf_s, hb_s, cb_s):
    """Fused fwd+bwd LSTM recurrence over ONE time chunk.

    gx_*   : (TC, N, 4Hp) bf16, precomputed x@W_ih + bias, gate order (i,f,o,g).
             The forward chunk walks forward in time, the backward chunk backward.
    whh_*  : (Hp, 4Hp) bf16 recurrent weights (kept as VMEM refs, not hoisted to vregs).
    of/ob  : (TC, N, Hp) bf16 hidden-state slabs (lane-dense: Hp is a multiple of 128).
    h/c    : f32 VMEM scratch, carried across grid (time-chunk) iterations.
    """
    TC = gxf_ref.shape[0]
    Hp = whf_ref.shape[0]
    H3 = 3 * Hp

    @pl.when(pl.program_id(0) == 0)
    def _init():
        hf_s[...] = jnp.zeros_like(hf_s)
        cf_s[...] = jnp.zeros_like(cf_s)
        hb_s[...] = jnp.zeros_like(hb_s)
        cb_s[...] = jnp.zeros_like(cb_s)

    def cell(gates, c):
        sg = jax.nn.sigmoid(gates[:, :H3])     # one contiguous EUP slab: (i, f, o)
        g = jnp.tanh(gates[:, H3:])            # one contiguous EUP slab: g
        i_g = sg[:, :Hp]
        f_g = sg[:, Hp:2 * Hp]
        o_g = sg[:, 2 * Hp:H3]
        c_new = f_g * c + i_g * g
        h_new = o_g * jnp.tanh(c_new)
        return h_new, c_new

    def step(s, carry):
        h_f, c_f, h_b, c_b = carry
        tb = TC - 1 - s
        gates_f = (jnp.dot(h_f.astype(MM_DTYPE), whf_ref[...],
                           preferred_element_type=jnp.float32)
                   + gxf_ref[s].astype(jnp.float32))
        gates_b = (jnp.dot(h_b.astype(MM_DTYPE), whb_ref[...],
                           preferred_element_type=jnp.float32)
                   + gxb_ref[tb].astype(jnp.float32))
        h_f, c_f = cell(gates_f, c_f)
        h_b, c_b = cell(gates_b, c_b)
        of_ref[s] = h_f.astype(of_ref.dtype)    # lane-dense, unmasked stores
        ob_ref[tb] = h_b.astype(ob_ref.dtype)
        return (h_f, c_f, h_b, c_b)

    # Bounded unroll: full code-size explosion avoided at production L, LLO still sees work.
    if TC <= 8:
        unroll = TC
    else:
        unroll = next((u for u in (8, 6, 5, 4, 3, 2) if TC % u == 0), 1)

    carry = (hf_s[...], cf_s[...], hb_s[...], cb_s[...])
    h_f, c_f, h_b, c_b = lax.fori_loop(0, TC, step, carry, unroll=unroll)
    hf_s[...] = h_f
    cf_s[...] = c_f
    hb_s[...] = h_b
    cb_s[...] = c_b


# ----------------------------------------------------------------------------
# Wrappers (grids / BlockSpecs)
# ----------------------------------------------------------------------------
def input_proj(x2d, w, bias, max_row_tile):
    M, D = x2d.shape
    G2 = w.shape[1]
    G = G2 // 2
    TM = _pick_row_tile(M, max_row_tile)
    return pl.pallas_call(
        _inproj_kernel,
        out_shape=(jax.ShapeDtypeStruct((M, G), MM_DTYPE),
                   jax.ShapeDtypeStruct((M, G), MM_DTYPE)),
        grid=(M // TM,),
        in_specs=[pl.BlockSpec((TM, D), lambda i: (i, 0)),
                  pl.BlockSpec((D, G2), lambda i: (0, 0)),
                  pl.BlockSpec((1, G2), lambda i: (0, 0))],
        out_specs=(pl.BlockSpec((TM, G), lambda i: (i, 0)),
                   pl.BlockSpec((TM, G), lambda i: (i, 0))),
        compiler_params=pltpu.CompilerParams(
            dimension_semantics=("parallel",), vmem_limit_bytes=VMEM_LIMIT),
    )(x2d, w, bias)


def input_proj2(a2d, b2d, wa, wb, bias, max_row_tile):
    M, Hp = a2d.shape
    G2 = wa.shape[1]
    G = G2 // 2
    TM = _pick_row_tile(M, max_row_tile)
    return pl.pallas_call(
        _inproj2_kernel,
        out_shape=(jax.ShapeDtypeStruct((M, G), MM_DTYPE),
                   jax.ShapeDtypeStruct((M, G), MM_DTYPE)),
        grid=(M // TM,),
        in_specs=[pl.BlockSpec((TM, Hp), lambda i: (i, 0)),
                  pl.BlockSpec((TM, Hp), lambda i: (i, 0)),
                  pl.BlockSpec((Hp, G2), lambda i: (0, 0)),
                  pl.BlockSpec((Hp, G2), lambda i: (0, 0)),
                  pl.BlockSpec((1, G2), lambda i: (0, 0))],
        out_specs=(pl.BlockSpec((TM, G), lambda i: (i, 0)),
                   pl.BlockSpec((TM, G), lambda i: (i, 0))),
        compiler_params=pltpu.CompilerParams(
            dimension_semantics=("parallel",), vmem_limit_bytes=VMEM_LIMIT),
    )(a2d, b2d, wa, wb, bias)


def fc_proj(a2d, b2d, wa, wb, bias):
    M = a2d.shape[0]
    O = wa.shape[1]
    # Only 2N rows (the two timesteps last_timestep() consumes) -> gridless is fine here.
    return pl.pallas_call(
        _fc_kernel,
        out_shape=jax.ShapeDtypeStruct((M, O), jnp.float32),
    )(a2d, b2d, wa, wb, bias)


def bilstm_recurrence(gxf, gxb, whh_f, whh_b, max_time_chunk):
    L, N, G = gxf.shape
    Hp = whh_f.shape[0]
    TC = _largest_divisor_leq(L, max_time_chunk)   # prime L falls back to TC=1 (correct, slow)
    NT = L // TC
    fwd_map = lambda i: (i, 0, 0)
    bwd_map = lambda i: (NT - 1 - i, 0, 0)         # backward direction streams chunks in reverse
    wmap = lambda i: (0, 0)
    return pl.pallas_call(
        _recurrence_kernel,
        out_shape=(jax.ShapeDtypeStruct((L, N, Hp), MM_DTYPE),
                   jax.ShapeDtypeStruct((L, N, Hp), MM_DTYPE)),
        grid=(NT,),
        in_specs=[pl.BlockSpec((TC, N, G), fwd_map),
                  pl.BlockSpec((TC, N, G), bwd_map),
                  pl.BlockSpec((Hp, G), wmap),
                  pl.BlockSpec((Hp, G), wmap)],
        out_specs=(pl.BlockSpec((TC, N, Hp), fwd_map),
                   pl.BlockSpec((TC, N, Hp), bwd_map)),
        scratch_shapes=[pltpu.VMEM((N, Hp), jnp.float32) for _ in range(4)],
        compiler_params=pltpu.CompilerParams(
            dimension_semantics=("arbitrary",), vmem_limit_bytes=VMEM_LIMIT),
    )(gxf, gxb, whh_f, whh_b)


# ----------------------------------------------------------------------------
# Parameters: raw PyTorch-layout init + packing into the kernel layout
# ----------------------------------------------------------------------------
def init_raw_params(key, input_dim, rnn_size, output_dim, num_layers):
    """PyTorch-layout params: per layer/direction w_ih (4H,d_in), w_hh (4H,H), b_ih, b_hh
    with gate row order (i,f,g,o); uniform(-1/sqrt(H), 1/sqrt(H)) like nn.LSTM."""
    H = rnn_size
    bound = 1.0 / (H ** 0.5)

    def u(k, shape, b=bound):
        return jax.random.uniform(k, shape, jnp.float32, -b, b)

    raw = {"lstm": []}
    for l in range(num_layers):
        d_in = input_dim if l == 0 else 2 * H
        key, *ks = jax.random.split(key, 9)
        raw["lstm"].append({
            "w_ih_f": u(ks[0], (4 * H, d_in)), "w_hh_f": u(ks[1], (4 * H, H)),
            "b_ih_f": u(ks[2], (4 * H,)),      "b_hh_f": u(ks[3], (4 * H,)),
            "w_ih_b": u(ks[4], (4 * H, d_in)), "w_hh_b": u(ks[5], (4 * H, H)),
            "b_ih_b": u(ks[6], (4 * H,)),      "b_hh_b": u(ks[7], (4 * H,)),
        })
    F = 2 * H
    fb = 1.0 / (F ** 0.5)
    key, kw, kb = jax.random.split(key, 3)
    raw["fc_w"] = u(kw, (output_dim, F), fb)
    raw["fc_b"] = u(kb, (output_dim,), fb)
    return raw


def pack_params(raw, rnn_size, num_layers):
    """Kernel layout: gates reordered (i,f,o,g), each gate zero-padded to Hp=round_up(H,128)
    so all slices / stores are 128-lane aligned; weights transposed (K, out) in bf16;
    b_ih+b_hh folded into one bias row per direction (consumed by the input projection)."""
    H = rnn_size
    Hp = _round_up(H, LANE)

    def pad0(m, rows):
        if m.shape[0] == rows:
            return m
        return jnp.concatenate(
            [m, jnp.zeros((rows - m.shape[0],) + m.shape[1:], m.dtype)], axis=0)

    def gates(w):  # (4H, ...) PyTorch order (i,f,g,o) -> (4Hp, ...) order (i,f,o,g)
        i_, f_, g_, o_ = w[:H], w[H:2 * H], w[2 * H:3 * H], w[3 * H:4 * H]
        return jnp.concatenate(
            [pad0(i_, Hp), pad0(f_, Hp), pad0(o_, Hp), pad0(g_, Hp)], axis=0)

    params = {"lstm": []}
    for l in range(num_layers):
        rl = raw["lstm"][l]
        bias = jnp.concatenate([gates(rl["b_ih_f"] + rl["b_hh_f"]),
                                gates(rl["b_ih_b"] + rl["b_hh_b"])]).reshape(1, 8 * Hp)
        entry = {
            "bias": bias.astype(jnp.float32),
            "whh_f": pad0(gates(rl["w_hh_f"]).T, Hp).astype(MM_DTYPE),   # (Hp, 4Hp)
            "whh_b": pad0(gates(rl["w_hh_b"]).T, Hp).astype(MM_DTYPE),
        }
        wfT = gates(rl["w_ih_f"]).T        # (d_in, 4Hp)
        wbT = gates(rl["w_ih_b"]).T
        if l == 0:
            entry["w_ih"] = jnp.concatenate([wfT, wbT], axis=1).astype(MM_DTYPE)  # (D, 8Hp)
        else:
            # d_in = 2H: rows [0,H) come from the forward stream, [H,2H) from the backward one
            entry["w_from_f"] = jnp.concatenate(
                [pad0(wfT[:H], Hp), pad0(wbT[:H], Hp)], axis=1).astype(MM_DTYPE)  # (Hp, 8Hp)
            entry["w_from_b"] = jnp.concatenate(
                [pad0(wfT[H:], Hp), pad0(wbT[H:], Hp)], axis=1).astype(MM_DTYPE)
        params["lstm"].append(entry)

    fcT = raw["fc_w"].T                                          # (2H, O)
    params["fc_w_f"] = pad0(fcT[:H], Hp).astype(MM_DTYPE)        # (Hp, O)
    params["fc_w_b"] = pad0(fcT[H:], Hp).astype(MM_DTYPE)
    params["fc_b"] = raw["fc_b"].reshape(1, -1).astype(jnp.float32)
    return params


# ----------------------------------------------------------------------------
# Full forward = PyTorch BasicLSTM.forward (bidirectional=True path)
# ----------------------------------------------------------------------------
def basic_lstm_forward(params, x, lengths, rnn_size, num_layers, output_dim,
                       max_time_chunk=32, max_row_tile=256):
    x = x.astype(jnp.float32)                                    # x.float()
    N, L, D = x.shape
    Hp = _round_up(rnn_size, LANE)
    x_tm = jnp.transpose(x, (1, 0, 2)).reshape(L * N, D)         # time-major rows (t*N + n)

    out_f = out_b = None
    for l in range(num_layers):
        p = params["lstm"][l]
        if l == 0:
            gxf, gxb = input_proj(x_tm, p["w_ih"], p["bias"], max_row_tile)
        else:
            gxf, gxb = input_proj2(out_f.reshape(L * N, Hp), out_b.reshape(L * N, Hp),
                                   p["w_from_f"], p["w_from_b"], p["bias"], max_row_tile)
        out_f, out_b = bilstm_recurrence(gxf.reshape(L, N, 4 * Hp),
                                         gxb.reshape(L, N, 4 * Hp),
                                         p["whh_f"], p["whh_b"], max_time_chunk)

    # last_timestep(): forward half of fc(outputs) at t = lengths-1, backward half at t = 0.
    # Only those two timesteps per sample feed the FC (2N rows instead of N*L).
    n_idx = jnp.arange(N)
    t_last = lengths - 1
    sel_f = jnp.concatenate([out_f[t_last, n_idx, :], out_f[0]], axis=0)   # (2N, Hp) bf16
    sel_b = jnp.concatenate([out_b[t_last, n_idx, :], out_b[0]], axis=0)
    fc_out = fc_proj(sel_f, sel_b, params["fc_w_f"], params["fc_w_b"], params["fc_b"])
    half = output_dim // 2
    return jnp.concatenate([fc_out[:N, :half], fc_out[N:, half:]], axis=-1)


# ----------------------------------------------------------------------------
# Pure-JAX reference in the ORIGINAL structure (per-direction scan, x@W_ih inside the
# recurrence, FC over all timesteps, then last_timestep gather). It uses bf16 matmul
# operands / f32 accumulation and rounds the input projection to bf16 — mirroring the
# kernels' mixed-precision storage — so the comparison is tight.
# ----------------------------------------------------------------------------
def _lstm_dir_ref(x_tm, w_ih, w_hh, b, reverse):
    H = w_hh.shape[1]
    N = x_tm.shape[1]
    w_ih_t = w_ih.T.astype(MM_DTYPE)
    w_hh_t = w_hh.T.astype(MM_DTYPE)
    seq = x_tm[::-1] if reverse else x_tm

    def step(carry, x_t):
        h, c = carry
        gx = jnp.dot(x_t.astype(MM_DTYPE), w_ih_t, preferred_element_type=jnp.float32) + b
        gx = gx.astype(MM_DTYPE).astype(jnp.float32)      # matches kernels' bf16 gx storage
        gates = gx + jnp.dot(h.astype(MM_DTYPE), w_hh_t, preferred_element_type=jnp.float32)
        i = jax.nn.sigmoid(gates[:, :H])
        f = jax.nn.sigmoid(gates[:, H:2 * H])
        g = jnp.tanh(gates[:, 2 * H:3 * H])
        o = jax.nn.sigmoid(gates[:, 3 * H:])
        c = f * c + i * g
        h = o * jnp.tanh(c)
        return (h, c), h

    z = jnp.zeros((N, H), jnp.float32)
    _, hs = lax.scan(step, (z, z), seq)
    return hs[::-1] if reverse else hs


def basic_lstm_ref(raw, x, lengths, rnn_size, num_layers, output_dim):
    x = x.astype(jnp.float32)
    N, L, _ = x.shape
    inp = jnp.transpose(x, (1, 0, 2))
    for l in range(num_layers):
        rl = raw["lstm"][l]
        hf = _lstm_dir_ref(inp, rl["w_ih_f"], rl["w_hh_f"], rl["b_ih_f"] + rl["b_hh_f"], False)
        hb = _lstm_dir_ref(inp, rl["w_ih_b"], rl["w_hh_b"], rl["b_ih_b"] + rl["b_hh_b"], True)
        inp = jnp.concatenate([hf, hb], axis=-1)
    outputs = jnp.transpose(inp, (1, 0, 2))                       # (N, L, 2H)
    fc_out = (jnp.dot(outputs.astype(MM_DTYPE), raw["fc_w"].T.astype(MM_DTYPE),
                      preferred_element_type=jnp.float32) + raw["fc_b"])
    half = output_dim // 2
    last_forward = fc_out[jnp.arange(N), lengths - 1, :half]
    last_backward = fc_out[:, 0, half:]
    return jnp.concatenate([last_forward, last_backward], axis=-1)


if __name__ == "__main__":
    N, L, D = 2, 8, 8            # batch, seq len, input_dim
    rnn_size = 32
    output_dim = 4               # even, so split_directions is well defined
    num_layers = 2

    key = jax.random.PRNGKey(0)
    kx, kp = jax.random.split(key)
    x = jax.random.normal(kx, (N, L, D), dtype=jnp.float32)
    lengths = jnp.array([5, 8], dtype=jnp.int32)

    raw = init_raw_params(kp, D, rnn_size, output_dim, num_layers)
    params = pack_params(raw, rnn_size, num_layers)

    # Small chunk/tile caps so the toy shapes still exercise the multi-chunk grid,
    # the cross-chunk scratch carry and the reversed backward-direction index map.
    fwd = jax.jit(basic_lstm_forward, static_argnums=(3, 4, 5, 6, 7))
    out = fwd(params, x, lengths, rnn_size, num_layers, output_dim, 4, 8)
    out = jax.block_until_ready(out)

    ref = jax.block_until_ready(
        basic_lstm_ref(raw, x, lengths, rnn_size, num_layers, output_dim))

    assert out.shape == (N, output_dim), out.shape
    assert jnp.allclose(out, ref, atol=5e-3, rtol=5e-3), (out, ref)
    print("KERNEL_OK")
</pallas_src>

<mosaic_0001>
module attributes {stable_mosaic.version = 11 : i64} {
  func.func @_inproj_kernel(%arg0: i32, %arg1: memref<8x8xf32, #tpu.memory_space<vmem>>, %arg2: memref<8x1024xbf16, #tpu.memory_space<vmem>>, %arg3: memref<1x1024xf32, #tpu.memory_space<vmem>>, %arg4: memref<8x512xbf16, #tpu.memory_space<vmem>>, %arg5: memref<8x512xbf16, #tpu.memory_space<vmem>>) attributes {dimension_semantics = [#tpu.dimension_semantics<parallel>], iteration_bounds = array<i64: 2>, scalar_prefetch = 0 : i64, scratch_operands = 0 : i64, tpu.core_type = #tpu.core_type<tc>, window_params = [{transform_indices = @transform_0, window_bounds = array<i64: 8, 8>}, {pipeline_mode = #tpu.pipeline_mode<synchronous>, transform_indices = @transform_1, window_bounds = array<i64: 8, 1024>}, {pipeline_mode = #tpu.pipeline_mode<synchronous>, transform_indices = @transform_2, window_bounds = array<i64: 1, 1024>}, {transform_indices = @transform_3, window_bounds = array<i64: 8, 512>}, {transform_indices = @transform_4, window_bounds = array<i64: 8, 512>}]} {
    %c0 = arith.constant 0 : index
    %c0_0 = arith.constant 0 : index
    %0 = vector.load %arg1[%c0, %c0_0] : memref<8x8xf32, #tpu.memory_space<vmem>>, vector<8x8xf32>
    %1 = arith.truncf %0 : vector<8x8xf32> to vector<8x8xbf16>
    %c0_1 = arith.constant 0 : index
    %c0_2 = arith.constant 0 : index
    %2 = vector.load %arg2[%c0_1, %c0_2] : memref<8x1024xbf16, #tpu.memory_space<vmem>>, vector<8x512xbf16>
    %cst = arith.constant dense<0.000000e+00> : vector<8x512xf32>
    %3 = tpu.matmul %1, %2, %cst {dimension_numbers = #tpu.dot_dimension_numbers<[1], [0], [0], [1], [0, 0, 1, 1], [], []>} : vector<8x8xbf16>, vector<8x512xbf16>, vector<8x512xf32> -> vector<8x512xf32>
    %c0_3 = arith.constant 0 : index
    %c0_4 = arith.constant 0 : index
    %4 = vector.load %arg3[%c0_3, %c0_4] : memref<1x1024xf32, #tpu.memory_space<vmem>>, vector<1x512xf32>
    %5 = vector.broadcast %4 : vector<1x512xf32> to vector<8x512xf32>
    %6 = arith.addf %3, %5 : vector<8x512xf32>
    %7 = arith.truncf %6 : vector<8x512xf32> to vector<8x512xbf16>
    %c0_5 = arith.constant 0 : index
    %c0_6 = arith.constant 0 : index
    %8 = vector.load %arg4[%c0_5, %c0_6] : memref<8x512xbf16, #tpu.memory_space<vmem>>, vector<8x512xbf16>
    tpu.vector_store %arg4[%c0_5, %c0_6], %7 {strides = array<i32>} : memref<8x512xbf16, #tpu.memory_space<vmem>>, vector<8x512xbf16>,
    %c0_7 = arith.constant 0 : index
    %c512 = arith.constant 512 : index
    %9 = vector.load %arg2[%c0_7, %c512] : memref<8x1024xbf16, #tpu.memory_space<vmem>>, vector<8x512xbf16>
    %cst_8 = arith.constant dense<0.000000e+00> : vector<8x512xf32>
    %10 = tpu.matmul %1, %9, %cst_8 {dimension_numbers = #tpu.dot_dimension_numbers<[1], [0], [0], [1], [0, 0, 1, 1], [], []>} : vector<8x8xbf16>, vector<8x512xbf16>, vector<8x512xf32> -> vector<8x512xf32>
    %c0_9 = arith.constant 0 : index
    %c512_10 = arith.constant 512 : index
    %11 = vector.load %arg3[%c0_9, %c512_10] : memref<1x1024xf32, #tpu.memory_space<vmem>>, vector<1x512xf32>
    %12 = vector.broadcast %11 : vector<1x512xf32> to vector<8x512xf32>
    %13 = arith.addf %10, %12 : vector<8x512xf32>
    %14 = arith.truncf %13 : vector<8x512xf32> to vector<8x512xbf16>
    %c0_11 = arith.constant 0 : index
    %c0_12 = arith.constant 0 : index
    %15 = vector.load %arg5[%c0_11, %c0_12] : memref<8x512xbf16, #tpu.memory_space<vmem>>, vector<8x512xbf16>
    tpu.vector_store %arg5[%c0_11, %c0_12], %14 {strides = array<i32>} : memref<8x512xbf16, #tpu.memory_space<vmem>>, vector<8x512xbf16>,
    return
  }
  func.func @transform_0(%arg0: i32) -> (i32, i32) {
    %c0_i32 = arith.constant 0 : i32
    %c0_i32_0 = arith.constant 0 : i32
    return %arg0, %c0_i32 : i32, i32
  }
  func.func @transform_1(%arg0: i32) -> (i32, i32) {
    %c0_i32 = arith.constant 0 : i32
    %c0_i32_0 = arith.constant 0 : i32
    %c0_i32_1 = arith.constant 0 : i32
    return %c0_i32, %c0_i32_0 : i32, i32
  }
  func.func @transform_2(%arg0: i32) -> (i32, i32) {
    %c0_i32 = arith.constant 0 : i32
    %c0_i32_0 = arith.constant 0 : i32
    %c0_i32_1 = arith.constant 0 : i32
    return %c0_i32, %c0_i32_0 : i32, i32
  }
  func.func @transform_3(%arg0: i32) -> (i32, i32) {
    %c0_i32 = arith.constant 0 : i32
    %c0_i32_0 = arith.constant 0 : i32
    return %arg0, %c0_i32 : i32, i32
  }
  func.func @transform_4(%arg0: i32) -> (i32, i32) {
    %c0_i32 = arith.constant 0 : i32
    %c0_i32_0 = arith.constant 0 : i32
    return %arg0, %c0_i32 : i32, i32
  }
}

module attributes {stable_mosaic.version = 11 : i64} {
  func.func @_inproj2_kernel(%arg0: i32, %arg1: memref<8x128xbf16, #tpu.memory_space<vmem>>, %arg2: memref<8x128xbf16, #tpu.memory_space<vmem>>, %arg3: memref<128x1024xbf16, #tpu.memory_space<vmem>>, %arg4: memref<128x1024xbf16, #tpu.memory_space<vmem>>, %arg5: memref<1x1024xf32, #tpu.memory_space<vmem>>, %arg6: memref<8x512xbf16, #tpu.memory_space<vmem>>, %arg7: memref<8x512xbf16, #tpu.memory_space<vmem>>) attributes {dimension_semantics = [#tpu.dimension_semantics<parallel>], iteration_bounds = array<i64: 2>, scalar_prefetch = 0 : i64, scratch_operands = 0 : i64, tpu.core_type = #tpu.core_type<tc>, window_params = [{transform_indices = @transform_0, window_bounds = array<i64: 8, 128>}, {transform_indices = @transform_1, window_bounds = array<i64: 8, 128>}, {pipeline_mode = #tpu.pipeline_mode<synchronous>, transform_indices = @transform_2, window_bounds = array<i64: 128, 1024>}, {pipeline_mode = #tpu.pipeline_mode<synchronous>, transform_indices = @transform_3, window_bounds = array<i64: 128, 1024>}, {pipeline_mode = #tpu.pipeline_mode<synchronous>, transform_indices = @transform_4, window_bounds = array<i64: 1, 1024>}, {transform_indices = @transform_5, window_bounds = array<i64: 8, 512>}, {transform_indices = @transform_6, window_bounds = array<i64: 8, 512>}]} {
    %c0 = arith.constant 0 : index
    %c0_0 = arith.constant 0 : index
    %0 = vector.load %arg1[%c0, %c0_0] : memref<8x128xbf16, #tpu.memory_space<vmem>>, vector<8x128xbf16>
    %c0_1 = arith.constant 0 : index
    %c0_2 = arith.constant 0 : index
    %1 = vector.load %arg2[%c0_1, %c0_2] : memref<8x128xbf16, #tpu.memory_space<vmem>>, vector<8x128xbf16>
    %c0_3 = arith.constant 0 : index
    %c0_4 = arith.constant 0 : index
    %2 = vector.load %arg3[%c0_3, %c0_4] : memref<128x1024xbf16, #tpu.memory_space<vmem>>, vector<128x512xbf16>
    %cst = arith.constant dense<0.000000e+00> : vector<8x512xf32>
    %3 = tpu.matmul %0, %2, %cst {dimension_numbers = #tpu.dot_dimension_numbers<[1], [0], [0], [1], [0, 0, 1, 1], [], []>} : vector<8x128xbf16>, vector<128x512xbf16>, vector<8x512xf32> -> vector<8x512xf32>
    %c0_5 = arith.constant 0 : index
    %c0_6 = arith.constant 0 : index
    %4 = vector.load %arg4[%c0_5, %c0_6] : memref<128x1024xbf16, #tpu.memory_space<vmem>>, vector<128x512xbf16>
    %cst_7 = arith.constant dense<0.000000e+00> : vector<8x512xf32>
    %5 = tpu.matmul %1, %4, %cst_7 {dimension_numbers = #tpu.dot_dimension_numbers<[1], [0], [0], [1], [0, 0, 1, 1], [], []>} : vector<8x128xbf16>, vector<128x512xbf16>, vector<8x512xf32> -> vector<8x512xf32>
    %6 = arith.addf %3, %5 : vector<8x512xf32>
    %c0_8 = arith.constant 0 : index
    %c0_9 = arith.constant 0 : index
    %7 = vector.load %arg5[%c0_8, %c0_9] : memref<1x1024xf32, #tpu.memory_space<vmem>>, vector<1x512xf32>
    %8 = vector.broadcast %7 : vector<1x512xf32> to vector<8x512xf32>
    %9 = arith.addf %6, %8 : vector<8x512xf32>
    %10 = arith.truncf %9 : vector<8x512xf32> to vector<8x512xbf16>
    %c0_10 = arith.constant 0 : index
    %c0_11 = arith.constant 0 : index
    %11 = vector.load %arg6[%c0_10, %c0_11] : memref<8x512xbf16, #tpu.memory_space<vmem>>, vector<8x512xbf16>
    tpu.vector_store %arg6[%c0_10, %c0_11], %10 {strides = array<i32>} : memref<8x512xbf16, #tpu.memory_space<vmem>>, vector<8x512xbf16>,
    %c0_12 = arith.constant 0 : index
    %c512 = arith.constant 512 : index
    %12 = vector.load %arg3[%c0_12, %c512] : memref<128x1024xbf16, #tpu.memory_space<vmem>>, vector<128x512xbf16>
    %cst_13 = arith.constant dense<0.000000e+00> : vector<8x512xf32>
    %13 = tpu.matmul %0, %12, %cst_13 {dimension_numbers = #tpu.dot_dimension_numbers<[1], [0], [0], [1], [0, 0, 1, 1], [], []>} : vector<8x128xbf16>, vector<128x512xbf16>, vector<8x512xf32> -> vector<8x512xf32>
    %c0_14 = arith.constant 0 : index
    %c512_15 = arith.constant 512 : index
    %14 = vector.load %arg4[%c0_14, %c512_15] : memref<128x1024xbf16, #tpu.memory_space<vmem>>, vector<128x512xbf16>
    %cst_16 = arith.constant dense<0.000000e+00> : vector<8x512xf32>
    %15 = tpu.matmul %1, %14, %cst_16 {dimension_numbers = #tpu.dot_dimension_numbers<[1], [0], [0], [1], [0, 0, 1, 1], [], []>} : vector<8x128xbf16>, vector<128x512xbf16>, vector<8x512xf32> -> vector<8x512xf32>
    %16 = arith.addf %13, %15 : vector<8x512xf32>
    %c0_17 = arith.constant 0 : index
    %c512_18 = arith.constant 512 : index
    %17 = vector.load %arg5[%c0_17, %c512_18] : memref<1x1024xf32, #tpu.memory_space<vmem>>, vector<1x512xf32>
    %18 = vector.broadcast %17 : vector<1x512xf32> to vector<8x512xf32>
    %19 = arith.addf %16, %18 : vector<8x512xf32>
    %20 = arith.truncf %19 : vector<8x512xf32> to vector<8x512xbf16>
    %c0_19 = arith.constant 0 : index
    %c0_20 = arith.constant 0 : index
    %21 = vector.load %arg7[%c0_19, %c0_20] : memref<8x512xbf16, #tpu.memory_space<vmem>>, vector<8x512xbf16>
    tpu.vector_store %arg7[%c0_19, %c0_20], %20 {strides = array<i32>} : memref<8x512xbf16, #tpu.memory_space<vmem>>, vector<8x512xbf16>,
    return
  }
  func.func @transform_0(%arg0: i32) -> (i32, i32) {
    %c0_i32 = arith.constant 0 : i32
    %c0_i32_0 = arith.constant 0 : i32
    return %arg0, %c0_i32 : i32, i32
  }
  func.func @transform_1(%arg0: i32) -> (i32, i32) {
    %c0_i32 = arith.constant 0 : i32
    %c0_i32_0 = arith.constant 0 : i32
    return %arg0, %c0_i32 : i32, i32
  }
  func.func @transform_2(%arg0: i32) -> (i32, i32) {
    %c0_i32 = arith.constant 0 : i32
    %c0_i32_0 = arith.constant 0 : i32
    %c0_i32_1 = arith.constant 0 : i32
    return %c0_i32, %c0_i32_0 : i32, i32
  }
  func.func @transform_3(%arg0: i32) -> (i32, i32) {
    %c0_i32 = arith.constant 0 : i32
    %c0_i32_0 = arith.constant 0 : i32
    %c0_i32_1 = arith.constant 0 : i32
    return %c0_i32, %c0_i32_0 : i32, i32
  }
  func.func @transform_4(%arg0: i32) -> (i32, i32) {
    %c0_i32 = arith.constant 0 : i32
    %c0_i32_0 = arith.constant 0 : i32
    %c0_i32_1 = arith.constant 0 : i32
    return %c0_i32, %c0_i32_0 : i32, i32
  }
  func.func @transform_5(%arg0: i32) -> (i32, i32) {
    %c0_i32 = arith.constant 0 : i32
    %c0_i32_0 = arith.constant 0 : i32
    return %arg0, %c0_i32 : i32, i32
  }
  func.func @transform_6(%arg0: i32) -> (i32, i32) {
    %c0_i32 = arith.constant 0 : i32
    %c0_i32_0 = arith.constant 0 : i32
    return %arg0, %c0_i32 : i32, i32
  }
}

module attributes {stable_mosaic.version = 11 : i64} {
  func.func @_recurrence_kernel(%arg0: i32, %arg1: memref<4x2x512xbf16, #tpu.memory_space<vmem>>, %arg2: memref<4x2x512xbf16, #tpu.memory_space<vmem>>, %arg3: memref<128x512xbf16, #tpu.memory_space<vmem>>, %arg4: memref<128x512xbf16, #tpu.memory_space<vmem>>, %arg5: memref<4x2x128xbf16, #tpu.memory_space<vmem>>, %arg6: memref<4x2x128xbf16, #tpu.memory_space<vmem>>, %arg7: memref<2x128xf32, #tpu.memory_space<vmem>>, %arg8: memref<2x128xf32, #tpu.memory_space<vmem>>, %arg9: memref<2x128xf32, #tpu.memory_space<vmem>>, %arg10: memref<2x128xf32, #tpu.memory_space<vmem>>) attributes {dimension_semantics = [#tpu.dimension_semantics<arbitrary>], iteration_bounds = array<i64: 2>, scalar_prefetch = 0 : i64, scratch_operands = 4 : i64, tpu.core_type = #tpu.core_type<tc>, window_params = [{transform_indices = @transform_0, window_bounds = array<i64: 4, 2, 512>}, {transform_indices = @transform_1, window_bounds = array<i64: 4, 2, 512>}, {pipeline_mode = #tpu.pipeline_mode<synchronous>, transform_indices = @transform_2, window_bounds = array<i64: 128, 512>}, {pipeline_mode = #tpu.pipeline_mode<synchronous>, transform_indices = @transform_3, window_bounds = array<i64: 128, 512>}, {transform_indices = @transform_4, window_bounds = array<i64: 4, 2, 128>}, {transform_indices = @transform_5, window_bounds = array<i64: 4, 2, 128>}]} {
    %c0_i32 = arith.constant 0 : i32
    %0 = arith.cmpi eq, %arg0, %c0_i32 : i32
    %1 = arith.extui %0 : i1 to i32
    %c0_i32_0 = arith.constant 0 : i32
    %2 = arith.cmpi ne, %1, %c0_i32_0 : i32
    scf.if %2 {
      %cst_84 = arith.constant 0.000000e+00 : f32
      %247 = vector.broadcast %cst_84 : f32 to vector<2x128xf32>
      %c0_85 = arith.constant 0 : index
      %c0_86 = arith.constant 0 : index
      %248 = vector.load %arg7[%c0_85, %c0_86] : memref<2x128xf32, #tpu.memory_space<vmem>>, vector<2x128xf32>
      tpu.vector_store %arg7[%c0_85, %c0_86], %247 {strides = array<i32>} : memref<2x128xf32, #tpu.memory_space<vmem>>, vector<2x128xf32>,
      %cst_87 = arith.constant 0.000000e+00 : f32
      %249 = vector.broadcast %cst_87 : f32 to vector<2x128xf32>
      %c0_88 = arith.constant 0 : index
      %c0_89 = arith.constant 0 : index
      %250 = vector.load %arg8[%c0_88, %c0_89] : memref<2x128xf32, #tpu.memory_space<vmem>>, vector<2x128xf32>
      tpu.vector_store %arg8[%c0_88, %c0_89], %249 {strides = array<i32>} : memref<2x128xf32, #tpu.memory_space<vmem>>, vector<2x128xf32>,
      %cst_90 = arith.constant 0.000000e+00 : f32
      %251 = vector.broadcast %cst_90 : f32 to vector<2x128xf32>
      %c0_91 = arith.constant 0 : index
      %c0_92 = arith.constant 0 : index
      %252 = vector.load %arg9[%c0_91, %c0_92] : memref<2x128xf32, #tpu.memory_space<vmem>>, vector<2x128xf32>
      tpu.vector_store %arg9[%c0_91, %c0_92], %251 {strides = array<i32>} : memref<2x128xf32, #tpu.memory_space<vmem>>, vector<2x128xf32>,
      %cst_93 = arith.constant 0.000000e+00 : f32
      %253 = vector.broadcast %cst_93 : f32 to vector<2x128xf32>
      %c0_94 = arith.constant 0 : index
      %c0_95 = arith.constant 0 : index
      %254 = vector.load %arg10[%c0_94, %c0_95] : memref<2x128xf32, #tpu.memory_space<vmem>>, vector<2x128xf32>
      tpu.vector_store %arg10[%c0_94, %c0_95], %253 {strides = array<i32>} : memref<2x128xf32, #tpu.memory_space<vmem>>, vector<2x128xf32>,
    } else {
    }
    %c0 = arith.constant 0 : index
    %c0_1 = arith.constant 0 : index
    %3 = vector.load %arg7[%c0, %c0_1] : memref<2x128xf32, #tpu.memory_space<vmem>>, vector<2x128xf32>
    %c0_2 = arith.constant 0 : index
    %c0_3 = arith.constant 0 : index
    %4 = vector.load %arg8[%c0_2, %c0_3] : memref<2x128xf32, #tpu.memory_space<vmem>>, vector<2x128xf32>
    %c0_4 = arith.constant 0 : index
    %c0_5 = arith.constant 0 : index
    %5 = vector.load %arg9[%c0_4, %c0_5] : memref<2x128xf32, #tpu.memory_space<vmem>>, vector<2x128xf32>
    %c0_6 = arith.constant 0 : index
    %c0_7 = arith.constant 0 : index
    %6 = vector.load %arg10[%c0_6, %c0_7] : memref<2x128xf32, #tpu.memory_space<vmem>>, vector<2x128xf32>
    %c0_i32_8 = arith.constant 0 : i32
    %c3_i32 = arith.constant 3 : i32
    %7 = arith.subi %c3_i32, %c0_i32_8 : i32
    %8 = arith.truncf %3 : vector<2x128xf32> to vector<2x128xbf16>
    %c0_9 = arith.constant 0 : index
    %c0_10 = arith.constant 0 : index
    %9 = vector.load %arg3[%c0_9, %c0_10] : memref<128x512xbf16, #tpu.memory_space<vmem>>, vector<128x512xbf16>
    %cst = arith.constant dense<0.000000e+00> : vector<2x512xf32>
    %10 = tpu.matmul %8, %9, %cst {dimension_numbers = #tpu.dot_dimension_numbers<[1], [0], [0], [1], [0, 0, 1, 1], [], []>} : vector<2x128xbf16>, vector<128x512xbf16>, vector<2x512xf32> -> vector<2x512xf32>
    %11 = arith.index_cast %c0_i32_8 : i32 to index
    %c0_11 = arith.constant 0 : index
    %c0_12 = arith.constant 0 : index
    %12 = vector.load %arg1[%11, %c0_11, %c0_12] : memref<4x2x512xbf16, #tpu.memory_space<vmem>>, vector<1x2x512xbf16>
    %13 = vector.shape_cast %12 : vector<1x2x512xbf16> to vector<2x512xbf16>
    %14 = arith.extf %13 : vector<2x512xbf16> to vector<2x512xf32>
    %15 = arith.addf %10, %14 : vector<2x512xf32>
    %16 = arith.truncf %5 : vector<2x128xf32> to vector<2x128xbf16>
    %c0_13 = arith.constant 0 : index
    %c0_14 = arith.constant 0 : index
    %17 = vector.load %arg4[%c0_13, %c0_14] : memref<128x512xbf16, #tpu.memory_space<vmem>>, vector<128x512xbf16>
    %cst_15 = arith.constant dense<0.000000e+00> : vector<2x512xf32>
    %18 = tpu.matmul %16, %17, %cst_15 {dimension_numbers = #tpu.dot_dimension_numbers<[1], [0], [0], [1], [0, 0, 1, 1], [], []>} : vector<2x128xbf16>, vector<128x512xbf16>, vector<2x512xf32> -> vector<2x512xf32>
    %19 = arith.index_cast %7 : i32 to index
    %c0_16 = arith.constant 0 : index
    %c0_17 = arith.constant 0 : index
    %20 = vector.load %arg2[%19, %c0_16, %c0_17] : memref<4x2x512xbf16, #tpu.memory_space<vmem>>, vector<1x2x512xbf16>
    %21 = vector.shape_cast %20 : vector<1x2x512xbf16> to vector<2x512xbf16>
    %22 = arith.extf %21 : vector<2x512xbf16> to vector<2x512xf32>
    %23 = arith.addf %18, %22 : vector<2x512xf32>
    %24 = vector.extract_strided_slice %15 {offsets = [0, 0], sizes = [2, 384], strides = [1, 1]} : vector<2x512xf32> to vector<2x384xf32>
    %25 = arith.negf %24 : vector<2x384xf32>
    %26 = math.exp %25 : vector<2x384xf32>
    %cst_18 = arith.constant 1.000000e+00 : f32
    %27 = vector.broadcast %cst_18 : f32 to vector<2x384xf32>
    %28 = arith.addf %27, %26 : vector<2x384xf32>
    %29 = arith.divf %27, %28 : vector<2x384xf32>
    %30 = vector.extract_strided_slice %15 {offsets = [0, 384], sizes = [2, 128], strides = [1, 1]} : vector<2x512xf32> to vector<2x128xf32>
    %31 = math.tanh %30 : vector<2x128xf32>
    %32 = vector.extract_strided_slice %29 {offsets = [0, 0], sizes = [2, 128], strides = [1, 1]} : vector<2x384xf32> to vector<2x128xf32>
    %33 = vector.extract_strided_slice %29 {offsets = [0, 128], sizes = [2, 128], strides = [1, 1]} : vector<2x384xf32> to vector<2x128xf32>
    %34 = vector.extract_strided_slice %29 {offsets = [0, 256], sizes = [2, 128], strides = [1, 1]} : vector<2x384xf32> to vector<2x128xf32>
    %35 = arith.mulf %33, %4 : vector<2x128xf32>
    %36 = arith.mulf %32, %31 : vector<2x128xf32>
    %37 = arith.addf %35, %36 : vector<2x128xf32>
    %38 = math.tanh %37 : vector<2x128xf32>
    %39 = arith.mulf %34, %38 : vector<2x128xf32>
    %40 = vector.extract_strided_slice %23 {offsets = [0, 0], sizes = [2, 384], strides = [1, 1]} : vector<2x512xf32> to vector<2x384xf32>
    %41 = arith.negf %40 : vector<2x384xf32>
    %42 = math.exp %41 : vector<2x384xf32>
    %cst_19 = arith.constant 1.000000e+00 : f32
    %43 = vector.broadcast %cst_19 : f32 to vector<2x384xf32>
    %44 = arith.addf %43, %42 : vector<2x384xf32>
    %45 = arith.divf %43, %44 : vector<2x384xf32>
    %46 = vector.extract_strided_slice %23 {offsets = [0, 384], sizes = [2, 128], strides = [1, 1]} : vector<2x512xf32> to vector<2x128xf32>
    %47 = math.tanh %46 : vector<2x128xf32>
    %48 = vector.extract_strided_slice %45 {offsets = [0, 0], sizes = [2, 128], strides = [1, 1]} : vector<2x384xf32> to vector<2x128xf32>
    %49 = vector.extract_strided_slice %45 {offsets = [0, 128], sizes = [2, 128], strides = [1, 1]} : vector<2x384xf32> to vector<2x128xf32>
    %50 = vector.extract_strided_slice %45 {offsets = [0, 256], sizes = [2, 128], strides = [1, 1]} : vector<2x384xf32> to vector<2x128xf32>
    %51 = arith.mulf %49, %6 : vector<2x128xf32>
    %52 = arith.mulf %48, %47 : vector<2x128xf32>
    %53 = arith.addf %51, %52 : vector<2x128xf32>
    %54 = math.tanh %53 : vector<2x128xf32>
    %55 = arith.mulf %50, %54 : vector<2x128xf32>
    %56 = arith.truncf %39 : vector<2x128xf32> to vector<2x128xbf16>
    %57 = arith.index_cast %c0_i32_8 : i32 to index
    %c0_20 = arith.constant 0 : index
    %c0_21 = arith.constant 0 : index
    %58 = vector.load %arg5[%57, %c0_20, %c0_21] : memref<4x2x128xbf16, #tpu.memory_space<vmem>>, vector<1x2x128xbf16>
    %59 = vector.shape_cast %58 : vector<1x2x128xbf16> to vector<2x128xbf16>
    %60 = vector.shape_cast %56 : vector<2x128xbf16> to vector<1x2x128xbf16>
    tpu.vector_store %arg5[%57, %c0_20, %c0_21], %60 {strides = array<i32>} : memref<4x2x128xbf16, #tpu.memory_space<vmem>>, vector<1x2x128xbf16>,
    %61 = arith.truncf %55 : vector<2x128xf32> to vector<2x128xbf16>
    %62 = arith.index_cast %7 : i32 to index
    %c0_22 = arith.constant 0 : index
    %c0_23 = arith.constant 0 : index
    %63 = vector.load %arg6[%62, %c0_22, %c0_23] : memref<4x2x128xbf16, #tpu.memory_space<vmem>>, vector<1x2x128xbf16>
    %64 = vector.shape_cast %63 : vector<1x2x128xbf16> to vector<2x128xbf16>
    %65 = vector.shape_cast %61 : vector<2x128xbf16> to vector<1x2x128xbf16>
    tpu.vector_store %arg6[%62, %c0_22, %c0_23], %65 {strides = array<i32>} : memref<4x2x128xbf16, #tpu.memory_space<vmem>>, vector<1x2x128xbf16>,
    %c1_i32 = arith.constant 1 : i32
    %c3_i32_24 = arith.constant 3 : i32
    %66 = arith.subi %c3_i32_24, %c1_i32 : i32
    %67 = arith.truncf %39 : vector<2x128xf32> to vector<2x128xbf16>
    %c0_25 = arith.constant 0 : index
    %c0_26 = arith.constant 0 : index
    %68 = vector.load %arg3[%c0_25, %c0_26] : memref<128x512xbf16, #tpu.memory_space<vmem>>, vector<128x512xbf16>
    %cst_27 = arith.constant dense<0.000000e+00> : vector<2x512xf32>
    %69 = tpu.matmul %67, %68, %cst_27 {dimension_numbers = #tpu.dot_dimension_numbers<[1], [0], [0], [1], [0, 0, 1, 1], [], []>} : vector<2x128xbf16>, vector<128x512xbf16>, vector<2x512xf32> -> vector<2x512xf32>
    %70 = arith.index_cast %c1_i32 : i32 to index
    %c0_28 = arith.constant 0 : index
    %c0_29 = arith.constant 0 : index
    %71 = vector.load %arg1[%70, %c0_28, %c0_29] : memref<4x2x512xbf16, #tpu.memory_space<vmem>>, vector<1x2x512xbf16>
    %72 = vector.shape_cast %71 : vector<1x2x512xbf16> to vector<2x512xbf16>
    %73 = arith.extf %72 : vector<2x512xbf16> to vector<2x512xf32>
    %74 = arith.addf %69, %73 : vector<2x512xf32>
    %75 = arith.truncf %55 : vector<2x128xf32> to vector<2x128xbf16>
    %c0_30 = arith.constant 0 : index
    %c0_31 = arith.constant 0 : index
    %76 = vector.load %arg4[%c0_30, %c0_31] : memref<128x512xbf16, #tpu.memory_space<vmem>>, vector<128x512xbf16>
    %cst_32 = arith.constant dense<0.000000e+00> : vector<2x512xf32>
    %77 = tpu.matmul %75, %76, %cst_32 {dimension_numbers = #tpu.dot_dimension_numbers<[1], [0], [0], [1], [0, 0, 1, 1], [], []>} : vector<2x128xbf16>, vector<128x512xbf16>, vector<2x512xf32> -> vector<2x512xf32>
    %78 = arith.index_cast %66 : i32 to index
    %c0_33 = arith.constant 0 : index
    %c0_34 = arith.constant 0 : index
    %79 = vector.load %arg2[%78, %c0_33, %c0_34] : memref<4x2x512xbf16, #tpu.memory_space<vmem>>, vector<1x2x512xbf16>
    %80 = vector.shape_cast %79 : vector<1x2x512xbf16> to vector<2x512xbf16>
    %81 = arith.extf %80 : vector<2x512xbf16> to vector<2x512xf32>
    %82 = arith.addf %77, %81 : vector<2x512xf32>
    %83 = vector.extract_strided_slice %74 {offsets = [0, 0], sizes = [2, 384], strides = [1, 1]} : vector<2x512xf32> to vector<2x384xf32>
    %84 = arith.negf %83 : vector<2x384xf32>
    %85 = math.exp %84 : vector<2x384xf32>
    %cst_35 = arith.constant 1.000000e+00 : f32
    %86 = vector.broadcast %cst_35 : f32 to vector<2x384xf32>
    %87 = arith.addf %86, %85 : vector<2x384xf32>
    %88 = arith.divf %86, %87 : vector<2x384xf32>
    %89 = vector.extract_strided_slice %74 {offsets = [0, 384], sizes = [2, 128], strides = [1, 1]} : vector<2x512xf32> to vector<2x128xf32>
    %90 = math.tanh %89 : vector<2x128xf32>
    %91 = vector.extract_strided_slice %88 {offsets = [0, 0], sizes = [2, 128], strides = [1, 1]} : vector<2x384xf32> to vector<2x128xf32>
    %92 = vector.extract_strided_slice %88 {offsets = [0, 128], sizes = [2, 128], strides = [1, 1]} : vector<2x384xf32> to vector<2x128xf32>
    %93 = vector.extract_strided_slice %88 {offsets = [0, 256], sizes = [2, 128], strides = [1, 1]} : vector<2x384xf32> to vector<2x128xf32>
    %94 = arith.mulf %92, %37 : vector<2x128xf32>
    %95 = arith.mulf %91, %90 : vector<2x128xf32>
    %96 = arith.addf %94, %95 : vector<2x128xf32>
    %97 = math.tanh %96 : vector<2x128xf32>
    %98 = arith.mulf %93, %97 : vector<2x128xf32>
    %99 = vector.extract_strided_slice %82 {offsets = [0, 0], sizes = [2, 384], strides = [1, 1]} : vector<2x512xf32> to vector<2x384xf32>
    %100 = arith.negf %99 : vector<2x384xf32>
    %101 = math.exp %100 : vector<2x384xf32>
    %cst_36 = arith.constant 1.000000e+00 : f32
    %102 = vector.broadcast %cst_36 : f32 to vector<2x384xf32>
    %103 = arith.addf %102, %101 : vector<2x384xf32>
    %104 = arith.divf %102, %103 : vector<2x384xf32>
    %105 = vector.extract_strided_slice %82 {offsets = [0, 384], sizes = [2, 128], strides = [1, 1]} : vector<2x512xf32> to vector<2x128xf32>
    %106 = math.tanh %105 : vector<2x128xf32>
    %107 = vector.extract_strided_slice %104 {offsets = [0, 0], sizes = [2, 128], strides = [1, 1]} : vector<2x384xf32> to vector<2x128xf32>
    %108 = vector.extract_strided_slice %104 {offsets = [0, 128], sizes = [2, 128], strides = [1, 1]} : vector<2x384xf32> to vector<2x128xf32>
    %109 = vector.extract_strided_slice %104 {offsets = [0, 256], sizes = [2, 128], strides = [1, 1]} : vector<2x384xf32> to vector<2x128xf32>
    %110 = arith.mulf %108, %53 : vector<2x128xf32>
    %111 = arith.mulf %107, %106 : vector<2x128xf32>
    %112 = arith.addf %110, %111 : vector<2x128xf32>
    %113 = math.tanh %112 : vector<2x128xf32>
    %114 = arith.mulf %109, %113 : vector<2x128xf32>
    %115 = arith.truncf %98 : vector<2x128xf32> to vector<2x128xbf16>
    %116 = arith.index_cast %c1_i32 : i32 to index
    %c0_37 = arith.constant 0 : index
    %c0_38 = arith.constant 0 : index
    %117 = vector.load %arg5[%116, %c0_37, %c0_38] : memref<4x2x128xbf16, #tpu.memory_space<vmem>>, vector<1x2x128xbf16>
    %118 = vector.shape_cast %117 : vector<1x2x128xbf16> to vector<2x128xbf16>
    %119 = vector.shape_cast %115 : vector<2x128xbf16> to vector<1x2x128xbf16>
    tpu.vector_store %arg5[%116, %c0_37, %c0_38], %119 {strides = array<i32>} : memref<4x2x128xbf16, #tpu.memory_space<vmem>>, vector<1x2x128xbf16>,
    %120 = arith.truncf %114 : vector<2x128xf32> to vector<2x128xbf16>
    %121 = arith.index_cast %66 : i32 to index
    %c0_39 = arith.constant 0 : index
    %c0_40 = arith.constant 0 : index
    %122 = vector.load %arg6[%121, %c0_39, %c0_40] : memref<4x2x128xbf16, #tpu.memory_space<vmem>>, vector<1x2x128xbf16>
    %123 = vector.shape_cast %122 : vector<1x2x128xbf16> to vector<2x128xbf16>
    %124 = vector.shape_cast %120 : vector<2x128xbf16> to vector<1x2x128xbf16>
    tpu.vector_store %arg6[%121, %c0_39, %c0_40], %124 {strides = array<i32>} : memref<4x2x128xbf16, #tpu.memory_space<vmem>>, vector<1x2x128xbf16>,
    %c2_i32 = arith.constant 2 : i32
    %c3_i32_41 = arith.constant 3 : i32
    %125 = arith.subi %c3_i32_41, %c2_i32 : i32
    %126 = arith.truncf %98 : vector<2x128xf32> to vector<2x128xbf16>
    %c0_42 = arith.constant 0 : index
    %c0_43 = arith.constant 0 : index
    %127 = vector.load %arg3[%c0_42, %c0_43] : memref<128x512xbf16, #tpu.memory_space<vmem>>, vector<128x512xbf16>
    %cst_44 = arith.constant dense<0.000000e+00> : vector<2x512xf32>
    %128 = tpu.matmul %126, %127, %cst_44 {dimension_numbers = #tpu.dot_dimension_numbers<[1], [0], [0], [1], [0, 0, 1, 1], [], []>} : vector<2x128xbf16>, vector<128x512xbf16>, vector<2x512xf32> -> vector<2x512xf32>
    %129 = arith.index_cast %c2_i32 : i32 to index
    %c0_45 = arith.constant 0 : index
    %c0_46 = arith.constant 0 : index
    %130 = vector.load %arg1[%129, %c0_45, %c0_46] : memref<4x2x512xbf16, #tpu.memory_space<vmem>>, vector<1x2x512xbf16>
    %131 = vector.shape_cast %130 : vector<1x2x512xbf16> to vector<2x512xbf16>
    %132 = arith.extf %131 : vector<2x512xbf16> to vector<2x512xf32>
    %133 = arith.addf %128, %132 : vector<2x512xf32>
    %134 = arith.truncf %114 : vector<2x128xf32> to vector<2x128xbf16>
    %c0_47 = arith.constant 0 : index
    %c0_48 = arith.constant 0 : index
    %135 = vector.load %arg4[%c0_47, %c0_48] : memref<128x512xbf16, #tpu.memory_space<vmem>>, vector<128x512xbf16>
    %cst_49 = arith.constant dense<0.000000e+00> : vector<2x512xf32>
    %136 = tpu.matmul %134, %135, %cst_49 {dimension_numbers = #tpu.dot_dimension_numbers<[1], [0], [0], [1], [0, 0, 1, 1], [], []>} : vector<2x128xbf16>, vector<128x512xbf16>, vector<2x512xf32> -> vector<2x512xf32>
    %137 = arith.index_cast %125 : i32 to index
    %c0_50 = arith.constant 0 : index
    %c0_51 = arith.constant 0 : index
    %138 = vector.load %arg2[%137, %c0_50, %c0_51] : memref<4x2x512xbf16, #tpu.memory_space<vmem>>, vector<1x2x512xbf16>
    %139 = vector.shape_cast %138 : vector<1x2x512xbf16> to vector<2x512xbf16>
    %140 = arith.extf %139 : vector<2x512xbf16> to vector<2x512xf32>
    %141 = arith.addf %136, %140 : vector<2x512xf32>
    %142 = vector.extract_strided_slice %133 {offsets = [0, 0], sizes = [2, 384], strides = [1, 1]} : vector<2x512xf32> to vector<2x384xf32>
    %143 = arith.negf %142 : vector<2x384xf32>
    %144 = math.exp %143 : vector<2x384xf32>
    %cst_52 = arith.constant 1.000000e+00 : f32
    %145 = vector.broadcast %cst_52 : f32 to vector<2x384xf32>
    %146 = arith.addf %145, %144 : vector<2x384xf32>
    %147 = arith.divf %145, %146 : vector<2x384xf32>
    %148 = vector.extract_strided_slice %133 {offsets = [0, 384], sizes = [2, 128], strides = [1, 1]} : vector<2x512xf32> to vector<2x128xf32>
    %149 = math.tanh %148 : vector<2x128xf32>
    %150 = vector.extract_strided_slice %147 {offsets = [0, 0], sizes = [2, 128], strides = [1, 1]} : vector<2x384xf32> to vector<2x128xf32>
    %151 = vector.extract_strided_slice %147 {offsets = [0, 128], sizes = [2, 128], strides = [1, 1]} : vector<2x384xf32> to vector<2x128xf32>
    %152 = vector.extract_strided_slice %147 {offsets = [0, 256], sizes = [2, 128], strides = [1, 1]} : vector<2x384xf32> to vector<2x128xf32>
    %153 = arith.mulf %151, %96 : vector<2x128xf32>
    %154 = arith.mulf %150, %149 : vector<2x128xf32>
    %155 = arith.addf %153, %154 : vector<2x128xf32>
    %156 = math.tanh %155 : vector<2x128xf32>
    %157 = arith.mulf %152, %156 : vector<2x128xf32>
    %158 = vector.extract_strided_slice %141 {offsets = [0, 0], sizes = [2, 384], strides = [1, 1]} : vector<2x512xf32> to vector<2x384xf32>
    %159 = arith.negf %158 : vector<2x384xf32>
    %160 = math.exp %159 : vector<2x384xf32>
    %cst_53 = arith.constant 1.000000e+00 : f32
    %161 = vector.broadcast %cst_53 : f32 to vector<2x384xf32>
    %162 = arith.addf %161, %160 : vector<2x384xf32>
    %163 = arith.divf %161, %162 : vector<2x384xf32>
    %164 = vector.extract_strided_slice %141 {offsets = [0, 384], sizes = [2, 128], strides = [1, 1]} : vector<2x512xf32> to vector<2x128xf32>
    %165 = math.tanh %164 : vector<2x128xf32>
    %166 = vector.extract_strided_slice %163 {offsets = [0, 0], sizes = [2, 128], strides = [1, 1]} : vector<2x384xf32> to vector<2x128xf32>
    %167 = vector.extract_strided_slice %163 {offsets = [0, 128], sizes = [2, 128], strides = [1, 1]} : vector<2x384xf32> to vector<2x128xf32>
    %168 = vector.extract_strided_slice %163 {offsets = [0, 256], sizes = [2, 128], strides = [1, 1]} : vector<2x384xf32> to vector<2x128xf32>
    %169 = arith.mulf %167, %112 : vector<2x128xf32>
    %170 = arith.mulf %166, %165 : vector<2x128xf32>
    %171 = arith.addf %169, %170 : vector<2x128xf32>
    %172 = math.tanh %171 : vector<2x128xf32>
    %173 = arith.mulf %168, %172 : vector<2x128xf32>
    %174 = arith.truncf %157 : vector<2x128xf32> to vector<2x128xbf16>
    %175 = arith.index_cast %c2_i32 : i32 to index
    %c0_54 = arith.constant 0 : index
    %c0_55 = arith.constant 0 : index
    %176 = vector.load %arg5[%175, %c0_54, %c0_55] : memref<4x2x128xbf16, #tpu.memory_space<vmem>>, vector<1x2x128xbf16>
    %177 = vector.shape_cast %176 : vector<1x2x128xbf16> to vector<2x128xbf16>
    %178 = vector.shape_cast %174 : vector<2x128xbf16> to vector<1x2x128xbf16>
    tpu.vector_store %arg5[%175, %c0_54, %c0_55], %178 {strides = array<i32>} : memref<4x2x128xbf16, #tpu.memory_space<vmem>>, vector<1x2x128xbf16>,
    %179 = arith.truncf %173 : vector<2x128xf32> to vector<2x128xbf16>
    %180 = arith.index_cast %125 : i32 to index
    %c0_56 = arith.constant 0 : index
    %c0_57 = arith.constant 0 : index
    %181 = vector.load %arg6[%180, %c0_56, %c0_57] : memref<4x2x128xbf16, #tpu.memory_space<vmem>>, vector<1x2x128xbf16>
    %182 = vector.shape_cast %181 : vector<1x2x128xbf16> to vector<2x128xbf16>
    %183 = vector.shape_cast %179 : vector<2x128xbf16> to vector<1x2x128xbf16>
    tpu.vector_store %arg6[%180, %c0_56, %c0_57], %183 {strides = array<i32>} : memref<4x2x128xbf16, #tpu.memory_space<vmem>>, vector<1x2x128xbf16>,
    %c3_i32_58 = arith.constant 3 : i32
    %c3_i32_59 = arith.constant 3 : i32
    %184 = arith.subi %c3_i32_59, %c3_i32_58 : i32
    %185 = arith.truncf %157 : vector<2x128xf32> to vector<2x128xbf16>
    %c0_60 = arith.constant 0 : index
    %c0_61 = arith.constant 0 : index
    %186 = vector.load %arg3[%c0_60, %c0_61] : memref<128x512xbf16, #tpu.memory_space<vmem>>, vector<128x512xbf16>
    %cst_62 = arith.constant dense<0.000000e+00> : vector<2x512xf32>
    %187 = tpu.matmul %185, %186, %cst_62 {dimension_numbers = #tpu.dot_dimension_numbers<[1], [0], [0], [1], [0, 0, 1, 1], [], []>} : vector<2x128xbf16>, vector<128x512xbf16>, vector<2x512xf32> -> vector<2x512xf32>
    %188 = arith.index_cast %c3_i32_58 : i32 to index
    %c0_63 = arith.constant 0 : index
    %c0_64 = arith.constant 0 : index
    %189 = vector.load %arg1[%188, %c0_63, %c0_64] : memref<4x2x512xbf16, #tpu.memory_space<vmem>>, vector<1x2x512xbf16>
    %190 = vector.shape_cast %189 : vector<1x2x512xbf16> to vector<2x512xbf16>
    %191 = arith.extf %190 : vector<2x512xbf16> to vector<2x512xf32>
    %192 = arith.addf %187, %191 : vector<2x512xf32>
    %193 = arith.truncf %173 : vector<2x128xf32> to vector<2x128xbf16>
    %c0_65 = arith.constant 0 : index
    %c0_66 = arith.constant 0 : index
    %194 = vector.load %arg4[%c0_65, %c0_66] : memref<128x512xbf16, #tpu.memory_space<vmem>>, vector<128x512xbf16>
    %cst_67 = arith.constant dense<0.000000e+00> : vector<2x512xf32>
    %195 = tpu.matmul %193, %194, %cst_67 {dimension_numbers = #tpu.dot_dimension_numbers<[1], [0], [0], [1], [0, 0, 1, 1], [], []>} : vector<2x128xbf16>, vector<128x512xbf16>, vector<2x512xf32> -> vector<2x512xf32>
    %196 = arith.index_cast %184 : i32 to index
    %c0_68 = arith.constant 0 : index
    %c0_69 = arith.constant 0 : index
    %197 = vector.load %arg2[%196, %c0_68, %c0_69] : memref<4x2x512xbf16, #tpu.memory_space<vmem>>, vector<1x2x512xbf16>
    %198 = vector.shape_cast %197 : vector<1x2x512xbf16> to vector<2x512xbf16>
    %199 = arith.extf %198 : vector<2x512xbf16> to vector<2x512xf32>
    %200 = arith.addf %195, %199 : vector<2x512xf32>
    %201 = vector.extract_strided_slice %192 {offsets = [0, 0], sizes = [2, 384], strides = [1, 1]} : vector<2x512xf32> to vector<2x384xf32>
    %202 = arith.negf %201 : vector<2x384xf32>
    %203 = math.exp %202 : vector<2x384xf32>
    %cst_70 = arith.constant 1.000000e+00 : f32
    %204 = vector.broadcast %cst_70 : f32 to vector<2x384xf32>
    %205 = arith.addf %204, %203 : vector<2x384xf32>
    %206 = arith.divf %204, %205 : vector<2x384xf32>
    %207 = vector.extract_strided_slice %192 {offsets = [0, 384], sizes = [2, 128], strides = [1, 1]} : vector<2x512xf32> to vector<2x128xf32>
    %208 = math.tanh %207 : vector<2x128xf32>
    %209 = vector.extract_strided_slice %206 {offsets = [0, 0], sizes = [2, 128], strides = [1, 1]} : vector<2x384xf32> to vector<2x128xf32>
    %210 = vector.extract_strided_slice %206 {offsets = [0, 128], sizes = [2, 128], strides = [1, 1]} : vector<2x384xf32> to vector<2x128xf32>
    %211 = vector.extract_strided_slice %206 {offsets = [0, 256], sizes = [2, 128], strides = [1, 1]} : vector<2x384xf32> to vector<2x128xf32>
    %212 = arith.mulf %210, %155 : vector<2x128xf32>
    %213 = arith.mulf %209, %208 : vector<2x128xf32>
    %214 = arith.addf %212, %213 : vector<2x128xf32>
    %215 = math.tanh %214 : vector<2x128xf32>
    %216 = arith.mulf %211, %215 : vector<2x128xf32>
    %217 = vector.extract_strided_slice %200 {offsets = [0, 0], sizes = [2, 384], strides = [1, 1]} : vector<2x512xf32> to vector<2x384xf32>
    %218 = arith.negf %217 : vector<2x384xf32>
    %219 = math.exp %218 : vector<2x384xf32>
    %cst_71 = arith.constant 1.000000e+00 : f32
    %220 = vector.broadcast %cst_71 : f32 to vector<2x384xf32>
    %221 = arith.addf %220, %219 : vector<2x384xf32>
    %222 = arith.divf %220, %221 : vector<2x384xf32>
    %223 = vector.extract_strided_slice %200 {offsets = [0, 384], sizes = [2, 128], strides = [1, 1]} : vector<2x512xf32> to vector<2x128xf32>
    %224 = math.tanh %223 : vector<2x128xf32>
    %225 = vector.extract_strided_slice %222 {offsets = [0, 0], sizes = [2, 128], strides = [1, 1]} : vector<2x384xf32> to vector<2x128xf32>
    %226 = vector.extract_strided_slice %222 {offsets = [0, 128], sizes = [2, 128], strides = [1, 1]} : vector<2x384xf32> to vector<2x128xf32>
    %227 = vector.extract_strided_slice %222 {offsets = [0, 256], sizes = [2, 128], strides = [1, 1]} : vector<2x384xf32> to vector<2x128xf32>
    %228 = arith.mulf %226, %171 : vector<2x128xf32>
    %229 = arith.mulf %225, %224 : vector<2x128xf32>
    %230 = arith.addf %228, %229 : vector<2x128xf32>
    %231 = math.tanh %230 : vector<2x128xf32>
    %232 = arith.mulf %227, %231 : vector<2x128xf32>
    %233 = arith.truncf %216 : vector<2x128xf32> to vector<2x128xbf16>
    %234 = arith.index_cast %c3_i32_58 : i32 to index
    %c0_72 = arith.constant 0 : index
    %c0_73 = arith.constant 0 : index
    %235 = vector.load %arg5[%234, %c0_72, %c0_73] : memref<4x2x128xbf16, #tpu.memory_space<vmem>>, vector<1x2x128xbf16>
    %236 = vector.shape_cast %235 : vector<1x2x128xbf16> to vector<2x128xbf16>
    %237 = vector.shape_cast %233 : vector<2x128xbf16> to vector<1x2x128xbf16>
    tpu.vector_store %arg5[%234, %c0_72, %c0_73], %237 {strides = array<i32>} : memref<4x2x128xbf16, #tpu.memory_space<vmem>>, vector<1x2x128xbf16>,
    %238 = arith.truncf %232 : vector<2x128xf32> to vector<2x128xbf16>
    %239 = arith.index_cast %184 : i32 to index
    %c0_74 = arith.constant 0 : index
    %c0_75 = arith.constant 0 : index
    %240 = vector.load %arg6[%239, %c0_74, %c0_75] : memref<4x2x128xbf16, #tpu.memory_space<vmem>>, vector<1x2x128xbf16>
    %241 = vector.shape_cast %240 : vector<1x2x128xbf16> to vector<2x128xbf16>
    %242 = vector.shape_cast %238 : vector<2x128xbf16> to vector<1x2x128xbf16>
    tpu.vector_store %arg6[%239, %c0_74, %c0_75], %242 {strides = array<i32>} : memref<4x2x128xbf16, #tpu.memory_space<vmem>>, vector<1x2x128xbf16>,
    %c4_i32 = arith.constant 4 : i32
    %c0_76 = arith.constant 0 : index
    %c0_77 = arith.constant 0 : index
    %243 = vector.load %arg7[%c0_76, %c0_77] : memref<2x128xf32, #tpu.memory_space<vmem>>, vector<2x128xf32>
    tpu.vector_store %arg7[%c0_76, %c0_77], %216 {strides = array<i32>} : memref<2x128xf32, #tpu.memory_space<vmem>>, vector<2x128xf32>,
    %c0_78 = arith.constant 0 : index
    %c0_79 = arith.constant 0 : index
    %244 = vector.load %arg8[%c0_78, %c0_79] : memref<2x128xf32, #tpu.memory_space<vmem>>, vector<2x128xf32>
    tpu.vector_store %arg8[%c0_78, %c0_79], %214 {strides = array<i32>} : memref<2x128xf32, #tpu.memory_space<vmem>>, vector<2x128xf32>,
    %c0_80 = arith.constant 0 : index
    %c0_81 = arith.constant 0 : index
    %245 = vector.load %arg9[%c0_80, %c0_81] : memref<2x128xf32, #tpu.memory_space<vmem>>, vector<2x128xf32>
    tpu.vector_store %arg9[%c0_80, %c0_81], %232 {strides = array<i32>} : memref<2x128xf32, #tpu.memory_space<vmem>>, vector<2x128xf32>,
    %c0_82 = arith.constant 0 : index
    %c0_83 = arith.constant 0 : index
    %246 = vector.load %arg10[%c0_82, %c0_83] : memref<2x128xf32, #tpu.memory_space<vmem>>, vector<2x128xf32>
    tpu.vector_store %arg10[%c0_82, %c0_83], %230 {strides = array<i32>} : memref<2x128xf32, #tpu.memory_space<vmem>>, vector<2x128xf32>,
    return
  }
  func.func @transform_0(%arg0: i32) -> (i32, i32, i32) {
    %c0_i32 = arith.constant 0 : i32
    %c0_i32_0 = arith.constant 0 : i32
    %c0_i32_1 = arith.constant 0 : i32
    return %arg0, %c0_i32, %c0_i32_0 : i32, i32, i32
  }
  func.func @transform_1(%arg0: i32) -> (i32, i32, i32) {
    %c1_i32 = arith.constant 1 : i32
    %0 = arith.subi %c1_i32, %arg0 : i32
    %c0_i32 = arith.constant 0 : i32
    %c0_i32_0 = arith.constant 0 : i32
    %c0_i32_1 = arith.constant 0 : i32
    return %0, %c0_i32, %c0_i32_0 : i32, i32, i32
  }
  func.func @transform_2(%arg0: i32) -> (i32, i32) {
    %c0_i32 = arith.constant 0 : i32
    %c0_i32_0 = arith.constant 0 : i32
    %c0_i32_1 = arith.constant 0 : i32
    return %c0_i32, %c0_i32_0 : i32, i32
  }
  func.func @transform_3(%arg0: i32) -> (i32, i32) {
    %c0_i32 = arith.constant 0 : i32
    %c0_i32_0 = arith.constant 0 : i32
    %c0_i32_1 = arith.constant 0 : i32
    return %c0_i32, %c0_i32_0 : i32, i32
  }
  func.func @transform_4(%arg0: i32) -> (i32, i32, i32) {
    %c0_i32 = arith.constant 0 : i32
    %c0_i32_0 = arith.constant 0 : i32
    %c0_i32_1 = arith.constant 0 : i32
    return %arg0, %c0_i32, %c0_i32_0 : i32, i32, i32
  }
  func.func @transform_5(%arg0: i32) -> (i32, i32, i32) {
    %c1_i32 = arith.constant 1 : i32
    %0 = arith.subi %c1_i32, %arg0 : i32
    %c0_i32 = arith.constant 0 : i32
    %c0_i32_0 = arith.constant 0 : i32
    %c0_i32_1 = arith.constant 0 : i32
    return %0, %c0_i32, %c0_i32_0 : i32, i32, i32
  }
}

module attributes {stable_mosaic.version = 11 : i64} {
  func.func @_recurrence_kernel(%arg0: i32, %arg1: memref<4x2x512xbf16, #tpu.memory_space<vmem>>, %arg2: memref<4x2x512xbf16, #tpu.memory_space<vmem>>, %arg3: memref<128x512xbf16, #tpu.memory_space<vmem>>, %arg4: memref<128x512xbf16, #tpu.memory_space<vmem>>, %arg5: memref<4x2x128xbf16, #tpu.memory_space<vmem>>, %arg6: memref<4x2x128xbf16, #tpu.memory_space<vmem>>, %arg7: memref<2x128xf32, #tpu.memory_space<vmem>>, %arg8: memref<2x128xf32, #tpu.memory_space<vmem>>, %arg9: memref<2x128xf32, #tpu.memory_space<vmem>>, %arg10: memref<2x128xf32, #tpu.memory_space<vmem>>) attributes {dimension_semantics = [#tpu.dimension_semantics<arbitrary>], iteration_bounds = array<i64: 2>, scalar_prefetch = 0 : i64, scratch_operands = 4 : i64, tpu.core_type = #tpu.core_type<tc>, window_params = [{transform_indices = @transform_0, window_bounds = array<i64: 4, 2, 512>}, {transform_indices = @transform_1, window_bounds = array<i64: 4, 2, 512>}, {pipeline_mode = #tpu.pipeline_mode<synchronous>, transform_indices = @transform_2, window_bounds = array<i64: 128, 512>}, {pipeline_mode = #tpu.pipeline_mode<synchronous>, transform_indices = @transform_3, window_bounds = array<i64: 128, 512>}, {transform_indices = @transform_4, window_bounds = array<i64: 4, 2, 128>}, {transform_indices = @transform_5, window_bounds = array<i64: 4, 2, 128>}]} {
    %c0_i32 = arith.constant 0 : i32
    %0 = arith.cmpi eq, %arg0, %c0_i32 : i32
    %1 = arith.extui %0 : i1 to i32
    %c0_i32_0 = arith.constant 0 : i32
    %2 = arith.cmpi ne, %1, %c0_i32_0 : i32
    scf.if %2 {
      %cst_84 = arith.constant 0.000000e+00 : f32
      %247 = vector.broadcast %cst_84 : f32 to vector<2x128xf32>
      %c0_85 = arith.constant 0 : index
      %c0_86 = arith.constant 0 : index
      %248 = vector.load %arg7[%c0_85, %c0_86] : memref<2x128xf32, #tpu.memory_space<vmem>>, vector<2x128xf32>
      tpu.vector_store %arg7[%c0_85, %c0_86], %247 {strides = array<i32>} : memref<2x128xf32, #tpu.memory_space<vmem>>, vector<2x128xf32>,
      %cst_87 = arith.constant 0.000000e+00 : f32
      %249 = vector.broadcast %cst_87 : f32 to vector<2x128xf32>
      %c0_88 = arith.constant 0 : index
      %c0_89 = arith.constant 0 : index
      %250 = vector.load %arg8[%c0_88, %c0_89] : memref<2x128xf32, #tpu.memory_space<vmem>>, vector<2x128xf32>
      tpu.vector_store %arg8[%c0_88, %c0_89], %249 {strides = array<i32>} : memref<2x128xf32, #tpu.memory_space<vmem>>, vector<2x128xf32>,
      %cst_90 = arith.constant 0.000000e+00 : f32
      %251 = vector.broadcast %cst_90 : f32 to vector<2x128xf32>
      %c0_91 = arith.constant 0 : index
      %c0_92 = arith.constant 0 : index
      %252 = vector.load %arg9[%c0_91, %c0_92] : memref<2x128xf32, #tpu.memory_space<vmem>>, vector<2x128xf32>
      tpu.vector_store %arg9[%c0_91, %c0_92], %251 {strides = array<i32>} : memref<2x128xf32, #tpu.memory_space<vmem>>, vector<2x128xf32>,
      %cst_93 = arith.constant 0.000000e+00 : f32
      %253 = vector.broadcast %cst_93 : f32 to vector<2x128xf32>
      %c0_94 = arith.constant 0 : index
      %c0_95 = arith.constant 0 : index
      %254 = vector.load %arg10[%c0_94, %c0_95] : memref<2x128xf32, #tpu.memory_space<vmem>>, vector<2x128xf32>
      tpu.vector_store %arg10[%c0_94, %c0_95], %253 {strides = array<i32>} : memref<2x128xf32, #tpu.memory_space<vmem>>, vector<2x128xf32>,
    } else {
    }
    %c0 = arith.constant 0 : index
    %c0_1 = arith.constant 0 : index
    %3 = vector.load %arg7[%c0, %c0_1] : memref<2x128xf32, #tpu.memory_space<vmem>>, vector<2x128xf32>
    %c0_2 = arith.constant 0 : index
    %c0_3 = arith.constant 0 : index
    %4 = vector.load %arg8[%c0_2, %c0_3] : memref<2x128xf32, #tpu.memory_space<vmem>>, vector<2x128xf32>
    %c0_4 = arith.constant 0 : index
    %c0_5 = arith.constant 0 : index
    %5 = vector.load %arg9[%c0_4, %c0_5] : memref<2x128xf32, #tpu.memory_space<vmem>>, vector<2x128xf32>
    %c0_6 = arith.constant 0 : index
    %c0_7 = arith.constant 0 : index
    %6 = vector.load %arg10[%c0_6, %c0_7] : memref<2x128xf32, #tpu.memory_space<vmem>>, vector<2x128xf32>
    %c0_i32_8 = arith.constant 0 : i32
    %c3_i32 = arith.constant 3 : i32
    %7 = arith.subi %c3_i32, %c0_i32_8 : i32
    %8 = arith.truncf %3 : vector<2x128xf32> to vector<2x128xbf16>
    %c0_9 = arith.constant 0 : index
    %c0_10 = arith.constant 0 : index
    %9 = vector.load %arg3[%c0_9, %c0_10] : memref<128x512xbf16, #tpu.memory_space<vmem>>, vector<128x512xbf16>
    %cst = arith.constant dense<0.000000e+00> : vector<2x512xf32>
    %10 = tpu.matmul %8, %9, %cst {dimension_numbers = #tpu.dot_dimension_numbers<[1], [0], [0], [1], [0, 0, 1, 1], [], []>} : vector<2x128xbf16>, vector<128x512xbf16>, vector<2x512xf32> -> vector<2x512xf32>
    %11 = arith.index_cast %c0_i32_8 : i32 to index
    %c0_11 = arith.constant 0 : index
    %c0_12 = arith.constant 0 : index
    %12 = vector.load %arg1[%11, %c0_11, %c0_12] : memref<4x2x512xbf16, #tpu.memory_space<vmem>>, vector<1x2x512xbf16>
    %13 = vector.shape_cast %12 : vector<1x2x512xbf16> to vector<2x512xbf16>
    %14 = arith.extf %13 : vector<2x512xbf16> to vector<2x512xf32>
    %15 = arith.addf %10, %14 : vector<2x512xf32>
    %16 = arith.truncf %5 : vector<2x128xf32> to vector<2x128xbf16>
    %c0_13 = arith.constant 0 : index
    %c0_14 = arith.constant 0 : index
    %17 = vector.load %arg4[%c0_13, %c0_14] : memref<128x512xbf16, #tpu.memory_space<vmem>>, vector<128x512xbf16>
    %cst_15 = arith.constant dense<0.000000e+00> : vector<2x512xf32>
    %18 = tpu.matmul %16, %17, %cst_15 {dimension_numbers = #tpu.dot_dimension_numbers<[1], [0], [0], [1], [0, 0, 1, 1], [], []>} : vector<2x128xbf16>, vector<128x512xbf16>, vector<2x512xf32> -> vector<2x512xf32>
    %19 = arith.index_cast %7 : i32 to index
    %c0_16 = arith.constant 0 : index
    %c0_17 = arith.constant 0 : index
    %20 = vector.load %arg2[%19, %c0_16, %c0_17] : memref<4x2x512xbf16, #tpu.memory_space<vmem>>, vector<1x2x512xbf16>
    %21 = vector.shape_cast %20 : vector<1x2x512xbf16> to vector<2x512xbf16>
    %22 = arith.extf %21 : vector<2x512xbf16> to vector<2x512xf32>
    %23 = arith.addf %18, %22 : vector<2x512xf32>
    %24 = vector.extract_strided_slice %15 {offsets = [0, 0], sizes = [2, 384], strides = [1, 1]} : vector<2x512xf32> to vector<2x384xf32>
    %25 = arith.negf %24 : vector<2x384xf32>
    %26 = math.exp %25 : vector<2x384xf32>
    %cst_18 = arith.constant 1.000000e+00 : f32
    %27 = vector.broadcast %cst_18 : f32 to vector<2x384xf32>
    %28 = arith.addf %27, %26 : vector<2x384xf32>
    %29 = arith.divf %27, %28 : vector<2x384xf32>
    %30 = vector.extract_strided_slice %15 {offsets = [0, 384], sizes = [2, 128], strides = [1, 1]} : vector<2x512xf32> to vector<2x128xf32>
    %31 = math.tanh %30 : vector<2x128xf32>
    %32 = vector.extract_strided_slice %29 {offsets = [0, 0], sizes = [2, 128], strides = [1, 1]} : vector<2x384xf32> to vector<2x128xf32>
    %33 = vector.extract_strided_slice %29 {offsets = [0, 128], sizes = [2, 128], strides = [1, 1]} : vector<2x384xf32> to vector<2x128xf32>
    %34 = vector.extract_strided_slice %29 {offsets = [0, 256], sizes = [2, 128], strides = [1, 1]} : vector<2x384xf32> to vector<2x128xf32>
    %35 = arith.mulf %33, %4 : vector<2x128xf32>
    %36 = arith.mulf %32, %31 : vector<2x128xf32>
    %37 = arith.addf %35, %36 : vector<2x128xf32>
    %38 = math.tanh %37 : vector<2x128xf32>
    %39 = arith.mulf %34, %38 : vector<2x128xf32>
    %40 = vector.extract_strided_slice %23 {offsets = [0, 0], sizes = [2, 384], strides = [1, 1]} : vector<2x512xf32> to vector<2x384xf32>
    %41 = arith.negf %40 : vector<2x384xf32>
    %42 = math.exp %41 : vector<2x384xf32>
    %cst_19 = arith.constant 1.000000e+00 : f32
    %43 = vector.broadcast %cst_19 : f32 to vector<2x384xf32>
    %44 = arith.addf %43, %42 : vector<2x384xf32>
    %45 = arith.divf %43, %44 : vector<2x384xf32>
    %46 = vector.extract_strided_slice %23 {offsets = [0, 384], sizes = [2, 128], strides = [1, 1]} : vector<2x512xf32> to vector<2x128xf32>
    %47 = math.tanh %46 : vector<2x128xf32>
    %48 = vector.extract_strided_slice %45 {offsets = [0, 0], sizes = [2, 128], strides = [1, 1]} : vector<2x384xf32> to vector<2x128xf32>
    %49 = vector.extract_strided_slice %45 {offsets = [0, 128], sizes = [2, 128], strides = [1, 1]} : vector<2x384xf32> to vector<2x128xf32>
    %50 = vector.extract_strided_slice %45 {offsets = [0, 256], sizes = [2, 128], strides = [1, 1]} : vector<2x384xf32> to vector<2x128xf32>
    %51 = arith.mulf %49, %6 : vector<2x128xf32>
    %52 = arith.mulf %48, %47 : vector<2x128xf32>
    %53 = arith.addf %51, %52 : vector<2x128xf32>
    %54 = math.tanh %53 : vector<2x128xf32>
    %55 = arith.mulf %50, %54 : vector<2x128xf32>
    %56 = arith.truncf %39 : vector<2x128xf32> to vector<2x128xbf16>
    %57 = arith.index_cast %c0_i32_8 : i32 to index
    %c0_20 = arith.constant 0 : index
    %c0_21 = arith.constant 0 : index
    %58 = vector.load %arg5[%57, %c0_20, %c0_21] : memref<4x2x128xbf16, #tpu.memory_space<vmem>>, vector<1x2x128xbf16>
    %59 = vector.shape_cast %58 : vector<1x2x128xbf16> to vector<2x128xbf16>
    %60 = vector.shape_cast %56 : vector<2x128xbf16> to vector<1x2x128xbf16>
    tpu.vector_store %arg5[%57, %c0_20, %c0_21], %60 {strides = array<i32>} : memref<4x2x128xbf16, #tpu.memory_space<vmem>>, vector<1x2x128xbf16>,
    %61 = arith.truncf %55 : vector<2x128xf32> to vector<2x128xbf16>
    %62 = arith.index_cast %7 : i32 to index
    %c0_22 = arith.constant 0 : index
    %c0_23 = arith.constant 0 : index
    %63 = vector.load %arg6[%62, %c0_22, %c0_23] : memref<4x2x128xbf16, #tpu.memory_space<vmem>>, vector<1x2x128xbf16>
    %64 = vector.shape_cast %63 : vector<1x2x128xbf16> to vector<2x128xbf16>
    %65 = vector.shape_cast %61 : vector<2x128xbf16> to vector<1x2x128xbf16>
    tpu.vector_store %arg6[%62, %c0_22, %c0_23], %65 {strides = array<i32>} : memref<4x2x128xbf16, #tpu.memory_space<vmem>>, vector<1x2x128xbf16>,
    %c1_i32 = arith.constant 1 : i32
    %c3_i32_24 = arith.constant 3 : i32
    %66 = arith.subi %c3_i32_24, %c1_i32 : i32
    %67 = arith.truncf %39 : vector<2x128xf32> to vector<2x128xbf16>
    %c0_25 = arith.constant 0 : index
    %c0_26 = arith.constant 0 : index
    %68 = vector.load %arg3[%c0_25, %c0_26] : memref<128x512xbf16, #tpu.memory_space<vmem>>, vector<128x512xbf16>
    %cst_27 = arith.constant dense<0.000000e+00> : vector<2x512xf32>
    %69 = tpu.matmul %67, %68, %cst_27 {dimension_numbers = #tpu.dot_dimension_numbers<[1], [0], [0], [1], [0, 0, 1, 1], [], []>} : vector<2x128xbf16>, vector<128x512xbf16>, vector<2x512xf32> -> vector<2x512xf32>
    %70 = arith.index_cast %c1_i32 : i32 to index
    %c0_28 = arith.constant 0 : index
    %c0_29 = arith.constant 0 : index
    %71 = vector.load %arg1[%70, %c0_28, %c0_29] : memref<4x2x512xbf16, #tpu.memory_space<vmem>>, vector<1x2x512xbf16>
    %72 = vector.shape_cast %71 : vector<1x2x512xbf16> to vector<2x512xbf16>
    %73 = arith.extf %72 : vector<2x512xbf16> to vector<2x512xf32>
    %74 = arith.addf %69, %73 : vector<2x512xf32>
    %75 = arith.truncf %55 : vector<2x128xf32> to vector<2x128xbf16>
    %c0_30 = arith.constant 0 : index
    %c0_31 = arith.constant 0 : index
    %76 = vector.load %arg4[%c0_30, %c0_31] : memref<128x512xbf16, #tpu.memory_space<vmem>>, vector<128x512xbf16>
    %cst_32 = arith.constant dense<0.000000e+00> : vector<2x512xf32>
    %77 = tpu.matmul %75, %76, %cst_32 {dimension_numbers = #tpu.dot_dimension_numbers<[1], [0], [0], [1], [0, 0, 1, 1], [], []>} : vector<2x128xbf16>, vector<128x512xbf16>, vector<2x512xf32> -> vector<2x512xf32>
    %78 = arith.index_cast %66 : i32 to index
    %c0_33 = arith.constant 0 : index
    %c0_34 = arith.constant 0 : index
    %79 = vector.load %arg2[%78, %c0_33, %c0_34] : memref<4x2x512xbf16, #tpu.memory_space<vmem>>, vector<1x2x512xbf16>
    %80 = vector.shape_cast %79 : vector<1x2x512xbf16> to vector<2x512xbf16>
    %81 = arith.extf %80 : vector<2x512xbf16> to vector<2x512xf32>
    %82 = arith.addf %77, %81 : vector<2x512xf32>
    %83 = vector.extract_strided_slice %74 {offsets = [0, 0], sizes = [2, 384], strides = [1, 1]} : vector<2x512xf32> to vector<2x384xf32>
    %84 = arith.negf %83 : vector<2x384xf32>
    %85 = math.exp %84 : vector<2x384xf32>
    %cst_35 = arith.constant 1.000000e+00 : f32
    %86 = vector.broadcast %cst_35 : f32 to vector<2x384xf32>
    %87 = arith.addf %86, %85 : vector<2x384xf32>
    %88 = arith.divf %86, %87 : vector<2x384xf32>
    %89 = vector.extract_strided_slice %74 {offsets = [0, 384], sizes = [2, 128], strides = [1, 1]} : vector<2x512xf32> to vector<2x128xf32>
    %90 = math.tanh %89 : vector<2x128xf32>
    %91 = vector.extract_strided_slice %88 {offsets = [0, 0], sizes = [2, 128], strides = [1, 1]} : vector<2x384xf32> to vector<2x128xf32>
    %92 = vector.extract_strided_slice %88 {offsets = [0, 128], sizes = [2, 128], strides = [1, 1]} : vector<2x384xf32> to vector<2x128xf32>
    %93 = vector.extract_strided_slice %88 {offsets = [0, 256], sizes = [2, 128], strides = [1, 1]} : vector<2x384xf32> to vector<2x128xf32>
    %94 = arith.mulf %92, %37 : vector<2x128xf32>
    %95 = arith.mulf %91, %90 : vector<2x128xf32>
    %96 = arith.addf %94, %95 : vector<2x128xf32>
    %97 = math.tanh %96 : vector<2x128xf32>
    %98 = arith.mulf %93, %97 : vector<2x128xf32>
    %99 = vector.extract_strided_slice %82 {offsets = [0, 0], sizes = [2, 384], strides = [1, 1]} : vector<2x512xf32> to vector<2x384xf32>
    %100 = arith.negf %99 : vector<2x384xf32>
    %101 = math.exp %100 : vector<2x384xf32>
    %cst_36 = arith.constant 1.000000e+00 : f32
    %102 = vector.broadcast %cst_36 : f32 to vector<2x384xf32>
    %103 = arith.addf %102, %101 : vector<2x384xf32>
    %104 = arith.divf %102, %103 : vector<2x384xf32>
    %105 = vector.extract_strided_slice %82 {offsets = [0, 384], sizes = [2, 128], strides = [1, 1]} : vector<2x512xf32> to vector<2x128xf32>
    %106 = math.tanh %105 : vector<2x128xf32>
    %107 = vector.extract_strided_slice %104 {offsets = [0, 0], sizes = [2, 128], strides = [1, 1]} : vector<2x384xf32> to vector<2x128xf32>
    %108 = vector.extract_strided_slice %104 {offsets = [0, 128], sizes = [2, 128], strides = [1, 1]} : vector<2x384xf32> to vector<2x128xf32>
    %109 = vector.extract_strided_slice %104 {offsets = [0, 256], sizes = [2, 128], strides = [1, 1]} : vector<2x384xf32> to vector<2x128xf32>
    %110 = arith.mulf %108, %53 : vector<2x128xf32>
    %111 = arith.mulf %107, %106 : vector<2x128xf32>
    %112 = arith.addf %110, %111 : vector<2x128xf32>
    %113 = math.tanh %112 : vector<2x128xf32>
    %114 = arith.mulf %109, %113 : vector<2x128xf32>
    %115 = arith.truncf %98 : vector<2x128xf32> to vector<2x128xbf16>
    %116 = arith.index_cast %c1_i32 : i32 to index
    %c0_37 = arith.constant 0 : index
    %c0_38 = arith.constant 0 : index
    %117 = vector.load %arg5[%116, %c0_37, %c0_38] : memref<4x2x128xbf16, #tpu.memory_space<vmem>>, vector<1x2x128xbf16>
    %118 = vector.shape_cast %117 : vector<1x2x128xbf16> to vector<2x128xbf16>
    %119 = vector.shape_cast %115 : vector<2x128xbf16> to vector<1x2x128xbf16>
    tpu.vector_store %arg5[%116, %c0_37, %c0_38], %119 {strides = array<i32>} : memref<4x2x128xbf16, #tpu.memory_space<vmem>>, vector<1x2x128xbf16>,
    %120 = arith.truncf %114 : vector<2x128xf32> to vector<2x128xbf16>
    %121 = arith.index_cast %66 : i32 to index
    %c0_39 = arith.constant 0 : index
    %c0_40 = arith.constant 0 : index
    %122 = vector.load %arg6[%121, %c0_39, %c0_40] : memref<4x2x128xbf16, #tpu.memory_space<vmem>>, vector<1x2x128xbf16>
    %123 = vector.shape_cast %122 : vector<1x2x128xbf16> to vector<2x128xbf16>
    %124 = vector.shape_cast %120 : vector<2x128xbf16> to vector<1x2x128xbf16>
    tpu.vector_store %arg6[%121, %c0_39, %c0_40], %124 {strides = array<i32>} : memref<4x2x128xbf16, #tpu.memory_space<vmem>>, vector<1x2x128xbf16>,
    %c2_i32 = arith.constant 2 : i32
    %c3_i32_41 = arith.constant 3 : i32
    %125 = arith.subi %c3_i32_41, %c2_i32 : i32
    %126 = arith.truncf %98 : vector<2x128xf32> to vector<2x128xbf16>
    %c0_42 = arith.constant 0 : index
    %c0_43 = arith.constant 0 : index
    %127 = vector.load %arg3[%c0_42, %c0_43] : memref<128x512xbf16, #tpu.memory_space<vmem>>, vector<128x512xbf16>
    %cst_44 = arith.constant dense<0.000000e+00> : vector<2x512xf32>
    %128 = tpu.matmul %126, %127, %cst_44 {dimension_numbers = #tpu.dot_dimension_numbers<[1], [0], [0], [1], [0, 0, 1, 1], [], []>} : vector<2x128xbf16>, vector<128x512xbf16>, vector<2x512xf32> -> vector<2x512xf32>
    %129 = arith.index_cast %c2_i32 : i32 to index
    %c0_45 = arith.constant 0 : index
    %c0_46 = arith.constant 0 : index
    %130 = vector.load %arg1[%129, %c0_45, %c0_46] : memref<4x2x512xbf16, #tpu.memory_space<vmem>>, vector<1x2x512xbf16>
    %131 = vector.shape_cast %130 : vector<1x2x512xbf16> to vector<2x512xbf16>
    %132 = arith.extf %131 : vector<2x512xbf16> to vector<2x512xf32>
    %133 = arith.addf %128, %132 : vector<2x512xf32>
    %134 = arith.truncf %114 : vector<2x128xf32> to vector<2x128xbf16>
    %c0_47 = arith.constant 0 : index
    %c0_48 = arith.constant 0 : index
    %135 = vector.load %arg4[%c0_47, %c0_48] : memref<128x512xbf16, #tpu.memory_space<vmem>>, vector<128x512xbf16>
    %cst_49 = arith.constant dense<0.000000e+00> : vector<2x512xf32>
    %136 = tpu.matmul %134, %135, %cst_49 {dimension_numbers = #tpu.dot_dimension_numbers<[1], [0], [0], [1], [0, 0, 1, 1], [], []>} : vector<2x128xbf16>, vector<128x512xbf16>, vector<2x512xf32> -> vector<2x512xf32>
    %137 = arith.index_cast %125 : i32 to index
    %c0_50 = arith.constant 0 : index
    %c0_51 = arith.constant 0 : index
    %138 = vector.load %arg2[%137, %c0_50, %c0_51] : memref<4x2x512xbf16, #tpu.memory_space<vmem>>, vector<1x2x512xbf16>
    %139 = vector.shape_cast %138 : vector<1x2x512xbf16> to vector<2x512xbf16>
    %140 = arith.extf %139 : vector<2x512xbf16> to vector<2x512xf32>
    %141 = arith.addf %136, %140 : vector<2x512xf32>
    %142 = vector.extract_strided_slice %133 {offsets = [0, 0], sizes = [2, 384], strides = [1, 1]} : vector<2x512xf32> to vector<2x384xf32>
    %143 = arith.negf %142 : vector<2x384xf32>
    %144 = math.exp %143 : vector<2x384xf32>
    %cst_52 = arith.constant 1.000000e+00 : f32
    %145 = vector.broadcast %cst_52 : f32 to vector<2x384xf32>
    %146 = arith.addf %145, %144 : vector<2x384xf32>
    %147 = arith.divf %145, %146 : vector<2x384xf32>
    %148 = vector.extract_strided_slice %133 {offsets = [0, 384], sizes = [2, 128], strides = [1, 1]} : vector<2x512xf32> to vector<2x128xf32>
    %149 = math.tanh %148 : vector<2x128xf32>
    %150 = vector.extract_strided_slice %147 {offsets = [0, 0], sizes = [2, 128], strides = [1, 1]} : vector<2x384xf32> to vector<2x128xf32>
    %151 = vector.extract_strided_slice %147 {offsets = [0, 128], sizes = [2, 128], strides = [1, 1]} : vector<2x384xf32> to vector<2x128xf32>
    %152 = vector.extract_strided_slice %147 {offsets = [0, 256], sizes = [2, 128], strides = [1, 1]} : vector<2x384xf32> to vector<2x128xf32>
    %153 = arith.mulf %151, %96 : vector<2x128xf32>
    %154 = arith.mulf %150, %149 : vector<2x128xf32>
    %155 = arith.addf %153, %154 : vector<2x128xf32>
    %156 = math.tanh %155 : vector<2x128xf32>
    %157 = arith.mulf %152, %156 : vector<2x128xf32>
    %158 = vector.extract_strided_slice %141 {offsets = [0, 0], sizes = [2, 384], strides = [1, 1]} : vector<2x512xf32> to vector<2x384xf32>
    %159 = arith.negf %158 : vector<2x384xf32>
    %160 = math.exp %159 : vector<2x384xf32>
    %cst_53 = arith.constant 1.000000e+00 : f32
    %161 = vector.broadcast %cst_53 : f32 to vector<2x384xf32>
    %162 = arith.addf %161, %160 : vector<2x384xf32>
    %163 = arith.divf %161, %162 : vector<2x384xf32>
    %164 = vector.extract_strided_slice %141 {offsets = [0, 384], sizes = [2, 128], strides = [1, 1]} : vector<2x512xf32> to vector<2x128xf32>
    %165 = math.tanh %164 : vector<2x128xf32>
    %166 = vector.extract_strided_slice %163 {offsets = [0, 0], sizes = [2, 128], strides = [1, 1]} : vector<2x384xf32> to vector<2x128xf32>
    %167 = vector.extract_strided_slice %163 {offsets = [0, 128], sizes = [2, 128], strides = [1, 1]} : vector<2x384xf32> to vector<2x128xf32>
    %168 = vector.extract_strided_slice %163 {offsets = [0, 256], sizes = [2, 128], strides = [1, 1]} : vector<2x384xf32> to vector<2x128xf32>
    %169 = arith.mulf %167, %112 : vector<2x128xf32>
    %170 = arith.mulf %166, %165 : vector<2x128xf32>
    %171 = arith.addf %169, %170 : vector<2x128xf32>
    %172 = math.tanh %171 : vector<2x128xf32>
    %173 = arith.mulf %168, %172 : vector<2x128xf32>
    %174 = arith.truncf %157 : vector<2x128xf32> to vector<2x128xbf16>
    %175 = arith.index_cast %c2_i32 : i32 to index
    %c0_54 = arith.constant 0 : index
    %c0_55 = arith.constant 0 : index
    %176 = vector.load %arg5[%175, %c0_54, %c0_55] : memref<4x2x128xbf16, #tpu.memory_space<vmem>>, vector<1x2x128xbf16>
    %177 = vector.shape_cast %176 : vector<1x2x128xbf16> to vector<2x128xbf16>
    %178 = vector.shape_cast %174 : vector<2x128xbf16> to vector<1x2x128xbf16>
    tpu.vector_store %arg5[%175, %c0_54, %c0_55], %178 {strides = array<i32>} : memref<4x2x128xbf16, #tpu.memory_space<vmem>>, vector<1x2x128xbf16>,
    %179 = arith.truncf %173 : vector<2x128xf32> to vector<2x128xbf16>
    %180 = arith.index_cast %125 : i32 to index
    %c0_56 = arith.constant 0 : index
    %c0_57 = arith.constant 0 : index
    %181 = vector.load %arg6[%180, %c0_56, %c0_57] : memref<4x2x128xbf16, #tpu.memory_space<vmem>>, vector<1x2x128xbf16>
    %182 = vector.shape_cast %181 : vector<1x2x128xbf16> to vector<2x128xbf16>
    %183 = vector.shape_cast %179 : vector<2x128xbf16> to vector<1x2x128xbf16>
    tpu.vector_store %arg6[%180, %c0_56, %c0_57], %183 {strides = array<i32>} : memref<4x2x128xbf16, #tpu.memory_space<vmem>>, vector<1x2x128xbf16>,
    %c3_i32_58 = arith.constant 3 : i32
    %c3_i32_59 = arith.constant 3 : i32
    %184 = arith.subi %c3_i32_59, %c3_i32_58 : i32
    %185 = arith.truncf %157 : vector<2x128xf32> to vector<2x128xbf16>
    %c0_60 = arith.constant 0 : index
    %c0_61 = arith.constant 0 : index
    %186 = vector.load %arg3[%c0_60, %c0_61] : memref<128x512xbf16, #tpu.memory_space<vmem>>, vector<128x512xbf16>
    %cst_62 = arith.constant dense<0.000000e+00> : vector<2x512xf32>
    %187 = tpu.matmul %185, %186, %cst_62 {dimension_numbers = #tpu.dot_dimension_numbers<[1], [0], [0], [1], [0, 0, 1, 1], [], []>} : vector<2x128xbf16>, vector<128x512xbf16>, vector<2x512xf32> -> vector<2x512xf32>
    %188 = arith.index_cast %c3_i32_58 : i32 to index
    %c0_63 = arith.constant 0 : index
    %c0_64 = arith.constant 0 : index
    %189 = vector.load %arg1[%188, %c0_63, %c0_64] : memref<4x2x512xbf16, #tpu.memory_space<vmem>>, vector<1x2x512xbf16>
    %190 = vector.shape_cast %189 : vector<1x2x512xbf16> to vector<2x512xbf16>
    %191 = arith.extf %190 : vector<2x512xbf16> to vector<2x512xf32>
    %192 = arith.addf %187, %191 : vector<2x512xf32>
    %193 = arith.truncf %173 : vector<2x128xf32> to vector<2x128xbf16>
    %c0_65 = arith.constant 0 : index
    %c0_66 = arith.constant 0 : index
    %194 = vector.load %arg4[%c0_65, %c0_66] : memref<128x512xbf16, #tpu.memory_space<vmem>>, vector<128x512xbf16>
    %cst_67 = arith.constant dense<0.000000e+00> : vector<2x512xf32>
    %195 = tpu.matmul %193, %194, %cst_67 {dimension_numbers = #tpu.dot_dimension_numbers<[1], [0], [0], [1], [0, 0, 1, 1], [], []>} : vector<2x128xbf16>, vector<128x512xbf16>, vector<2x512xf32> -> vector<2x512xf32>
    %196 = arith.index_cast %184 : i32 to index
    %c0_68 = arith.constant 0 : index
    %c0_69 = arith.constant 0 : index
    %197 = vector.load %arg2[%196, %c0_68, %c0_69] : memref<4x2x512xbf16, #tpu.memory_space<vmem>>, vector<1x2x512xbf16>
    %198 = vector.shape_cast %197 : vector<1x2x512xbf16> to vector<2x512xbf16>
    %199 = arith.extf %198 : vector<2x512xbf16> to vector<2x512xf32>
    %200 = arith.addf %195, %199 : vector<2x512xf32>
    %201 = vector.extract_strided_slice %192 {offsets = [0, 0], sizes = [2, 384], strides = [1, 1]} : vector<2x512xf32> to vector<2x384xf32>
    %202 = arith.negf %201 : vector<2x384xf32>
    %203 = math.exp %202 : vector<2x384xf32>
    %cst_70 = arith.constant 1.000000e+00 : f32
    %204 = vector.broadcast %cst_70 : f32 to vector<2x384xf32>
    %205 = arith.addf %204, %203 : vector<2x384xf32>
    %206 = arith.divf %204, %205 : vector<2x384xf32>
    %207 = vector.extract_strided_slice %192 {offsets = [0, 384], sizes = [2, 128], strides = [1, 1]} : vector<2x512xf32> to vector<2x128xf32>
    %208 = math.tanh %207 : vector<2x128xf32>
    %209 = vector.extract_strided_slice %206 {offsets = [0, 0], sizes = [2, 128], strides = [1, 1]} : vector<2x384xf32> to vector<2x128xf32>
    %210 = vector.extract_strided_slice %206 {offsets = [0, 128], sizes = [2, 128], strides = [1, 1]} : vector<2x384xf32> to vector<2x128xf32>
    %211 = vector.extract_strided_slice %206 {offsets = [0, 256], sizes = [2, 128], strides = [1, 1]} : vector<2x384xf32> to vector<2x128xf32>
    %212 = arith.mulf %210, %155 : vector<2x128xf32>
    %213 = arith.mulf %209, %208 : vector<2x128xf32>
    %214 = arith.addf %212, %213 : vector<2x128xf32>
    %215 = math.tanh %214 : vector<2x128xf32>
    %216 = arith.mulf %211, %215 : vector<2x128xf32>
    %217 = vector.extract_strided_slice %200 {offsets = [0, 0], sizes = [2, 384], strides = [1, 1]} : vector<2x512xf32> to vector<2x384xf32>
    %218 = arith.negf %217 : vector<2x384xf32>
    %219 = math.exp %218 : vector<2x384xf32>
    %cst_71 = arith.constant 1.000000e+00 : f32
    %220 = vector.broadcast %cst_71 : f32 to vector<2x384xf32>
    %221 = arith.addf %220, %219 : vector<2x384xf32>
    %222 = arith.divf %220, %221 : vector<2x384xf32>
    %223 = vector.extract_strided_slice %200 {offsets = [0, 384], sizes = [2, 128], strides = [1, 1]} : vector<2x512xf32> to vector<2x128xf32>
    %224 = math.tanh %223 : vector<2x128xf32>
    %225 = vector.extract_strided_slice %222 {offsets = [0, 0], sizes = [2, 128], strides = [1, 1]} : vector<2x384xf32> to vector<2x128xf32>
    %226 = vector.extract_strided_slice %222 {offsets = [0, 128], sizes = [2, 128], strides = [1, 1]} : vector<2x384xf32> to vector<2x128xf32>
    %227 = vector.extract_strided_slice %222 {offsets = [0, 256], sizes = [2, 128], strides = [1, 1]} : vector<2x384xf32> to vector<2x128xf32>
    %228 = arith.mulf %226, %171 : vector<2x128xf32>
    %229 = arith.mulf %225, %224 : vector<2x128xf32>
    %230 = arith.addf %228, %229 : vector<2x128xf32>
    %231 = math.tanh %230 : vector<2x128xf32>
    %232 = arith.mulf %227, %231 : vector<2x128xf32>
    %233 = arith.truncf %216 : vector<2x128xf32> to vector<2x128xbf16>
    %234 = arith.index_cast %c3_i32_58 : i32 to index
    %c0_72 = arith.constant 0 : index
    %c0_73 = arith.constant 0 : index
    %235 = vector.load %arg5[%234, %c0_72, %c0_73] : memref<4x2x128xbf16, #tpu.memory_space<vmem>>, vector<1x2x128xbf16>
    %236 = vector.shape_cast %235 : vector<1x2x128xbf16> to vector<2x128xbf16>
    %237 = vector.shape_cast %233 : vector<2x128xbf16> to vector<1x2x128xbf16>
    tpu.vector_store %arg5[%234, %c0_72, %c0_73], %237 {strides = array<i32>} : memref<4x2x128xbf16, #tpu.memory_space<vmem>>, vector<1x2x128xbf16>,
    %238 = arith.truncf %232 : vector<2x128xf32> to vector<2x128xbf16>
    %239 = arith.index_cast %184 : i32 to index
    %c0_74 = arith.constant 0 : index
    %c0_75 = arith.constant 0 : index
    %240 = vector.load %arg6[%239, %c0_74, %c0_75] : memref<4x2x128xbf16, #tpu.memory_space<vmem>>, vector<1x2x128xbf16>
    %241 = vector.shape_cast %240 : vector<1x2x128xbf16> to vector<2x128xbf16>
    %242 = vector.shape_cast %238 : vector<2x128xbf16> to vector<1x2x128xbf16>
    tpu.vector_store %arg6[%239, %c0_74, %c0_75], %242 {strides = array<i32>} : memref<4x2x128xbf16, #tpu.memory_space<vmem>>, vector<1x2x128xbf16>,
    %c4_i32 = arith.constant 4 : i32
    %c0_76 = arith.constant 0 : index
    %c0_77 = arith.constant 0 : index
    %243 = vector.load %arg7[%c0_76, %c0_77] : memref<2x128xf32, #tpu.memory_space<vmem>>, vector<2x128xf32>
    tpu.vector_store %arg7[%c0_76, %c0_77], %216 {strides = array<i32>} : memref<2x128xf32, #tpu.memory_space<vmem>>, vector<2x128xf32>,
    %c0_78 = arith.constant 0 : index
    %c0_79 = arith.constant 0 : index
    %244 = vector.load %arg8[%c0_78, %c0_79] : memref<2x128xf32, #tpu.memory_space<vmem>>, vector<2x128xf32>
    tpu.vector_store %arg8[%c0_78, %c0_79], %214 {strides = array<i32>} : memref<2x128xf32, #tpu.memory_space<vmem>>, vector<2x128xf32>,
    %c0_80 = arith.constant 0 : index
    %c0_81 = arith.constant 0 : index
    %245 = vector.load %arg9[%c0_80, %c0_81] : memref<2x128xf32, #tpu.memory_space<vmem>>, vector<2x128xf32>
    tpu.vector_store %arg9[%c0_80, %c0_81], %232 {strides = array<i32>} : memref<2x128xf32, #tpu.memory_space<vmem>>, vector<2x128xf32>,
    %c0_82 = arith.constant 0 : index
    %c0_83 = arith.constant 0 : index
    %246 = vector.load %arg10[%c0_82, %c0_83] : memref<2x128xf32, #tpu.memory_space<vmem>>, vector<2x128xf32>
    tpu.vector_store %arg10[%c0_82, %c0_83], %230 {strides = array<i32>} : memref<2x128xf32, #tpu.memory_space<vmem>>, vector<2x128xf32>,
    return
  }
  func.func @transform_0(%arg0: i32) -> (i32, i32, i32) {
    %c0_i32 = arith.constant 0 : i32
    %c0_i32_0 = arith.constant 0 : i32
    %c0_i32_1 = arith.constant 0 : i32
    return %arg0, %c0_i32, %c0_i32_0 : i32, i32, i32
  }
  func.func @transform_1(%arg0: i32) -> (i32, i32, i32) {
    %c1_i32 = arith.constant 1 : i32
    %0 = arith.subi %c1_i32, %arg0 : i32
    %c0_i32 = arith.constant 0 : i32
    %c0_i32_0 = arith.constant 0 : i32
    %c0_i32_1 = arith.constant 0 : i32
    return %0, %c0_i32, %c0_i32_0 : i32, i32, i32
  }
  func.func @transform_2(%arg0: i32) -> (i32, i32) {
    %c0_i32 = arith.constant 0 : i32
    %c0_i32_0 = arith.constant 0 : i32
    %c0_i32_1 = arith.constant 0 : i32
    return %c0_i32, %c0_i32_0 : i32, i32
  }
  func.func @transform_3(%arg0: i32) -> (i32, i32) {
    %c0_i32 = arith.constant 0 : i32
    %c0_i32_0 = arith.constant 0 : i32
    %c0_i32_1 = arith.constant 0 : i32
    return %c0_i32, %c0_i32_0 : i32, i32
  }
  func.func @transform_4(%arg0: i32) -> (i32, i32, i32) {
    %c0_i32 = arith.constant 0 : i32
    %c0_i32_0 = arith.constant 0 : i32
    %c0_i32_1 = arith.constant 0 : i32
    return %arg0, %c0_i32, %c0_i32_0 : i32, i32, i32
  }
  func.func @transform_5(%arg0: i32) -> (i32, i32, i32) {
    %c1_i32 = arith.constant 1 : i32
    %0 = arith.subi %c1_i32, %arg0 : i32
    %c0_i32 = arith.constant 0 : i32
    %c0_i32_0 = arith.constant 0 : i32
    %c0_i32_1 = arith.constant 0 : i32
    return %0, %c0_i32, %c0_i32_0 : i32, i32, i32
  }
}

module attributes {stable_mosaic.version = 11 : i64} {
  func.func @_fc_kernel(%arg0: memref<4x128xbf16, #tpu.memory_space<vmem>>, %arg1: memref<4x128xbf16, #tpu.memory_space<vmem>>, %arg2: memref<128x4xbf16, #tpu.memory_space<vmem>>, %arg3: memref<128x4xbf16, #tpu.memory_space<vmem>>, %arg4: memref<1x4xf32, #tpu.memory_space<vmem>>, %arg5: memref<4x4xf32, #tpu.memory_space<vmem>>) attributes {dimension_semantics = [], scalar_prefetch = 0 : i64, scratch_operands = 0 : i64, tpu.core_type = #tpu.core_type<tc>} {
    %c0 = arith.constant 0 : index
    %c0_0 = arith.constant 0 : index
    %0 = vector.load %arg0[%c0, %c0_0] : memref<4x128xbf16, #tpu.memory_space<vmem>>, vector<4x128xbf16>
    %c0_1 = arith.constant 0 : index
    %c0_2 = arith.constant 0 : index
    %1 = vector.load %arg2[%c0_1, %c0_2] : memref<128x4xbf16, #tpu.memory_space<vmem>>, vector<128x4xbf16>
    %cst = arith.constant dense<0.000000e+00> : vector<4x4xf32>
    %2 = tpu.matmul %0, %1, %cst {dimension_numbers = #tpu.dot_dimension_numbers<[1], [0], [0], [1], [0, 0, 1, 1], [], []>} : vector<4x128xbf16>, vector<128x4xbf16>, vector<4x4xf32> -> vector<4x4xf32>
    %c0_3 = arith.constant 0 : index
    %c0_4 = arith.constant 0 : index
    %3 = vector.load %arg1[%c0_3, %c0_4] : memref<4x128xbf16, #tpu.memory_space<vmem>>, vector<4x128xbf16>
    %c0_5 = arith.constant 0 : index
    %c0_6 = arith.constant 0 : index
    %4 = vector.load %arg3[%c0_5, %c0_6] : memref<128x4xbf16, #tpu.memory_space<vmem>>, vector<128x4xbf16>
    %cst_7 = arith.constant dense<0.000000e+00> : vector<4x4xf32>
    %5 = tpu.matmul %3, %4, %cst_7 {dimension_numbers = #tpu.dot_dimension_numbers<[1], [0], [0], [1], [0, 0, 1, 1], [], []>} : vector<4x128xbf16>, vector<128x4xbf16>, vector<4x4xf32> -> vector<4x4xf32>
    %6 = arith.addf %2, %5 : vector<4x4xf32>
    %c0_8 = arith.constant 0 : index
    %c0_9 = arith.constant 0 : index
    %7 = vector.load %arg4[%c0_8, %c0_9] : memref<1x4xf32, #tpu.memory_space<vmem>>, vector<1x4xf32>
    %8 = vector.broadcast %7 : vector<1x4xf32> to vector<4x4xf32>
    %9 = arith.addf %6, %8 : vector<4x4xf32>
    %c0_10 = arith.constant 0 : index
    %c0_11 = arith.constant 0 : index
    %10 = vector.load %arg5[%c0_10, %c0_11] : memref<4x4xf32, #tpu.memory_space<vmem>>, vector<4x4xf32>
    tpu.vector_store %arg5[%c0_10, %c0_11], %9 {strides = array<i32>} : memref<4x4xf32, #tpu.memory_space<vmem>>, vector<4x4xf32>,
    return
  }
}

</mosaic_0001>

<llo_original>
// kernel: basic_lstm_forward.5
$region0: #{basic_lstm_forward.5}
  #allocation0 [shape = 'u32[]', space=smem, size = 0x4, offset = 0x4, fixed_abs, tag = 'smem constant byte address 0x4 - core index']
  #allocation1 [shape = 'u32[144,128]{1,0:T(1,128)}', space=vmem, size = 0x12000, scoped, tag = 'internal scratch']
  %s0 = inlined_call_operand.vmem [shape: f32[16,8], index: 0, kind: input, shape index: {}]
  %s1 = inlined_call_operand.hbm [shape: bf16[8,1024], index: 1, kind: input, shape index: {}]
  %s2 = inlined_call_operand.hbm [shape: f32[1,1024], index: 2, kind: input, shape index: {}]
  %s3 = inlined_call_operand.vmem [shape: bf16[16,512], index: 3, kind: output, shape index: {0}]
  %s4 = inlined_call_operand.vmem [shape: bf16[16,512], index: 4, kind: output, shape index: {1}]
  %5 = xla_tuple %s3, %s4
  %s6 = sld [smem:[#allocation0]]
  $region61: #{basic_lstm_forward.5} parent=0
    _
  %s8 = ssub.s32 1, %s6
  %s9 = scalar_select 0, %s8, %s6
  $region1: #{basic_lstm_forward.5} parent=0
    #allocation2 [shape = 'u8[16384]{0}', space=vmem, size = 0x4000, scoped, tag = 'input window, operand 1, single buffered']
    #allocation3 [shape = 's32[2]{0}', space=sflag, size = 0x8, scoped, tag = 'scoped memory for basic_lstm_forward.5']
    #allocation4 [shape = 'u8[4096]{0}', space=vmem, size = 0x1000, scoped, tag = 'input window, operand 2, single buffered']
    #allocation5 [shape = 's32[1]{0}', space=sflag, size = 0x4, scoped, tag = 'scoped memory for basic_lstm_forward.5']
    %10 = vsyncpa [#allocation3], 0
    %11 = vsyncpa [#allocation5], 0
    loop: start=0, step=1, limit=4
    $region2: #{basic_lstm_forward.5} parent=1 // loop_pre_header
      _
    $region3: #{basic_lstm_forward.5} parent=1 // loop_header
      %s13 = sphi 0, %s17
      %p14 = scmp.ge.s32.totalorder %s13, 4
      %s23 = sphi 0, %s25
      %s26 = sphi 0, %s23
      %s27 = sphi 0, %s26
      %s43 = sphi 0, %s27
      %s47 = sphi 0, %s47
      %s49 = sphi 0, %s47
      %s50 = sphi 0, %s49
      %s64 = sphi 0, %s50
      %s68 = sphi 0, %s68
      %s70 = sphi 0, %s68
      %s71 = sphi 0, %s70
      %s85 = sphi 0, %s71
      %s91 = sphi 0, %s93
      %s94 = sphi 0, %s91
      %s95 = sphi 0, %s94
      %s111 = sphi 0, %s95
      %s117 = sphi 0, %s119
      %s120 = sphi 0, %s117
      %s121 = sphi 0, %s120
      %s137 = sphi 0, %s121
    $region4: #{basic_lstm_forward.5} parent=1 // loop_header_branch
      %16 = sbr.rel (%p14) target = $region8
    $region5: #{basic_lstm_forward.5} parent=1 // loop_body
      %s18 = ssub.s32 %s13, 1
      %s19 = ssub.s32 %s13, 2
      %s20 = sadd.s32 %s13, 1
      %s21 = ssub.s32 %s13, %s20
      %p22 = scmp.eq.s32.totalorder %s21, 0
      %s24 = sadd.s32 %s23, 1
      %s25 = scalar_select %p22, %s23, %s24
      %p28 = pneg %p22
      %p29 = scmp.eq.s32.totalorder %s13, 1
      %p30 = por %p28, %p29
      %p31 = scmp.ne.s32.totalorder %s23, %s26
      %p32 = scmp.eq.s32.totalorder %s13, 0
      %p33 = por %p31, %p32
      %p34 = scmp.ne.s32.totalorder %s23, %s26
      %p35 = scmp.eq.s32.totalorder %s18, 1
      %p36 = por %p34, %p35
      %p37 = scmp.ne.s32.totalorder %s26, %s27
      %p38 = scmp.eq.s32.totalorder %s18, 0
      %p39 = por %p37, %p38
      %p40 = scmp.ne.s32.totalorder %s26, %s27
      %p41 = scmp.eq.s32.totalorder %s19, 1
      %p42 = por %p40, %p41
      %p44 = scmp.ne.s32.totalorder %s27, %s43
      %p45 = scmp.eq.s32.totalorder %s19, 0
      %p46 = por %p44, %p45
      %s48 = sadd.s32 %s47, 1
      %p51 = scmp.eq.s32.totalorder %s13, 1
      %p52 = scmp.ne.s32.totalorder %s47, %s49
      %p53 = scmp.eq.s32.totalorder %s13, 0
      %p54 = por %p52, %p53
      %p55 = scmp.ne.s32.totalorder %s47, %s49
      %p56 = scmp.eq.s32.totalorder %s18, 1
      %p57 = por %p55, %p56
      %p58 = scmp.ne.s32.totalorder %s49, %s50
      %p59 = scmp.eq.s32.totalorder %s18, 0
      %p60 = por %p58, %p59
      %p61 = scmp.ne.s32.totalorder %s49, %s50
      %p62 = scmp.eq.s32.totalorder %s19, 1
      %p63 = por %p61, %p62
      %p65 = scmp.ne.s32.totalorder %s50, %s64
      %p66 = scmp.eq.s32.totalorder %s19, 0
      %p67 = por %p65, %p66
      %s69 = sadd.s32 %s68, 1
      %p72 = scmp.eq.s32.totalorder %s13, 1
      %p73 = scmp.ne.s32.totalorder %s68, %s70
      %p74 = scmp.eq.s32.totalorder %s13, 0
      %p75 = por %p73, %p74
      %p76 = scmp.ne.s32.totalorder %s68, %s70
      %p77 = scmp.eq.s32.totalorder %s18, 1
      %p78 = por %p76, %p77
      %p79 = scmp.ne.s32.totalorder %s70, %s71
      %p80 = scmp.eq.s32.totalorder %s18, 0
      %p81 = por %p79, %p80
      %p82 = scmp.ne.s32.totalorder %s70, %s71
      %p83 = scmp.eq.s32.totalorder %s19, 1
      %p84 = por %p82, %p83
      %p86 = scmp.ne.s32.totalorder %s71, %s85
      %p87 = scmp.eq.s32.totalorder %s19, 0
      %p88 = por %p86, %p87
      %s89 = ssub.s32 %s13, %s20
      %p90 = scmp.eq.s32.totalorder %s89, 0
      %s92 = sadd.s32 %s91, 1
      %s93 = scalar_select %p90, %s91, %s92
      %p96 = pneg %p90
      %p97 = scmp.eq.s32.totalorder %s13, 1
      %p98 = por %p96, %p97
      %p99 = scmp.ne.s32.totalorder %s91, %s94
      %p100 = scmp.eq.s32.totalorder %s13, 0
      %p101 = por %p99, %p100
      %p102 = scmp.ne.s32.totalorder %s91, %s94
      %p103 = scmp.eq.s32.totalorder %s18, 1
      %p104 = por %p102, %p103
      %p105 = scmp.ne.s32.totalorder %s94, %s95
      %p106 = scmp.eq.s32.totalorder %s18, 0
      %p107 = por %p105, %p106
      %p108 = scmp.ne.s32.totalorder %s94, %s95
      %p109 = scmp.eq.s32.totalorder %s19, 1
      %p110 = por %p108, %p109
      %p112 = scmp.ne.s32.totalorder %s95, %s111
      %p113 = scmp.eq.s32.totalorder %s19, 0
      %p114 = por %p112, %p113
      %s115 = ssub.s32 %s13, %s20
      %p116 = scmp.eq.s32.totalorder %s115, 0
      %s118 = sadd.s32 %s117, 1
      %s119 = scalar_select %p116, %s117, %s118
      %p122 = pneg %p116
      %p123 = scmp.eq.s32.totalorder %s13, 1
      %p124 = por %p122, %p123
      %p125 = scmp.ne.s32.totalorder %s117, %s120
      %p126 = scmp.eq.s32.totalorder %s13, 0
      %p127 = por %p125, %p126
      %p128 = scmp.ne.s32.totalorder %s117, %s120
      %p129 = scmp.eq.s32.totalorder %s18, 1
      %p130 = por %p128, %p129
      %p131 = scmp.ne.s32.totalorder %s120, %s121
      %p132 = scmp.eq.s32.totalorder %s18, 0
      %p133 = por %p131, %p132
      %p134 = scmp.ne.s32.totalorder %s120, %s121
      %p135 = scmp.eq.s32.totalorder %s19, 1
      %p136 = por %p134, %p135
      %p138 = scmp.ne.s32.totalorder %s121, %s137
      %p139 = scmp.eq.s32.totalorder %s19, 0
      %p140 = por %p138, %p139
      %p141 = scmp.le.s32.totalorder 1, %s13
      %p142 = scmp.lt.s32.totalorder %s13, 3
      %p143 = pnand %p141, %p142
      %p144 = pneg %p143
      // Predicated region
      $region9: #{basic_lstm_forward.5} parent=5 // pred_check
        _
      $region10: #{basic_lstm_forward.5} parent=5 // pred_check_branch
        %146 = sbr.rel (%p143) target = $region12
      $region11: #{basic_lstm_forward.5} parent=5 // pred_region
        %s147 = ssub.s32 %s13, 1
        // Predicated region
        $region13: #{basic_lstm_forward.5} parent=11 // pred_check
          %p148 = pneg %p60
        $region14: #{basic_lstm_forward.5} parent=11 // pred_check_branch
          %150 = sbr.rel (%p148) target = $region16
        $region15: #{basic_lstm_forward.5} parent=11 // pred_region
          %s152 = ssub.s32 512, 512
          %153 = vsyncadd [#allocation3], %s152
          %s155 = sshll.u32 [#allocation2], 4
          %s156 = int_to_ptr.vmem [resolvable:$true] %s155
          %158 = dma.hbm_to_vmem [thread:$0]  %s1, 512, %s156, [#allocation3]
        $region16: #{basic_lstm_forward.5} parent=11 // pred_fallthru
          _
        // Predicated region
        $region17: #{basic_lstm_forward.5} parent=11 // pred_check
          %p159 = pneg %p81
        $region18: #{basic_lstm_forward.5} parent=11 // pred_check_branch
          %161 = sbr.rel (%p159) target = $region20
        $region19: #{basic_lstm_forward.5} parent=11 // pred_region
          %s163 = ssub.s32 128, 128
          %164 = vsyncadd [#allocation5], %s163
          %s166 = sshll.u32 [#allocation4], 4
          %s167 = int_to_ptr.vmem [resolvable:$true] %s166
          %169 = dma.hbm_to_vmem [thread:$0]  %s2, 128, %s167, [#allocation5]
        $region20: #{basic_lstm_forward.5} parent=11 // pred_fallthru
          _
      $region12: #{basic_lstm_forward.5} parent=5 // pred_fallthru
        _
      %p170 = scmp.lt.s32.totalorder %s13, 2
      // Predicated region
      $region21: #{basic_lstm_forward.5} parent=5 // pred_check
        %p171 = pneg %p170
      $region22: #{basic_lstm_forward.5} parent=5 // pred_check_branch
        %173 = sbr.rel (%p171) target = $region24
      $region23: #{basic_lstm_forward.5} parent=5 // pred_region
        // Predicated region
        $region25: #{basic_lstm_forward.5} parent=23 // pred_check
          %p174 = pneg %p33
        $region26: #{basic_lstm_forward.5} parent=23 // pred_check_branch
          %176 = sbr.rel (%p174) target = $region28
        $region27: #{basic_lstm_forward.5} parent=23 // pred_region
          %p177 = scmp.lt.s32.totalorder %s13, 1
          %s178 = scalar_select %p177, %s13, 1
          %s179 = smul.addr %s178, 8
          %s180 = scalar_lea.vmem %s0, %s179
        $region28: #{basic_lstm_forward.5} parent=23 // pred_fallthru
          _
      $region24: #{basic_lstm_forward.5} parent=5 // pred_fallthru
        _
      %p181 = scmp.le.s32.totalorder 1, %s13
      %p182 = scmp.lt.s32.totalorder %s13, 3
      %p183 = pnand %p181, %p182
      %p184 = pneg %p183
      // Predicated region
      $region29: #{basic_lstm_forward.5} parent=5 // pred_check
        _
      $region30: #{basic_lstm_forward.5} parent=5 // pred_check_branch
        %186 = sbr.rel (%p183) target = $region32
      $region31: #{basic_lstm_forward.5} parent=5 // pred_region
        %s187 = ssub.s32 %s13, 1
        // Predicated region
        $region33: #{basic_lstm_forward.5} parent=31 // pred_check
          %p188 = pneg %p60
        $region34: #{basic_lstm_forward.5} parent=31 // pred_check_branch
          %190 = sbr.rel (%p188) target = $region36
        $region35: #{basic_lstm_forward.5} parent=31 // pred_region
          %191 = dma.done [#allocation3], 512
        $region36: #{basic_lstm_forward.5} parent=31 // pred_fallthru
          _
        // Predicated region
        $region37: #{basic_lstm_forward.5} parent=31 // pred_check
          %p192 = pneg %p81
        $region38: #{basic_lstm_forward.5} parent=31 // pred_check_branch
          %194 = sbr.rel (%p192) target = $region40
        $region39: #{basic_lstm_forward.5} parent=31 // pred_region
          %195 = dma.done [#allocation5], 128
        $region40: #{basic_lstm_forward.5} parent=31 // pred_fallthru
          _
        %p196 = scmp.lt.s32.totalorder %s18, 1
        %s197 = scalar_select %p196, %s18, 1
        %s198 = smul.addr %s197, 8
        %s199 = scalar_lea.vmem %s0, %s198
        %p200 = pneg %p39
        %p201 = pneg %p36
        %p202 = pneg %p60
        %p203 = pneg %p57
        %p204 = pneg %p81
        %p205 = pneg %p78
        %p206 = pneg %p107
        %p207 = pneg %p104
        %p208 = scmp.lt.s32.totalorder %s18, 1
        %s209 = scalar_select %p208, %s18, 1
        %s210 = smul.addr %s209, 4
        %s211 = smul.addr %s210, 4
        %s212 = scalar_lea.vmem %s3, %s211
        %p213 = pneg %p133
        %p214 = pneg %p130
        %p215 = scmp.lt.s32.totalorder %s18, 1
        %s216 = scalar_select %p215, %s18, 1
        %s217 = smul.addr %s216, 4
        %s218 = smul.addr %s217, 4
        %s219 = scalar_lea.vmem %s4, %s218
        %p220 = scmp.lt.s32.totalorder %s18, 1
        %s221 = scalar_select %p220, %s18, 1
        %s222 = smul.addr %s221, 8
        %s223 = scalar_lea.vmem %s0, %s222
        %p224 = scmp.lt.s32.totalorder %s18, 1
        %s225 = scalar_select %p224, %s18, 1
        %s226 = smul.addr %s225, 4
        %s227 = smul.addr %s226, 4
        %s228 = scalar_lea.vmem %s3, %s227
        %p229 = scmp.lt.s32.totalorder %s18, 1
        %s230 = scalar_select %p229, %s18, 1
        %s231 = smul.addr %s230, 4
        %s232 = smul.addr %s231, 4
        %s233 = scalar_lea.vmem %s4, %s232
        %v235 = vld [vmem:[%s223] sm:$0xff]
        %v236 = vpack.c.bf16 %v235, %v235
        %v237 = vld [vmem:[#allocation2] sm:$0xff]
        %v238 = vld [vmem:[#allocation2 + $0x8] sm:$0xff]
        %v239 = vld [vmem:[#allocation4] sm:$0xf]
        %v241 = vlaneseq
        %v242 = vshrl.u32 %v241, 7
        %v243 = vsub.s32 0, %v242
        %v244 = vrot.slane %v239, %v243
        %v245 = vlaneseq
        %v246 = vshrl.u32 %v245, 7
        %v247 = vsub.s32 1, %v246
        %v248 = vrot.slane %v239, %v247
        %v249 = vlaneseq
        %v250 = vshrl.u32 %v249, 7
        %v251 = vsub.s32 2, %v250
        %v252 = vrot.slane %v239, %v251
        %v253 = vlaneseq
        %v254 = vshrl.u32 %v253, 7
        %v255 = vsub.s32 3, %v254
        %v256 = vrot.slane %v239, %v255
        %v263 = vunpack.c.l.b16 %v237
        %v264 = vunpack.c.h.b16 %v237
        %v265 = vunpack.c.l.b16 %v238
        %v266 = vunpack.c.h.b16 %v238
        %v267 = vpack.c.b16 %v263, %v263
        %v268 = vpack.c.b16 %v264, %v264
        %v269 = vpack.c.b16 %v265, %v265
        %v270 = vpack.c.b16 %v266, %v266
        %vm271 = vcmask 64512
        %v273 = vsel %vm271, %v236, 0
        %vm275 = vcmask 1043456
        %v277 = vsel %vm275, %v267, 0
        %v280 = vsel %vm275, %v268, 0
        %v283 = vsel %vm275, %v269, 0
        %v286 = vsel %vm275, %v270, 0
        %288 = vmatprep.subr.bf16.mxu0 %v280
        %289 = vmatpush1.bf16.msra.mxu0 %v277
        %290 = vmatprep.subr.bf16.mxu0 0
        %291 = vmatpush1.bf16.msra.mxu0 0
        %292 = vmatprep.subr.bf16.mxu0 0
        %293 = vmatpush1.bf16.msra.mxu0 0
        %294 = vmatprep.subr.bf16.mxu0 0
        %295 = vmatpush1.bf16.msra.mxu0 0
        %296 = vmatprep.subr.bf16.mxu0 0
        %297 = vmatpush1.bf16.msra.mxu0 0
        %298 = vmatprep.subr.bf16.mxu0 0
        %299 = vmatpush1.bf16.msra.mxu0 0
        %300 = vmatprep.subr.bf16.mxu0 0
        %301 = vmatpush1.bf16.msra.mxu0 0
        %302 = vmatprep.subr.bf16.mxu0 0
        %303 = vmatpush1.bf16.msra.mxu0 0
        %304 = vmatprep.subr.bf16.mxu0 0
        %305 = vmatpush1.bf16.msra.mxu0 0
        %306 = vmatprep.subr.bf16.mxu0 0
        %307 = vmatpush1.bf16.msra.mxu0 0
        %308 = vmatprep.subr.bf16.mxu0 0
        %309 = vmatpush1.bf16.msra.mxu0 0
        %310 = vmatprep.subr.bf16.mxu0 0
        %311 = vmatpush1.bf16.msra.mxu0 0
        %312 = vmatprep.subr.bf16.mxu0 0
        %313 = vmatpush1.bf16.msra.mxu0 0
        %314 = vmatprep.subr.bf16.mxu0 0
        %315 = vmatpush1.bf16.msra.mxu0 0
        %316 = vmatprep.subr.bf16.mxu0 0
        %317 = vmatpush1.bf16.msra.mxu0 0
        %318 = vmatprep.subr.bf16.mxu0 0
        %319 = vmatpush1.bf16.msra.mxu0 0
        %320 = vmatprep.mubr.bf16.mxu0 0
        %321 = vmatmul.mubr.bf16.gmra.mrb[0].mxu0 %v273
        %v322 = vpop.f32.mrb[0].mxu0
        %v323 = vadd.f32 %v244, %v322
        %v324 = vpop.f32.mrb[0].mxu0
        %v325 = vadd.f32 %v248, %v324
        %v326 = vpop.f32.mrb[0].mxu0
        %v327 = vpop.f32.mrb[0].mxu0
        %328 = vdwg.mxu0
        %329 = vmatprep.subr.bf16.mxu0 %v286
        %330 = vmatpush1.bf16.msra.mxu0 %v283
        %331 = vmatprep.subr.bf16.mxu0 0
        %332 = vmatpush1.bf16.msra.mxu0 0
        %333 = vmatprep.subr.bf16.mxu0 0
        %334 = vmatpush1.bf16.msra.mxu0 0
        %335 = vmatprep.subr.bf16.mxu0 0
        %336 = vmatpush1.bf16.msra.mxu0 0
        %337 = vmatprep.subr.bf16.mxu0 0
        %338 = vmatpush1.bf16.msra.mxu0 0
        %339 = vmatprep.subr.bf16.mxu0 0
        %340 = vmatpush1.bf16.msra.mxu0 0
        %341 = vmatprep.subr.bf16.mxu0 0
        %342 = vmatpush1.bf16.msra.mxu0 0
        %343 = vmatprep.subr.bf16.mxu0 0
        %344 = vmatpush1.bf16.msra.mxu0 0
        %345 = vmatprep.subr.bf16.mxu0 0
        %346 = vmatpush1.bf16.msra.mxu0 0
        %347 = vmatprep.subr.bf16.mxu0 0
        %348 = vmatpush1.bf16.msra.mxu0 0
        %349 = vmatprep.subr.bf16.mxu0 0
        %350 = vmatpush1.bf16.msra.mxu0 0
        %351 = vmatprep.subr.bf16.mxu0 0
        %352 = vmatpush1.bf16.msra.mxu0 0
        %353 = vmatprep.subr.bf16.mxu0 0
        %354 = vmatpush1.bf16.msra.mxu0 0
        %355 = vmatprep.subr.bf16.mxu0 0
        %356 = vmatpush1.bf16.msra.mxu0 0
        %357 = vmatprep.subr.bf16.mxu0 0
        %358 = vmatpush1.bf16.msra.mxu0 0
        %359 = vmatprep.subr.bf16.mxu0 0
        %360 = vmatpush1.bf16.msra.mxu0 0
        %361 = vmatprep.mubr.bf16.mxu0 0
        %362 = vmatmul.mubr.bf16.gmra.mrb[0].mxu0 %v273
        %v363 = vpop.f32.mrb[0].mxu0
        %v364 = vadd.f32 %v252, %v363
        %v365 = vpop.f32.mrb[0].mxu0
        %v366 = vadd.f32 %v256, %v365
        %v367 = vpop.f32.mrb[0].mxu0
        %v368 = vpop.f32.mrb[0].mxu0
        %369 = vdwg.mxu0
        %v370 = vpack.c.bf16 %v323, %v323
        %v371 = vpack.c.bf16 %v325, %v325
        %v372 = vpack.c.bf16 %v364, %v364
        %v373 = vpack.c.bf16 %v366, %v366
        %v378 = vunpack.c.l.b16 %v370
        %v379 = vunpack.c.l.b16 %v371
        %v380 = vunpack.c.l.b16 %v372
        %v381 = vunpack.c.l.b16 %v373
        %v382 = vpack.c.b16 %v379, %v378
        %v383 = vpack.c.b16 %v381, %v380
        %386 = vst [vmem:[%s228] sm:$0xff] %v382
        %387 = vst [vmem:[%s228 + $0x8] sm:$0xff] %v383
        %v388 = vld [vmem:[#allocation2 + $0x10] sm:$0xff]
        %v389 = vld [vmem:[#allocation2 + $0x18] sm:$0xff]
        %v390 = vld [vmem:[#allocation4 + $0x4] sm:$0xf]
        %v392 = vlaneseq
        %v393 = vshrl.u32 %v392, 7
        %v394 = vsub.s32 0, %v393
        %v395 = vrot.slane %v390, %v394
        %v396 = vlaneseq
        %v397 = vshrl.u32 %v396, 7
        %v398 = vsub.s32 1, %v397
        %v399 = vrot.slane %v390, %v398
        %v400 = vlaneseq
        %v401 = vshrl.u32 %v400, 7
        %v402 = vsub.s32 2, %v401
        %v403 = vrot.slane %v390, %v402
        %v404 = vlaneseq
        %v405 = vshrl.u32 %v404, 7
        %v406 = vsub.s32 3, %v405
        %v407 = vrot.slane %v390, %v406
        %v414 = vunpack.c.l.b16 %v388
        %v415 = vunpack.c.h.b16 %v388
        %v416 = vunpack.c.l.b16 %v389
        %v417 = vunpack.c.h.b16 %v389
        %v418 = vpack.c.b16 %v414, %v414
        %v419 = vpack.c.b16 %v415, %v415
        %v420 = vpack.c.b16 %v416, %v416
        %v421 = vpack.c.b16 %v417, %v417
        %v423 = vsel %vm275, %v418, 0
        %v426 = vsel %vm275, %v419, 0
        %v429 = vsel %vm275, %v420, 0
        %v432 = vsel %vm275, %v421, 0
        %434 = vmatprep.subr.bf16.mxu0 %v426
        %435 = vmatpush1.bf16.msra.mxu0 %v423
        %436 = vmatprep.subr.bf16.mxu0 0
        %437 = vmatpush1.bf16.msra.mxu0 0
        %438 = vmatprep.subr.bf16.mxu0 0
        %439 = vmatpush1.bf16.msra.mxu0 0
        %440 = vmatprep.subr.bf16.mxu0 0
        %441 = vmatpush1.bf16.msra.mxu0 0
        %442 = vmatprep.subr.bf16.mxu0 0
        %443 = vmatpush1.bf16.msra.mxu0 0
        %444 = vmatprep.subr.bf16.mxu0 0
        %445 = vmatpush1.bf16.msra.mxu0 0
        %446 = vmatprep.subr.bf16.mxu0 0
        %447 = vmatpush1.bf16.msra.mxu0 0
        %448 = vmatprep.subr.bf16.mxu0 0
        %449 = vmatpush1.bf16.msra.mxu0 0
        %450 = vmatprep.subr.bf16.mxu0 0
        %451 = vmatpush1.bf16.msra.mxu0 0
        %452 = vmatprep.subr.bf16.mxu0 0
        %453 = vmatpush1.bf16.msra.mxu0 0
        %454 = vmatprep.subr.bf16.mxu0 0
        %455 = vmatpush1.bf16.msra.mxu0 0
        %456 = vmatprep.subr.bf16.mxu0 0
        %457 = vmatpush1.bf16.msra.mxu0 0
        %458 = vmatprep.subr.bf16.mxu0 0
        %459 = vmatpush1.bf16.msra.mxu0 0
        %460 = vmatprep.subr.bf16.mxu0 0
        %461 = vmatpush1.bf16.msra.mxu0 0
        %462 = vmatprep.subr.bf16.mxu0 0
        %463 = vmatpush1.bf16.msra.mxu0 0
        %464 = vmatprep.subr.bf16.mxu0 0
        %465 = vmatpush1.bf16.msra.mxu0 0
        %466 = vmatprep.mubr.bf16.mxu0 0
        %467 = vmatmul.mubr.bf16.gmra.mrb[0].mxu0 %v273
        %v468 = vpop.f32.mrb[0].mxu0
        %v469 = vadd.f32 %v395, %v468
        %v470 = vpop.f32.mrb[0].mxu0
        %v471 = vadd.f32 %v399, %v470
        %v472 = vpop.f32.mrb[0].mxu0
        %v473 = vpop.f32.mrb[0].mxu0
        %474 = vdwg.mxu0
        %475 = vmatprep.subr.bf16.mxu0 %v432
        %476 = vmatpush1.bf16.msra.mxu0 %v429
        %477 = vmatprep.subr.bf16.mxu0 0
        %478 = vmatpush1.bf16.msra.mxu0 0
        %479 = vmatprep.subr.bf16.mxu0 0
        %480 = vmatpush1.bf16.msra.mxu0 0
        %481 = vmatprep.subr.bf16.mxu0 0
        %482 = vmatpush1.bf16.msra.mxu0 0
        %483 = vmatprep.subr.bf16.mxu0 0
        %484 = vmatpush1.bf16.msra.mxu0 0
        %485 = vmatprep.subr.bf16.mxu0 0
        %486 = vmatpush1.bf16.msra.mxu0 0
        %487 = vmatprep.subr.bf16.mxu0 0
        %488 = vmatpush1.bf16.msra.mxu0 0
        %489 = vmatprep.subr.bf16.mxu0 0
        %490 = vmatpush1.bf16.msra.mxu0 0
        %491 = vmatprep.subr.bf16.mxu0 0
        %492 = vmatpush1.bf16.msra.mxu0 0
        %493 = vmatprep.subr.bf16.mxu0 0
        %494 = vmatpush1.bf16.msra.mxu0 0
        %495 = vmatprep.subr.bf16.mxu0 0
        %496 = vmatpush1.bf16.msra.mxu0 0
        %497 = vmatprep.subr.bf16.mxu0 0
        %498 = vmatpush1.bf16.msra.mxu0 0
        %499 = vmatprep.subr.bf16.mxu0 0
        %500 = vmatpush1.bf16.msra.mxu0 0
        %501 = vmatprep.subr.bf16.mxu0 0
        %502 = vmatpush1.bf16.msra.mxu0 0
        %503 = vmatprep.subr.bf16.mxu0 0
        %504 = vmatpush1.bf16.msra.mxu0 0
        %505 = vmatprep.subr.bf16.mxu0 0
        %506 = vmatpush1.bf16.msra.mxu0 0
        %507 = vmatprep.mubr.bf16.mxu0 0
        %508 = vmatmul.mubr.bf16.gmra.mrb[0].mxu0 %v273
        %v509 = vpop.f32.mrb[0].mxu0
        %v510 = vadd.f32 %v403, %v509
        %v511 = vpop.f32.mrb[0].mxu0
        %v512 = vadd.f32 %v407, %v511
        %v513 = vpop.f32.mrb[0].mxu0
        %v514 = vpop.f32.mrb[0].mxu0
        %515 = vdwg.mxu0
        %v516 = vpack.c.bf16 %v469, %v469
        %v517 = vpack.c.bf16 %v471, %v471
        %v518 = vpack.c.bf16 %v510, %v510
        %v519 = vpack.c.bf16 %v512, %v512
        %v524 = vunpack.c.l.b16 %v516
        %v525 = vunpack.c.l.b16 %v517
        %v526 = vunpack.c.l.b16 %v518
        %v527 = vunpack.c.l.b16 %v519
        %v528 = vpack.c.b16 %v525, %v524
        %v529 = vpack.c.b16 %v527, %v526
        %532 = vst [vmem:[%s233] sm:$0xff] %v528
        %533 = vst [vmem:[%s233 + $0x8] sm:$0xff] %v529
        %p534 = scmp.lt.s32.totalorder %s18, 1
        %s535 = scalar_select %p534, %s18, 1
        %s536 = smul.addr %s535, 4
        %s537 = smul.addr %s536, 4
        %s538 = scalar_lea.vmem %s3, %s537
        %p539 = scmp.lt.s32.totalorder %s18, 1
        %s540 = scalar_select %p539, %s18, 1
        %s541 = smul.addr %s540, 4
        %s542 = smul.addr %s541, 4
        %s543 = scalar_lea.vmem %s4, %s542
        // Predicated region
        $region41: #{basic_lstm_forward.5} parent=31 // pred_check
          %p544 = pneg %p104
        $region42: #{basic_lstm_forward.5} parent=31 // pred_check_branch
          %546 = sbr.rel (%p544) target = $region44
        $region43: #{basic_lstm_forward.5} parent=31 // pred_region
          _
        $region44: #{basic_lstm_forward.5} parent=31 // pred_fallthru
          _
        // Predicated region
        $region45: #{basic_lstm_forward.5} parent=31 // pred_check
          %p547 = pneg %p130
        $region46: #{basic_lstm_forward.5} parent=31 // pred_check_branch
          %549 = sbr.rel (%p547) target = $region48
        $region47: #{basic_lstm_forward.5} parent=31 // pred_region
          _
        $region48: #{basic_lstm_forward.5} parent=31 // pred_fallthru
          _
      $region32: #{basic_lstm_forward.5} parent=5 // pred_fallthru
        _
      %p550 = scmp.le.s32.totalorder 2, %s13
      // Predicated region
      $region49: #{basic_lstm_forward.5} parent=5 // pred_check
        %p551 = pneg %p550
      $region50: #{basic_lstm_forward.5} parent=5 // pred_check_branch
        %553 = sbr.rel (%p551) target = $region52
      $region51: #{basic_lstm_forward.5} parent=5 // pred_region
        %s554 = ssub.s32 %s13, 2
        // Predicated region
        $region53: #{basic_lstm_forward.5} parent=51 // pred_check
          %p555 = pneg %p110
        $region54: #{basic_lstm_forward.5} parent=51 // pred_check_branch
          %557 = sbr.rel (%p555) target = $region56
        $region55: #{basic_lstm_forward.5} parent=51 // pred_region
          %p558 = scmp.lt.s32.totalorder %s19, 1
          %s559 = scalar_select %p558, %s19, 1
          %s560 = smul.addr %s559, 4
          %s561 = smul.addr %s560, 4
          %s562 = scalar_lea.vmem %s3, %s561
        $region56: #{basic_lstm_forward.5} parent=51 // pred_fallthru
          _
        // Predicated region
        $region57: #{basic_lstm_forward.5} parent=51 // pred_check
          %p563 = pneg %p136
        $region58: #{basic_lstm_forward.5} parent=51 // pred_check_branch
          %565 = sbr.rel (%p563) target = $region60
        $region59: #{basic_lstm_forward.5} parent=51 // pred_region
          %p566 = scmp.lt.s32.totalorder %s19, 1
          %s567 = scalar_select %p566, %s19, 1
          %s568 = smul.addr %s567, 4
          %s569 = smul.addr %s568, 4
          %s570 = scalar_lea.vmem %s4, %s569
        $region60: #{basic_lstm_forward.5} parent=51 // pred_fallthru
          _
      $region52: #{basic_lstm_forward.5} parent=5 // pred_fallthru
        _
    $region6: #{basic_lstm_forward.5} parent=1 // loop_footer
      %s17 = sadd.s32 1, %s13
    $region7: #{basic_lstm_forward.5} parent=1 // loop_footer_branch
      %12 = sbr.rel target = $region3
    $region8: #{basic_lstm_forward.5} parent=1 // loop_exit
      _
    %571 = vsyncpa [#allocation3], 1
    %s572 = scalar_lea.sflag [#allocation3], 1
    %573 = vsyncpa %s572, 1
    %574 = vsyncpa [#allocation5], 1

// kernel: basic_lstm_forward.7
$region0: #{basic_lstm_forward.7}
  #allocation0 [shape = 'u32[]', space=smem, size = 0x4, offset = 0x4, fixed_abs, tag = 'smem constant byte address 0x4 - core index']
  #allocation1 [shape = 'u32[144,128]{1,0:T(1,128)}', space=vmem, size = 0x12000, scoped, tag = 'internal scratch']
  %s0 = inlined_call_operand.vmem [shape: bf16[16,128], index: 0, kind: input, shape index: {}]
  %s1 = inlined_call_operand.vmem [shape: bf16[16,128], index: 1, kind: input, shape index: {}]
  %s2 = inlined_call_operand.vmem [shape: bf16[128,1024], index: 2, kind: input, shape index: {}]
  %s3 = inlined_call_operand.hbm [shape: bf16[128,1024], index: 3, kind: input, shape index: {}]
  %s4 = inlined_call_operand.vmem [shape: f32[1,1024], index: 4, kind: input, shape index: {}]
  %s5 = inlined_call_operand.vmem [shape: bf16[16,512], index: 5, kind: output, shape index: {0}]
  %s6 = inlined_call_operand.vmem [shape: bf16[16,512], index: 6, kind: output, shape index: {1}]
  %7 = xla_tuple %s5, %s6
  %s8 = sld [smem:[#allocation0]]
  $region65: #{basic_lstm_forward.7} parent=0
    _
  %s10 = ssub.s32 1, %s8
  %s11 = scalar_select 0, %s10, %s8
  $region1: #{basic_lstm_forward.7} parent=0
    #allocation2 [shape = 'u8[262144]{0}', space=vmem, size = 0x40000, scoped, tag = 'input window, operand 3, single buffered']
    #allocation3 [shape = 's32[2]{0}', space=sflag, size = 0x8, scoped, tag = 'scoped memory for basic_lstm_forward.7']
    %12 = vsyncpa [#allocation3], 0
    loop: start=0, step=1, limit=4
    $region2: #{basic_lstm_forward.7} parent=1 // loop_pre_header
      _
    $region3: #{basic_lstm_forward.7} parent=1 // loop_header
      %s14 = sphi 0, %s18
      %p15 = scmp.ge.s32.totalorder %s14, 4
      %s24 = sphi 0, %s26
      %s27 = sphi 0, %s24
      %s28 = sphi 0, %s27
      %s44 = sphi 0, %s28
      %s50 = sphi 0, %s52
      %s53 = sphi 0, %s50
      %s54 = sphi 0, %s53
      %s70 = sphi 0, %s54
      %s74 = sphi 0, %s74
      %s76 = sphi 0, %s74
      %s77 = sphi 0, %s76
      %s91 = sphi 0, %s77
      %s95 = sphi 0, %s95
      %s97 = sphi 0, %s95
      %s98 = sphi 0, %s97
      %s112 = sphi 0, %s98
      %s116 = sphi 0, %s116
      %s118 = sphi 0, %s116
      %s119 = sphi 0, %s118
      %s133 = sphi 0, %s119
      %s139 = sphi 0, %s141
      %s142 = sphi 0, %s139
      %s143 = sphi 0, %s142
      %s159 = sphi 0, %s143
      %s165 = sphi 0, %s167
      %s168 = sphi 0, %s165
      %s169 = sphi 0, %s168
      %s185 = sphi 0, %s169
    $region4: #{basic_lstm_forward.7} parent=1 // loop_header_branch
      %17 = sbr.rel (%p15) target = $region8
    $region5: #{basic_lstm_forward.7} parent=1 // loop_body
      %s19 = ssub.s32 %s14, 1
      %s20 = ssub.s32 %s14, 2
      %s21 = sadd.s32 %s14, 1
      %s22 = ssub.s32 %s14, %s21
      %p23 = scmp.eq.s32.totalorder %s22, 0
      %s25 = sadd.s32 %s24, 1
      %s26 = scalar_select %p23, %s24, %s25
      %p29 = pneg %p23
      %p30 = scmp.eq.s32.totalorder %s14, 1
      %p31 = por %p29, %p30
      %p32 = scmp.ne.s32.totalorder %s24, %s27
      %p33 = scmp.eq.s32.totalorder %s14, 0
      %p34 = por %p32, %p33
      %p35 = scmp.ne.s32.totalorder %s24, %s27
      %p36 = scmp.eq.s32.totalorder %s19, 1
      %p37 = por %p35, %p36
      %p38 = scmp.ne.s32.totalorder %s27, %s28
      %p39 = scmp.eq.s32.totalorder %s19, 0
      %p40 = por %p38, %p39
      %p41 = scmp.ne.s32.totalorder %s27, %s28
      %p42 = scmp.eq.s32.totalorder %s20, 1
      %p43 = por %p41, %p42
      %p45 = scmp.ne.s32.totalorder %s28, %s44
      %p46 = scmp.eq.s32.totalorder %s20, 0
      %p47 = por %p45, %p46
      %s48 = ssub.s32 %s14, %s21
      %p49 = scmp.eq.s32.totalorder %s48, 0
      %s51 = sadd.s32 %s50, 1
      %s52 = scalar_select %p49, %s50, %s51
      %p55 = pneg %p49
      %p56 = scmp.eq.s32.totalorder %s14, 1
      %p57 = por %p55, %p56
      %p58 = scmp.ne.s32.totalorder %s50, %s53
      %p59 = scmp.eq.s32.totalorder %s14, 0
      %p60 = por %p58, %p59
      %p61 = scmp.ne.s32.totalorder %s50, %s53
      %p62 = scmp.eq.s32.totalorder %s19, 1
      %p63 = por %p61, %p62
      %p64 = scmp.ne.s32.totalorder %s53, %s54
      %p65 = scmp.eq.s32.totalorder %s19, 0
      %p66 = por %p64, %p65
      %p67 = scmp.ne.s32.totalorder %s53, %s54
      %p68 = scmp.eq.s32.totalorder %s20, 1
      %p69 = por %p67, %p68
      %p71 = scmp.ne.s32.totalorder %s54, %s70
      %p72 = scmp.eq.s32.totalorder %s20, 0
      %p73 = por %p71, %p72
      %s75 = sadd.s32 %s74, 1
      %p78 = scmp.eq.s32.totalorder %s14, 1
      %p79 = scmp.ne.s32.totalorder %s74, %s76
      %p80 = scmp.eq.s32.totalorder %s14, 0
      %p81 = por %p79, %p80
      %p82 = scmp.ne.s32.totalorder %s74, %s76
      %p83 = scmp.eq.s32.totalorder %s19, 1
      %p84 = por %p82, %p83
      %p85 = scmp.ne.s32.totalorder %s76, %s77
      %p86 = scmp.eq.s32.totalorder %s19, 0
      %p87 = por %p85, %p86
      %p88 = scmp.ne.s32.totalorder %s76, %s77
      %p89 = scmp.eq.s32.totalorder %s20, 1
      %p90 = por %p88, %p89
      %p92 = scmp.ne.s32.totalorder %s77, %s91
      %p93 = scmp.eq.s32.totalorder %s20, 0
      %p94 = por %p92, %p93
      %s96 = sadd.s32 %s95, 1
      %p99 = scmp.eq.s32.totalorder %s14, 1
      %p100 = scmp.ne.s32.totalorder %s95, %s97
      %p101 = scmp.eq.s32.totalorder %s14, 0
      %p102 = por %p100, %p101
      %p103 = scmp.ne.s32.totalorder %s95, %s97
      %p104 = scmp.eq.s32.totalorder %s19, 1
      %p105 = por %p103, %p104
      %p106 = scmp.ne.s32.totalorder %s97, %s98
      %p107 = scmp.eq.s32.totalorder %s19, 0
      %p108 = por %p106, %p107
      %p109 = scmp.ne.s32.totalorder %s97, %s98
      %p110 = scmp.eq.s32.totalorder %s20, 1
      %p111 = por %p109, %p110
      %p113 = scmp.ne.s32.totalorder %s98, %s112
      %p114 = scmp.eq.s32.totalorder %s20, 0
      %p115 = por %p113, %p114
      %s117 = sadd.s32 %s116, 1
      %p120 = scmp.eq.s32.totalorder %s14, 1
      %p121 = scmp.ne.s32.totalorder %s116, %s118
      %p122 = scmp.eq.s32.totalorder %s14, 0
      %p123 = por %p121, %p122
      %p124 = scmp.ne.s32.totalorder %s116, %s118
      %p125 = scmp.eq.s32.totalorder %s19, 1
      %p126 = por %p124, %p125
      %p127 = scmp.ne.s32.totalorder %s118, %s119
      %p128 = scmp.eq.s32.totalorder %s19, 0
      %p129 = por %p127, %p128
      %p130 = scmp.ne.s32.totalorder %s118, %s119
      %p131 = scmp.eq.s32.totalorder %s20, 1
      %p132 = por %p130, %p131
      %p134 = scmp.ne.s32.totalorder %s119, %s133
      %p135 = scmp.eq.s32.totalorder %s20, 0
      %p136 = por %p134, %p135
      %s137 = ssub.s32 %s14, %s21
      %p138 = scmp.eq.s32.totalorder %s137, 0
      %s140 = sadd.s32 %s139, 1
      %s141 = scalar_select %p138, %s139, %s140
      %p144 = pneg %p138
      %p145 = scmp.eq.s32.totalorder %s14, 1
      %p146 = por %p144, %p145
      %p147 = scmp.ne.s32.totalorder %s139, %s142
      %p148 = scmp.eq.s32.totalorder %s14, 0
      %p149 = por %p147, %p148
      %p150 = scmp.ne.s32.totalorder %s139, %s142
      %p151 = scmp.eq.s32.totalorder %s19, 1
      %p152 = por %p150, %p151
      %p153 = scmp.ne.s32.totalorder %s142, %s143
      %p154 = scmp.eq.s32.totalorder %s19, 0
      %p155 = por %p153, %p154
      %p156 = scmp.ne.s32.totalorder %s142, %s143
      %p157 = scmp.eq.s32.totalorder %s20, 1
      %p158 = por %p156, %p157
      %p160 = scmp.ne.s32.totalorder %s143, %s159
      %p161 = scmp.eq.s32.totalorder %s20, 0
      %p162 = por %p160, %p161
      %s163 = ssub.s32 %s14, %s21
      %p164 = scmp.eq.s32.totalorder %s163, 0
      %s166 = sadd.s32 %s165, 1
      %s167 = scalar_select %p164, %s165, %s166
      %p170 = pneg %p164
      %p171 = scmp.eq.s32.totalorder %s14, 1
      %p172 = por %p170, %p171
      %p173 = scmp.ne.s32.totalorder %s165, %s168
      %p174 = scmp.eq.s32.totalorder %s14, 0
      %p175 = por %p173, %p174
      %p176 = scmp.ne.s32.totalorder %s165, %s168
      %p177 = scmp.eq.s32.totalorder %s19, 1
      %p178 = por %p176, %p177
      %p179 = scmp.ne.s32.totalorder %s168, %s169
      %p180 = scmp.eq.s32.totalorder %s19, 0
      %p181 = por %p179, %p180
      %p182 = scmp.ne.s32.totalorder %s168, %s169
      %p183 = scmp.eq.s32.totalorder %s20, 1
      %p184 = por %p182, %p183
      %p186 = scmp.ne.s32.totalorder %s169, %s185
      %p187 = scmp.eq.s32.totalorder %s20, 0
      %p188 = por %p186, %p187
      %p189 = scmp.le.s32.totalorder 1, %s14
      %p190 = scmp.lt.s32.totalorder %s14, 3
      %p191 = pnand %p189, %p190
      %p192 = pneg %p191
      // Predicated region
      $region9: #{basic_lstm_forward.7} parent=5 // pred_check
        _
      $region10: #{basic_lstm_forward.7} parent=5 // pred_check_branch
        %194 = sbr.rel (%p191) target = $region12
      $region11: #{basic_lstm_forward.7} parent=5 // pred_region
        %s195 = ssub.s32 %s14, 1
        // Predicated region
        $region13: #{basic_lstm_forward.7} parent=11 // pred_check
          %p196 = pneg %p87
        $region14: #{basic_lstm_forward.7} parent=11 // pred_check_branch
          %198 = sbr.rel (%p196) target = $region16
        $region15: #{basic_lstm_forward.7} parent=11 // pred_region
          _
        $region16: #{basic_lstm_forward.7} parent=11 // pred_fallthru
          _
        // Predicated region
        $region17: #{basic_lstm_forward.7} parent=11 // pred_check
          %p199 = pneg %p108
        $region18: #{basic_lstm_forward.7} parent=11 // pred_check_branch
          %201 = sbr.rel (%p199) target = $region20
        $region19: #{basic_lstm_forward.7} parent=11 // pred_region
          %s203 = ssub.s32 8192, 8192
          %204 = vsyncadd [#allocation3], %s203
          %s205 = sshll.u32 [#allocation2], 4
          %s206 = int_to_ptr.vmem [resolvable:$true] %s205
          %211 = dma.hbm_to_vmem [thread:$0]  %s3, 8192, %s206, [#allocation3], 512, 512, 32
        $region20: #{basic_lstm_forward.7} parent=11 // pred_fallthru
          _
        // Predicated region
        $region21: #{basic_lstm_forward.7} parent=11 // pred_check
          %p212 = pneg %p129
        $region22: #{basic_lstm_forward.7} parent=11 // pred_check_branch
          %214 = sbr.rel (%p212) target = $region24
        $region23: #{basic_lstm_forward.7} parent=11 // pred_region
          _
        $region24: #{basic_lstm_forward.7} parent=11 // pred_fallthru
          _
      $region12: #{basic_lstm_forward.7} parent=5 // pred_fallthru
        _
      %p215 = scmp.lt.s32.totalorder %s14, 2
      // Predicated region
      $region25: #{basic_lstm_forward.7} parent=5 // pred_check
        %p216 = pneg %p215
      $region26: #{basic_lstm_forward.7} parent=5 // pred_check_branch
        %218 = sbr.rel (%p216) target = $region28
      $region27: #{basic_lstm_forward.7} parent=5 // pred_region
        // Predicated region
        $region29: #{basic_lstm_forward.7} parent=27 // pred_check
          %p219 = pneg %p34
        $region30: #{basic_lstm_forward.7} parent=27 // pred_check_branch
          %221 = sbr.rel (%p219) target = $region32
        $region31: #{basic_lstm_forward.7} parent=27 // pred_region
          %p222 = scmp.lt.s32.totalorder %s14, 1
          %s223 = scalar_select %p222, %s14, 1
          %s224 = smul.addr %s223, 4
          %s225 = scalar_lea.vmem %s0, %s224
        $region32: #{basic_lstm_forward.7} parent=27 // pred_fallthru
          _
        // Predicated region
        $region33: #{basic_lstm_forward.7} parent=27 // pred_check
          %p226 = pneg %p60
        $region34: #{basic_lstm_forward.7} parent=27 // pred_check_branch
          %228 = sbr.rel (%p226) target = $region36
        $region35: #{basic_lstm_forward.7} parent=27 // pred_region
          %p229 = scmp.lt.s32.totalorder %s14, 1
          %s230 = scalar_select %p229, %s14, 1
          %s231 = smul.addr %s230, 4
          %s232 = scalar_lea.vmem %s1, %s231
        $region36: #{basic_lstm_forward.7} parent=27 // pred_fallthru
          _
      $region28: #{basic_lstm_forward.7} parent=5 // pred_fallthru
        _
      %p233 = scmp.le.s32.totalorder 1, %s14
      %p234 = scmp.lt.s32.totalorder %s14, 3
      %p235 = pnand %p233, %p234
      %p236 = pneg %p235
      // Predicated region
      $region37: #{basic_lstm_forward.7} parent=5 // pred_check
        _
      $region38: #{basic_lstm_forward.7} parent=5 // pred_check_branch
        %238 = sbr.rel (%p235) target = $region40
      $region39: #{basic_lstm_forward.7} parent=5 // pred_region
        %s239 = ssub.s32 %s14, 1
        // Predicated region
        $region41: #{basic_lstm_forward.7} parent=39 // pred_check
          %p240 = pneg %p108
        $region42: #{basic_lstm_forward.7} parent=39 // pred_check_branch
          %242 = sbr.rel (%p240) target = $region44
        $region43: #{basic_lstm_forward.7} parent=39 // pred_region
          %243 = dma.done [#allocation3], 8192
        $region44: #{basic_lstm_forward.7} parent=39 // pred_fallthru
          _
        %p244 = scmp.lt.s32.totalorder %s19, 1
        %s245 = scalar_select %p244, %s19, 1
        %s246 = smul.addr %s245, 4
        %s247 = scalar_lea.vmem %s0, %s246
        %p248 = pneg %p40
        %p249 = pneg %p37
        %p250 = scmp.lt.s32.totalorder %s19, 1
        %s251 = scalar_select %p250, %s19, 1
        %s252 = smul.addr %s251, 4
        %s253 = scalar_lea.vmem %s1, %s252
        %p254 = pneg %p66
        %p255 = pneg %p63
        %p256 = pneg %p87
        %p257 = pneg %p84
        %p258 = pneg %p108
        %p259 = pneg %p105
        %p260 = pneg %p129
        %p261 = pneg %p126
        %p262 = pneg %p155
        %p263 = pneg %p152
        %p264 = scmp.lt.s32.totalorder %s19, 1
        %s265 = scalar_select %p264, %s19, 1
        %s266 = smul.addr %s265, 4
        %s267 = smul.addr %s266, 4
        %s268 = scalar_lea.vmem %s5, %s267
        %p269 = pneg %p181
        %p270 = pneg %p178
        %p271 = scmp.lt.s32.totalorder %s19, 1
        %s272 = scalar_select %p271, %s19, 1
        %s273 = smul.addr %s272, 4
        %s274 = smul.addr %s273, 4
        %s275 = scalar_lea.vmem %s6, %s274
        %p276 = scmp.lt.s32.totalorder %s19, 1
        %s277 = scalar_select %p276, %s19, 1
        %s278 = smul.addr %s277, 4
        %s279 = scalar_lea.vmem %s0, %s278
        %p280 = scmp.lt.s32.totalorder %s19, 1
        %s281 = scalar_select %p280, %s19, 1
        %s282 = smul.addr %s281, 4
        %s283 = scalar_lea.vmem %s1, %s282
        %p284 = scmp.lt.s32.totalorder %s19, 1
        %s285 = scalar_select %p284, %s19, 1
        %s286 = smul.addr %s285, 4
        %s287 = smul.addr %s286, 4
        %s288 = scalar_lea.vmem %s5, %s287
        %p289 = scmp.lt.s32.totalorder %s19, 1
        %s290 = scalar_select %p289, %s19, 1
        %s291 = smul.addr %s290, 4
        %s292 = smul.addr %s291, 4
        %s293 = scalar_lea.vmem %s6, %s292
        %v295 = vld [vmem:[%s279] sm:$0xf]
        %v296 = vld [vmem:[%s283] sm:$0xf]
        %v297 = vld [vmem:[%s2] sm:$0xff]
        %v298 = vld [vmem:[%s2 + $0x8] sm:$0xff]
        %v299 = vld [vmem:[%s2 + $0x20] sm:$0xff]
        %v300 = vld [vmem:[%s2 + $0x28] sm:$0xff]
        %v301 = vld [vmem:[%s2 + $0x40] sm:$0xff]
        %v302 = vld [vmem:[%s2 + $0x48] sm:$0xff]
        %v303 = vld [vmem:[%s2 + $0x60] sm:$0xff]
        %v304 = vld [vmem:[%s2 + $0x68] sm:$0xff]
        %v305 = vld [vmem:[%s2 + $0x80] sm:$0xff]
        %v306 = vld [vmem:[%s2 + $0x88] sm:$0xff]
        %v307 = vld [vmem:[%s2 + $0xa0] sm:$0xff]
        %v308 = vld [vmem:[%s2 + $0xa8] sm:$0xff]
        %v309 = vld [vmem:[%s2 + $0xc0] sm:$0xff]
        %v310 = vld [vmem:[%s2 + $0xc8] sm:$0xff]
        %v311 = vld [vmem:[%s2 + $0xe0] sm:$0xff]
        %v312 = vld [vmem:[%s2 + $0xe8] sm:$0xff]
        %v313 = vld [vmem:[%s2 + $0x100] sm:$0xff]
        %v314 = vld [vmem:[%s2 + $0x108] sm:$0xff]
        %v315 = vld [vmem:[%s2 + $0x120] sm:$0xff]
        %v316 = vld [vmem:[%s2 + $0x128] sm:$0xff]
        %v317 = vld [vmem:[%s2 + $0x140] sm:$0xff]
        %v318 = vld [vmem:[%s2 + $0x148] sm:$0xff]
        %v319 = vld [vmem:[%s2 + $0x160] sm:$0xff]
        %v320 = vld [vmem:[%s2 + $0x168] sm:$0xff]
        %v321 = vld [vmem:[%s2 + $0x180] sm:$0xff]
        %v322 = vld [vmem:[%s2 + $0x188] sm:$0xff]
        %v323 = vld [vmem:[%s2 + $0x1a0] sm:$0xff]
        %v324 = vld [vmem:[%s2 + $0x1a8] sm:$0xff]
        %v325 = vld [vmem:[%s2 + $0x1c0] sm:$0xff]
        %v326 = vld [vmem:[%s2 + $0x1c8] sm:$0xff]
        %v327 = vld [vmem:[%s2 + $0x1e0] sm:$0xff]
        %v328 = vld [vmem:[%s2 + $0x1e8] sm:$0xff]
        %v329 = vld [vmem:[#allocation2] sm:$0xff]
        %v330 = vld [vmem:[#allocation2 + $0x8] sm:$0xff]
        %v331 = vld [vmem:[#allocation2 + $0x20] sm:$0xff]
        %v332 = vld [vmem:[#allocation2 + $0x28] sm:$0xff]
        %v333 = vld [vmem:[#allocation2 + $0x40] sm:$0xff]
        %v334 = vld [vmem:[#allocation2 + $0x48] sm:$0xff]
        %v335 = vld [vmem:[#allocation2 + $0x60] sm:$0xff]
        %v336 = vld [vmem:[#allocation2 + $0x68] sm:$0xff]
        %v337 = vld [vmem:[#allocation2 + $0x80] sm:$0xff]
        %v338 = vld [vmem:[#allocation2 + $0x88] sm:$0xff]
        %v339 = vld [vmem:[#allocation2 + $0xa0] sm:$0xff]
        %v340 = vld [vmem:[#allocation2 + $0xa8] sm:$0xff]
        %v341 = vld [vmem:[#allocation2 + $0xc0] sm:$0xff]
        %v342 = vld [vmem:[#allocation2 + $0xc8] sm:$0xff]
        %v343 = vld [vmem:[#allocation2 + $0xe0] sm:$0xff]
        %v344 = vld [vmem:[#allocation2 + $0xe8] sm:$0xff]
        %v345 = vld [vmem:[#allocation2 + $0x100] sm:$0xff]
        %v346 = vld [vmem:[#allocation2 + $0x108] sm:$0xff]
        %v347 = vld [vmem:[#allocation2 + $0x120] sm:$0xff]
        %v348 = vld [vmem:[#allocation2 + $0x128] sm:$0xff]
        %v349 = vld [vmem:[#allocation2 + $0x140] sm:$0xff]
        %v350 = vld [vmem:[#allocation2 + $0x148] sm:$0xff]
        %v351 = vld [vmem:[#allocation2 + $0x160] sm:$0xff]
        %v352 = vld [vmem:[#allocation2 + $0x168] sm:$0xff]
        %v353 = vld [vmem:[#allocation2 + $0x180] sm:$0xff]
        %v354 = vld [vmem:[#allocation2 + $0x188] sm:$0xff]
        %v355 = vld [vmem:[#allocation2 + $0x1a0] sm:$0xff]
        %v356 = vld [vmem:[#allocation2 + $0x1a8] sm:$0xff]
        %v357 = vld [vmem:[#allocation2 + $0x1c0] sm:$0xff]
        %v358 = vld [vmem:[#allocation2 + $0x1c8] sm:$0xff]
        %v359 = vld [vmem:[#allocation2 + $0x1e0] sm:$0xff]
        %v360 = vld [vmem:[#allocation2 + $0x1e8] sm:$0xff]
        %v393 = vunpack.c.l.b16 %v329
        %v394 = vunpack.c.h.b16 %v329
        %v395 = vunpack.c.l.b16 %v330
        %v396 = vunpack.c.h.b16 %v330
        %v397 = vunpack.c.l.b16 %v331
        %v398 = vunpack.c.h.b16 %v331
        %v399 = vunpack.c.l.b16 %v332
        %v400 = vunpack.c.h.b16 %v332
        %v401 = vunpack.c.l.b16 %v333
        %v402 = vunpack.c.h.b16 %v333
        %v403 = vunpack.c.l.b16 %v334
        %v404 = vunpack.c.h.b16 %v334
        %v405 = vunpack.c.l.b16 %v335
        %v406 = vunpack.c.h.b16 %v335
        %v407 = vunpack.c.l.b16 %v336
        %v408 = vunpack.c.h.b16 %v336
        %v409 = vunpack.c.l.b16 %v337
        %v410 = vunpack.c.h.b16 %v337
        %v411 = vunpack.c.l.b16 %v338
        %v412 = vunpack.c.h.b16 %v338
        %v413 = vunpack.c.l.b16 %v339
        %v414 = vunpack.c.h.b16 %v339
        %v415 = vunpack.c.l.b16 %v340
        %v416 = vunpack.c.h.b16 %v340
        %v417 = vunpack.c.l.b16 %v341
        %v418 = vunpack.c.h.b16 %v341
        %v419 = vunpack.c.l.b16 %v342
        %v420 = vunpack.c.h.b16 %v342
        %v421 = vunpack.c.l.b16 %v343
        %v422 = vunpack.c.h.b16 %v343
        %v423 = vunpack.c.l.b16 %v344
        %v424 = vunpack.c.h.b16 %v344
        %v425 = vunpack.c.l.b16 %v345
        %v426 = vunpack.c.h.b16 %v345
        %v427 = vunpack.c.l.b16 %v346
        %v428 = vunpack.c.h.b16 %v346
        %v429 = vunpack.c.l.b16 %v347
        %v430 = vunpack.c.h.b16 %v347
        %v431 = vunpack.c.l.b16 %v348
        %v432 = vunpack.c.h.b16 %v348
        %v433 = vunpack.c.l.b16 %v349
        %v434 = vunpack.c.h.b16 %v349
        %v435 = vunpack.c.l.b16 %v350
        %v436 = vunpack.c.h.b16 %v350
        %v437 = vunpack.c.l.b16 %v351
        %v438 = vunpack.c.h.b16 %v351
        %v439 = vunpack.c.l.b16 %v352
        %v440 = vunpack.c.h.b16 %v352
        %v441 = vunpack.c.l.b16 %v353
        %v442 = vunpack.c.h.b16 %v353
        %v443 = vunpack.c.l.b16 %v354
        %v444 = vunpack.c.h.b16 %v354
        %v445 = vunpack.c.l.b16 %v355
        %v446 = vunpack.c.h.b16 %v355
        %v447 = vunpack.c.l.b16 %v356
        %v448 = vunpack.c.h.b16 %v356
        %v449 = vunpack.c.l.b16 %v357
        %v450 = vunpack.c.h.b16 %v357
        %v451 = vunpack.c.l.b16 %v358
        %v452 = vunpack.c.h.b16 %v358
        %v453 = vunpack.c.l.b16 %v359
        %v454 = vunpack.c.h.b16 %v359
        %v455 = vunpack.c.l.b16 %v360
        %v456 = vunpack.c.h.b16 %v360
        %v457 = vpack.c.b16 %v397, %v393
        %v458 = vpack.c.b16 %v398, %v394
        %v459 = vpack.c.b16 %v399, %v395
        %v460 = vpack.c.b16 %v400, %v396
        %v461 = vpack.c.b16 %v405, %v401
        %v462 = vpack.c.b16 %v406, %v402
        %v463 = vpack.c.b16 %v407, %v403
        %v464 = vpack.c.b16 %v408, %v404
        %v465 = vpack.c.b16 %v413, %v409
        %v466 = vpack.c.b16 %v414, %v410
        %v467 = vpack.c.b16 %v415, %v411
        %v468 = vpack.c.b16 %v416, %v412
        %v469 = vpack.c.b16 %v421, %v417
        %v470 = vpack.c.b16 %v422, %v418
        %v471 = vpack.c.b16 %v423, %v419
        %v472 = vpack.c.b16 %v424, %v420
        %v473 = vpack.c.b16 %v429, %v425
        %v474 = vpack.c.b16 %v430, %v426
        %v475 = vpack.c.b16 %v431, %v427
        %v476 = vpack.c.b16 %v432, %v428
        %v477 = vpack.c.b16 %v437, %v433
        %v478 = vpack.c.b16 %v438, %v434
        %v479 = vpack.c.b16 %v439, %v435
        %v480 = vpack.c.b16 %v440, %v436
        %v481 = vpack.c.b16 %v445, %v441
        %v482 = vpack.c.b16 %v446, %v442
        %v483 = vpack.c.b16 %v447, %v443
        %v484 = vpack.c.b16 %v448, %v444
        %v485 = vpack.c.b16 %v453, %v449
        %v486 = vpack.c.b16 %v454, %v450
        %v487 = vpack.c.b16 %v455, %v451
        %v488 = vpack.c.b16 %v456, %v452
        %521 = vmatprep.subr.bf16.mxu0 %v458
        %522 = vmatpush1.bf16.msra.mxu0 %v457
        %523 = vmatprep.subr.bf16.mxu0 %v462
        %524 = vmatpush1.bf16.msra.mxu0 %v461
        %525 = vmatprep.subr.bf16.mxu0 %v466
        %526 = vmatpush1.bf16.msra.mxu0 %v465
        %527 = vmatprep.subr.bf16.mxu0 %v470
        %528 = vmatpush1.bf16.msra.mxu0 %v469
        %529 = vmatprep.subr.bf16.mxu0 %v474
        %530 = vmatpush1.bf16.msra.mxu0 %v473
        %531 = vmatprep.subr.bf16.mxu0 %v478
        %532 = vmatpush1.bf16.msra.mxu0 %v477
        %533 = vmatprep.subr.bf16.mxu0 %v482
        %534 = vmatpush1.bf16.msra.mxu0 %v481
        %535 = vmatprep.subr.bf16.mxu0 %v486
        %536 = vmatpush1.bf16.msra.mxu0 %v485
        %537 = vmatprep.subr.bf16.mxu0 0
        %538 = vmatpush1.bf16.msra.mxu0 0
        %539 = vmatprep.subr.bf16.mxu0 0
        %540 = vmatpush1.bf16.msra.mxu0 0
        %541 = vmatprep.subr.bf16.mxu0 0
        %542 = vmatpush1.bf16.msra.mxu0 0
        %543 = vmatprep.subr.bf16.mxu0 0
        %544 = vmatpush1.bf16.msra.mxu0 0
        %545 = vmatprep.subr.bf16.mxu0 0
        %546 = vmatpush1.bf16.msra.mxu0 0
        %547 = vmatprep.subr.bf16.mxu0 0
        %548 = vmatpush1.bf16.msra.mxu0 0
        %549 = vmatprep.subr.bf16.mxu0 0
        %550 = vmatpush1.bf16.msra.mxu0 0
        %551 = vmatprep.subr.bf16.mxu0 0
        %552 = vmatpush1.bf16.msra.mxu0 0
        %553 = vmatprep.mubr.bf16.mxu0 0
        %554 = vmatmul.mubr.bf16.gmra.mrb[0].mxu0 %v296
        %v555 = vpop.f32.mrb[0].mxu0
        %v556 = vadd.f32 0.0, %v555
        %v557 = vpop.f32.mrb[0].mxu0
        %v558 = vadd.f32 0.0, %v557
        %v559 = vpop.f32.mrb[0].mxu0
        %v560 = vpop.f32.mrb[0].mxu0
        %561 = vdwg.mxu0
        %562 = vmatprep.subr.bf16.mxu0 %v460
        %563 = vmatpush1.bf16.msra.mxu0 %v459
        %564 = vmatprep.subr.bf16.mxu0 %v464
        %565 = vmatpush1.bf16.msra.mxu0 %v463
        %566 = vmatprep.subr.bf16.mxu0 %v468
        %567 = vmatpush1.bf16.msra.mxu0 %v467
        %568 = vmatprep.subr.bf16.mxu0 %v472
        %569 = vmatpush1.bf16.msra.mxu0 %v471
        %570 = vmatprep.subr.bf16.mxu0 %v476
        %571 = vmatpush1.bf16.msra.mxu0 %v475
        %572 = vmatprep.subr.bf16.mxu0 %v480
        %573 = vmatpush1.bf16.msra.mxu0 %v479
        %574 = vmatprep.subr.bf16.mxu0 %v484
        %575 = vmatpush1.bf16.msra.mxu0 %v483
        %576 = vmatprep.subr.bf16.mxu0 %v488
        %577 = vmatpush1.bf16.msra.mxu0 %v487
        %578 = vmatprep.subr.bf16.mxu0 0
        %579 = vmatpush1.bf16.msra.mxu0 0
        %580 = vmatprep.subr.bf16.mxu0 0
        %581 = vmatpush1.bf16.msra.mxu0 0
        %582 = vmatprep.subr.bf16.mxu0 0
        %583 = vmatpush1.bf16.msra.mxu0 0
        %584 = vmatprep.subr.bf16.mxu0 0
        %585 = vmatpush1.bf16.msra.mxu0 0
        %586 = vmatprep.subr.bf16.mxu0 0
        %587 = vmatpush1.bf16.msra.mxu0 0
        %588 = vmatprep.subr.bf16.mxu0 0
        %589 = vmatpush1.bf16.msra.mxu0 0
        %590 = vmatprep.subr.bf16.mxu0 0
        %591 = vmatpush1.bf16.msra.mxu0 0
        %592 = vmatprep.subr.bf16.mxu0 0
        %593 = vmatpush1.bf16.msra.mxu0 0
        %594 = vmatprep.mubr.bf16.mxu0 0
        %595 = vmatmul.mubr.bf16.gmra.mrb[0].mxu0 %v296
        %v596 = vpop.f32.mrb[0].mxu0
        %v597 = vadd.f32 0.0, %v596
        %v598 = vpop.f32.mrb[0].mxu0
        %v599 = vadd.f32 0.0, %v598
        %v600 = vpop.f32.mrb[0].mxu0
        %v601 = vpop.f32.mrb[0].mxu0
        %602 = vdwg.mxu0
        %v635 = vunpack.c.l.b16 %v297
        %v636 = vunpack.c.h.b16 %v297
        %v637 = vunpack.c.l.b16 %v298
        %v638 = vunpack.c.h.b16 %v298
        %v639 = vunpack.c.l.b16 %v299
        %v640 = vunpack.c.h.b16 %v299
        %v641 = vunpack.c.l.b16 %v300
        %v642 = vunpack.c.h.b16 %v300
        %v643 = vunpack.c.l.b16 %v301
        %v644 = vunpack.c.h.b16 %v301
        %v645 = vunpack.c.l.b16 %v302
        %v646 = vunpack.c.h.b16 %v302
        %v647 = vunpack.c.l.b16 %v303
        %v648 = vunpack.c.h.b16 %v303
        %v649 = vunpack.c.l.b16 %v304
        %v650 = vunpack.c.h.b16 %v304
        %v651 = vunpack.c.l.b16 %v305
        %v652 = vunpack.c.h.b16 %v305
        %v653 = vunpack.c.l.b16 %v306
        %v654 = vunpack.c.h.b16 %v306
        %v655 = vunpack.c.l.b16 %v307
        %v656 = vunpack.c.h.b16 %v307
        %v657 = vunpack.c.l.b16 %v308
        %v658 = vunpack.c.h.b16 %v308
        %v659 = vunpack.c.l.b16 %v309
        %v660 = vunpack.c.h.b16 %v309
        %v661 = vunpack.c.l.b16 %v310
        %v662 = vunpack.c.h.b16 %v310
        %v663 = vunpack.c.l.b16 %v311
        %v664 = vunpack.c.h.b16 %v311
        %v665 = vunpack.c.l.b16 %v312
        %v666 = vunpack.c.h.b16 %v312
        %v667 = vunpack.c.l.b16 %v313
        %v668 = vunpack.c.h.b16 %v313
        %v669 = vunpack.c.l.b16 %v314
        %v670 = vunpack.c.h.b16 %v314
        %v671 = vunpack.c.l.b16 %v315
        %v672 = vunpack.c.h.b16 %v315
        %v673 = vunpack.c.l.b16 %v316
        %v674 = vunpack.c.h.b16 %v316
        %v675 = vunpack.c.l.b16 %v317
        %v676 = vunpack.c.h.b16 %v317
        %v677 = vunpack.c.l.b16 %v318
        %v678 = vunpack.c.h.b16 %v318
        %v679 = vunpack.c.l.b16 %v319
        %v680 = vunpack.c.h.b16 %v319
        %v681 = vunpack.c.l.b16 %v320
        %v682 = vunpack.c.h.b16 %v320
        %v683 = vunpack.c.l.b16 %v321
        %v684 = vunpack.c.h.b16 %v321
        %v685 = vunpack.c.l.b16 %v322
        %v686 = vunpack.c.h.b16 %v322
        %v687 = vunpack.c.l.b16 %v323
        %v688 = vunpack.c.h.b16 %v323
        %v689 = vunpack.c.l.b16 %v324
        %v690 = vunpack.c.h.b16 %v324
        %v691 = vunpack.c.l.b16 %v325
        %v692 = vunpack.c.h.b16 %v325
        %v693 = vunpack.c.l.b16 %v326
        %v694 = vunpack.c.h.b16 %v326
        %v695 = vunpack.c.l.b16 %v327
        %v696 = vunpack.c.h.b16 %v327
        %v697 = vunpack.c.l.b16 %v328
        %v698 = vunpack.c.h.b16 %v328
        %v699 = vpack.c.b16 %v639, %v635
        %v700 = vpack.c.b16 %v640, %v636
        %v701 = vpack.c.b16 %v641, %v637
        %v702 = vpack.c.b16 %v642, %v638
        %v703 = vpack.c.b16 %v647, %v643
        %v704 = vpack.c.b16 %v648, %v644
        %v705 = vpack.c.b16 %v649, %v645
        %v706 = vpack.c.b16 %v650, %v646
        %v707 = vpack.c.b16 %v655, %v651
        %v708 = vpack.c.b16 %v656, %v652
        %v709 = vpack.c.b16 %v657, %v653
        %v710 = vpack.c.b16 %v658, %v654
        %v711 = vpack.c.b16 %v663, %v659
        %v712 = vpack.c.b16 %v664, %v660
        %v713 = vpack.c.b16 %v665, %v661
        %v714 = vpack.c.b16 %v666, %v662
        %v715 = vpack.c.b16 %v671, %v667
        %v716 = vpack.c.b16 %v672, %v668
        %v717 = vpack.c.b16 %v673, %v669
        %v718 = vpack.c.b16 %v674, %v670
        %v719 = vpack.c.b16 %v679, %v675
        %v720 = vpack.c.b16 %v680, %v676
        %v721 = vpack.c.b16 %v681, %v677
        %v722 = vpack.c.b16 %v682, %v678
        %v723 = vpack.c.b16 %v687, %v683
        %v724 = vpack.c.b16 %v688, %v684
        %v725 = vpack.c.b16 %v689, %v685
        %v726 = vpack.c.b16 %v690, %v686
        %v727 = vpack.c.b16 %v695, %v691
        %v728 = vpack.c.b16 %v696, %v692
        %v729 = vpack.c.b16 %v697, %v693
        %v730 = vpack.c.b16 %v698, %v694
        %763 = vmatprep.subr.bf16.mxu0 %v700
        %764 = vmatpush1.bf16.msra.mxu0 %v699
        %765 = vmatprep.subr.bf16.mxu0 %v704
        %766 = vmatpush1.bf16.msra.mxu0 %v703
        %767 = vmatprep.subr.bf16.mxu0 %v708
        %768 = vmatpush1.bf16.msra.mxu0 %v707
        %769 = vmatprep.subr.bf16.mxu0 %v712
        %770 = vmatpush1.bf16.msra.mxu0 %v711
        %771 = vmatprep.subr.bf16.mxu0 %v716
        %772 = vmatpush1.bf16.msra.mxu0 %v715
        %773 = vmatprep.subr.bf16.mxu0 %v720
        %774 = vmatpush1.bf16.msra.mxu0 %v719
        %775 = vmatprep.subr.bf16.mxu0 %v724
        %776 = vmatpush1.bf16.msra.mxu0 %v723
        %777 = vmatprep.subr.bf16.mxu0 %v728
        %778 = vmatpush1.bf16.msra.mxu0 %v727
        %779 = vmatprep.subr.bf16.mxu0 0
        %780 = vmatpush1.bf16.msra.mxu0 0
        %781 = vmatprep.subr.bf16.mxu0 0
        %782 = vmatpush1.bf16.msra.mxu0 0
        %783 = vmatprep.subr.bf16.mxu0 0
        %784 = vmatpush1.bf16.msra.mxu0 0
        %785 = vmatprep.subr.bf16.mxu0 0
        %786 = vmatpush1.bf16.msra.mxu0 0
        %787 = vmatprep.subr.bf16.mxu0 0
        %788 = vmatpush1.bf16.msra.mxu0 0
        %789 = vmatprep.subr.bf16.mxu0 0
        %790 = vmatpush1.bf16.msra.mxu0 0
        %791 = vmatprep.subr.bf16.mxu0 0
        %792 = vmatpush1.bf16.msra.mxu0 0
        %793 = vmatprep.subr.bf16.mxu0 0
        %794 = vmatpush1.bf16.msra.mxu0 0
        %795 = vmatprep.mubr.bf16.mxu0 0
        %796 = vmatmul.mubr.bf16.gmra.mrb[0].mxu0 %v295
        %v797 = vpop.f32.mrb[0].mxu0
        %v798 = vadd.f32 %v556, %v797
        %v799 = vpop.f32.mrb[0].mxu0
        %v800 = vadd.f32 %v558, %v799
        %v801 = vpop.f32.mrb[0].mxu0
        %v802 = vpop.f32.mrb[0].mxu0
        %803 = vdwg.mxu0
        %804 = vmatprep.subr.bf16.mxu0 %v702
        %805 = vmatpush1.bf16.msra.mxu0 %v701
        %806 = vmatprep.subr.bf16.mxu0 %v706
        %807 = vmatpush1.bf16.msra.mxu0 %v705
        %808 = vmatprep.subr.bf16.mxu0 %v710
        %809 = vmatpush1.bf16.msra.mxu0 %v709
        %810 = vmatprep.subr.bf16.mxu0 %v714
        %811 = vmatpush1.bf16.msra.mxu0 %v713
        %812 = vmatprep.subr.bf16.mxu0 %v718
        %813 = vmatpush1.bf16.msra.mxu0 %v717
        %814 = vmatprep.subr.bf16.mxu0 %v722
        %815 = vmatpush1.bf16.msra.mxu0 %v721
        %816 = vmatprep.subr.bf16.mxu0 %v726
        %817 = vmatpush1.bf16.msra.mxu0 %v725
        %818 = vmatprep.subr.bf16.mxu0 %v730
        %819 = vmatpush1.bf16.msra.mxu0 %v729
        %820 = vmatprep.subr.bf16.mxu0 0
        %821 = vmatpush1.bf16.msra.mxu0 0
        %822 = vmatprep.subr.bf16.mxu0 0
        %823 = vmatpush1.bf16.msra.mxu0 0
        %824 = vmatprep.subr.bf16.mxu0 0
        %825 = vmatpush1.bf16.msra.mxu0 0
        %826 = vmatprep.subr.bf16.mxu0 0
        %827 = vmatpush1.bf16.msra.mxu0 0
        %828 = vmatprep.subr.bf16.mxu0 0
        %829 = vmatpush1.bf16.msra.mxu0 0
        %830 = vmatprep.subr.bf16.mxu0 0
        %831 = vmatpush1.bf16.msra.mxu0 0
        %832 = vmatprep.subr.bf16.mxu0 0
        %833 = vmatpush1.bf16.msra.mxu0 0
        %834 = vmatprep.subr.bf16.mxu0 0
        %835 = vmatpush1.bf16.msra.mxu0 0
        %836 = vmatprep.mubr.bf16.mxu0 0
        %837 = vmatmul.mubr.bf16.gmra.mrb[0].mxu0 %v295
        %v838 = vpop.f32.mrb[0].mxu0
        %v839 = vadd.f32 %v597, %v838
        %v840 = vpop.f32.mrb[0].mxu0
        %v841 = vadd.f32 %v599, %v840
        %v842 = vpop.f32.mrb[0].mxu0
        %v843 = vpop.f32.mrb[0].mxu0
        %844 = vdwg.mxu0
        %v845 = vld [vmem:[%s4] sm:$0xf]
        %v847 = vlaneseq
        %v848 = vshrl.u32 %v847, 7
        %v849 = vsub.s32 0, %v848
        %v850 = vrot.slane %v845, %v849
        %v851 = vlaneseq
        %v852 = vshrl.u32 %v851, 7
        %v853 = vsub.s32 1, %v852
        %v854 = vrot.slane %v845, %v853
        %v855 = vlaneseq
        %v856 = vshrl.u32 %v855, 7
        %v857 = vsub.s32 2, %v856
        %v858 = vrot.slane %v845, %v857
        %v859 = vlaneseq
        %v860 = vshrl.u32 %v859, 7
        %v861 = vsub.s32 3, %v860
        %v862 = vrot.slane %v845, %v861
        %v867 = vadd.f32 %v798, %v850
        %v868 = vadd.f32 %v800, %v854
        %v869 = vadd.f32 %v839, %v858
        %v870 = vadd.f32 %v841, %v862
        %v871 = vpack.c.bf16 %v867, %v867
        %v872 = vpack.c.bf16 %v868, %v868
        %v873 = vpack.c.bf16 %v869, %v869
        %v874 = vpack.c.bf16 %v870, %v870
        %v879 = vunpack.c.l.b16 %v871
        %v880 = vunpack.c.l.b16 %v872
        %v881 = vunpack.c.l.b16 %v873
        %v882 = vunpack.c.l.b16 %v874
        %v883 = vpack.c.b16 %v880, %v879
        %v884 = vpack.c.b16 %v882, %v881
        %887 = vst [vmem:[%s288] sm:$0xff] %v883
        %888 = vst [vmem:[%s288 + $0x8] sm:$0xff] %v884
        %v889 = vld [vmem:[%s2 + $0x10] sm:$0xff]
        %v890 = vld [vmem:[%s2 + $0x18] sm:$0xff]
        %v891 = vld [vmem:[%s2 + $0x30] sm:$0xff]
        %v892 = vld [vmem:[%s2 + $0x38] sm:$0xff]
        %v893 = vld [vmem:[%s2 + $0x50] sm:$0xff]
        %v894 = vld [vmem:[%s2 + $0x58] sm:$0xff]
        %v895 = vld [vmem:[%s2 + $0x70] sm:$0xff]
        %v896 = vld [vmem:[%s2 + $0x78] sm:$0xff]
        %v897 = vld [vmem:[%s2 + $0x90] sm:$0xff]
        %v898 = vld [vmem:[%s2 + $0x98] sm:$0xff]
        %v899 = vld [vmem:[%s2 + $0xb0] sm:$0xff]
        %v900 = vld [vmem:[%s2 + $0xb8] sm:$0xff]
        %v901 = vld [vmem:[%s2 + $0xd0] sm:$0xff]
        %v902 = vld [vmem:[%s2 + $0xd8] sm:$0xff]
        %v903 = vld [vmem:[%s2 + $0xf0] sm:$0xff]
        %v904 = vld [vmem:[%s2 + $0xf8] sm:$0xff]
        %v905 = vld [vmem:[%s2 + $0x110] sm:$0xff]
        %v906 = vld [vmem:[%s2 + $0x118] sm:$0xff]
        %v907 = vld [vmem:[%s2 + $0x130] sm:$0xff]
        %v908 = vld [vmem:[%s2 + $0x138] sm:$0xff]
        %v909 = vld [vmem:[%s2 + $0x150] sm:$0xff]
        %v910 = vld [vmem:[%s2 + $0x158] sm:$0xff]
        %v911 = vld [vmem:[%s2 + $0x170] sm:$0xff]
        %v912 = vld [vmem:[%s2 + $0x178] sm:$0xff]
        %v913 = vld [vmem:[%s2 + $0x190] sm:$0xff]
        %v914 = vld [vmem:[%s2 + $0x198] sm:$0xff]
        %v915 = vld [vmem:[%s2 + $0x1b0] sm:$0xff]
        %v916 = vld [vmem:[%s2 + $0x1b8] sm:$0xff]
        %v917 = vld [vmem:[%s2 + $0x1d0] sm:$0xff]
        %v918 = vld [vmem:[%s2 + $0x1d8] sm:$0xff]
        %v919 = vld [vmem:[%s2 + $0x1f0] sm:$0xff]
        %v920 = vld [vmem:[%s2 + $0x1f8] sm:$0xff]
        %v921 = vld [vmem:[#allocation2 + $0x10] sm:$0xff]
        %v922 = vld [vmem:[#allocation2 + $0x18] sm:$0xff]
        %v923 = vld [vmem:[#allocation2 + $0x30] sm:$0xff]
        %v924 = vld [vmem:[#allocation2 + $0x38] sm:$0xff]
        %v925 = vld [vmem:[#allocation2 + $0x50] sm:$0xff]
        %v926 = vld [vmem:[#allocation2 + $0x58] sm:$0xff]
        %v927 = vld [vmem:[#allocation2 + $0x70] sm:$0xff]
        %v928 = vld [vmem:[#allocation2 + $0x78] sm:$0xff]
        %v929 = vld [vmem:[#allocation2 + $0x90] sm:$0xff]
        %v930 = vld [vmem:[#allocation2 + $0x98] sm:$0xff]
        %v931 = vld [vmem:[#allocation2 + $0xb0] sm:$0xff]
        %v932 = vld [vmem:[#allocation2 + $0xb8] sm:$0xff]
        %v933 = vld [vmem:[#allocation2 + $0xd0] sm:$0xff]
        %v934 = vld [vmem:[#allocation2 + $0xd8] sm:$0xff]
        %v935 = vld [vmem:[#allocation2 + $0xf0] sm:$0xff]
        %v936 = vld [vmem:[#allocation2 + $0xf8] sm:$0xff]
        %v937 = vld [vmem:[#allocation2 + $0x110] sm:$0xff]
        %v938 = vld [vmem:[#allocation2 + $0x118] sm:$0xff]
        %v939 = vld [vmem:[#allocation2 + $0x130] sm:$0xff]
        %v940 = vld [vmem:[#allocation2 + $0x138] sm:$0xff]
        %v941 = vld [vmem:[#allocation2 + $0x150] sm:$0xff]
        %v942 = vld [vmem:[#allocation2 + $0x158] sm:$0xff]
        %v943 = vld [vmem:[#allocation2 + $0x170] sm:$0xff]
        %v944 = vld [vmem:[#allocation2 + $0x178] sm:$0xff]
        %v945 = vld [vmem:[#allocation2 + $0x190] sm:$0xff]
        %v946 = vld [vmem:[#allocation2 + $0x198] sm:$0xff]
        %v947 = vld [vmem:[#allocation2 + $0x1b0] sm:$0xff]
        %v948 = vld [vmem:[#allocation2 + $0x1b8] sm:$0xff]
        %v949 = vld [vmem:[#allocation2 + $0x1d0] sm:$0xff]
        %v950 = vld [vmem:[#allocation2 + $0x1d8] sm:$0xff]
        %v951 = vld [vmem:[#allocation2 + $0x1f0] sm:$0xff]
        %v952 = vld [vmem:[#allocation2 + $0x1f8] sm:$0xff]
        %v985 = vunpack.c.l.b16 %v921
        %v986 = vunpack.c.h.b16 %v921
        %v987 = vunpack.c.l.b16 %v922
        %v988 = vunpack.c.h.b16 %v922
        %v989 = vunpack.c.l.b16 %v923
        %v990 = vunpack.c.h.b16 %v923
        %v991 = vunpack.c.l.b16 %v924
        %v992 = vunpack.c.h.b16 %v924
        %v993 = vunpack.c.l.b16 %v925
        %v994 = vunpack.c.h.b16 %v925
        %v995 = vunpack.c.l.b16 %v926
        %v996 = vunpack.c.h.b16 %v926
        %v997 = vunpack.c.l.b16 %v927
        %v998 = vunpack.c.h.b16 %v927
        %v999 = vunpack.c.l.b16 %v928
        %v1000 = vunpack.c.h.b16 %v928
        %v1001 = vunpack.c.l.b16 %v929
        %v1002 = vunpack.c.h.b16 %v929
        %v1003 = vunpack.c.l.b16 %v930
        %v1004 = vunpack.c.h.b16 %v930
        %v1005 = vunpack.c.l.b16 %v931
        %v1006 = vunpack.c.h.b16 %v931
        %v1007 = vunpack.c.l.b16 %v932
        %v1008 = vunpack.c.h.b16 %v932
        %v1009 = vunpack.c.l.b16 %v933
        %v1010 = vunpack.c.h.b16 %v933
        %v1011 = vunpack.c.l.b16 %v934
        %v1012 = vunpack.c.h.b16 %v934
        %v1013 = vunpack.c.l.b16 %v935
        %v1014 = vunpack.c.h.b16 %v935
        %v1015 = vunpack.c.l.b16 %v936
        %v1016 = vunpack.c.h.b16 %v936
        %v1017 = vunpack.c.l.b16 %v937
        %v1018 = vunpack.c.h.b16 %v937
        %v1019 = vunpack.c.l.b16 %v938
        %v1020 = vunpack.c.h.b16 %v938
        %v1021 = vunpack.c.l.b16 %v939
        %v1022 = vunpack.c.h.b16 %v939
        %v1023 = vunpack.c.l.b16 %v940
        %v1024 = vunpack.c.h.b16 %v940
        %v1025 = vunpack.c.l.b16 %v941
        %v1026 = vunpack.c.h.b16 %v941
        %v1027 = vunpack.c.l.b16 %v942
        %v1028 = vunpack.c.h.b16 %v942
        %v1029 = vunpack.c.l.b16 %v943
        %v1030 = vunpack.c.h.b16 %v943
        %v1031 = vunpack.c.l.b16 %v944
        %v1032 = vunpack.c.h.b16 %v944
        %v1033 = vunpack.c.l.b16 %v945
        %v1034 = vunpack.c.h.b16 %v945
        %v1035 = vunpack.c.l.b16 %v946
        %v1036 = vunpack.c.h.b16 %v946
        %v1037 = vunpack.c.l.b16 %v947
        %v1038 = vunpack.c.h.b16 %v947
        %v1039 = vunpack.c.l.b16 %v948
        %v1040 = vunpack.c.h.b16 %v948
        %v1041 = vunpack.c.l.b16 %v949
        %v1042 = vunpack.c.h.b16 %v949
        %v1043 = vunpack.c.l.b16 %v950
        %v1044 = vunpack.c.h.b16 %v950
        %v1045 = vunpack.c.l.b16 %v951
        %v1046 = vunpack.c.h.b16 %v951
        %v1047 = vunpack.c.l.b16 %v952
        %v1048 = vunpack.c.h.b16 %v952
        %v1049 = vpack.c.b16 %v989, %v985
        %v1050 = vpack.c.b16 %v990, %v986
        %v1051 = vpack.c.b16 %v991, %v987
        %v1052 = vpack.c.b16 %v992, %v988
        %v1053 = vpack.c.b16 %v997, %v993
        %v1054 = vpack.c.b16 %v998, %v994
        %v1055 = vpack.c.b16 %v999, %v995
        %v1056 = vpack.c.b16 %v1000, %v996
        %v1057 = vpack.c.b16 %v1005, %v1001
        %v1058 = vpack.c.b16 %v1006, %v1002
        %v1059 = vpack.c.b16 %v1007, %v1003
        %v1060 = vpack.c.b16 %v1008, %v1004
        %v1061 = vpack.c.b16 %v1013, %v1009
        %v1062 = vpack.c.b16 %v1014, %v1010
        %v1063 = vpack.c.b16 %v1015, %v1011
        %v1064 = vpack.c.b16 %v1016, %v1012
        %v1065 = vpack.c.b16 %v1021, %v1017
        %v1066 = vpack.c.b16 %v1022, %v1018
        %v1067 = vpack.c.b16 %v1023, %v1019
        %v1068 = vpack.c.b16 %v1024, %v1020
        %v1069 = vpack.c.b16 %v1029, %v1025
        %v1070 = vpack.c.b16 %v1030, %v1026
        %v1071 = vpack.c.b16 %v1031, %v1027
        %v1072 = vpack.c.b16 %v1032, %v1028
        %v1073 = vpack.c.b16 %v1037, %v1033
        %v1074 = vpack.c.b16 %v1038, %v1034
        %v1075 = vpack.c.b16 %v1039, %v1035
        %v1076 = vpack.c.b16 %v1040, %v1036
        %v1077 = vpack.c.b16 %v1045, %v1041
        %v1078 = vpack.c.b16 %v1046, %v1042
        %v1079 = vpack.c.b16 %v1047, %v1043
        %v1080 = vpack.c.b16 %v1048, %v1044
        %1113 = vmatprep.subr.bf16.mxu0 %v1050
        %1114 = vmatpush1.bf16.msra.mxu0 %v1049
        %1115 = vmatprep.subr.bf16.mxu0 %v1054
        %1116 = vmatpush1.bf16.msra.mxu0 %v1053
        %1117 = vmatprep.subr.bf16.mxu0 %v1058
        %1118 = vmatpush1.bf16.msra.mxu0 %v1057
        %1119 = vmatprep.subr.bf16.mxu0 %v1062
        %1120 = vmatpush1.bf16.msra.mxu0 %v1061
        %1121 = vmatprep.subr.bf16.mxu0 %v1066
        %1122 = vmatpush1.bf16.msra.mxu0 %v1065
        %1123 = vmatprep.subr.bf16.mxu0 %v1070
        %1124 = vmatpush1.bf16.msra.mxu0 %v1069
        %1125 = vmatprep.subr.bf16.mxu0 %v1074
        %1126 = vmatpush1.bf16.msra.mxu0 %v1073
        %1127 = vmatprep.subr.bf16.mxu0 %v1078
        %1128 = vmatpush1.bf16.msra.mxu0 %v1077
        %1129 = vmatprep.subr.bf16.mxu0 0
        %1130 = vmatpush1.bf16.msra.mxu0 0
        %1131 = vmatprep.subr.bf16.mxu0 0
        %1132 = vmatpush1.bf16.msra.mxu0 0
        %1133 = vmatprep.subr.bf16.mxu0 0
        %1134 = vmatpush1.bf16.msra.mxu0 0
        %1135 = vmatprep.subr.bf16.mxu0 0
        %1136 = vmatpush1.bf16.msra.mxu0 0
        %1137 = vmatprep.subr.bf16.mxu0 0
        %1138 = vmatpush1.bf16.msra.mxu0 0
        %1139 = vmatprep.subr.bf16.mxu0 0
        %1140 = vmatpush1.bf16.msra.mxu0 0
        %1141 = vmatprep.subr.bf16.mxu0 0
        %1142 = vmatpush1.bf16.msra.mxu0 0
        %1143 = vmatprep.subr.bf16.mxu0 0
        %1144 = vmatpush1.bf16.msra.mxu0 0
        %1145 = vmatprep.mubr.bf16.mxu0 0
        %1146 = vmatmul.mubr.bf16.gmra.mrb[0].mxu0 %v296
        %v1147 = vpop.f32.mrb[0].mxu0
        %v1148 = vadd.f32 0.0, %v1147
        %v1149 = vpop.f32.mrb[0].mxu0
        %v1150 = vadd.f32 0.0, %v1149
        %v1151 = vpop.f32.mrb[0].mxu0
        %v1152 = vpop.f32.mrb[0].mxu0
        %1153 = vdwg.mxu0
        %1154 = vmatprep.subr.bf16.mxu0 %v1052
        %1155 = vmatpush1.bf16.msra.mxu0 %v1051
        %1156 = vmatprep.subr.bf16.mxu0 %v1056
        %1157 = vmatpush1.bf16.msra.mxu0 %v1055
        %1158 = vmatprep.subr.bf16.mxu0 %v1060
        %1159 = vmatpush1.bf16.msra.mxu0 %v1059
        %1160 = vmatprep.subr.bf16.mxu0 %v1064
        %1161 = vmatpush1.bf16.msra.mxu0 %v1063
        %1162 = vmatprep.subr.bf16.mxu0 %v1068
        %1163 = vmatpush1.bf16.msra.mxu0 %v1067
        %1164 = vmatprep.subr.bf16.mxu0 %v1072
        %1165 = vmatpush1.bf16.msra.mxu0 %v1071
        %1166 = vmatprep.subr.bf16.mxu0 %v1076
        %1167 = vmatpush1.bf16.msra.mxu0 %v1075
        %1168 = vmatprep.subr.bf16.mxu0 %v1080
        %1169 = vmatpush1.bf16.msra.mxu0 %v1079
        %1170 = vmatprep.subr.bf16.mxu0 0
        %1171 = vmatpush1.bf16.msra.mxu0 0
        %1172 = vmatprep.subr.bf16.mxu0 0
        %1173 = vmatpush1.bf16.msra.mxu0 0
        %1174 = vmatprep.subr.bf16.mxu0 0
        %1175 = vmatpush1.bf16.msra.mxu0 0
        %1176 = vmatprep.subr.bf16.mxu0 0
        %1177 = vmatpush1.bf16.msra.mxu0 0
        %1178 = vmatprep.subr.bf16.mxu0 0
        %1179 = vmatpush1.bf16.msra.mxu0 0
        %1180 = vmatprep.subr.bf16.mxu0 0
        %1181 = vmatpush1.bf16.msra.mxu0 0
        %1182 = vmatprep.subr.bf16.mxu0 0
        %1183 = vmatpush1.bf16.msra.mxu0 0
        %1184 = vmatprep.subr.bf16.mxu0 0
        %1185 = vmatpush1.bf16.msra.mxu0 0
        %1186 = vmatprep.mubr.bf16.mxu0 0
        %1187 = vmatmul.mubr.bf16.gmra.mrb[0].mxu0 %v296
        %v1188 = vpop.f32.mrb[0].mxu0
        %v1189 = vadd.f32 0.0, %v1188
        %v1190 = vpop.f32.mrb[0].mxu0
        %v1191 = vadd.f32 0.0, %v1190
        %v1192 = vpop.f32.mrb[0].mxu0
        %v1193 = vpop.f32.mrb[0].mxu0
        %1194 = vdwg.mxu0
        %v1227 = vunpack.c.l.b16 %v889
        %v1228 = vunpack.c.h.b16 %v889
        %v1229 = vunpack.c.l.b16 %v890
        %v1230 = vunpack.c.h.b16 %v890
        %v1231 = vunpack.c.l.b16 %v891
        %v1232 = vunpack.c.h.b16 %v891
        %v1233 = vunpack.c.l.b16 %v892
        %v1234 = vunpack.c.h.b16 %v892
        %v1235 = vunpack.c.l.b16 %v893
        %v1236 = vunpack.c.h.b16 %v893
        %v1237 = vunpack.c.l.b16 %v894
        %v1238 = vunpack.c.h.b16 %v894
        %v1239 = vunpack.c.l.b16 %v895
        %v1240 = vunpack.c.h.b16 %v895
        %v1241 = vunpack.c.l.b16 %v896
        %v1242 = vunpack.c.h.b16 %v896
        %v1243 = vunpack.c.l.b16 %v897
        %v1244 = vunpack.c.h.b16 %v897
        %v1245 = vunpack.c.l.b16 %v898
        %v1246 = vunpack.c.h.b16 %v898
        %v1247 = vunpack.c.l.b16 %v899
        %v1248 = vunpack.c.h.b16 %v899
        %v1249 = vunpack.c.l.b16 %v900
        %v1250 = vunpack.c.h.b16 %v900
        %v1251 = vunpack.c.l.b16 %v901
        %v1252 = vunpack.c.h.b16 %v901
        %v1253 = vunpack.c.l.b16 %v902
        %v1254 = vunpack.c.h.b16 %v902
        %v1255 = vunpack.c.l.b16 %v903
        %v1256 = vunpack.c.h.b16 %v903
        %v1257 = vunpack.c.l.b16 %v904
        %v1258 = vunpack.c.h.b16 %v904
        %v1259 = vunpack.c.l.b16 %v905
        %v1260 = vunpack.c.h.b16 %v905
        %v1261 = vunpack.c.l.b16 %v906
        %v1262 = vunpack.c.h.b16 %v906
        %v1263 = vunpack.c.l.b16 %v907
        %v1264 = vunpack.c.h.b16 %v907
        %v1265 = vunpack.c.l.b16 %v908
        %v1266 = vunpack.c.h.b16 %v908
        %v1267 = vunpack.c.l.b16 %v909
        %v1268 = vunpack.c.h.b16 %v909
        %v1269 = vunpack.c.l.b16 %v910
        %v1270 = vunpack.c.h.b16 %v910
        %v1271 = vunpack.c.l.b16 %v911
        %v1272 = vunpack.c.h.b16 %v911
        %v1273 = vunpack.c.l.b16 %v912
        %v1274 = vunpack.c.h.b16 %v912
        %v1275 = vunpack.c.l.b16 %v913
        %v1276 = vunpack.c.h.b16 %v913
        %v1277 = vunpack.c.l.b16 %v914
        %v1278 = vunpack.c.h.b16 %v914
        %v1279 = vunpack.c.l.b16 %v915
        %v1280 = vunpack.c.h.b16 %v915
        %v1281 = vunpack.c.l.b16 %v916
        %v1282 = vunpack.c.h.b16 %v916
        %v1283 = vunpack.c.l.b16 %v917
        %v1284 = vunpack.c.h.b16 %v917
        %v1285 = vunpack.c.l.b16 %v918
        %v1286 = vunpack.c.h.b16 %v918
        %v1287 = vunpack.c.l.b16 %v919
        %v1288 = vunpack.c.h.b16 %v919
        %v1289 = vunpack.c.l.b16 %v920
        %v1290 = vunpack.c.h.b16 %v920
        %v1291 = vpack.c.b16 %v1231, %v1227
        %v1292 = vpack.c.b16 %v1232, %v1228
        %v1293 = vpack.c.b16 %v1233, %v1229
        %v1294 = vpack.c.b16 %v1234, %v1230
        %v1295 = vpack.c.b16 %v1239, %v1235
        %v1296 = vpack.c.b16 %v1240, %v1236
        %v1297 = vpack.c.b16 %v1241, %v1237
        %v1298 = vpack.c.b16 %v1242, %v1238
        %v1299 = vpack.c.b16 %v1247, %v1243
        %v1300 = vpack.c.b16 %v1248, %v1244
        %v1301 = vpack.c.b16 %v1249, %v1245
        %v1302 = vpack.c.b16 %v1250, %v1246
        %v1303 = vpack.c.b16 %v1255, %v1251
        %v1304 = vpack.c.b16 %v1256, %v1252
        %v1305 = vpack.c.b16 %v1257, %v1253
        %v1306 = vpack.c.b16 %v1258, %v1254
        %v1307 = vpack.c.b16 %v1263, %v1259
        %v1308 = vpack.c.b16 %v1264, %v1260
        %v1309 = vpack.c.b16 %v1265, %v1261
        %v1310 = vpack.c.b16 %v1266, %v1262
        %v1311 = vpack.c.b16 %v1271, %v1267
        %v1312 = vpack.c.b16 %v1272, %v1268
        %v1313 = vpack.c.b16 %v1273, %v1269
        %v1314 = vpack.c.b16 %v1274, %v1270
        %v1315 = vpack.c.b16 %v1279, %v1275
        %v1316 = vpack.c.b16 %v1280, %v1276
        %v1317 = vpack.c.b16 %v1281, %v1277
        %v1318 = vpack.c.b16 %v1282, %v1278
        %v1319 = vpack.c.b16 %v1287, %v1283
        %v1320 = vpack.c.b16 %v1288, %v1284
        %v1321 = vpack.c.b16 %v1289, %v1285
        %v1322 = vpack.c.b16 %v1290, %v1286
        %1355 = vmatprep.subr.bf16.mxu0 %v1292
        %1356 = vmatpush1.bf16.msra.mxu0 %v1291
        %1357 = vmatprep.subr.bf16.mxu0 %v1296
        %1358 = vmatpush1.bf16.msra.mxu0 %v1295
        %1359 = vmatprep.subr.bf16.mxu0 %v1300
        %1360 = vmatpush1.bf16.msra.mxu0 %v1299
        %1361 = vmatprep.subr.bf16.mxu0 %v1304
        %1362 = vmatpush1.bf16.msra.mxu0 %v1303
        %1363 = vmatprep.subr.bf16.mxu0 %v1308
        %1364 = vmatpush1.bf16.msra.mxu0 %v1307
        %1365 = vmatprep.subr.bf16.mxu0 %v1312
        %1366 = vmatpush1.bf16.msra.mxu0 %v1311
        %1367 = vmatprep.subr.bf16.mxu0 %v1316
        %1368 = vmatpush1.bf16.msra.mxu0 %v1315
        %1369 = vmatprep.subr.bf16.mxu0 %v1320
        %1370 = vmatpush1.bf16.msra.mxu0 %v1319
        %1371 = vmatprep.subr.bf16.mxu0 0
        %1372 = vmatpush1.bf16.msra.mxu0 0
        %1373 = vmatprep.subr.bf16.mxu0 0
        %1374 = vmatpush1.bf16.msra.mxu0 0
        %1375 = vmatprep.subr.bf16.mxu0 0
        %1376 = vmatpush1.bf16.msra.mxu0 0
        %1377 = vmatprep.subr.bf16.mxu0 0
        %1378 = vmatpush1.bf16.msra.mxu0 0
        %1379 = vmatprep.subr.bf16.mxu0 0
        %1380 = vmatpush1.bf16.msra.mxu0 0
        %1381 = vmatprep.subr.bf16.mxu0 0
        %1382 = vmatpush1.bf16.msra.mxu0 0
        %1383 = vmatprep.subr.bf16.mxu0 0
        %1384 = vmatpush1.bf16.msra.mxu0 0
        %1385 = vmatprep.subr.bf16.mxu0 0
        %1386 = vmatpush1.bf16.msra.mxu0 0
        %1387 = vmatprep.mubr.bf16.mxu0 0
        %1388 = vmatmul.mubr.bf16.gmra.mrb[0].mxu0 %v295
        %v1389 = vpop.f32.mrb[0].mxu0
        %v1390 = vadd.f32 %v1148, %v1389
        %v1391 = vpop.f32.mrb[0].mxu0
        %v1392 = vadd.f32 %v1150, %v1391
        %v1393 = vpop.f32.mrb[0].mxu0
        %v1394 = vpop.f32.mrb[0].mxu0
        %1395 = vdwg.mxu0
        %1396 = vmatprep.subr.bf16.mxu0 %v1294
        %1397 = vmatpush1.bf16.msra.mxu0 %v1293
        %1398 = vmatprep.subr.bf16.mxu0 %v1298
        %1399 = vmatpush1.bf16.msra.mxu0 %v1297
        %1400 = vmatprep.subr.bf16.mxu0 %v1302
        %1401 = vmatpush1.bf16.msra.mxu0 %v1301
        %1402 = vmatprep.subr.bf16.mxu0 %v1306
        %1403 = vmatpush1.bf16.msra.mxu0 %v1305
        %1404 = vmatprep.subr.bf16.mxu0 %v1310
        %1405 = vmatpush1.bf16.msra.mxu0 %v1309
        %1406 = vmatprep.subr.bf16.mxu0 %v1314
        %1407 = vmatpush1.bf16.msra.mxu0 %v1313
        %1408 = vmatprep.subr.bf16.mxu0 %v1318
        %1409 = vmatpush1.bf16.msra.mxu0 %v1317
        %1410 = vmatprep.subr.bf16.mxu0 %v1322
        %1411 = vmatpush1.bf16.msra.mxu0 %v1321
        %1412 = vmatprep.subr.bf16.mxu0 0
        %1413 = vmatpush1.bf16.msra.mxu0 0
        %1414 = vmatprep.subr.bf16.mxu0 0
        %1415 = vmatpush1.bf16.msra.mxu0 0
        %1416 = vmatprep.subr.bf16.mxu0 0
        %1417 = vmatpush1.bf16.msra.mxu0 0
        %1418 = vmatprep.subr.bf16.mxu0 0
        %1419 = vmatpush1.bf16.msra.mxu0 0
        %1420 = vmatprep.subr.bf16.mxu0 0
        %1421 = vmatpush1.bf16.msra.mxu0 0
        %1422 = vmatprep.subr.bf16.mxu0 0
        %1423 = vmatpush1.bf16.msra.mxu0 0
        %1424 = vmatprep.subr.bf16.mxu0 0
        %1425 = vmatpush1.bf16.msra.mxu0 0
        %1426 = vmatprep.subr.bf16.mxu0 0
        %1427 = vmatpush1.bf16.msra.mxu0 0
        %1428 = vmatprep.mubr.bf16.mxu0 0
        %1429 = vmatmul.mubr.bf16.gmra.mrb[0].mxu0 %v295
        %v1430 = vpop.f32.mrb[0].mxu0
        %v1431 = vadd.f32 %v1189, %v1430
        %v1432 = vpop.f32.mrb[0].mxu0
        %v1433 = vadd.f32 %v1191, %v1432
        %v1434 = vpop.f32.mrb[0].mxu0
        %v1435 = vpop.f32.mrb[0].mxu0
        %1436 = vdwg.mxu0
        %v1437 = vld [vmem:[%s4 + $0x4] sm:$0xf]
        %v1439 = vlaneseq
        %v1440 = vshrl.u32 %v1439, 7
        %v1441 = vsub.s32 0, %v1440
        %v1442 = vrot.slane %v1437, %v1441
        %v1443 = vlaneseq
        %v1444 = vshrl.u32 %v1443, 7
        %v1445 = vsub.s32 1, %v1444
        %v1446 = vrot.slane %v1437, %v1445
        %v1447 = vlaneseq
        %v1448 = vshrl.u32 %v1447, 7
        %v1449 = vsub.s32 2, %v1448
        %v1450 = vrot.slane %v1437, %v1449
        %v1451 = vlaneseq
        %v1452 = vshrl.u32 %v1451, 7
        %v1453 = vsub.s32 3, %v1452
        %v1454 = vrot.slane %v1437, %v1453
        %v1459 = vadd.f32 %v1390, %v1442
        %v1460 = vadd.f32 %v1392, %v1446
        %v1461 = vadd.f32 %v1431, %v1450
        %v1462 = vadd.f32 %v1433, %v1454
        %v1463 = vpack.c.bf16 %v1459, %v1459
        %v1464 = vpack.c.bf16 %v1460, %v1460
        %v1465 = vpack.c.bf16 %v1461, %v1461
        %v1466 = vpack.c.bf16 %v1462, %v1462
        %v1471 = vunpack.c.l.b16 %v1463
        %v1472 = vunpack.c.l.b16 %v1464
        %v1473 = vunpack.c.l.b16 %v1465
        %v1474 = vunpack.c.l.b16 %v1466
        %v1475 = vpack.c.b16 %v1472, %v1471
        %v1476 = vpack.c.b16 %v1474, %v1473
        %1479 = vst [vmem:[%s293] sm:$0xff] %v1475
        %1480 = vst [vmem:[%s293 + $0x8] sm:$0xff] %v1476
        %p1481 = scmp.lt.s32.totalorder %s19, 1
        %s1482 = scalar_select %p1481, %s19, 1
        %s1483 = smul.addr %s1482, 4
        %s1484 = smul.addr %s1483, 4
        %s1485 = scalar_lea.vmem %s5, %s1484
        %p1486 = scmp.lt.s32.totalorder %s19, 1
        %s1487 = scalar_select %p1486, %s19, 1
        %s1488 = smul.addr %s1487, 4
        %s1489 = smul.addr %s1488, 4
        %s1490 = scalar_lea.vmem %s6, %s1489
        // Predicated region
        $region45: #{basic_lstm_forward.7} parent=39 // pred_check
          %p1491 = pneg %p152
        $region46: #{basic_lstm_forward.7} parent=39 // pred_check_branch
          %1493 = sbr.rel (%p1491) target = $region48
        $region47: #{basic_lstm_forward.7} parent=39 // pred_region
          _
        $region48: #{basic_lstm_forward.7} parent=39 // pred_fallthru
          _
        // Predicated region
        $region49: #{basic_lstm_forward.7} parent=39 // pred_check
          %p1494 = pneg %p178
        $region50: #{basic_lstm_forward.7} parent=39 // pred_check_branch
          %1496 = sbr.rel (%p1494) target = $region52
        $region51: #{basic_lstm_forward.7} parent=39 // pred_region
          _
        $region52: #{basic_lstm_forward.7} parent=39 // pred_fallthru
          _
      $region40: #{basic_lstm_forward.7} parent=5 // pred_fallthru
        _
      %p1497 = scmp.le.s32.totalorder 2, %s14
      // Predicated region
      $region53: #{basic_lstm_forward.7} parent=5 // pred_check
        %p1498 = pneg %p1497
      $region54: #{basic_lstm_forward.7} parent=5 // pred_check_branch
        %1500 = sbr.rel (%p1498) target = $region56
      $region55: #{basic_lstm_forward.7} parent=5 // pred_region
        %s1501 = ssub.s32 %s14, 2
        // Predicated region
        $region57: #{basic_lstm_forward.7} parent=55 // pred_check
          %p1502 = pneg %p158
        $region58: #{basic_lstm_forward.7} parent=55 // pred_check_branch
          %1504 = sbr.rel (%p1502) target = $region60
        $region59: #{basic_lstm_forward.7} parent=55 // pred_region
          %p1505 = scmp.lt.s32.totalorder %s20, 1
          %s1506 = scalar_select %p1505, %s20, 1
          %s1507 = smul.addr %s1506, 4
          %s1508 = smul.addr %s1507, 4
          %s1509 = scalar_lea.vmem %s5, %s1508
        $region60: #{basic_lstm_forward.7} parent=55 // pred_fallthru
          _
        // Predicated region
        $region61: #{basic_lstm_forward.7} parent=55 // pred_check
          %p1510 = pneg %p184
        $region62: #{basic_lstm_forward.7} parent=55 // pred_check_branch
          %1512 = sbr.rel (%p1510) target = $region64
        $region63: #{basic_lstm_forward.7} parent=55 // pred_region
          %p1513 = scmp.lt.s32.totalorder %s20, 1
          %s1514 = scalar_select %p1513, %s20, 1
          %s1515 = smul.addr %s1514, 4
          %s1516 = smul.addr %s1515, 4
          %s1517 = scalar_lea.vmem %s6, %s1516
        $region64: #{basic_lstm_forward.7} parent=55 // pred_fallthru
          _
      $region56: #{basic_lstm_forward.7} parent=5 // pred_fallthru
        _
    $region6: #{basic_lstm_forward.7} parent=1 // loop_footer
      %s18 = sadd.s32 1, %s14
    $region7: #{basic_lstm_forward.7} parent=1 // loop_footer_branch
      %13 = sbr.rel target = $region3
    $region8: #{basic_lstm_forward.7} parent=1 // loop_exit
      _
    %1518 = vsyncpa [#allocation3], 1
    %s1519 = scalar_lea.sflag [#allocation3], 1
    %1520 = vsyncpa %s1519, 1

// kernel: basic_lstm_forward.9
$region0: #{basic_lstm_forward.9}
  #allocation0 [shape = 'u32[]', space=smem, size = 0x4, offset = 0x4, fixed_abs, tag = 'smem constant byte address 0x4 - core index']
  #allocation1 [shape = 'u32[144,128]{1,0:T(1,128)}', space=vmem, size = 0x12000, scoped, tag = 'internal scratch']
  %s0 = inlined_call_operand.vmem [shape: bf16[4,128], index: 0, kind: input, shape index: {}]
  %s1 = inlined_call_operand.vmem [shape: bf16[4,128], index: 1, kind: input, shape index: {}]
  %s2 = inlined_call_operand.vmem [shape: bf16[128,4], index: 2, kind: input, shape index: {}]
  %s3 = inlined_call_operand.vmem [shape: bf16[128,4], index: 3, kind: input, shape index: {}]
  %s4 = inlined_call_operand.vmem [shape: f32[1,4], index: 4, kind: input, shape index: {}]
  %s5 = inlined_call_operand.vmem [shape: f32[4,4], index: 5, kind: output, shape index: {}]
  %s6 = sld [smem:[#allocation0]]
  $region30: #{basic_lstm_forward.9} parent=0
    _
  %s8 = ssub.s32 1, %s6
  %s9 = scalar_select 0, %s8, %s6
  // Predicated region
  $region2: #{basic_lstm_forward.9} parent=0 // pred_check
    _
  $region3: #{basic_lstm_forward.9} parent=0 // pred_check_branch
    %11 = sbr.rel (0) target = $region5
  $region4: #{basic_lstm_forward.9} parent=0 // pred_region
    _
  $region5: #{basic_lstm_forward.9} parent=0 // pred_fallthru
    _
  // Predicated region
  $region6: #{basic_lstm_forward.9} parent=0 // pred_check
    _
  $region7: #{basic_lstm_forward.9} parent=0 // pred_check_branch
    %13 = sbr.rel (0) target = $region9
  $region8: #{basic_lstm_forward.9} parent=0 // pred_region
    _
  $region9: #{basic_lstm_forward.9} parent=0 // pred_fallthru
    _
  // Predicated region
  $region10: #{basic_lstm_forward.9} parent=0 // pred_check
    _
  $region11: #{basic_lstm_forward.9} parent=0 // pred_check_branch
    %15 = sbr.rel (0) target = $region13
  $region12: #{basic_lstm_forward.9} parent=0 // pred_region
    _
  $region13: #{basic_lstm_forward.9} parent=0 // pred_fallthru
    _
  // Predicated region
  $region14: #{basic_lstm_forward.9} parent=0 // pred_check
    _
  $region15: #{basic_lstm_forward.9} parent=0 // pred_check_branch
    %17 = sbr.rel (0) target = $region17
  $region16: #{basic_lstm_forward.9} parent=0 // pred_region
    _
  $region17: #{basic_lstm_forward.9} parent=0 // pred_fallthru
    _
  // Predicated region
  $region18: #{basic_lstm_forward.9} parent=0 // pred_check
    _
  $region19: #{basic_lstm_forward.9} parent=0 // pred_check_branch
    %19 = sbr.rel (0) target = $region21
  $region20: #{basic_lstm_forward.9} parent=0 // pred_region
    _
  $region21: #{basic_lstm_forward.9} parent=0 // pred_fallthru
    _
  %v21 = vld [vmem:[%s0] sm:$0x3]
  %v22 = vld [vmem:[%s2] sm:$0xf]
  %v23 = vld [vmem:[%s2 + $0x4] sm:$0xf]
  %v24 = vld [vmem:[%s2 + $0x8] sm:$0xf]
  %v25 = vld [vmem:[%s2 + $0xc] sm:$0xf]
  %v26 = vld [vmem:[%s2 + $0x10] sm:$0xf]
  %v27 = vld [vmem:[%s2 + $0x14] sm:$0xf]
  %v28 = vld [vmem:[%s2 + $0x18] sm:$0xf]
  %v29 = vld [vmem:[%s2 + $0x1c] sm:$0xf]
  %v30 = vld [vmem:[%s2 + $0x20] sm:$0xf]
  %v31 = vld [vmem:[%s2 + $0x24] sm:$0xf]
  %v32 = vld [vmem:[%s2 + $0x28] sm:$0xf]
  %v33 = vld [vmem:[%s2 + $0x2c] sm:$0xf]
  %v34 = vld [vmem:[%s2 + $0x30] sm:$0xf]
  %v35 = vld [vmem:[%s2 + $0x34] sm:$0xf]
  %v36 = vld [vmem:[%s2 + $0x38] sm:$0xf]
  %v37 = vld [vmem:[%s2 + $0x3c] sm:$0xf]
  %v38 = vld [vmem:[%s1] sm:$0x3]
  %v39 = vld [vmem:[%s3] sm:$0xf]
  %v40 = vld [vmem:[%s3 + $0x4] sm:$0xf]
  %v41 = vld [vmem:[%s3 + $0x8] sm:$0xf]
  %v42 = vld [vmem:[%s3 + $0xc] sm:$0xf]
  %v43 = vld [vmem:[%s3 + $0x10] sm:$0xf]
  %v44 = vld [vmem:[%s3 + $0x14] sm:$0xf]
  %v45 = vld [vmem:[%s3 + $0x18] sm:$0xf]
  %v46 = vld [vmem:[%s3 + $0x1c] sm:$0xf]
  %v47 = vld [vmem:[%s3 + $0x20] sm:$0xf]
  %v48 = vld [vmem:[%s3 + $0x24] sm:$0xf]
  %v49 = vld [vmem:[%s3 + $0x28] sm:$0xf]
  %v50 = vld [vmem:[%s3 + $0x2c] sm:$0xf]
  %v51 = vld [vmem:[%s3 + $0x30] sm:$0xf]
  %v52 = vld [vmem:[%s3 + $0x34] sm:$0xf]
  %v53 = vld [vmem:[%s3 + $0x38] sm:$0xf]
  %v54 = vld [vmem:[%s3 + $0x3c] sm:$0xf]
  %v71 = vunpack.c.l.b16 %v39
  %v72 = vunpack.c.l.b16 %v40
  %v73 = vunpack.c.l.b16 %v41
  %v74 = vunpack.c.l.b16 %v42
  %v75 = vunpack.c.l.b16 %v43
  %v76 = vunpack.c.l.b16 %v44
  %v77 = vunpack.c.l.b16 %v45
  %v78 = vunpack.c.l.b16 %v46
  %v79 = vunpack.c.l.b16 %v47
  %v80 = vunpack.c.l.b16 %v48
  %v81 = vunpack.c.l.b16 %v49
  %v82 = vunpack.c.l.b16 %v50
  %v83 = vunpack.c.l.b16 %v51
  %v84 = vunpack.c.l.b16 %v52
  %v85 = vunpack.c.l.b16 %v53
  %v86 = vunpack.c.l.b16 %v54
  %v87 = vpack.c.b16 %v72, %v71
  %v88 = vpack.c.b16 %v74, %v73
  %v89 = vpack.c.b16 %v76, %v75
  %v90 = vpack.c.b16 %v78, %v77
  %v91 = vpack.c.b16 %v80, %v79
  %v92 = vpack.c.b16 %v82, %v81
  %v93 = vpack.c.b16 %v84, %v83
  %v94 = vpack.c.b16 %v86, %v85
  %103 = vmatprep.subr.bf16.mxu0 0
  %104 = vmatpush1.bf16.msra.mxu0 %v87
  %105 = vmatprep.subr.bf16.mxu0 0
  %106 = vmatpush1.bf16.msra.mxu0 %v88
  %107 = vmatprep.subr.bf16.mxu0 0
  %108 = vmatpush1.bf16.msra.mxu0 %v89
  %109 = vmatprep.subr.bf16.mxu0 0
  %110 = vmatpush1.bf16.msra.mxu0 %v90
  %111 = vmatprep.subr.bf16.mxu0 0
  %112 = vmatpush1.bf16.msra.mxu0 %v91
  %113 = vmatprep.subr.bf16.mxu0 0
  %114 = vmatpush1.bf16.msra.mxu0 %v92
  %115 = vmatprep.subr.bf16.mxu0 0
  %116 = vmatpush1.bf16.msra.mxu0 %v93
  %117 = vmatprep.subr.bf16.mxu0 0
  %118 = vmatpush1.bf16.msra.mxu0 %v94
  %119 = vmatprep.subr.bf16.mxu0 0
  %120 = vmatpush1.bf16.msra.mxu0 0
  %121 = vmatprep.subr.bf16.mxu0 0
  %122 = vmatpush1.bf16.msra.mxu0 0
  %123 = vmatprep.subr.bf16.mxu0 0
  %124 = vmatpush1.bf16.msra.mxu0 0
  %125 = vmatprep.subr.bf16.mxu0 0
  %126 = vmatpush1.bf16.msra.mxu0 0
  %127 = vmatprep.subr.bf16.mxu0 0
  %128 = vmatpush1.bf16.msra.mxu0 0
  %129 = vmatprep.subr.bf16.mxu0 0
  %130 = vmatpush1.bf16.msra.mxu0 0
  %131 = vmatprep.subr.bf16.mxu0 0
  %132 = vmatpush1.bf16.msra.mxu0 0
  %133 = vmatprep.subr.bf16.mxu0 0
  %134 = vmatpush1.bf16.msra.mxu0 0
  %135 = vmatprep.mubr.bf16.mxu0 0
  %136 = vmatmul.mubr.bf16.gmra.mrb[0].mxu0 %v38
  %v137 = vpop.f32.mrb[0].mxu0
  %v138 = vadd.f32 0.0, %v137
  %v139 = vpop.f32.mrb[0].mxu0
  %v140 = vpop.f32.mrb[0].mxu0
  %v141 = vpop.f32.mrb[0].mxu0
  %142 = vdwg.mxu0
  %v159 = vunpack.c.l.b16 %v22
  %v160 = vunpack.c.l.b16 %v23
  %v161 = vunpack.c.l.b16 %v24
  %v162 = vunpack.c.l.b16 %v25
  %v163 = vunpack.c.l.b16 %v26
  %v164 = vunpack.c.l.b16 %v27
  %v165 = vunpack.c.l.b16 %v28
  %v166 = vunpack.c.l.b16 %v29
  %v167 = vunpack.c.l.b16 %v30
  %v168 = vunpack.c.l.b16 %v31
  %v169 = vunpack.c.l.b16 %v32
  %v170 = vunpack.c.l.b16 %v33
  %v171 = vunpack.c.l.b16 %v34
  %v172 = vunpack.c.l.b16 %v35
  %v173 = vunpack.c.l.b16 %v36
  %v174 = vunpack.c.l.b16 %v37
  %v175 = vpack.c.b16 %v160, %v159
  %v176 = vpack.c.b16 %v162, %v161
  %v177 = vpack.c.b16 %v164, %v163
  %v178 = vpack.c.b16 %v166, %v165
  %v179 = vpack.c.b16 %v168, %v167
  %v180 = vpack.c.b16 %v170, %v169
  %v181 = vpack.c.b16 %v172, %v171
  %v182 = vpack.c.b16 %v174, %v173
  %191 = vmatprep.subr.bf16.mxu0 0
  %192 = vmatpush1.bf16.msra.mxu0 %v175
  %193 = vmatprep.subr.bf16.mxu0 0
  %194 = vmatpush1.bf16.msra.mxu0 %v176
  %195 = vmatprep.subr.bf16.mxu0 0
  %196 = vmatpush1.bf16.msra.mxu0 %v177
  %197 = vmatprep.subr.bf16.mxu0 0
  %198 = vmatpush1.bf16.msra.mxu0 %v178
  %199 = vmatprep.subr.bf16.mxu0 0
  %200 = vmatpush1.bf16.msra.mxu0 %v179
  %201 = vmatprep.subr.bf16.mxu0 0
  %202 = vmatpush1.bf16.msra.mxu0 %v180
  %203 = vmatprep.subr.bf16.mxu0 0
  %204 = vmatpush1.bf16.msra.mxu0 %v181
  %205 = vmatprep.subr.bf16.mxu0 0
  %206 = vmatpush1.bf16.msra.mxu0 %v182
  %207 = vmatprep.subr.bf16.mxu0 0
  %208 = vmatpush1.bf16.msra.mxu0 0
  %209 = vmatprep.subr.bf16.mxu0 0
  %210 = vmatpush1.bf16.msra.mxu0 0
  %211 = vmatprep.subr.bf16.mxu0 0
  %212 = vmatpush1.bf16.msra.mxu0 0
  %213 = vmatprep.subr.bf16.mxu0 0
  %214 = vmatpush1.bf16.msra.mxu0 0
  %215 = vmatprep.subr.bf16.mxu0 0
  %216 = vmatpush1.bf16.msra.mxu0 0
  %217 = vmatprep.subr.bf16.mxu0 0
  %218 = vmatpush1.bf16.msra.mxu0 0
  %219 = vmatprep.subr.bf16.mxu0 0
  %220 = vmatpush1.bf16.msra.mxu0 0
  %221 = vmatprep.subr.bf16.mxu0 0
  %222 = vmatpush1.bf16.msra.mxu0 0
  %223 = vmatprep.mubr.bf16.mxu0 0
  %224 = vmatmul.mubr.bf16.gmra.mrb[0].mxu0 %v21
  %v225 = vpop.f32.mrb[0].mxu0
  %v226 = vadd.f32 %v138, %v225
  %v227 = vpop.f32.mrb[0].mxu0
  %v228 = vpop.f32.mrb[0].mxu0
  %v229 = vpop.f32.mrb[0].mxu0
  %230 = vdwg.mxu0
  %v231 = vld [vmem:[%s4] sm:$0x1]
  %v233 = vlaneseq
  %v234 = vshrl.u32 %v233, 7
  %v235 = vsub.s32 0, %v234
  %v236 = vrot.slane %v231, %v235
  %v238 = vadd.f32 %v226, %v236
  %vm239 = vcmask 27648
  %240 = vst.msk [vmem:[%s5] sm:$0xf] %vm239, %v238
  // Predicated region
  $region22: #{basic_lstm_forward.9} parent=0 // pred_check
    _
  $region23: #{basic_lstm_forward.9} parent=0 // pred_check_branch
    %242 = sbr.rel (0) target = $region25
  $region24: #{basic_lstm_forward.9} parent=0 // pred_region
    _
  $region25: #{basic_lstm_forward.9} parent=0 // pred_fallthru
    _
  // Predicated region
  $region26: #{basic_lstm_forward.9} parent=0 // pred_check
    _
  $region27: #{basic_lstm_forward.9} parent=0 // pred_check_branch
    %244 = sbr.rel (0) target = $region29
  $region28: #{basic_lstm_forward.9} parent=0 // pred_region
    _
  $region29: #{basic_lstm_forward.9} parent=0 // pred_fallthru
    _

// kernel: basic_lstm_forward.6
$region0: #{basic_lstm_forward.6}
  #allocation0 [shape = 'u32[]', space=smem, size = 0x4, offset = 0x4, fixed_abs, tag = 'smem constant byte address 0x4 - core index']
  #allocation1 [shape = 'u32[144,128]{1,0:T(1,128)}', space=vmem, size = 0x12000, scoped, tag = 'internal scratch']
  #allocation2 [shape = 'f32[2,128]{1,0:T(2,128)}', space=vmem, size = 0x400, scoped, tag = 'scratch operand']
  #allocation3 [shape = 'f32[2,128]{1,0:T(2,128)}', space=vmem, size = 0x400, scoped, tag = 'scratch operand']
  #allocation4 [shape = 'f32[2,128]{1,0:T(2,128)}', space=vmem, size = 0x400, scoped, tag = 'scratch operand']
  #allocation5 [shape = 'f32[2,128]{1,0:T(2,128)}', space=vmem, size = 0x400, scoped, tag = 'scratch operand']
  %s0 = inlined_call_operand.vmem [shape: bf16[8,2,512], index: 0, kind: input, shape index: {}]
  %s1 = inlined_call_operand.vmem [shape: bf16[8,2,512], index: 1, kind: input, shape index: {}]
  %s2 = inlined_call_operand.hbm [shape: bf16[128,512], index: 2, kind: input, shape index: {}]
  %s3 = inlined_call_operand.hbm [shape: bf16[128,512], index: 3, kind: input, shape index: {}]
  %s4 = inlined_call_operand.vmem [shape: bf16[8,2,128], index: 4, kind: output, shape index: {0}]
  %s5 = inlined_call_operand.vmem [shape: bf16[8,2,128], index: 5, kind: output, shape index: {1}]
  %6 = xla_tuple %s4, %s5
  %s7 = sld [smem:[#allocation0]]
  $region69: #{basic_lstm_forward.6} parent=0
    _
  %s9 = ssub.s32 1, %s7
  %s10 = scalar_select 0, %s9, %s7
  $region1: #{basic_lstm_forward.6} parent=0
    #allocation6 [shape = 'u8[131072]{0}', space=vmem, size = 0x20000, scoped, tag = 'input window, operand 2, single buffered']
    #allocation7 [shape = 's32[2]{0}', space=sflag, size = 0x8, scoped, tag = 'scoped memory for basic_lstm_forward.6']
    #allocation8 [shape = 'u8[131072]{0}', space=vmem, size = 0x20000, scoped, tag = 'input window, operand 3, single buffered']
    #allocation9 [shape = 's32[1]{0}', space=sflag, size = 0x4, scoped, tag = 'scoped memory for basic_lstm_forward.6']
    %11 = vsyncpa [#allocation7], 0
    %12 = vsyncpa [#allocation9], 0
    loop: start=0, step=1, limit=4
    $region2: #{basic_lstm_forward.6} parent=1 // loop_pre_header
      _
    $region3: #{basic_lstm_forward.6} parent=1 // loop_header
      %s14 = sphi 0, %s18
      %p15 = scmp.ge.s32.totalorder %s14, 4
      %s24 = sphi 0, %s26
      %s27 = sphi 0, %s24
      %s28 = sphi 0, %s27
      %s44 = sphi 0, %s28
      %s52 = sphi 0, %s54
      %s55 = sphi 0, %s52
      %s56 = sphi 0, %s55
      %s72 = sphi 0, %s56
      %s76 = sphi 0, %s76
      %s78 = sphi 0, %s76
      %s79 = sphi 0, %s78
      %s93 = sphi 0, %s79
      %s97 = sphi 0, %s97
      %s99 = sphi 0, %s97
      %s100 = sphi 0, %s99
      %s114 = sphi 0, %s100
      %s120 = sphi 0, %s122
      %s123 = sphi 0, %s120
      %s124 = sphi 0, %s123
      %s140 = sphi 0, %s124
      %s148 = sphi 0, %s150
      %s151 = sphi 0, %s148
      %s152 = sphi 0, %s151
      %s168 = sphi 0, %s152
    $region4: #{basic_lstm_forward.6} parent=1 // loop_header_branch
      %17 = sbr.rel (%p15) target = $region8
    $region5: #{basic_lstm_forward.6} parent=1 // loop_body
      %s19 = ssub.s32 %s14, 1
      %s20 = ssub.s32 %s14, 2
      %s21 = sadd.s32 %s14, 1
      %s22 = ssub.s32 %s14, %s21
      %p23 = scmp.eq.s32.totalorder %s22, 0
      %s25 = sadd.s32 %s24, 1
      %s26 = scalar_select %p23, %s24, %s25
      %p29 = pneg %p23
      %p30 = scmp.eq.s32.totalorder %s14, 1
      %p31 = por %p29, %p30
      %p32 = scmp.ne.s32.totalorder %s24, %s27
      %p33 = scmp.eq.s32.totalorder %s14, 0
      %p34 = por %p32, %p33
      %p35 = scmp.ne.s32.totalorder %s24, %s27
      %p36 = scmp.eq.s32.totalorder %s19, 1
      %p37 = por %p35, %p36
      %p38 = scmp.ne.s32.totalorder %s27, %s28
      %p39 = scmp.eq.s32.totalorder %s19, 0
      %p40 = por %p38, %p39
      %p41 = scmp.ne.s32.totalorder %s27, %s28
      %p42 = scmp.eq.s32.totalorder %s20, 1
      %p43 = por %p41, %p42
      %p45 = scmp.ne.s32.totalorder %s28, %s44
      %p46 = scmp.eq.s32.totalorder %s20, 0
      %p47 = por %p45, %p46
      %s48 = ssub.s32 1, %s14
      %s49 = ssub.s32 1, %s21
      %s50 = ssub.s32 %s48, %s49
      %p51 = scmp.eq.s32.totalorder %s50, 0
      %s53 = sadd.s32 %s52, 1
      %s54 = scalar_select %p51, %s52, %s53
      %p57 = pneg %p51
      %p58 = scmp.eq.s32.totalorder %s14, 1
      %p59 = por %p57, %p58
      %p60 = scmp.ne.s32.totalorder %s52, %s55
      %p61 = scmp.eq.s32.totalorder %s14, 0
      %p62 = por %p60, %p61
      %p63 = scmp.ne.s32.totalorder %s52, %s55
      %p64 = scmp.eq.s32.totalorder %s19, 1
      %p65 = por %p63, %p64
      %p66 = scmp.ne.s32.totalorder %s55, %s56
      %p67 = scmp.eq.s32.totalorder %s19, 0
      %p68 = por %p66, %p67
      %p69 = scmp.ne.s32.totalorder %s55, %s56
      %p70 = scmp.eq.s32.totalorder %s20, 1
      %p71 = por %p69, %p70
      %p73 = scmp.ne.s32.totalorder %s56, %s72
      %p74 = scmp.eq.s32.totalorder %s20, 0
      %p75 = por %p73, %p74
      %s77 = sadd.s32 %s76, 1
      %p80 = scmp.eq.s32.totalorder %s14, 1
      %p81 = scmp.ne.s32.totalorder %s76, %s78
      %p82 = scmp.eq.s32.totalorder %s14, 0
      %p83 = por %p81, %p82
      %p84 = scmp.ne.s32.totalorder %s76, %s78
      %p85 = scmp.eq.s32.totalorder %s19, 1
      %p86 = por %p84, %p85
      %p87 = scmp.ne.s32.totalorder %s78, %s79
      %p88 = scmp.eq.s32.totalorder %s19, 0
      %p89 = por %p87, %p88
      %p90 = scmp.ne.s32.totalorder %s78, %s79
      %p91 = scmp.eq.s32.totalorder %s20, 1
      %p92 = por %p90, %p91
      %p94 = scmp.ne.s32.totalorder %s79, %s93
      %p95 = scmp.eq.s32.totalorder %s20, 0
      %p96 = por %p94, %p95
      %s98 = sadd.s32 %s97, 1
      %p101 = scmp.eq.s32.totalorder %s14, 1
      %p102 = scmp.ne.s32.totalorder %s97, %s99
      %p103 = scmp.eq.s32.totalorder %s14, 0
      %p104 = por %p102, %p103
      %p105 = scmp.ne.s32.totalorder %s97, %s99
      %p106 = scmp.eq.s32.totalorder %s19, 1
      %p107 = por %p105, %p106
      %p108 = scmp.ne.s32.totalorder %s99, %s100
      %p109 = scmp.eq.s32.totalorder %s19, 0
      %p110 = por %p108, %p109
      %p111 = scmp.ne.s32.totalorder %s99, %s100
      %p112 = scmp.eq.s32.totalorder %s20, 1
      %p113 = por %p111, %p112
      %p115 = scmp.ne.s32.totalorder %s100, %s114
      %p116 = scmp.eq.s32.totalorder %s20, 0
      %p117 = por %p115, %p116
      %s118 = ssub.s32 %s14, %s21
      %p119 = scmp.eq.s32.totalorder %s118, 0
      %s121 = sadd.s32 %s120, 1
      %s122 = scalar_select %p119, %s120, %s121
      %p125 = pneg %p119
      %p126 = scmp.eq.s32.totalorder %s14, 1
      %p127 = por %p125, %p126
      %p128 = scmp.ne.s32.totalorder %s120, %s123
      %p129 = scmp.eq.s32.totalorder %s14, 0
      %p130 = por %p128, %p129
      %p131 = scmp.ne.s32.totalorder %s120, %s123
      %p132 = scmp.eq.s32.totalorder %s19, 1
      %p133 = por %p131, %p132
      %p134 = scmp.ne.s32.totalorder %s123, %s124
      %p135 = scmp.eq.s32.totalorder %s19, 0
      %p136 = por %p134, %p135
      %p137 = scmp.ne.s32.totalorder %s123, %s124
      %p138 = scmp.eq.s32.totalorder %s20, 1
      %p139 = por %p137, %p138
      %p141 = scmp.ne.s32.totalorder %s124, %s140
      %p142 = scmp.eq.s32.totalorder %s20, 0
      %p143 = por %p141, %p142
      %s144 = ssub.s32 1, %s14
      %s145 = ssub.s32 1, %s21
      %s146 = ssub.s32 %s144, %s145
      %p147 = scmp.eq.s32.totalorder %s146, 0
      %s149 = sadd.s32 %s148, 1
      %s150 = scalar_select %p147, %s148, %s149
      %p153 = pneg %p147
      %p154 = scmp.eq.s32.totalorder %s14, 1
      %p155 = por %p153, %p154
      %p156 = scmp.ne.s32.totalorder %s148, %s151
      %p157 = scmp.eq.s32.totalorder %s14, 0
      %p158 = por %p156, %p157
      %p159 = scmp.ne.s32.totalorder %s148, %s151
      %p160 = scmp.eq.s32.totalorder %s19, 1
      %p161 = por %p159, %p160
      %p162 = scmp.ne.s32.totalorder %s151, %s152
      %p163 = scmp.eq.s32.totalorder %s19, 0
      %p164 = por %p162, %p163
      %p165 = scmp.ne.s32.totalorder %s151, %s152
      %p166 = scmp.eq.s32.totalorder %s20, 1
      %p167 = por %p165, %p166
      %p169 = scmp.ne.s32.totalorder %s152, %s168
      %p170 = scmp.eq.s32.totalorder %s20, 0
      %p171 = por %p169, %p170
      %p172 = scmp.le.s32.totalorder 1, %s14
      %p173 = scmp.lt.s32.totalorder %s14, 3
      %p174 = pnand %p172, %p173
      %p175 = pneg %p174
      // Predicated region
      $region9: #{basic_lstm_forward.6} parent=5 // pred_check
        _
      $region10: #{basic_lstm_forward.6} parent=5 // pred_check_branch
        %177 = sbr.rel (%p174) target = $region12
      $region11: #{basic_lstm_forward.6} parent=5 // pred_region
        %s178 = ssub.s32 %s14, 1
        // Predicated region
        $region13: #{basic_lstm_forward.6} parent=11 // pred_check
          %p179 = pneg %p89
        $region14: #{basic_lstm_forward.6} parent=11 // pred_check_branch
          %181 = sbr.rel (%p179) target = $region16
        $region15: #{basic_lstm_forward.6} parent=11 // pred_region
          %s183 = ssub.s32 4096, 4096
          %184 = vsyncadd [#allocation7], %s183
          %s185 = sshll.u32 [#allocation6], 4
          %s186 = int_to_ptr.vmem [resolvable:$true] %s185
          %191 = dma.hbm_to_vmem [thread:$0]  %s2, 4096, %s186, [#allocation7], 256, 256, 16
        $region16: #{basic_lstm_forward.6} parent=11 // pred_fallthru
          _
        // Predicated region
        $region17: #{basic_lstm_forward.6} parent=11 // pred_check
          %p192 = pneg %p110
        $region18: #{basic_lstm_forward.6} parent=11 // pred_check_branch
          %194 = sbr.rel (%p192) target = $region20
        $region19: #{basic_lstm_forward.6} parent=11 // pred_region
          %s196 = ssub.s32 4096, 4096
          %197 = vsyncadd [#allocation9], %s196
          %s198 = sshll.u32 [#allocation8], 4
          %s199 = int_to_ptr.vmem [resolvable:$true] %s198
          %204 = dma.hbm_to_vmem [thread:$0]  %s3, 4096, %s199, [#allocation9], 256, 256, 16
        $region20: #{basic_lstm_forward.6} parent=11 // pred_fallthru
          _
      $region12: #{basic_lstm_forward.6} parent=5 // pred_fallthru
        _
      %p205 = scmp.lt.s32.totalorder %s14, 2
      // Predicated region
      $region21: #{basic_lstm_forward.6} parent=5 // pred_check
        %p206 = pneg %p205
      $region22: #{basic_lstm_forward.6} parent=5 // pred_check_branch
        %208 = sbr.rel (%p206) target = $region24
      $region23: #{basic_lstm_forward.6} parent=5 // pred_region
        // Predicated region
        $region25: #{basic_lstm_forward.6} parent=23 // pred_check
          %p209 = pneg %p34
        $region26: #{basic_lstm_forward.6} parent=23 // pred_check_branch
          %211 = sbr.rel (%p209) target = $region28
        $region27: #{basic_lstm_forward.6} parent=23 // pred_region
          %s212 = smul.u32 4, %s14
          %p213 = scmp.lt.s32.totalorder %s212, 7
          %s214 = scalar_select %p213, %s212, 7
          %s215 = smul.addr %s214, 4
          %s216 = scalar_lea.vmem %s0, %s215
          %s217 = smul.u32 4, %s14
        $region28: #{basic_lstm_forward.6} parent=23 // pred_fallthru
          _
        // Predicated region
        $region29: #{basic_lstm_forward.6} parent=23 // pred_check
          %p218 = pneg %p62
        $region30: #{basic_lstm_forward.6} parent=23 // pred_check_branch
          %220 = sbr.rel (%p218) target = $region32
        $region31: #{basic_lstm_forward.6} parent=23 // pred_region
          %s221 = ssub.s32 1, %s14
          %s222 = smul.u32 4, %s221
          %p223 = scmp.lt.s32.totalorder %s222, 7
          %s224 = scalar_select %p223, %s222, 7
          %s225 = smul.addr %s224, 4
          %s226 = scalar_lea.vmem %s1, %s225
          %s227 = ssub.s32 1, %s14
          %s228 = smul.u32 4, %s227
        $region32: #{basic_lstm_forward.6} parent=23 // pred_fallthru
          _
      $region24: #{basic_lstm_forward.6} parent=5 // pred_fallthru
        _
      %p229 = scmp.le.s32.totalorder 1, %s14
      %p230 = scmp.lt.s32.totalorder %s14, 3
      %p231 = pnand %p229, %p230
      %p232 = pneg %p231
      // Predicated region
      $region33: #{basic_lstm_forward.6} parent=5 // pred_check
        _
      $region34: #{basic_lstm_forward.6} parent=5 // pred_check_branch
        %234 = sbr.rel (%p231) target = $region36
      $region35: #{basic_lstm_forward.6} parent=5 // pred_region
        %s235 = ssub.s32 %s14, 1
        // Predicated region
        $region37: #{basic_lstm_forward.6} parent=35 // pred_check
          %p236 = pneg %p89
        $region38: #{basic_lstm_forward.6} parent=35 // pred_check_branch
          %238 = sbr.rel (%p236) target = $region40
        $region39: #{basic_lstm_forward.6} parent=35 // pred_region
          %239 = dma.done [#allocation7], 4096
        $region40: #{basic_lstm_forward.6} parent=35 // pred_fallthru
          _
        // Predicated region
        $region41: #{basic_lstm_forward.6} parent=35 // pred_check
          %p240 = pneg %p110
        $region42: #{basic_lstm_forward.6} parent=35 // pred_check_branch
          %242 = sbr.rel (%p240) target = $region44
        $region43: #{basic_lstm_forward.6} parent=35 // pred_region
          %243 = dma.done [#allocation9], 4096
        $region44: #{basic_lstm_forward.6} parent=35 // pred_fallthru
          _
        %s244 = smul.u32 4, %s19
        %p245 = scmp.lt.s32.totalorder %s244, 7
        %s246 = scalar_select %p245, %s244, 7
        %s247 = smul.addr %s246, 4
        %s248 = scalar_lea.vmem %s0, %s247
        %p249 = pneg %p40
        %p250 = pneg %p37
        %s251 = ssub.s32 1, %s19
        %s252 = smul.u32 4, %s251
        %p253 = scmp.lt.s32.totalorder %s252, 7
        %s254 = scalar_select %p253, %s252, 7
        %s255 = smul.addr %s254, 4
        %s256 = scalar_lea.vmem %s1, %s255
        %p257 = pneg %p68
        %p258 = pneg %p65
        %p259 = pneg %p89
        %p260 = pneg %p86
        %p261 = pneg %p110
        %p262 = pneg %p107
        %p263 = pneg %p136
        %p264 = pneg %p133
        %s265 = smul.u32 4, %s19
        %p266 = scmp.lt.s32.totalorder %s265, 7
        %s267 = scalar_select %p266, %s265, 7
        %s268 = scalar_lea.vmem %s4, %s267
        %p269 = pneg %p164
        %p270 = pneg %p161
        %s271 = ssub.s32 1, %s19
        %s272 = smul.u32 4, %s271
        %p273 = scmp.lt.s32.totalorder %s272, 7
        %s274 = scalar_select %p273, %s272, 7
        %s275 = scalar_lea.vmem %s5, %s274
        %s276 = smul.u32 4, %s19
        %p277 = scmp.lt.s32.totalorder %s276, 7
        %s278 = scalar_select %p277, %s276, 7
        %s279 = smul.addr %s278, 4
        %s280 = scalar_lea.vmem %s0, %s279
        %s281 = smul.u32 4, %s19
        %s282 = ssub.s32 1, %s19
        %s283 = smul.u32 4, %s282
        %p284 = scmp.lt.s32.totalorder %s283, 7
        %s285 = scalar_select %p284, %s283, 7
        %s286 = smul.addr %s285, 4
        %s287 = scalar_lea.vmem %s1, %s286
        %s288 = ssub.s32 1, %s19
        %s289 = smul.u32 4, %s288
        %s290 = smul.u32 4, %s19
        %p291 = scmp.lt.s32.totalorder %s290, 7
        %s292 = scalar_select %p291, %s290, 7
        %s293 = scalar_lea.vmem %s4, %s292
        %s294 = smul.u32 4, %s19
        %s295 = ssub.s32 1, %s19
        %s296 = smul.u32 4, %s295
        %p297 = scmp.lt.s32.totalorder %s296, 7
        %s298 = scalar_select %p297, %s296, 7
        %s299 = scalar_lea.vmem %s5, %s298
        %s300 = ssub.s32 1, %s19
        %s301 = smul.u32 4, %s300
        %p303 = scmp.eq.s32.totalorder %s19, 0
        // Predicated region
        $region45: #{basic_lstm_forward.6} parent=35 // pred_check
          %p304 = pneg %p303
        $region46: #{basic_lstm_forward.6} parent=35 // pred_check_branch
          %306 = sbr.rel (%p304) target = $region48
        $region47: #{basic_lstm_forward.6} parent=35 // pred_region
          %307 = vst [vmem:[#allocation2] sm:$0x3] 0.0
          %308 = vst [vmem:[#allocation3] sm:$0x3] 0.0
          %309 = vst [vmem:[#allocation4] sm:$0x3] 0.0
          %310 = vst [vmem:[#allocation5] sm:$0x3] 0.0
        $region48: #{basic_lstm_forward.6} parent=35 // pred_fallthru
          _
        %v311 = vld [vmem:[#allocation2] sm:$0x3]
        %v312 = vld [vmem:[#allocation3] sm:$0x3]
        %v313 = vld [vmem:[#allocation4] sm:$0x3]
        %v314 = vld [vmem:[#allocation5] sm:$0x3]
        %v315 = vpack.c.bf16 %v311, %v311
        %v316 = vld [vmem:[#allocation6] sm:$0xff]
        %v317 = vld [vmem:[#allocation6 + $0x8] sm:$0xff]
        %v318 = vld [vmem:[#allocation6 + $0x10] sm:$0xff]
        %v319 = vld [vmem:[#allocation6 + $0x18] sm:$0xff]
        %v320 = vld [vmem:[#allocation6 + $0x20] sm:$0xff]
        %v321 = vld [vmem:[#allocation6 + $0x28] sm:$0xff]
        %v322 = vld [vmem:[#allocation6 + $0x30] sm:$0xff]
        %v323 = vld [vmem:[#allocation6 + $0x38] sm:$0xff]
        %v324 = vld [vmem:[#allocation6 + $0x40] sm:$0xff]
        %v325 = vld [vmem:[#allocation6 + $0x48] sm:$0xff]
        %v326 = vld [vmem:[#allocation6 + $0x50] sm:$0xff]
        %v327 = vld [vmem:[#allocation6 + $0x58] sm:$0xff]
        %v328 = vld [vmem:[#allocation6 + $0x60] sm:$0xff]
        %v329 = vld [vmem:[#allocation6 + $0x68] sm:$0xff]
        %v330 = vld [vmem:[#allocation6 + $0x70] sm:$0xff]
        %v331 = vld [vmem:[#allocation6 + $0x78] sm:$0xff]
        %v332 = vld [vmem:[#allocation6 + $0x80] sm:$0xff]
        %v333 = vld [vmem:[#allocation6 + $0x88] sm:$0xff]
        %v334 = vld [vmem:[#allocation6 + $0x90] sm:$0xff]
        %v335 = vld [vmem:[#allocation6 + $0x98] sm:$0xff]
        %v336 = vld [vmem:[#allocation6 + $0xa0] sm:$0xff]
        %v337 = vld [vmem:[#allocation6 + $0xa8] sm:$0xff]
        %v338 = vld [vmem:[#allocation6 + $0xb0] sm:$0xff]
        %v339 = vld [vmem:[#allocation6 + $0xb8] sm:$0xff]
        %v340 = vld [vmem:[#allocation6 + $0xc0] sm:$0xff]
        %v341 = vld [vmem:[#allocation6 + $0xc8] sm:$0xff]
        %v342 = vld [vmem:[#allocation6 + $0xd0] sm:$0xff]
        %v343 = vld [vmem:[#allocation6 + $0xd8] sm:$0xff]
        %v344 = vld [vmem:[#allocation6 + $0xe0] sm:$0xff]
        %v345 = vld [vmem:[#allocation6 + $0xe8] sm:$0xff]
        %v346 = vld [vmem:[#allocation6 + $0xf0] sm:$0xff]
        %v347 = vld [vmem:[#allocation6 + $0xf8] sm:$0xff]
        %v348 = vld [vmem:[%s280] sm:$0xf]
        %v349 = vunpack.c.l.bf16 %v348
        %v382 = vunpack.c.l.b16 %v316
        %v383 = vunpack.c.h.b16 %v316
        %v384 = vunpack.c.l.b16 %v317
        %v385 = vunpack.c.h.b16 %v317
        %v386 = vunpack.c.l.b16 %v318
        %v387 = vunpack.c.h.b16 %v318
        %v388 = vunpack.c.l.b16 %v319
        %v389 = vunpack.c.h.b16 %v319
        %v390 = vunpack.c.l.b16 %v320
        %v391 = vunpack.c.h.b16 %v320
        %v392 = vunpack.c.l.b16 %v321
        %v393 = vunpack.c.h.b16 %v321
        %v394 = vunpack.c.l.b16 %v322
        %v395 = vunpack.c.h.b16 %v322
        %v396 = vunpack.c.l.b16 %v323
        %v397 = vunpack.c.h.b16 %v323
        %v398 = vunpack.c.l.b16 %v324
        %v399 = vunpack.c.h.b16 %v324
        %v400 = vunpack.c.l.b16 %v325
        %v401 = vunpack.c.h.b16 %v325
        %v402 = vunpack.c.l.b16 %v326
        %v403 = vunpack.c.h.b16 %v326
        %v404 = vunpack.c.l.b16 %v327
        %v405 = vunpack.c.h.b16 %v327
        %v406 = vunpack.c.l.b16 %v328
        %v407 = vunpack.c.h.b16 %v328
        %v408 = vunpack.c.l.b16 %v329
        %v409 = vunpack.c.h.b16 %v329
        %v410 = vunpack.c.l.b16 %v330
        %v411 = vunpack.c.h.b16 %v330
        %v412 = vunpack.c.l.b16 %v331
        %v413 = vunpack.c.h.b16 %v331
        %v414 = vunpack.c.l.b16 %v332
        %v415 = vunpack.c.h.b16 %v332
        %v416 = vunpack.c.l.b16 %v333
        %v417 = vunpack.c.h.b16 %v333
        %v418 = vunpack.c.l.b16 %v334
        %v419 = vunpack.c.h.b16 %v334
        %v420 = vunpack.c.l.b16 %v335
        %v421 = vunpack.c.h.b16 %v335
        %v422 = vunpack.c.l.b16 %v336
        %v423 = vunpack.c.h.b16 %v336
        %v424 = vunpack.c.l.b16 %v337
        %v425 = vunpack.c.h.b16 %v337
        %v426 = vunpack.c.l.b16 %v338
        %v427 = vunpack.c.h.b16 %v338
        %v428 = vunpack.c.l.b16 %v339
        %v429 = vunpack.c.h.b16 %v339
        %v430 = vunpack.c.l.b16 %v340
        %v431 = vunpack.c.h.b16 %v340
        %v432 = vunpack.c.l.b16 %v341
        %v433 = vunpack.c.h.b16 %v341
        %v434 = vunpack.c.l.b16 %v342
        %v435 = vunpack.c.h.b16 %v342
        %v436 = vunpack.c.l.b16 %v343
        %v437 = vunpack.c.h.b16 %v343
        %v438 = vunpack.c.l.b16 %v344
        %v439 = vunpack.c.h.b16 %v344
        %v440 = vunpack.c.l.b16 %v345
        %v441 = vunpack.c.h.b16 %v345
        %v442 = vunpack.c.l.b16 %v346
        %v443 = vunpack.c.h.b16 %v346
        %v444 = vunpack.c.l.b16 %v347
        %v445 = vunpack.c.h.b16 %v347
        %v446 = vpack.c.b16 %v386, %v382
        %v447 = vpack.c.b16 %v387, %v383
        %v448 = vpack.c.b16 %v388, %v384
        %v449 = vpack.c.b16 %v389, %v385
        %v450 = vpack.c.b16 %v394, %v390
        %v451 = vpack.c.b16 %v395, %v391
        %v452 = vpack.c.b16 %v396, %v392
        %v453 = vpack.c.b16 %v397, %v393
        %v454 = vpack.c.b16 %v402, %v398
        %v455 = vpack.c.b16 %v403, %v399
        %v456 = vpack.c.b16 %v404, %v400
        %v457 = vpack.c.b16 %v405, %v401
        %v458 = vpack.c.b16 %v410, %v406
        %v459 = vpack.c.b16 %v411, %v407
        %v460 = vpack.c.b16 %v412, %v408
        %v461 = vpack.c.b16 %v413, %v409
        %v462 = vpack.c.b16 %v418, %v414
        %v463 = vpack.c.b16 %v419, %v415
        %v464 = vpack.c.b16 %v420, %v416
        %v465 = vpack.c.b16 %v421, %v417
        %v466 = vpack.c.b16 %v426, %v422
        %v467 = vpack.c.b16 %v427, %v423
        %v468 = vpack.c.b16 %v428, %v424
        %v469 = vpack.c.b16 %v429, %v425
        %v470 = vpack.c.b16 %v434, %v430
        %v471 = vpack.c.b16 %v435, %v431
        %v472 = vpack.c.b16 %v436, %v432
        %v473 = vpack.c.b16 %v437, %v433
        %v474 = vpack.c.b16 %v442, %v438
        %v475 = vpack.c.b16 %v443, %v439
        %v476 = vpack.c.b16 %v444, %v440
        %v477 = vpack.c.b16 %v445, %v441
        %v511 = vcombine.high %v349, %v349
        %v513 = vunpack.c.l.s4 1983009808
        %v514 = vunpack.c.0.s8 %v513
        %v515 = vlaneseq
        %v516 = vshrl.u32 %v515, 7
        %v517 = vsub.s32 %v514, %v516
        %v518 = vrot.slane %v349, %v517
        %v520 = vunpack.c.l.s4 1983009808
        %v521 = vunpack.c.0.s8 %v520
        %v522 = vlaneseq
        %v523 = vshrl.u32 %v522, 7
        %v524 = vsub.s32 %v521, %v523
        %v525 = vrot.slane %v511, %v524
        %v526 = vcombine.high %v518, %v518
        %v527 = vcombine.high %v525, %v525
        %532 = vmatprep.subr.bf16.mxu0 %v447
        %533 = vmatpush1.bf16.msra.mxu0 %v446
        %534 = vmatprep.subr.bf16.mxu0 %v451
        %535 = vmatpush1.bf16.msra.mxu0 %v450
        %536 = vmatprep.subr.bf16.mxu0 %v455
        %537 = vmatpush1.bf16.msra.mxu0 %v454
        %538 = vmatprep.subr.bf16.mxu0 %v459
        %539 = vmatpush1.bf16.msra.mxu0 %v458
        %540 = vmatprep.subr.bf16.mxu0 %v463
        %541 = vmatpush1.bf16.msra.mxu0 %v462
        %542 = vmatprep.subr.bf16.mxu0 %v467
        %543 = vmatpush1.bf16.msra.mxu0 %v466
        %544 = vmatprep.subr.bf16.mxu0 %v471
        %545 = vmatpush1.bf16.msra.mxu0 %v470
        %546 = vmatprep.subr.bf16.mxu0 %v475
        %547 = vmatpush1.bf16.msra.mxu0 %v474
        %548 = vmatprep.subr.bf16.mxu0 0
        %549 = vmatpush1.bf16.msra.mxu0 0
        %550 = vmatprep.subr.bf16.mxu0 0
        %551 = vmatpush1.bf16.msra.mxu0 0
        %552 = vmatprep.subr.bf16.mxu0 0
        %553 = vmatpush1.bf16.msra.mxu0 0
        %554 = vmatprep.subr.bf16.mxu0 0
        %555 = vmatpush1.bf16.msra.mxu0 0
        %556 = vmatprep.subr.bf16.mxu0 0
        %557 = vmatpush1.bf16.msra.mxu0 0
        %558 = vmatprep.subr.bf16.mxu0 0
        %559 = vmatpush1.bf16.msra.mxu0 0
        %560 = vmatprep.subr.bf16.mxu0 0
        %561 = vmatpush1.bf16.msra.mxu0 0
        %562 = vmatprep.subr.bf16.mxu0 0
        %563 = vmatpush1.bf16.msra.mxu0 0
        %564 = vmatprep.mubr.bf16.mxu0 0
        %565 = vmatmul.mubr.bf16.gmra.mrb[0].mxu0 %v315
        %v566 = vpop.f32.mrb[0].mxu0
        %v567 = vadd.f32 %v518, %v566
        %v568 = vpop.f32.mrb[0].mxu0
        %v569 = vadd.f32 %v526, %v568
        %v570 = vpop.f32.mrb[0].mxu0
        %v571 = vpop.f32.mrb[0].mxu0
        %572 = vdwg.mxu0
        %573 = vmatprep.subr.bf16.mxu0 %v449
        %574 = vmatpush1.bf16.msra.mxu0 %v448
        %575 = vmatprep.subr.bf16.mxu0 %v453
        %576 = vmatpush1.bf16.msra.mxu0 %v452
        %577 = vmatprep.subr.bf16.mxu0 %v457
        %578 = vmatpush1.bf16.msra.mxu0 %v456
        %579 = vmatprep.subr.bf16.mxu0 %v461
        %580 = vmatpush1.bf16.msra.mxu0 %v460
        %581 = vmatprep.subr.bf16.mxu0 %v465
        %582 = vmatpush1.bf16.msra.mxu0 %v464
        %583 = vmatprep.subr.bf16.mxu0 %v469
        %584 = vmatpush1.bf16.msra.mxu0 %v468
        %585 = vmatprep.subr.bf16.mxu0 %v473
        %586 = vmatpush1.bf16.msra.mxu0 %v472
        %587 = vmatprep.subr.bf16.mxu0 %v477
        %588 = vmatpush1.bf16.msra.mxu0 %v476
        %589 = vmatprep.subr.bf16.mxu0 0
        %590 = vmatpush1.bf16.msra.mxu0 0
        %591 = vmatprep.subr.bf16.mxu0 0
        %592 = vmatpush1.bf16.msra.mxu0 0
        %593 = vmatprep.subr.bf16.mxu0 0
        %594 = vmatpush1.bf16.msra.mxu0 0
        %595 = vmatprep.subr.bf16.mxu0 0
        %596 = vmatpush1.bf16.msra.mxu0 0
        %597 = vmatprep.subr.bf16.mxu0 0
        %598 = vmatpush1.bf16.msra.mxu0 0
        %599 = vmatprep.subr.bf16.mxu0 0
        %600 = vmatpush1.bf16.msra.mxu0 0
        %601 = vmatprep.subr.bf16.mxu0 0
        %602 = vmatpush1.bf16.msra.mxu0 0
        %603 = vmatprep.subr.bf16.mxu0 0
        %604 = vmatpush1.bf16.msra.mxu0 0
        %605 = vmatprep.mubr.bf16.mxu0 0
        %606 = vmatmul.mubr.bf16.gmra.mrb[0].mxu0 %v315
        %v607 = vpop.f32.mrb[0].mxu0
        %v608 = vadd.f32 %v525, %v607
        %v609 = vpop.f32.mrb[0].mxu0
        %v610 = vadd.f32 %v527, %v609
        %v611 = vpop.f32.mrb[0].mxu0
        %v612 = vpop.f32.mrb[0].mxu0
        %613 = vdwg.mxu0
        %v614 = vpack.c.bf16 %v313, %v313
        %v615 = vld [vmem:[#allocation8] sm:$0xff]
        %v616 = vld [vmem:[#allocation8 + $0x8] sm:$0xff]
        %v617 = vld [vmem:[#allocation8 + $0x10] sm:$0xff]
        %v618 = vld [vmem:[#allocation8 + $0x18] sm:$0xff]
        %v619 = vld [vmem:[#allocation8 + $0x20] sm:$0xff]
        %v620 = vld [vmem:[#allocation8 + $0x28] sm:$0xff]
        %v621 = vld [vmem:[#allocation8 + $0x30] sm:$0xff]
        %v622 = vld [vmem:[#allocation8 + $0x38] sm:$0xff]
        %v623 = vld [vmem:[#allocation8 + $0x40] sm:$0xff]
        %v624 = vld [vmem:[#allocation8 + $0x48] sm:$0xff]
        %v625 = vld [vmem:[#allocation8 + $0x50] sm:$0xff]
        %v626 = vld [vmem:[#allocation8 + $0x58] sm:$0xff]
        %v627 = vld [vmem:[#allocation8 + $0x60] sm:$0xff]
        %v628 = vld [vmem:[#allocation8 + $0x68] sm:$0xff]
        %v629 = vld [vmem:[#allocation8 + $0x70] sm:$0xff]
        %v630 = vld [vmem:[#allocation8 + $0x78] sm:$0xff]
        %v631 = vld [vmem:[#allocation8 + $0x80] sm:$0xff]
        %v632 = vld [vmem:[#allocation8 + $0x88] sm:$0xff]
        %v633 = vld [vmem:[#allocation8 + $0x90] sm:$0xff]
        %v634 = vld [vmem:[#allocation8 + $0x98] sm:$0xff]
        %v635 = vld [vmem:[#allocation8 + $0xa0] sm:$0xff]
        %v636 = vld [vmem:[#allocation8 + $0xa8] sm:$0xff]
        %v637 = vld [vmem:[#allocation8 + $0xb0] sm:$0xff]
        %v638 = vld [vmem:[#allocation8 + $0xb8] sm:$0xff]
        %v639 = vld [vmem:[#allocation8 + $0xc0] sm:$0xff]
        %v640 = vld [vmem:[#allocation8 + $0xc8] sm:$0xff]
        %v641 = vld [vmem:[#allocation8 + $0xd0] sm:$0xff]
        %v642 = vld [vmem:[#allocation8 + $0xd8] sm:$0xff]
        %v643 = vld [vmem:[#allocation8 + $0xe0] sm:$0xff]
        %v644 = vld [vmem:[#allocation8 + $0xe8] sm:$0xff]
        %v645 = vld [vmem:[#allocation8 + $0xf0] sm:$0xff]
        %v646 = vld [vmem:[#allocation8 + $0xf8] sm:$0xff]
        %s647 = scalar_lea.vmem %s287, 12
        %v648 = vld [vmem:[%s647] sm:$0xf]
        %v649 = vunpack.c.l.bf16 %v648
        %v682 = vunpack.c.l.b16 %v615
        %v683 = vunpack.c.h.b16 %v615
        %v684 = vunpack.c.l.b16 %v616
        %v685 = vunpack.c.h.b16 %v616
        %v686 = vunpack.c.l.b16 %v617
        %v687 = vunpack.c.h.b16 %v617
        %v688 = vunpack.c.l.b16 %v618
        %v689 = vunpack.c.h.b16 %v618
        %v690 = vunpack.c.l.b16 %v619
        %v691 = vunpack.c.h.b16 %v619
        %v692 = vunpack.c.l.b16 %v620
        %v693 = vunpack.c.h.b16 %v620
        %v694 = vunpack.c.l.b16 %v621
        %v695 = vunpack.c.h.b16 %v621
        %v696 = vunpack.c.l.b16 %v622
        %v697 = vunpack.c.h.b16 %v622
        %v698 = vunpack.c.l.b16 %v623
        %v699 = vunpack.c.h.b16 %v623
        %v700 = vunpack.c.l.b16 %v624
        %v701 = vunpack.c.h.b16 %v624
        %v702 = vunpack.c.l.b16 %v625
        %v703 = vunpack.c.h.b16 %v625
        %v704 = vunpack.c.l.b16 %v626
        %v705 = vunpack.c.h.b16 %v626
        %v706 = vunpack.c.l.b16 %v627
        %v707 = vunpack.c.h.b16 %v627
        %v708 = vunpack.c.l.b16 %v628
        %v709 = vunpack.c.h.b16 %v628
        %v710 = vunpack.c.l.b16 %v629
        %v711 = vunpack.c.h.b16 %v629
        %v712 = vunpack.c.l.b16 %v630
        %v713 = vunpack.c.h.b16 %v630
        %v714 = vunpack.c.l.b16 %v631
        %v715 = vunpack.c.h.b16 %v631
        %v716 = vunpack.c.l.b16 %v632
        %v717 = vunpack.c.h.b16 %v632
        %v718 = vunpack.c.l.b16 %v633
        %v719 = vunpack.c.h.b16 %v633
        %v720 = vunpack.c.l.b16 %v634
        %v721 = vunpack.c.h.b16 %v634
        %v722 = vunpack.c.l.b16 %v635
        %v723 = vunpack.c.h.b16 %v635
        %v724 = vunpack.c.l.b16 %v636
        %v725 = vunpack.c.h.b16 %v636
        %v726 = vunpack.c.l.b16 %v637
        %v727 = vunpack.c.h.b16 %v637
        %v728 = vunpack.c.l.b16 %v638
        %v729 = vunpack.c.h.b16 %v638
        %v730 = vunpack.c.l.b16 %v639
        %v731 = vunpack.c.h.b16 %v639
        %v732 = vunpack.c.l.b16 %v640
        %v733 = vunpack.c.h.b16 %v640
        %v734 = vunpack.c.l.b16 %v641
        %v735 = vunpack.c.h.b16 %v641
        %v736 = vunpack.c.l.b16 %v642
        %v737 = vunpack.c.h.b16 %v642
        %v738 = vunpack.c.l.b16 %v643
        %v739 = vunpack.c.h.b16 %v643
        %v740 = vunpack.c.l.b16 %v644
        %v741 = vunpack.c.h.b16 %v644
        %v742 = vunpack.c.l.b16 %v645
        %v743 = vunpack.c.h.b16 %v645
        %v744 = vunpack.c.l.b16 %v646
        %v745 = vunpack.c.h.b16 %v646
        %v746 = vpack.c.b16 %v686, %v682
        %v747 = vpack.c.b16 %v687, %v683
        %v748 = vpack.c.b16 %v688, %v684
        %v749 = vpack.c.b16 %v689, %v685
        %v750 = vpack.c.b16 %v694, %v690
        %v751 = vpack.c.b16 %v695, %v691
        %v752 = vpack.c.b16 %v696, %v692
        %v753 = vpack.c.b16 %v697, %v693
        %v754 = vpack.c.b16 %v702, %v698
        %v755 = vpack.c.b16 %v703, %v699
        %v756 = vpack.c.b16 %v704, %v700
        %v757 = vpack.c.b16 %v705, %v701
        %v758 = vpack.c.b16 %v710, %v706
        %v759 = vpack.c.b16 %v711, %v707
        %v760 = vpack.c.b16 %v712, %v708
        %v761 = vpack.c.b16 %v713, %v709
        %v762 = vpack.c.b16 %v718, %v714
        %v763 = vpack.c.b16 %v719, %v715
        %v764 = vpack.c.b16 %v720, %v716
        %v765 = vpack.c.b16 %v721, %v717
        %v766 = vpack.c.b16 %v726, %v722
        %v767 = vpack.c.b16 %v727, %v723
        %v768 = vpack.c.b16 %v728, %v724
        %v769 = vpack.c.b16 %v729, %v725
        %v770 = vpack.c.b16 %v734, %v730
        %v771 = vpack.c.b16 %v735, %v731
        %v772 = vpack.c.b16 %v736, %v732
        %v773 = vpack.c.b16 %v737, %v733
        %v774 = vpack.c.b16 %v742, %v738
        %v775 = vpack.c.b16 %v743, %v739
        %v776 = vpack.c.b16 %v744, %v740
        %v777 = vpack.c.b16 %v745, %v741
        %v811 = vcombine.high %v649, %v649
        %v813 = vunpack.c.l.s4 1983009808
        %v814 = vunpack.c.0.s8 %v813
        %v815 = vlaneseq
        %v816 = vshrl.u32 %v815, 7
        %v817 = vsub.s32 %v814, %v816
        %v818 = vrot.slane %v649, %v817
        %v820 = vunpack.c.l.s4 1983009808
        %v821 = vunpack.c.0.s8 %v820
        %v822 = vlaneseq
        %v823 = vshrl.u32 %v822, 7
        %v824 = vsub.s32 %v821, %v823
        %v825 = vrot.slane %v811, %v824
        %v826 = vcombine.high %v818, %v818
        %v827 = vcombine.high %v825, %v825
        %832 = vmatprep.subr.bf16.mxu0 %v747
        %833 = vmatpush1.bf16.msra.mxu0 %v746
        %834 = vmatprep.subr.bf16.mxu0 %v751
        %835 = vmatpush1.bf16.msra.mxu0 %v750
        %836 = vmatprep.subr.bf16.mxu0 %v755
        %837 = vmatpush1.bf16.msra.mxu0 %v754
        %838 = vmatprep.subr.bf16.mxu0 %v759
        %839 = vmatpush1.bf16.msra.mxu0 %v758
        %840 = vmatprep.subr.bf16.mxu0 %v763
        %841 = vmatpush1.bf16.msra.mxu0 %v762
        %842 = vmatprep.subr.bf16.mxu0 %v767
        %843 = vmatpush1.bf16.msra.mxu0 %v766
        %844 = vmatprep.subr.bf16.mxu0 %v771
        %845 = vmatpush1.bf16.msra.mxu0 %v770
        %846 = vmatprep.subr.bf16.mxu0 %v775
        %847 = vmatpush1.bf16.msra.mxu0 %v774
        %848 = vmatprep.subr.bf16.mxu0 0
        %849 = vmatpush1.bf16.msra.mxu0 0
        %850 = vmatprep.subr.bf16.mxu0 0
        %851 = vmatpush1.bf16.msra.mxu0 0
        %852 = vmatprep.subr.bf16.mxu0 0
        %853 = vmatpush1.bf16.msra.mxu0 0
        %854 = vmatprep.subr.bf16.mxu0 0
        %855 = vmatpush1.bf16.msra.mxu0 0
        %856 = vmatprep.subr.bf16.mxu0 0
        %857 = vmatpush1.bf16.msra.mxu0 0
        %858 = vmatprep.subr.bf16.mxu0 0
        %859 = vmatpush1.bf16.msra.mxu0 0
        %860 = vmatprep.subr.bf16.mxu0 0
        %861 = vmatpush1.bf16.msra.mxu0 0
        %862 = vmatprep.subr.bf16.mxu0 0
        %863 = vmatpush1.bf16.msra.mxu0 0
        %864 = vmatprep.mubr.bf16.mxu0 0
        %865 = vmatmul.mubr.bf16.gmra.mrb[0].mxu0 %v614
        %v866 = vpop.f32.mrb[0].mxu0
        %v867 = vadd.f32 %v818, %v866
        %v868 = vpop.f32.mrb[0].mxu0
        %v869 = vadd.f32 %v826, %v868
        %v870 = vpop.f32.mrb[0].mxu0
        %v871 = vpop.f32.mrb[0].mxu0
        %872 = vdwg.mxu0
        %873 = vmatprep.subr.bf16.mxu0 %v749
        %874 = vmatpush1.bf16.msra.mxu0 %v748
        %875 = vmatprep.subr.bf16.mxu0 %v753
        %876 = vmatpush1.bf16.msra.mxu0 %v752
        %877 = vmatprep.subr.bf16.mxu0 %v757
        %878 = vmatpush1.bf16.msra.mxu0 %v756
        %879 = vmatprep.subr.bf16.mxu0 %v761
        %880 = vmatpush1.bf16.msra.mxu0 %v760
        %881 = vmatprep.subr.bf16.mxu0 %v765
        %882 = vmatpush1.bf16.msra.mxu0 %v764
        %883 = vmatprep.subr.bf16.mxu0 %v769
        %884 = vmatpush1.bf16.msra.mxu0 %v768
        %885 = vmatprep.subr.bf16.mxu0 %v773
        %886 = vmatpush1.bf16.msra.mxu0 %v772
        %887 = vmatprep.subr.bf16.mxu0 %v777
        %888 = vmatpush1.bf16.msra.mxu0 %v776
        %889 = vmatprep.subr.bf16.mxu0 0
        %890 = vmatpush1.bf16.msra.mxu0 0
        %891 = vmatprep.subr.bf16.mxu0 0
        %892 = vmatpush1.bf16.msra.mxu0 0
        %893 = vmatprep.subr.bf16.mxu0 0
        %894 = vmatpush1.bf16.msra.mxu0 0
        %895 = vmatprep.subr.bf16.mxu0 0
        %896 = vmatpush1.bf16.msra.mxu0 0
        %897 = vmatprep.subr.bf16.mxu0 0
        %898 = vmatpush1.bf16.msra.mxu0 0
        %899 = vmatprep.subr.bf16.mxu0 0
        %900 = vmatpush1.bf16.msra.mxu0 0
        %901 = vmatprep.subr.bf16.mxu0 0
        %902 = vmatpush1.bf16.msra.mxu0 0
        %903 = vmatprep.subr.bf16.mxu0 0
        %904 = vmatpush1.bf16.msra.mxu0 0
        %905 = vmatprep.mubr.bf16.mxu0 0
        %906 = vmatmul.mubr.bf16.gmra.mrb[0].mxu0 %v614
        %v907 = vpop.f32.mrb[0].mxu0
        %v908 = vadd.f32 %v825, %v907
        %v909 = vpop.f32.mrb[0].mxu0
        %v910 = vadd.f32 %v827, %v909
        %v911 = vpop.f32.mrb[0].mxu0
        %v912 = vpop.f32.mrb[0].mxu0
        %913 = vdwg.mxu0
        %v914 = vxor.u32 %v567, 2147483648
        %v915 = vxor.u32 %v569, 2147483648
        %v916 = vxor.u32 %v608, 2147483648
        %v917 = vmul.f32 %v914, 1.442695
        %v918 = vpow.pop %v917
        %v919 = vmul.f32 %v915, 1.442695
        %v920 = vpow.pop %v919
        %v921 = vmul.f32 %v916, 1.442695
        %v922 = vpow.pop %v921
        %v923 = vadd.f32 %v918, 1.0
        %v924 = vadd.f32 %v920, 1.0
        %v925 = vadd.f32 %v922, 1.0
        %v926 = vrcp.pop %v923
        %v927 = vmul.f32 1.0, %v926
        %v928 = vrcp.pop %v924
        %v929 = vmul.f32 1.0, %v928
        %v930 = vrcp.pop %v925
        %v931 = vmul.f32 1.0, %v930
        %v932 = vtanh.pop %v610
        %v933 = vmul.f32 %v929, %v312
        %v934 = vmul.f32 %v927, %v932
        %v935 = vadd.f32 %v933, %v934
        %v936 = vtanh.pop %v935
        %v937 = vmul.f32 %v931, %v936
        %v938 = vxor.u32 %v867, 2147483648
        %v939 = vxor.u32 %v869, 2147483648
        %v940 = vxor.u32 %v908, 2147483648
        %v941 = vmul.f32 %v938, 1.442695
        %v942 = vpow.pop %v941
        %v943 = vmul.f32 %v939, 1.442695
        %v944 = vpow.pop %v943
        %v945 = vmul.f32 %v940, 1.442695
        %v946 = vpow.pop %v945
        %v947 = vadd.f32 %v942, 1.0
        %v948 = vadd.f32 %v944, 1.0
        %v949 = vadd.f32 %v946, 1.0
        %v950 = vrcp.pop %v947
        %v951 = vmul.f32 1.0, %v950
        %v952 = vrcp.pop %v948
        %v953 = vmul.f32 1.0, %v952
        %v954 = vrcp.pop %v949
        %v955 = vmul.f32 1.0, %v954
        %v956 = vtanh.pop %v910
        %v957 = vmul.f32 %v953, %v314
        %v958 = vmul.f32 %v951, %v956
        %v959 = vadd.f32 %v957, %v958
        %v960 = vtanh.pop %v959
        %v961 = vmul.f32 %v955, %v960
        %v962 = vpack.c.bf16 %v937, %v937
        %963 = vst [vmem:[%s293] sm:$0x1] %v962
        %v964 = vpack.c.bf16 %v961, %v961
        %s965 = scalar_lea.vmem %s299, 3
        %966 = vst [vmem:[%s965] sm:$0x1] %v964
        %v967 = vld [vmem:[#allocation6] sm:$0xff]
        %v968 = vld [vmem:[#allocation6 + $0x8] sm:$0xff]
        %v969 = vld [vmem:[#allocation6 + $0x10] sm:$0xff]
        %v970 = vld [vmem:[#allocation6 + $0x18] sm:$0xff]
        %v971 = vld [vmem:[#allocation6 + $0x20] sm:$0xff]
        %v972 = vld [vmem:[#allocation6 + $0x28] sm:$0xff]
        %v973 = vld [vmem:[#allocation6 + $0x30] sm:$0xff]
        %v974 = vld [vmem:[#allocation6 + $0x38] sm:$0xff]
        %v975 = vld [vmem:[#allocation6 + $0x40] sm:$0xff]
        %v976 = vld [vmem:[#allocation6 + $0x48] sm:$0xff]
        %v977 = vld [vmem:[#allocation6 + $0x50] sm:$0xff]
        %v978 = vld [vmem:[#allocation6 + $0x58] sm:$0xff]
        %v979 = vld [vmem:[#allocation6 + $0x60] sm:$0xff]
        %v980 = vld [vmem:[#allocation6 + $0x68] sm:$0xff]
        %v981 = vld [vmem:[#allocation6 + $0x70] sm:$0xff]
        %v982 = vld [vmem:[#allocation6 + $0x78] sm:$0xff]
        %v983 = vld [vmem:[#allocation6 + $0x80] sm:$0xff]
        %v984 = vld [vmem:[#allocation6 + $0x88] sm:$0xff]
        %v985 = vld [vmem:[#allocation6 + $0x90] sm:$0xff]
        %v986 = vld [vmem:[#allocation6 + $0x98] sm:$0xff]
        %v987 = vld [vmem:[#allocation6 + $0xa0] sm:$0xff]
        %v988 = vld [vmem:[#allocation6 + $0xa8] sm:$0xff]
        %v989 = vld [vmem:[#allocation6 + $0xb0] sm:$0xff]
        %v990 = vld [vmem:[#allocation6 + $0xb8] sm:$0xff]
        %v991 = vld [vmem:[#allocation6 + $0xc0] sm:$0xff]
        %v992 = vld [vmem:[#allocation6 + $0xc8] sm:$0xff]
        %v993 = vld [vmem:[#allocation6 + $0xd0] sm:$0xff]
        %v994 = vld [vmem:[#allocation6 + $0xd8] sm:$0xff]
        %v995 = vld [vmem:[#allocation6 + $0xe0] sm:$0xff]
        %v996 = vld [vmem:[#allocation6 + $0xe8] sm:$0xff]
        %v997 = vld [vmem:[#allocation6 + $0xf0] sm:$0xff]
        %v998 = vld [vmem:[#allocation6 + $0xf8] sm:$0xff]
        %s999 = scalar_lea.vmem %s280, 4
        %v1000 = vld [vmem:[%s999] sm:$0xf]
        %v1001 = vunpack.c.l.bf16 %v1000
        %v1034 = vunpack.c.l.b16 %v967
        %v1035 = vunpack.c.h.b16 %v967
        %v1036 = vunpack.c.l.b16 %v968
        %v1037 = vunpack.c.h.b16 %v968
        %v1038 = vunpack.c.l.b16 %v969
        %v1039 = vunpack.c.h.b16 %v969
        %v1040 = vunpack.c.l.b16 %v970
        %v1041 = vunpack.c.h.b16 %v970
        %v1042 = vunpack.c.l.b16 %v971
        %v1043 = vunpack.c.h.b16 %v971
        %v1044 = vunpack.c.l.b16 %v972
        %v1045 = vunpack.c.h.b16 %v972
        %v1046 = vunpack.c.l.b16 %v973
        %v1047 = vunpack.c.h.b16 %v973
        %v1048 = vunpack.c.l.b16 %v974
        %v1049 = vunpack.c.h.b16 %v974
        %v1050 = vunpack.c.l.b16 %v975
        %v1051 = vunpack.c.h.b16 %v975
        %v1052 = vunpack.c.l.b16 %v976
        %v1053 = vunpack.c.h.b16 %v976
        %v1054 = vunpack.c.l.b16 %v977
        %v1055 = vunpack.c.h.b16 %v977
        %v1056 = vunpack.c.l.b16 %v978
        %v1057 = vunpack.c.h.b16 %v978
        %v1058 = vunpack.c.l.b16 %v979
        %v1059 = vunpack.c.h.b16 %v979
        %v1060 = vunpack.c.l.b16 %v980
        %v1061 = vunpack.c.h.b16 %v980
        %v1062 = vunpack.c.l.b16 %v981
        %v1063 = vunpack.c.h.b16 %v981
        %v1064 = vunpack.c.l.b16 %v982
        %v1065 = vunpack.c.h.b16 %v982
        %v1066 = vunpack.c.l.b16 %v983
        %v1067 = vunpack.c.h.b16 %v983
        %v1068 = vunpack.c.l.b16 %v984
        %v1069 = vunpack.c.h.b16 %v984
        %v1070 = vunpack.c.l.b16 %v985
        %v1071 = vunpack.c.h.b16 %v985
        %v1072 = vunpack.c.l.b16 %v986
        %v1073 = vunpack.c.h.b16 %v986
        %v1074 = vunpack.c.l.b16 %v987
        %v1075 = vunpack.c.h.b16 %v987
        %v1076 = vunpack.c.l.b16 %v988
        %v1077 = vunpack.c.h.b16 %v988
        %v1078 = vunpack.c.l.b16 %v989
        %v1079 = vunpack.c.h.b16 %v989
        %v1080 = vunpack.c.l.b16 %v990
        %v1081 = vunpack.c.h.b16 %v990
        %v1082 = vunpack.c.l.b16 %v991
        %v1083 = vunpack.c.h.b16 %v991
        %v1084 = vunpack.c.l.b16 %v992
        %v1085 = vunpack.c.h.b16 %v992
        %v1086 = vunpack.c.l.b16 %v993
        %v1087 = vunpack.c.h.b16 %v993
        %v1088 = vunpack.c.l.b16 %v994
        %v1089 = vunpack.c.h.b16 %v994
        %v1090 = vunpack.c.l.b16 %v995
        %v1091 = vunpack.c.h.b16 %v995
        %v1092 = vunpack.c.l.b16 %v996
        %v1093 = vunpack.c.h.b16 %v996
        %v1094 = vunpack.c.l.b16 %v997
        %v1095 = vunpack.c.h.b16 %v997
        %v1096 = vunpack.c.l.b16 %v998
        %v1097 = vunpack.c.h.b16 %v998
        %v1098 = vpack.c.b16 %v1038, %v1034
        %v1099 = vpack.c.b16 %v1039, %v1035
        %v1100 = vpack.c.b16 %v1040, %v1036
        %v1101 = vpack.c.b16 %v1041, %v1037
        %v1102 = vpack.c.b16 %v1046, %v1042
        %v1103 = vpack.c.b16 %v1047, %v1043
        %v1104 = vpack.c.b16 %v1048, %v1044
        %v1105 = vpack.c.b16 %v1049, %v1045
        %v1106 = vpack.c.b16 %v1054, %v1050
        %v1107 = vpack.c.b16 %v1055, %v1051
        %v1108 = vpack.c.b16 %v1056, %v1052
        %v1109 = vpack.c.b16 %v1057, %v1053
        %v1110 = vpack.c.b16 %v1062, %v1058
        %v1111 = vpack.c.b16 %v1063, %v1059
        %v1112 = vpack.c.b16 %v1064, %v1060
        %v1113 = vpack.c.b16 %v1065, %v1061
        %v1114 = vpack.c.b16 %v1070, %v1066
        %v1115 = vpack.c.b16 %v1071, %v1067
        %v1116 = vpack.c.b16 %v1072, %v1068
        %v1117 = vpack.c.b16 %v1073, %v1069
        %v1118 = vpack.c.b16 %v1078, %v1074
        %v1119 = vpack.c.b16 %v1079, %v1075
        %v1120 = vpack.c.b16 %v1080, %v1076
        %v1121 = vpack.c.b16 %v1081, %v1077
        %v1122 = vpack.c.b16 %v1086, %v1082
        %v1123 = vpack.c.b16 %v1087, %v1083
        %v1124 = vpack.c.b16 %v1088, %v1084
        %v1125 = vpack.c.b16 %v1089, %v1085
        %v1126 = vpack.c.b16 %v1094, %v1090
        %v1127 = vpack.c.b16 %v1095, %v1091
        %v1128 = vpack.c.b16 %v1096, %v1092
        %v1129 = vpack.c.b16 %v1097, %v1093
        %v1163 = vcombine.high %v1001, %v1001
        %v1165 = vunpack.c.l.s4 1983009808
        %v1166 = vunpack.c.0.s8 %v1165
        %v1167 = vlaneseq
        %v1168 = vshrl.u32 %v1167, 7
        %v1169 = vsub.s32 %v1166, %v1168
        %v1170 = vrot.slane %v1001, %v1169
        %v1172 = vunpack.c.l.s4 1983009808
        %v1173 = vunpack.c.0.s8 %v1172
        %v1174 = vlaneseq
        %v1175 = vshrl.u32 %v1174, 7
        %v1176 = vsub.s32 %v1173, %v1175
        %v1177 = vrot.slane %v1163, %v1176
        %v1178 = vcombine.high %v1170, %v1170
        %v1179 = vcombine.high %v1177, %v1177
        %1184 = vmatprep.subr.bf16.mxu0 %v1099
        %1185 = vmatpush1.bf16.msra.mxu0 %v1098
        %1186 = vmatprep.subr.bf16.mxu0 %v1103
        %1187 = vmatpush1.bf16.msra.mxu0 %v1102
        %1188 = vmatprep.subr.bf16.mxu0 %v1107
        %1189 = vmatpush1.bf16.msra.mxu0 %v1106
        %1190 = vmatprep.subr.bf16.mxu0 %v1111
        %1191 = vmatpush1.bf16.msra.mxu0 %v1110
        %1192 = vmatprep.subr.bf16.mxu0 %v1115
        %1193 = vmatpush1.bf16.msra.mxu0 %v1114
        %1194 = vmatprep.subr.bf16.mxu0 %v1119
        %1195 = vmatpush1.bf16.msra.mxu0 %v1118
        %1196 = vmatprep.subr.bf16.mxu0 %v1123
        %1197 = vmatpush1.bf16.msra.mxu0 %v1122
        %1198 = vmatprep.subr.bf16.mxu0 %v1127
        %1199 = vmatpush1.bf16.msra.mxu0 %v1126
        %1200 = vmatprep.subr.bf16.mxu0 0
        %1201 = vmatpush1.bf16.msra.mxu0 0
        %1202 = vmatprep.subr.bf16.mxu0 0
        %1203 = vmatpush1.bf16.msra.mxu0 0
        %1204 = vmatprep.subr.bf16.mxu0 0
        %1205 = vmatpush1.bf16.msra.mxu0 0
        %1206 = vmatprep.subr.bf16.mxu0 0
        %1207 = vmatpush1.bf16.msra.mxu0 0
        %1208 = vmatprep.subr.bf16.mxu0 0
        %1209 = vmatpush1.bf16.msra.mxu0 0
        %1210 = vmatprep.subr.bf16.mxu0 0
        %1211 = vmatpush1.bf16.msra.mxu0 0
        %1212 = vmatprep.subr.bf16.mxu0 0
        %1213 = vmatpush1.bf16.msra.mxu0 0
        %1214 = vmatprep.subr.bf16.mxu0 0
        %1215 = vmatpush1.bf16.msra.mxu0 0
        %1216 = vmatprep.mubr.bf16.mxu0 0
        %1217 = vmatmul.mubr.bf16.gmra.mrb[0].mxu0 %v962
        %v1218 = vpop.f32.mrb[0].mxu0
        %v1219 = vadd.f32 %v1170, %v1218
        %v1220 = vpop.f32.mrb[0].mxu0
        %v1221 = vadd.f32 %v1178, %v1220
        %v1222 = vpop.f32.mrb[0].mxu0
        %v1223 = vpop.f32.mrb[0].mxu0
        %1224 = vdwg.mxu0
        %1225 = vmatprep.subr.bf16.mxu0 %v1101
        %1226 = vmatpush1.bf16.msra.mxu0 %v1100
        %1227 = vmatprep.subr.bf16.mxu0 %v1105
        %1228 = vmatpush1.bf16.msra.mxu0 %v1104
        %1229 = vmatprep.subr.bf16.mxu0 %v1109
        %1230 = vmatpush1.bf16.msra.mxu0 %v1108
        %1231 = vmatprep.subr.bf16.mxu0 %v1113
        %1232 = vmatpush1.bf16.msra.mxu0 %v1112
        %1233 = vmatprep.subr.bf16.mxu0 %v1117
        %1234 = vmatpush1.bf16.msra.mxu0 %v1116
        %1235 = vmatprep.subr.bf16.mxu0 %v1121
        %1236 = vmatpush1.bf16.msra.mxu0 %v1120
        %1237 = vmatprep.subr.bf16.mxu0 %v1125
        %1238 = vmatpush1.bf16.msra.mxu0 %v1124
        %1239 = vmatprep.subr.bf16.mxu0 %v1129
        %1240 = vmatpush1.bf16.msra.mxu0 %v1128
        %1241 = vmatprep.subr.bf16.mxu0 0
        %1242 = vmatpush1.bf16.msra.mxu0 0
        %1243 = vmatprep.subr.bf16.mxu0 0
        %1244 = vmatpush1.bf16.msra.mxu0 0
        %1245 = vmatprep.subr.bf16.mxu0 0
        %1246 = vmatpush1.bf16.msra.mxu0 0
        %1247 = vmatprep.subr.bf16.mxu0 0
        %1248 = vmatpush1.bf16.msra.mxu0 0
        %1249 = vmatprep.subr.bf16.mxu0 0
        %1250 = vmatpush1.bf16.msra.mxu0 0
        %1251 = vmatprep.subr.bf16.mxu0 0
        %1252 = vmatpush1.bf16.msra.mxu0 0
        %1253 = vmatprep.subr.bf16.mxu0 0
        %1254 = vmatpush1.bf16.msra.mxu0 0
        %1255 = vmatprep.subr.bf16.mxu0 0
        %1256 = vmatpush1.bf16.msra.mxu0 0
        %1257 = vmatprep.mubr.bf16.mxu0 0
        %1258 = vmatmul.mubr.bf16.gmra.mrb[0].mxu0 %v962
        %v1259 = vpop.f32.mrb[0].mxu0
        %v1260 = vadd.f32 %v1177, %v1259
        %v1261 = vpop.f32.mrb[0].mxu0
        %v1262 = vadd.f32 %v1179, %v1261
        %v1263 = vpop.f32.mrb[0].mxu0
        %v1264 = vpop.f32.mrb[0].mxu0
        %1265 = vdwg.mxu0
        %v1266 = vld [vmem:[#allocation8] sm:$0xff]
        %v1267 = vld [vmem:[#allocation8 + $0x8] sm:$0xff]
        %v1268 = vld [vmem:[#allocation8 + $0x10] sm:$0xff]
        %v1269 = vld [vmem:[#allocation8 + $0x18] sm:$0xff]
        %v1270 = vld [vmem:[#allocation8 + $0x20] sm:$0xff]
        %v1271 = vld [vmem:[#allocation8 + $0x28] sm:$0xff]
        %v1272 = vld [vmem:[#allocation8 + $0x30] sm:$0xff]
        %v1273 = vld [vmem:[#allocation8 + $0x38] sm:$0xff]
        %v1274 = vld [vmem:[#allocation8 + $0x40] sm:$0xff]
        %v1275 = vld [vmem:[#allocation8 + $0x48] sm:$0xff]
        %v1276 = vld [vmem:[#allocation8 + $0x50] sm:$0xff]
        %v1277 = vld [vmem:[#allocation8 + $0x58] sm:$0xff]
        %v1278 = vld [vmem:[#allocation8 + $0x60] sm:$0xff]
        %v1279 = vld [vmem:[#allocation8 + $0x68] sm:$0xff]
        %v1280 = vld [vmem:[#allocation8 + $0x70] sm:$0xff]
        %v1281 = vld [vmem:[#allocation8 + $0x78] sm:$0xff]
        %v1282 = vld [vmem:[#allocation8 + $0x80] sm:$0xff]
        %v1283 = vld [vmem:[#allocation8 + $0x88] sm:$0xff]
        %v1284 = vld [vmem:[#allocation8 + $0x90] sm:$0xff]
        %v1285 = vld [vmem:[#allocation8 + $0x98] sm:$0xff]
        %v1286 = vld [vmem:[#allocation8 + $0xa0] sm:$0xff]
        %v1287 = vld [vmem:[#allocation8 + $0xa8] sm:$0xff]
        %v1288 = vld [vmem:[#allocation8 + $0xb0] sm:$0xff]
        %v1289 = vld [vmem:[#allocation8 + $0xb8] sm:$0xff]
        %v1290 = vld [vmem:[#allocation8 + $0xc0] sm:$0xff]
        %v1291 = vld [vmem:[#allocation8 + $0xc8] sm:$0xff]
        %v1292 = vld [vmem:[#allocation8 + $0xd0] sm:$0xff]
        %v1293 = vld [vmem:[#allocation8 + $0xd8] sm:$0xff]
        %v1294 = vld [vmem:[#allocation8 + $0xe0] sm:$0xff]
        %v1295 = vld [vmem:[#allocation8 + $0xe8] sm:$0xff]
        %v1296 = vld [vmem:[#allocation8 + $0xf0] sm:$0xff]
        %v1297 = vld [vmem:[#allocation8 + $0xf8] sm:$0xff]
        %s1298 = scalar_lea.vmem %s287, 8
        %v1299 = vld [vmem:[%s1298] sm:$0xf]
        %v1300 = vunpack.c.l.bf16 %v1299
        %v1333 = vunpack.c.l.b16 %v1266
        %v1334 = vunpack.c.h.b16 %v1266
        %v1335 = vunpack.c.l.b16 %v1267
        %v1336 = vunpack.c.h.b16 %v1267
        %v1337 = vunpack.c.l.b16 %v1268
        %v1338 = vunpack.c.h.b16 %v1268
        %v1339 = vunpack.c.l.b16 %v1269
        %v1340 = vunpack.c.h.b16 %v1269
        %v1341 = vunpack.c.l.b16 %v1270
        %v1342 = vunpack.c.h.b16 %v1270
        %v1343 = vunpack.c.l.b16 %v1271
        %v1344 = vunpack.c.h.b16 %v1271
        %v1345 = vunpack.c.l.b16 %v1272
        %v1346 = vunpack.c.h.b16 %v1272
        %v1347 = vunpack.c.l.b16 %v1273
        %v1348 = vunpack.c.h.b16 %v1273
        %v1349 = vunpack.c.l.b16 %v1274
        %v1350 = vunpack.c.h.b16 %v1274
        %v1351 = vunpack.c.l.b16 %v1275
        %v1352 = vunpack.c.h.b16 %v1275
        %v1353 = vunpack.c.l.b16 %v1276
        %v1354 = vunpack.c.h.b16 %v1276
        %v1355 = vunpack.c.l.b16 %v1277
        %v1356 = vunpack.c.h.b16 %v1277
        %v1357 = vunpack.c.l.b16 %v1278
        %v1358 = vunpack.c.h.b16 %v1278
        %v1359 = vunpack.c.l.b16 %v1279
        %v1360 = vunpack.c.h.b16 %v1279
        %v1361 = vunpack.c.l.b16 %v1280
        %v1362 = vunpack.c.h.b16 %v1280
        %v1363 = vunpack.c.l.b16 %v1281
        %v1364 = vunpack.c.h.b16 %v1281
        %v1365 = vunpack.c.l.b16 %v1282
        %v1366 = vunpack.c.h.b16 %v1282
        %v1367 = vunpack.c.l.b16 %v1283
        %v1368 = vunpack.c.h.b16 %v1283
        %v1369 = vunpack.c.l.b16 %v1284
        %v1370 = vunpack.c.h.b16 %v1284
        %v1371 = vunpack.c.l.b16 %v1285
        %v1372 = vunpack.c.h.b16 %v1285
        %v1373 = vunpack.c.l.b16 %v1286
        %v1374 = vunpack.c.h.b16 %v1286
        %v1375 = vunpack.c.l.b16 %v1287
        %v1376 = vunpack.c.h.b16 %v1287
        %v1377 = vunpack.c.l.b16 %v1288
        %v1378 = vunpack.c.h.b16 %v1288
        %v1379 = vunpack.c.l.b16 %v1289
        %v1380 = vunpack.c.h.b16 %v1289
        %v1381 = vunpack.c.l.b16 %v1290
        %v1382 = vunpack.c.h.b16 %v1290
        %v1383 = vunpack.c.l.b16 %v1291
        %v1384 = vunpack.c.h.b16 %v1291
        %v1385 = vunpack.c.l.b16 %v1292
        %v1386 = vunpack.c.h.b16 %v1292
        %v1387 = vunpack.c.l.b16 %v1293
        %v1388 = vunpack.c.h.b16 %v1293
        %v1389 = vunpack.c.l.b16 %v1294
        %v1390 = vunpack.c.h.b16 %v1294
        %v1391 = vunpack.c.l.b16 %v1295
        %v1392 = vunpack.c.h.b16 %v1295
        %v1393 = vunpack.c.l.b16 %v1296
        %v1394 = vunpack.c.h.b16 %v1296
        %v1395 = vunpack.c.l.b16 %v1297
        %v1396 = vunpack.c.h.b16 %v1297
        %v1397 = vpack.c.b16 %v1337, %v1333
        %v1398 = vpack.c.b16 %v1338, %v1334
        %v1399 = vpack.c.b16 %v1339, %v1335
        %v1400 = vpack.c.b16 %v1340, %v1336
        %v1401 = vpack.c.b16 %v1345, %v1341
        %v1402 = vpack.c.b16 %v1346, %v1342
        %v1403 = vpack.c.b16 %v1347, %v1343
        %v1404 = vpack.c.b16 %v1348, %v1344
        %v1405 = vpack.c.b16 %v1353, %v1349
        %v1406 = vpack.c.b16 %v1354, %v1350
        %v1407 = vpack.c.b16 %v1355, %v1351
        %v1408 = vpack.c.b16 %v1356, %v1352
        %v1409 = vpack.c.b16 %v1361, %v1357
        %v1410 = vpack.c.b16 %v1362, %v1358
        %v1411 = vpack.c.b16 %v1363, %v1359
        %v1412 = vpack.c.b16 %v1364, %v1360
        %v1413 = vpack.c.b16 %v1369, %v1365
        %v1414 = vpack.c.b16 %v1370, %v1366
        %v1415 = vpack.c.b16 %v1371, %v1367
        %v1416 = vpack.c.b16 %v1372, %v1368
        %v1417 = vpack.c.b16 %v1377, %v1373
        %v1418 = vpack.c.b16 %v1378, %v1374
        %v1419 = vpack.c.b16 %v1379, %v1375
        %v1420 = vpack.c.b16 %v1380, %v1376
        %v1421 = vpack.c.b16 %v1385, %v1381
        %v1422 = vpack.c.b16 %v1386, %v1382
        %v1423 = vpack.c.b16 %v1387, %v1383
        %v1424 = vpack.c.b16 %v1388, %v1384
        %v1425 = vpack.c.b16 %v1393, %v1389
        %v1426 = vpack.c.b16 %v1394, %v1390
        %v1427 = vpack.c.b16 %v1395, %v1391
        %v1428 = vpack.c.b16 %v1396, %v1392
        %v1462 = vcombine.high %v1300, %v1300
        %v1464 = vunpack.c.l.s4 1983009808
        %v1465 = vunpack.c.0.s8 %v1464
        %v1466 = vlaneseq
        %v1467 = vshrl.u32 %v1466, 7
        %v1468 = vsub.s32 %v1465, %v1467
        %v1469 = vrot.slane %v1300, %v1468
        %v1471 = vunpack.c.l.s4 1983009808
        %v1472 = vunpack.c.0.s8 %v1471
        %v1473 = vlaneseq
        %v1474 = vshrl.u32 %v1473, 7
        %v1475 = vsub.s32 %v1472, %v1474
        %v1476 = vrot.slane %v1462, %v1475
        %v1477 = vcombine.high %v1469, %v1469
        %v1478 = vcombine.high %v1476, %v1476
        %1483 = vmatprep.subr.bf16.mxu0 %v1398
        %1484 = vmatpush1.bf16.msra.mxu0 %v1397
        %1485 = vmatprep.subr.bf16.mxu0 %v1402
        %1486 = vmatpush1.bf16.msra.mxu0 %v1401
        %1487 = vmatprep.subr.bf16.mxu0 %v1406
        %1488 = vmatpush1.bf16.msra.mxu0 %v1405
        %1489 = vmatprep.subr.bf16.mxu0 %v1410
        %1490 = vmatpush1.bf16.msra.mxu0 %v1409
        %1491 = vmatprep.subr.bf16.mxu0 %v1414
        %1492 = vmatpush1.bf16.msra.mxu0 %v1413
        %1493 = vmatprep.subr.bf16.mxu0 %v1418
        %1494 = vmatpush1.bf16.msra.mxu0 %v1417
        %1495 = vmatprep.subr.bf16.mxu0 %v1422
        %1496 = vmatpush1.bf16.msra.mxu0 %v1421
        %1497 = vmatprep.subr.bf16.mxu0 %v1426
        %1498 = vmatpush1.bf16.msra.mxu0 %v1425
        %1499 = vmatprep.subr.bf16.mxu0 0
        %1500 = vmatpush1.bf16.msra.mxu0 0
        %1501 = vmatprep.subr.bf16.mxu0 0
        %1502 = vmatpush1.bf16.msra.mxu0 0
        %1503 = vmatprep.subr.bf16.mxu0 0
        %1504 = vmatpush1.bf16.msra.mxu0 0
        %1505 = vmatprep.subr.bf16.mxu0 0
        %1506 = vmatpush1.bf16.msra.mxu0 0
        %1507 = vmatprep.subr.bf16.mxu0 0
        %1508 = vmatpush1.bf16.msra.mxu0 0
        %1509 = vmatprep.subr.bf16.mxu0 0
        %1510 = vmatpush1.bf16.msra.mxu0 0
        %1511 = vmatprep.subr.bf16.mxu0 0
        %1512 = vmatpush1.bf16.msra.mxu0 0
        %1513 = vmatprep.subr.bf16.mxu0 0
        %1514 = vmatpush1.bf16.msra.mxu0 0
        %1515 = vmatprep.mubr.bf16.mxu0 0
        %1516 = vmatmul.mubr.bf16.gmra.mrb[0].mxu0 %v964
        %v1517 = vpop.f32.mrb[0].mxu0
        %v1518 = vadd.f32 %v1469, %v1517
        %v1519 = vpop.f32.mrb[0].mxu0
        %v1520 = vadd.f32 %v1477, %v1519
        %v1521 = vpop.f32.mrb[0].mxu0
        %v1522 = vpop.f32.mrb[0].mxu0
        %1523 = vdwg.mxu0
        %1524 = vmatprep.subr.bf16.mxu0 %v1400
        %1525 = vmatpush1.bf16.msra.mxu0 %v1399
        %1526 = vmatprep.subr.bf16.mxu0 %v1404
        %1527 = vmatpush1.bf16.msra.mxu0 %v1403
        %1528 = vmatprep.subr.bf16.mxu0 %v1408
        %1529 = vmatpush1.bf16.msra.mxu0 %v1407
        %1530 = vmatprep.subr.bf16.mxu0 %v1412
        %1531 = vmatpush1.bf16.msra.mxu0 %v1411
        %1532 = vmatprep.subr.bf16.mxu0 %v1416
        %1533 = vmatpush1.bf16.msra.mxu0 %v1415
        %1534 = vmatprep.subr.bf16.mxu0 %v1420
        %1535 = vmatpush1.bf16.msra.mxu0 %v1419
        %1536 = vmatprep.subr.bf16.mxu0 %v1424
        %1537 = vmatpush1.bf16.msra.mxu0 %v1423
        %1538 = vmatprep.subr.bf16.mxu0 %v1428
        %1539 = vmatpush1.bf16.msra.mxu0 %v1427
        %1540 = vmatprep.subr.bf16.mxu0 0
        %1541 = vmatpush1.bf16.msra.mxu0 0
        %1542 = vmatprep.subr.bf16.mxu0 0
        %1543 = vmatpush1.bf16.msra.mxu0 0
        %1544 = vmatprep.subr.bf16.mxu0 0
        %1545 = vmatpush1.bf16.msra.mxu0 0
        %1546 = vmatprep.subr.bf16.mxu0 0
        %1547 = vmatpush1.bf16.msra.mxu0 0
        %1548 = vmatprep.subr.bf16.mxu0 0
        %1549 = vmatpush1.bf16.msra.mxu0 0
        %1550 = vmatprep.subr.bf16.mxu0 0
        %1551 = vmatpush1.bf16.msra.mxu0 0
        %1552 = vmatprep.subr.bf16.mxu0 0
        %1553 = vmatpush1.bf16.msra.mxu0 0
        %1554 = vmatprep.subr.bf16.mxu0 0
        %1555 = vmatpush1.bf16.msra.mxu0 0
        %1556 = vmatprep.mubr.bf16.mxu0 0
        %1557 = vmatmul.mubr.bf16.gmra.mrb[0].mxu0 %v964
        %v1558 = vpop.f32.mrb[0].mxu0
        %v1559 = vadd.f32 %v1476, %v1558
        %v1560 = vpop.f32.mrb[0].mxu0
        %v1561 = vadd.f32 %v1478, %v1560
        %v1562 = vpop.f32.mrb[0].mxu0
        %v1563 = vpop.f32.mrb[0].mxu0
        %1564 = vdwg.mxu0
        %v1565 = vxor.u32 %v1219, 2147483648
        %v1566 = vxor.u32 %v1221, 2147483648
        %v1567 = vxor.u32 %v1260, 2147483648
        %v1568 = vmul.f32 %v1565, 1.442695
        %v1569 = vpow.pop %v1568
        %v1570 = vmul.f32 %v1566, 1.442695
        %v1571 = vpow.pop %v1570
        %v1572 = vmul.f32 %v1567, 1.442695
        %v1573 = vpow.pop %v1572
        %v1574 = vadd.f32 %v1569, 1.0
        %v1575 = vadd.f32 %v1571, 1.0
        %v1576 = vadd.f32 %v1573, 1.0
        %v1577 = vrcp.pop %v1574
        %v1578 = vmul.f32 1.0, %v1577
        %v1579 = vrcp.pop %v1575
        %v1580 = vmul.f32 1.0, %v1579
        %v1581 = vrcp.pop %v1576
        %v1582 = vmul.f32 1.0, %v1581
        %v1583 = vtanh.pop %v1262
        %v1584 = vmul.f32 %v1580, %v935
        %v1585 = vmul.f32 %v1578, %v1583
        %v1586 = vadd.f32 %v1584, %v1585
        %v1587 = vtanh.pop %v1586
        %v1588 = vmul.f32 %v1582, %v1587
        %v1589 = vxor.u32 %v1518, 2147483648
        %v1590 = vxor.u32 %v1520, 2147483648
        %v1591 = vxor.u32 %v1559, 2147483648
        %v1592 = vmul.f32 %v1589, 1.442695
        %v1593 = vpow.pop %v1592
        %v1594 = vmul.f32 %v1590, 1.442695
        %v1595 = vpow.pop %v1594
        %v1596 = vmul.f32 %v1591, 1.442695
        %v1597 = vpow.pop %v1596
        %v1598 = vadd.f32 %v1593, 1.0
        %v1599 = vadd.f32 %v1595, 1.0
        %v1600 = vadd.f32 %v1597, 1.0
        %v1601 = vrcp.pop %v1598
        %v1602 = vmul.f32 1.0, %v1601
        %v1603 = vrcp.pop %v1599
        %v1604 = vmul.f32 1.0, %v1603
        %v1605 = vrcp.pop %v1600
        %v1606 = vmul.f32 1.0, %v1605
        %v1607 = vtanh.pop %v1561
        %v1608 = vmul.f32 %v1604, %v959
        %v1609 = vmul.f32 %v1602, %v1607
        %v1610 = vadd.f32 %v1608, %v1609
        %v1611 = vtanh.pop %v1610
        %v1612 = vmul.f32 %v1606, %v1611
        %v1613 = vpack.c.bf16 %v1588, %v1588
        %s1614 = scalar_lea.vmem %s293, 1
        %1615 = vst [vmem:[%s1614] sm:$0x1] %v1613
        %v1616 = vpack.c.bf16 %v1612, %v1612
        %s1617 = scalar_lea.vmem %s299, 2
        %1618 = vst [vmem:[%s1617] sm:$0x1] %v1616
        %v1619 = vld [vmem:[#allocation6] sm:$0xff]
        %v1620 = vld [vmem:[#allocation6 + $0x8] sm:$0xff]
        %v1621 = vld [vmem:[#allocation6 + $0x10] sm:$0xff]
        %v1622 = vld [vmem:[#allocation6 + $0x18] sm:$0xff]
        %v1623 = vld [vmem:[#allocation6 + $0x20] sm:$0xff]
        %v1624 = vld [vmem:[#allocation6 + $0x28] sm:$0xff]
        %v1625 = vld [vmem:[#allocation6 + $0x30] sm:$0xff]
        %v1626 = vld [vmem:[#allocation6 + $0x38] sm:$0xff]
        %v1627 = vld [vmem:[#allocation6 + $0x40] sm:$0xff]
        %v1628 = vld [vmem:[#allocation6 + $0x48] sm:$0xff]
        %v1629 = vld [vmem:[#allocation6 + $0x50] sm:$0xff]
        %v1630 = vld [vmem:[#allocation6 + $0x58] sm:$0xff]
        %v1631 = vld [vmem:[#allocation6 + $0x60] sm:$0xff]
        %v1632 = vld [vmem:[#allocation6 + $0x68] sm:$0xff]
        %v1633 = vld [vmem:[#allocation6 + $0x70] sm:$0xff]
        %v1634 = vld [vmem:[#allocation6 + $0x78] sm:$0xff]
        %v1635 = vld [vmem:[#allocation6 + $0x80] sm:$0xff]
        %v1636 = vld [vmem:[#allocation6 + $0x88] sm:$0xff]
        %v1637 = vld [vmem:[#allocation6 + $0x90] sm:$0xff]
        %v1638 = vld [vmem:[#allocation6 + $0x98] sm:$0xff]
        %v1639 = vld [vmem:[#allocation6 + $0xa0] sm:$0xff]
        %v1640 = vld [vmem:[#allocation6 + $0xa8] sm:$0xff]
        %v1641 = vld [vmem:[#allocation6 + $0xb0] sm:$0xff]
        %v1642 = vld [vmem:[#allocation6 + $0xb8] sm:$0xff]
        %v1643 = vld [vmem:[#allocation6 + $0xc0] sm:$0xff]
        %v1644 = vld [vmem:[#allocation6 + $0xc8] sm:$0xff]
        %v1645 = vld [vmem:[#allocation6 + $0xd0] sm:$0xff]
        %v1646 = vld [vmem:[#allocation6 + $0xd8] sm:$0xff]
        %v1647 = vld [vmem:[#allocation6 + $0xe0] sm:$0xff]
        %v1648 = vld [vmem:[#allocation6 + $0xe8] sm:$0xff]
        %v1649 = vld [vmem:[#allocation6 + $0xf0] sm:$0xff]
        %v1650 = vld [vmem:[#allocation6 + $0xf8] sm:$0xff]
        %s1651 = scalar_lea.vmem %s280, 8
        %v1652 = vld [vmem:[%s1651] sm:$0xf]
        %v1653 = vunpack.c.l.bf16 %v1652
        %v1686 = vunpack.c.l.b16 %v1619
        %v1687 = vunpack.c.h.b16 %v1619
        %v1688 = vunpack.c.l.b16 %v1620
        %v1689 = vunpack.c.h.b16 %v1620
        %v1690 = vunpack.c.l.b16 %v1621
        %v1691 = vunpack.c.h.b16 %v1621
        %v1692 = vunpack.c.l.b16 %v1622
        %v1693 = vunpack.c.h.b16 %v1622
        %v1694 = vunpack.c.l.b16 %v1623
        %v1695 = vunpack.c.h.b16 %v1623
        %v1696 = vunpack.c.l.b16 %v1624
        %v1697 = vunpack.c.h.b16 %v1624
        %v1698 = vunpack.c.l.b16 %v1625
        %v1699 = vunpack.c.h.b16 %v1625
        %v1700 = vunpack.c.l.b16 %v1626
        %v1701 = vunpack.c.h.b16 %v1626
        %v1702 = vunpack.c.l.b16 %v1627
        %v1703 = vunpack.c.h.b16 %v1627
        %v1704 = vunpack.c.l.b16 %v1628
        %v1705 = vunpack.c.h.b16 %v1628
        %v1706 = vunpack.c.l.b16 %v1629
        %v1707 = vunpack.c.h.b16 %v1629
        %v1708 = vunpack.c.l.b16 %v1630
        %v1709 = vunpack.c.h.b16 %v1630
        %v1710 = vunpack.c.l.b16 %v1631
        %v1711 = vunpack.c.h.b16 %v1631
        %v1712 = vunpack.c.l.b16 %v1632
        %v1713 = vunpack.c.h.b16 %v1632
        %v1714 = vunpack.c.l.b16 %v1633
        %v1715 = vunpack.c.h.b16 %v1633
        %v1716 = vunpack.c.l.b16 %v1634
        %v1717 = vunpack.c.h.b16 %v1634
        %v1718 = vunpack.c.l.b16 %v1635
        %v1719 = vunpack.c.h.b16 %v1635
        %v1720 = vunpack.c.l.b16 %v1636
        %v1721 = vunpack.c.h.b16 %v1636
        %v1722 = vunpack.c.l.b16 %v1637
        %v1723 = vunpack.c.h.b16 %v1637
        %v1724 = vunpack.c.l.b16 %v1638
        %v1725 = vunpack.c.h.b16 %v1638
        %v1726 = vunpack.c.l.b16 %v1639
        %v1727 = vunpack.c.h.b16 %v1639
        %v1728 = vunpack.c.l.b16 %v1640
        %v1729 = vunpack.c.h.b16 %v1640
        %v1730 = vunpack.c.l.b16 %v1641
        %v1731 = vunpack.c.h.b16 %v1641
        %v1732 = vunpack.c.l.b16 %v1642
        %v1733 = vunpack.c.h.b16 %v1642
        %v1734 = vunpack.c.l.b16 %v1643
        %v1735 = vunpack.c.h.b16 %v1643
        %v1736 = vunpack.c.l.b16 %v1644
        %v1737 = vunpack.c.h.b16 %v1644
        %v1738 = vunpack.c.l.b16 %v1645
        %v1739 = vunpack.c.h.b16 %v1645
        %v1740 = vunpack.c.l.b16 %v1646
        %v1741 = vunpack.c.h.b16 %v1646
        %v1742 = vunpack.c.l.b16 %v1647
        %v1743 = vunpack.c.h.b16 %v1647
        %v1744 = vunpack.c.l.b16 %v1648
        %v1745 = vunpack.c.h.b16 %v1648
        %v1746 = vunpack.c.l.b16 %v1649
        %v1747 = vunpack.c.h.b16 %v1649
        %v1748 = vunpack.c.l.b16 %v1650
        %v1749 = vunpack.c.h.b16 %v1650
        %v1750 = vpack.c.b16 %v1690, %v1686
        %v1751 = vpack.c.b16 %v1691, %v1687
        %v1752 = vpack.c.b16 %v1692, %v1688
        %v1753 = vpack.c.b16 %v1693, %v1689
        %v1754 = vpack.c.b16 %v1698, %v1694
        %v1755 = vpack.c.b16 %v1699, %v1695
        %v1756 = vpack.c.b16 %v1700, %v1696
        %v1757 = vpack.c.b16 %v1701, %v1697
        %v1758 = vpack.c.b16 %v1706, %v1702
        %v1759 = vpack.c.b16 %v1707, %v1703
        %v1760 = vpack.c.b16 %v1708, %v1704
        %v1761 = vpack.c.b16 %v1709, %v1705
        %v1762 = vpack.c.b16 %v1714, %v1710
        %v1763 = vpack.c.b16 %v1715, %v1711
        %v1764 = vpack.c.b16 %v1716, %v1712
        %v1765 = vpack.c.b16 %v1717, %v1713
        %v1766 = vpack.c.b16 %v1722, %v1718
        %v1767 = vpack.c.b16 %v1723, %v1719
        %v1768 = vpack.c.b16 %v1724, %v1720
        %v1769 = vpack.c.b16 %v1725, %v1721
        %v1770 = vpack.c.b16 %v1730, %v1726
        %v1771 = vpack.c.b16 %v1731, %v1727
        %v1772 = vpack.c.b16 %v1732, %v1728
        %v1773 = vpack.c.b16 %v1733, %v1729
        %v1774 = vpack.c.b16 %v1738, %v1734
        %v1775 = vpack.c.b16 %v1739, %v1735
        %v1776 = vpack.c.b16 %v1740, %v1736
        %v1777 = vpack.c.b16 %v1741, %v1737
        %v1778 = vpack.c.b16 %v1746, %v1742
        %v1779 = vpack.c.b16 %v1747, %v1743
        %v1780 = vpack.c.b16 %v1748, %v1744
        %v1781 = vpack.c.b16 %v1749, %v1745
        %v1815 = vcombine.high %v1653, %v1653
        %v1817 = vunpack.c.l.s4 1983009808
        %v1818 = vunpack.c.0.s8 %v1817
        %v1819 = vlaneseq
        %v1820 = vshrl.u32 %v1819, 7
        %v1821 = vsub.s32 %v1818, %v1820
        %v1822 = vrot.slane %v1653, %v1821
        %v1824 = vunpack.c.l.s4 1983009808
        %v1825 = vunpack.c.0.s8 %v1824
        %v1826 = vlaneseq
        %v1827 = vshrl.u32 %v1826, 7
        %v1828 = vsub.s32 %v1825, %v1827
        %v1829 = vrot.slane %v1815, %v1828
        %v1830 = vcombine.high %v1822, %v1822
        %v1831 = vcombine.high %v1829, %v1829
        %1836 = vmatprep.subr.bf16.mxu0 %v1751
        %1837 = vmatpush1.bf16.msra.mxu0 %v1750
        %1838 = vmatprep.subr.bf16.mxu0 %v1755
        %1839 = vmatpush1.bf16.msra.mxu0 %v1754
        %1840 = vmatprep.subr.bf16.mxu0 %v1759
        %1841 = vmatpush1.bf16.msra.mxu0 %v1758
        %1842 = vmatprep.subr.bf16.mxu0 %v1763
        %1843 = vmatpush1.bf16.msra.mxu0 %v1762
        %1844 = vmatprep.subr.bf16.mxu0 %v1767
        %1845 = vmatpush1.bf16.msra.mxu0 %v1766
        %1846 = vmatprep.subr.bf16.mxu0 %v1771
        %1847 = vmatpush1.bf16.msra.mxu0 %v1770
        %1848 = vmatprep.subr.bf16.mxu0 %v1775
        %1849 = vmatpush1.bf16.msra.mxu0 %v1774
        %1850 = vmatprep.subr.bf16.mxu0 %v1779
        %1851 = vmatpush1.bf16.msra.mxu0 %v1778
        %1852 = vmatprep.subr.bf16.mxu0 0
        %1853 = vmatpush1.bf16.msra.mxu0 0
        %1854 = vmatprep.subr.bf16.mxu0 0
        %1855 = vmatpush1.bf16.msra.mxu0 0
        %1856 = vmatprep.subr.bf16.mxu0 0
        %1857 = vmatpush1.bf16.msra.mxu0 0
        %1858 = vmatprep.subr.bf16.mxu0 0
        %1859 = vmatpush1.bf16.msra.mxu0 0
        %1860 = vmatprep.subr.bf16.mxu0 0
        %1861 = vmatpush1.bf16.msra.mxu0 0
        %1862 = vmatprep.subr.bf16.mxu0 0
        %1863 = vmatpush1.bf16.msra.mxu0 0
        %1864 = vmatprep.subr.bf16.mxu0 0
        %1865 = vmatpush1.bf16.msra.mxu0 0
        %1866 = vmatprep.subr.bf16.mxu0 0
        %1867 = vmatpush1.bf16.msra.mxu0 0
        %1868 = vmatprep.mubr.bf16.mxu0 0
        %1869 = vmatmul.mubr.bf16.gmra.mrb[0].mxu0 %v1613
        %v1870 = vpop.f32.mrb[0].mxu0
        %v1871 = vadd.f32 %v1822, %v1870
        %v1872 = vpop.f32.mrb[0].mxu0
        %v1873 = vadd.f32 %v1830, %v1872
        %v1874 = vpop.f32.mrb[0].mxu0
        %v1875 = vpop.f32.mrb[0].mxu0
        %1876 = vdwg.mxu0
        %1877 = vmatprep.subr.bf16.mxu0 %v1753
        %1878 = vmatpush1.bf16.msra.mxu0 %v1752
        %1879 = vmatprep.subr.bf16.mxu0 %v1757
        %1880 = vmatpush1.bf16.msra.mxu0 %v1756
        %1881 = vmatprep.subr.bf16.mxu0 %v1761
        %1882 = vmatpush1.bf16.msra.mxu0 %v1760
        %1883 = vmatprep.subr.bf16.mxu0 %v1765
        %1884 = vmatpush1.bf16.msra.mxu0 %v1764
        %1885 = vmatprep.subr.bf16.mxu0 %v1769
        %1886 = vmatpush1.bf16.msra.mxu0 %v1768
        %1887 = vmatprep.subr.bf16.mxu0 %v1773
        %1888 = vmatpush1.bf16.msra.mxu0 %v1772
        %1889 = vmatprep.subr.bf16.mxu0 %v1777
        %1890 = vmatpush1.bf16.msra.mxu0 %v1776
        %1891 = vmatprep.subr.bf16.mxu0 %v1781
        %1892 = vmatpush1.bf16.msra.mxu0 %v1780
        %1893 = vmatprep.subr.bf16.mxu0 0
        %1894 = vmatpush1.bf16.msra.mxu0 0
        %1895 = vmatprep.subr.bf16.mxu0 0
        %1896 = vmatpush1.bf16.msra.mxu0 0
        %1897 = vmatprep.subr.bf16.mxu0 0
        %1898 = vmatpush1.bf16.msra.mxu0 0
        %1899 = vmatprep.subr.bf16.mxu0 0
        %1900 = vmatpush1.bf16.msra.mxu0 0
        %1901 = vmatprep.subr.bf16.mxu0 0
        %1902 = vmatpush1.bf16.msra.mxu0 0
        %1903 = vmatprep.subr.bf16.mxu0 0
        %1904 = vmatpush1.bf16.msra.mxu0 0
        %1905 = vmatprep.subr.bf16.mxu0 0
        %1906 = vmatpush1.bf16.msra.mxu0 0
        %1907 = vmatprep.subr.bf16.mxu0 0
        %1908 = vmatpush1.bf16.msra.mxu0 0
        %1909 = vmatprep.mubr.bf16.mxu0 0
        %1910 = vmatmul.mubr.bf16.gmra.mrb[0].mxu0 %v1613
        %v1911 = vpop.f32.mrb[0].mxu0
        %v1912 = vadd.f32 %v1829, %v1911
        %v1913 = vpop.f32.mrb[0].mxu0
        %v1914 = vadd.f32 %v1831, %v1913
        %v1915 = vpop.f32.mrb[0].mxu0
        %v1916 = vpop.f32.mrb[0].mxu0
        %1917 = vdwg.mxu0
        %v1918 = vld [vmem:[#allocation8] sm:$0xff]
        %v1919 = vld [vmem:[#allocation8 + $0x8] sm:$0xff]
        %v1920 = vld [vmem:[#allocation8 + $0x10] sm:$0xff]
        %v1921 = vld [vmem:[#allocation8 + $0x18] sm:$0xff]
        %v1922 = vld [vmem:[#allocation8 + $0x20] sm:$0xff]
        %v1923 = vld [vmem:[#allocation8 + $0x28] sm:$0xff]
        %v1924 = vld [vmem:[#allocation8 + $0x30] sm:$0xff]
        %v1925 = vld [vmem:[#allocation8 + $0x38] sm:$0xff]
        %v1926 = vld [vmem:[#allocation8 + $0x40] sm:$0xff]
        %v1927 = vld [vmem:[#allocation8 + $0x48] sm:$0xff]
        %v1928 = vld [vmem:[#allocation8 + $0x50] sm:$0xff]
        %v1929 = vld [vmem:[#allocation8 + $0x58] sm:$0xff]
        %v1930 = vld [vmem:[#allocation8 + $0x60] sm:$0xff]
        %v1931 = vld [vmem:[#allocation8 + $0x68] sm:$0xff]
        %v1932 = vld [vmem:[#allocation8 + $0x70] sm:$0xff]
        %v1933 = vld [vmem:[#allocation8 + $0x78] sm:$0xff]
        %v1934 = vld [vmem:[#allocation8 + $0x80] sm:$0xff]
        %v1935 = vld [vmem:[#allocation8 + $0x88] sm:$0xff]
        %v1936 = vld [vmem:[#allocation8 + $0x90] sm:$0xff]
        %v1937 = vld [vmem:[#allocation8 + $0x98] sm:$0xff]
        %v1938 = vld [vmem:[#allocation8 + $0xa0] sm:$0xff]
        %v1939 = vld [vmem:[#allocation8 + $0xa8] sm:$0xff]
        %v1940 = vld [vmem:[#allocation8 + $0xb0] sm:$0xff]
        %v1941 = vld [vmem:[#allocation8 + $0xb8] sm:$0xff]
        %v1942 = vld [vmem:[#allocation8 + $0xc0] sm:$0xff]
        %v1943 = vld [vmem:[#allocation8 + $0xc8] sm:$0xff]
        %v1944 = vld [vmem:[#allocation8 + $0xd0] sm:$0xff]
        %v1945 = vld [vmem:[#allocation8 + $0xd8] sm:$0xff]
        %v1946 = vld [vmem:[#allocation8 + $0xe0] sm:$0xff]
        %v1947 = vld [vmem:[#allocation8 + $0xe8] sm:$0xff]
        %v1948 = vld [vmem:[#allocation8 + $0xf0] sm:$0xff]
        %v1949 = vld [vmem:[#allocation8 + $0xf8] sm:$0xff]
        %s1950 = scalar_lea.vmem %s287, 4
        %v1951 = vld [vmem:[%s1950] sm:$0xf]
        %v1952 = vunpack.c.l.bf16 %v1951
        %v1985 = vunpack.c.l.b16 %v1918
        %v1986 = vunpack.c.h.b16 %v1918
        %v1987 = vunpack.c.l.b16 %v1919
        %v1988 = vunpack.c.h.b16 %v1919
        %v1989 = vunpack.c.l.b16 %v1920
        %v1990 = vunpack.c.h.b16 %v1920
        %v1991 = vunpack.c.l.b16 %v1921
        %v1992 = vunpack.c.h.b16 %v1921
        %v1993 = vunpack.c.l.b16 %v1922
        %v1994 = vunpack.c.h.b16 %v1922
        %v1995 = vunpack.c.l.b16 %v1923
        %v1996 = vunpack.c.h.b16 %v1923
        %v1997 = vunpack.c.l.b16 %v1924
        %v1998 = vunpack.c.h.b16 %v1924
        %v1999 = vunpack.c.l.b16 %v1925
        %v2000 = vunpack.c.h.b16 %v1925
        %v2001 = vunpack.c.l.b16 %v1926
        %v2002 = vunpack.c.h.b16 %v1926
        %v2003 = vunpack.c.l.b16 %v1927
        %v2004 = vunpack.c.h.b16 %v1927
        %v2005 = vunpack.c.l.b16 %v1928
        %v2006 = vunpack.c.h.b16 %v1928
        %v2007 = vunpack.c.l.b16 %v1929
        %v2008 = vunpack.c.h.b16 %v1929
        %v2009 = vunpack.c.l.b16 %v1930
        %v2010 = vunpack.c.h.b16 %v1930
        %v2011 = vunpack.c.l.b16 %v1931
        %v2012 = vunpack.c.h.b16 %v1931
        %v2013 = vunpack.c.l.b16 %v1932
        %v2014 = vunpack.c.h.b16 %v1932
        %v2015 = vunpack.c.l.b16 %v1933
        %v2016 = vunpack.c.h.b16 %v1933
        %v2017 = vunpack.c.l.b16 %v1934
        %v2018 = vunpack.c.h.b16 %v1934
        %v2019 = vunpack.c.l.b16 %v1935
        %v2020 = vunpack.c.h.b16 %v1935
        %v2021 = vunpack.c.l.b16 %v1936
        %v2022 = vunpack.c.h.b16 %v1936
        %v2023 = vunpack.c.l.b16 %v1937
        %v2024 = vunpack.c.h.b16 %v1937
        %v2025 = vunpack.c.l.b16 %v1938
        %v2026 = vunpack.c.h.b16 %v1938
        %v2027 = vunpack.c.l.b16 %v1939
        %v2028 = vunpack.c.h.b16 %v1939
        %v2029 = vunpack.c.l.b16 %v1940
        %v2030 = vunpack.c.h.b16 %v1940
        %v2031 = vunpack.c.l.b16 %v1941
        %v2032 = vunpack.c.h.b16 %v1941
        %v2033 = vunpack.c.l.b16 %v1942
        %v2034 = vunpack.c.h.b16 %v1942
        %v2035 = vunpack.c.l.b16 %v1943
        %v2036 = vunpack.c.h.b16 %v1943
        %v2037 = vunpack.c.l.b16 %v1944
        %v2038 = vunpack.c.h.b16 %v1944
        %v2039 = vunpack.c.l.b16 %v1945
        %v2040 = vunpack.c.h.b16 %v1945
        %v2041 = vunpack.c.l.b16 %v1946
        %v2042 = vunpack.c.h.b16 %v1946
        %v2043 = vunpack.c.l.b16 %v1947
        %v2044 = vunpack.c.h.b16 %v1947
        %v2045 = vunpack.c.l.b16 %v1948
        %v2046 = vunpack.c.h.b16 %v1948
        %v2047 = vunpack.c.l.b16 %v1949
        %v2048 = vunpack.c.h.b16 %v1949
        %v2049 = vpack.c.b16 %v1989, %v1985
        %v2050 = vpack.c.b16 %v1990, %v1986
        %v2051 = vpack.c.b16 %v1991, %v1987
        %v2052 = vpack.c.b16 %v1992, %v1988
        %v2053 = vpack.c.b16 %v1997, %v1993
        %v2054 = vpack.c.b16 %v1998, %v1994
        %v2055 = vpack.c.b16 %v1999, %v1995
        %v2056 = vpack.c.b16 %v2000, %v1996
        %v2057 = vpack.c.b16 %v2005, %v2001
        %v2058 = vpack.c.b16 %v2006, %v2002
        %v2059 = vpack.c.b16 %v2007, %v2003
        %v2060 = vpack.c.b16 %v2008, %v2004
        %v2061 = vpack.c.b16 %v2013, %v2009
        %v2062 = vpack.c.b16 %v2014, %v2010
        %v2063 = vpack.c.b16 %v2015, %v2011
        %v2064 = vpack.c.b16 %v2016, %v2012
        %v2065 = vpack.c.b16 %v2021, %v2017
        %v2066 = vpack.c.b16 %v2022, %v2018
        %v2067 = vpack.c.b16 %v2023, %v2019
        %v2068 = vpack.c.b16 %v2024, %v2020
        %v2069 = vpack.c.b16 %v2029, %v2025
        %v2070 = vpack.c.b16 %v2030, %v2026
        %v2071 = vpack.c.b16 %v2031, %v2027
        %v2072 = vpack.c.b16 %v2032, %v2028
        %v2073 = vpack.c.b16 %v2037, %v2033
        %v2074 = vpack.c.b16 %v2038, %v2034
        %v2075 = vpack.c.b16 %v2039, %v2035
        %v2076 = vpack.c.b16 %v2040, %v2036
        %v2077 = vpack.c.b16 %v2045, %v2041
        %v2078 = vpack.c.b16 %v2046, %v2042
        %v2079 = vpack.c.b16 %v2047, %v2043
        %v2080 = vpack.c.b16 %v2048, %v2044
        %v2114 = vcombine.high %v1952, %v1952
        %v2116 = vunpack.c.l.s4 1983009808
        %v2117 = vunpack.c.0.s8 %v2116
        %v2118 = vlaneseq
        %v2119 = vshrl.u32 %v2118, 7
        %v2120 = vsub.s32 %v2117, %v2119
        %v2121 = vrot.slane %v1952, %v2120
        %v2123 = vunpack.c.l.s4 1983009808
        %v2124 = vunpack.c.0.s8 %v2123
        %v2125 = vlaneseq
        %v2126 = vshrl.u32 %v2125, 7
        %v2127 = vsub.s32 %v2124, %v2126
        %v2128 = vrot.slane %v2114, %v2127
        %v2129 = vcombine.high %v2121, %v2121
        %v2130 = vcombine.high %v2128, %v2128
        %2135 = vmatprep.subr.bf16.mxu0 %v2050
        %2136 = vmatpush1.bf16.msra.mxu0 %v2049
        %2137 = vmatprep.subr.bf16.mxu0 %v2054
        %2138 = vmatpush1.bf16.msra.mxu0 %v2053
        %2139 = vmatprep.subr.bf16.mxu0 %v2058
        %2140 = vmatpush1.bf16.msra.mxu0 %v2057
        %2141 = vmatprep.subr.bf16.mxu0 %v2062
        %2142 = vmatpush1.bf16.msra.mxu0 %v2061
        %2143 = vmatprep.subr.bf16.mxu0 %v2066
        %2144 = vmatpush1.bf16.msra.mxu0 %v2065
        %2145 = vmatprep.subr.bf16.mxu0 %v2070
        %2146 = vmatpush1.bf16.msra.mxu0 %v2069
        %2147 = vmatprep.subr.bf16.mxu0 %v2074
        %2148 = vmatpush1.bf16.msra.mxu0 %v2073
        %2149 = vmatprep.subr.bf16.mxu0 %v2078
        %2150 = vmatpush1.bf16.msra.mxu0 %v2077
        %2151 = vmatprep.subr.bf16.mxu0 0
        %2152 = vmatpush1.bf16.msra.mxu0 0
        %2153 = vmatprep.subr.bf16.mxu0 0
        %2154 = vmatpush1.bf16.msra.mxu0 0
        %2155 = vmatprep.subr.bf16.mxu0 0
        %2156 = vmatpush1.bf16.msra.mxu0 0
        %2157 = vmatprep.subr.bf16.mxu0 0
        %2158 = vmatpush1.bf16.msra.mxu0 0
        %2159 = vmatprep.subr.bf16.mxu0 0
        %2160 = vmatpush1.bf16.msra.mxu0 0
        %2161 = vmatprep.subr.bf16.mxu0 0
        %2162 = vmatpush1.bf16.msra.mxu0 0
        %2163 = vmatprep.subr.bf16.mxu0 0
        %2164 = vmatpush1.bf16.msra.mxu0 0
        %2165 = vmatprep.subr.bf16.mxu0 0
        %2166 = vmatpush1.bf16.msra.mxu0 0
        %2167 = vmatprep.mubr.bf16.mxu0 0
        %2168 = vmatmul.mubr.bf16.gmra.mrb[0].mxu0 %v1616
        %v2169 = vpop.f32.mrb[0].mxu0
        %v2170 = vadd.f32 %v2121, %v2169
        %v2171 = vpop.f32.mrb[0].mxu0
        %v2172 = vadd.f32 %v2129, %v2171
        %v2173 = vpop.f32.mrb[0].mxu0
        %v2174 = vpop.f32.mrb[0].mxu0
        %2175 = vdwg.mxu0
        %2176 = vmatprep.subr.bf16.mxu0 %v2052
        %2177 = vmatpush1.bf16.msra.mxu0 %v2051
        %2178 = vmatprep.subr.bf16.mxu0 %v2056
        %2179 = vmatpush1.bf16.msra.mxu0 %v2055
        %2180 = vmatprep.subr.bf16.mxu0 %v2060
        %2181 = vmatpush1.bf16.msra.mxu0 %v2059
        %2182 = vmatprep.subr.bf16.mxu0 %v2064
        %2183 = vmatpush1.bf16.msra.mxu0 %v2063
        %2184 = vmatprep.subr.bf16.mxu0 %v2068
        %2185 = vmatpush1.bf16.msra.mxu0 %v2067
        %2186 = vmatprep.subr.bf16.mxu0 %v2072
        %2187 = vmatpush1.bf16.msra.mxu0 %v2071
        %2188 = vmatprep.subr.bf16.mxu0 %v2076
        %2189 = vmatpush1.bf16.msra.mxu0 %v2075
        %2190 = vmatprep.subr.bf16.mxu0 %v2080
        %2191 = vmatpush1.bf16.msra.mxu0 %v2079
        %2192 = vmatprep.subr.bf16.mxu0 0
        %2193 = vmatpush1.bf16.msra.mxu0 0
        %2194 = vmatprep.subr.bf16.mxu0 0
        %2195 = vmatpush1.bf16.msra.mxu0 0
        %2196 = vmatprep.subr.bf16.mxu0 0
        %2197 = vmatpush1.bf16.msra.mxu0 0
        %2198 = vmatprep.subr.bf16.mxu0 0
        %2199 = vmatpush1.bf16.msra.mxu0 0
        %2200 = vmatprep.subr.bf16.mxu0 0
        %2201 = vmatpush1.bf16.msra.mxu0 0
        %2202 = vmatprep.subr.bf16.mxu0 0
        %2203 = vmatpush1.bf16.msra.mxu0 0
        %2204 = vmatprep.subr.bf16.mxu0 0
        %2205 = vmatpush1.bf16.msra.mxu0 0
        %2206 = vmatprep.subr.bf16.mxu0 0
        %2207 = vmatpush1.bf16.msra.mxu0 0
        %2208 = vmatprep.mubr.bf16.mxu0 0
        %2209 = vmatmul.mubr.bf16.gmra.mrb[0].mxu0 %v1616
        %v2210 = vpop.f32.mrb[0].mxu0
        %v2211 = vadd.f32 %v2128, %v2210
        %v2212 = vpop.f32.mrb[0].mxu0
        %v2213 = vadd.f32 %v2130, %v2212
        %v2214 = vpop.f32.mrb[0].mxu0
        %v2215 = vpop.f32.mrb[0].mxu0
        %2216 = vdwg.mxu0
        %v2217 = vxor.u32 %v1871, 2147483648
        %v2218 = vxor.u32 %v1873, 2147483648
        %v2219 = vxor.u32 %v1912, 2147483648
        %v2220 = vmul.f32 %v2217, 1.442695
        %v2221 = vpow.pop %v2220
        %v2222 = vmul.f32 %v2218, 1.442695
        %v2223 = vpow.pop %v2222
        %v2224 = vmul.f32 %v2219, 1.442695
        %v2225 = vpow.pop %v2224
        %v2226 = vadd.f32 %v2221, 1.0
        %v2227 = vadd.f32 %v2223, 1.0
        %v2228 = vadd.f32 %v2225, 1.0
        %v2229 = vrcp.pop %v2226
        %v2230 = vmul.f32 1.0, %v2229
        %v2231 = vrcp.pop %v2227
        %v2232 = vmul.f32 1.0, %v2231
        %v2233 = vrcp.pop %v2228
        %v2234 = vmul.f32 1.0, %v2233
        %v2235 = vtanh.pop %v1914
        %v2236 = vmul.f32 %v2232, %v1586
        %v2237 = vmul.f32 %v2230, %v2235
        %v2238 = vadd.f32 %v2236, %v2237
        %v2239 = vtanh.pop %v2238
        %v2240 = vmul.f32 %v2234, %v2239
        %v2241 = vxor.u32 %v2170, 2147483648
        %v2242 = vxor.u32 %v2172, 2147483648
        %v2243 = vxor.u32 %v2211, 2147483648
        %v2244 = vmul.f32 %v2241, 1.442695
        %v2245 = vpow.pop %v2244
        %v2246 = vmul.f32 %v2242, 1.442695
        %v2247 = vpow.pop %v2246
        %v2248 = vmul.f32 %v2243, 1.442695
        %v2249 = vpow.pop %v2248
        %v2250 = vadd.f32 %v2245, 1.0
        %v2251 = vadd.f32 %v2247, 1.0
        %v2252 = vadd.f32 %v2249, 1.0
        %v2253 = vrcp.pop %v2250
        %v2254 = vmul.f32 1.0, %v2253
        %v2255 = vrcp.pop %v2251
        %v2256 = vmul.f32 1.0, %v2255
        %v2257 = vrcp.pop %v2252
        %v2258 = vmul.f32 1.0, %v2257
        %v2259 = vtanh.pop %v2213
        %v2260 = vmul.f32 %v2256, %v1610
        %v2261 = vmul.f32 %v2254, %v2259
        %v2262 = vadd.f32 %v2260, %v2261
        %v2263 = vtanh.pop %v2262
        %v2264 = vmul.f32 %v2258, %v2263
        %v2265 = vpack.c.bf16 %v2240, %v2240
        %s2266 = scalar_lea.vmem %s293, 2
        %2267 = vst [vmem:[%s2266] sm:$0x1] %v2265
        %v2268 = vpack.c.bf16 %v2264, %v2264
        %s2269 = scalar_lea.vmem %s299, 1
        %2270 = vst [vmem:[%s2269] sm:$0x1] %v2268
        %v2271 = vld [vmem:[#allocation6] sm:$0xff]
        %v2272 = vld [vmem:[#allocation6 + $0x8] sm:$0xff]
        %v2273 = vld [vmem:[#allocation6 + $0x10] sm:$0xff]
        %v2274 = vld [vmem:[#allocation6 + $0x18] sm:$0xff]
        %v2275 = vld [vmem:[#allocation6 + $0x20] sm:$0xff]
        %v2276 = vld [vmem:[#allocation6 + $0x28] sm:$0xff]
        %v2277 = vld [vmem:[#allocation6 + $0x30] sm:$0xff]
        %v2278 = vld [vmem:[#allocation6 + $0x38] sm:$0xff]
        %v2279 = vld [vmem:[#allocation6 + $0x40] sm:$0xff]
        %v2280 = vld [vmem:[#allocation6 + $0x48] sm:$0xff]
        %v2281 = vld [vmem:[#allocation6 + $0x50] sm:$0xff]
        %v2282 = vld [vmem:[#allocation6 + $0x58] sm:$0xff]
        %v2283 = vld [vmem:[#allocation6 + $0x60] sm:$0xff]
        %v2284 = vld [vmem:[#allocation6 + $0x68] sm:$0xff]
        %v2285 = vld [vmem:[#allocation6 + $0x70] sm:$0xff]
        %v2286 = vld [vmem:[#allocation6 + $0x78] sm:$0xff]
        %v2287 = vld [vmem:[#allocation6 + $0x80] sm:$0xff]
        %v2288 = vld [vmem:[#allocation6 + $0x88] sm:$0xff]
        %v2289 = vld [vmem:[#allocation6 + $0x90] sm:$0xff]
        %v2290 = vld [vmem:[#allocation6 + $0x98] sm:$0xff]
        %v2291 = vld [vmem:[#allocation6 + $0xa0] sm:$0xff]
        %v2292 = vld [vmem:[#allocation6 + $0xa8] sm:$0xff]
        %v2293 = vld [vmem:[#allocation6 + $0xb0] sm:$0xff]
        %v2294 = vld [vmem:[#allocation6 + $0xb8] sm:$0xff]
        %v2295 = vld [vmem:[#allocation6 + $0xc0] sm:$0xff]
        %v2296 = vld [vmem:[#allocation6 + $0xc8] sm:$0xff]
        %v2297 = vld [vmem:[#allocation6 + $0xd0] sm:$0xff]
        %v2298 = vld [vmem:[#allocation6 + $0xd8] sm:$0xff]
        %v2299 = vld [vmem:[#allocation6 + $0xe0] sm:$0xff]
        %v2300 = vld [vmem:[#allocation6 + $0xe8] sm:$0xff]
        %v2301 = vld [vmem:[#allocation6 + $0xf0] sm:$0xff]
        %v2302 = vld [vmem:[#allocation6 + $0xf8] sm:$0xff]
        %s2303 = scalar_lea.vmem %s280, 12
        %v2304 = vld [vmem:[%s2303] sm:$0xf]
        %v2305 = vunpack.c.l.bf16 %v2304
        %v2338 = vunpack.c.l.b16 %v2271
        %v2339 = vunpack.c.h.b16 %v2271
        %v2340 = vunpack.c.l.b16 %v2272
        %v2341 = vunpack.c.h.b16 %v2272
        %v2342 = vunpack.c.l.b16 %v2273
        %v2343 = vunpack.c.h.b16 %v2273
        %v2344 = vunpack.c.l.b16 %v2274
        %v2345 = vunpack.c.h.b16 %v2274
        %v2346 = vunpack.c.l.b16 %v2275
        %v2347 = vunpack.c.h.b16 %v2275
        %v2348 = vunpack.c.l.b16 %v2276
        %v2349 = vunpack.c.h.b16 %v2276
        %v2350 = vunpack.c.l.b16 %v2277
        %v2351 = vunpack.c.h.b16 %v2277
        %v2352 = vunpack.c.l.b16 %v2278
        %v2353 = vunpack.c.h.b16 %v2278
        %v2354 = vunpack.c.l.b16 %v2279
        %v2355 = vunpack.c.h.b16 %v2279
        %v2356 = vunpack.c.l.b16 %v2280
        %v2357 = vunpack.c.h.b16 %v2280
        %v2358 = vunpack.c.l.b16 %v2281
        %v2359 = vunpack.c.h.b16 %v2281
        %v2360 = vunpack.c.l.b16 %v2282
        %v2361 = vunpack.c.h.b16 %v2282
        %v2362 = vunpack.c.l.b16 %v2283
        %v2363 = vunpack.c.h.b16 %v2283
        %v2364 = vunpack.c.l.b16 %v2284
        %v2365 = vunpack.c.h.b16 %v2284
        %v2366 = vunpack.c.l.b16 %v2285
        %v2367 = vunpack.c.h.b16 %v2285
        %v2368 = vunpack.c.l.b16 %v2286
        %v2369 = vunpack.c.h.b16 %v2286
        %v2370 = vunpack.c.l.b16 %v2287
        %v2371 = vunpack.c.h.b16 %v2287
        %v2372 = vunpack.c.l.b16 %v2288
        %v2373 = vunpack.c.h.b16 %v2288
        %v2374 = vunpack.c.l.b16 %v2289
        %v2375 = vunpack.c.h.b16 %v2289
        %v2376 = vunpack.c.l.b16 %v2290
        %v2377 = vunpack.c.h.b16 %v2290
        %v2378 = vunpack.c.l.b16 %v2291
        %v2379 = vunpack.c.h.b16 %v2291
        %v2380 = vunpack.c.l.b16 %v2292
        %v2381 = vunpack.c.h.b16 %v2292
        %v2382 = vunpack.c.l.b16 %v2293
        %v2383 = vunpack.c.h.b16 %v2293
        %v2384 = vunpack.c.l.b16 %v2294
        %v2385 = vunpack.c.h.b16 %v2294
        %v2386 = vunpack.c.l.b16 %v2295
        %v2387 = vunpack.c.h.b16 %v2295
        %v2388 = vunpack.c.l.b16 %v2296
        %v2389 = vunpack.c.h.b16 %v2296
        %v2390 = vunpack.c.l.b16 %v2297
        %v2391 = vunpack.c.h.b16 %v2297
        %v2392 = vunpack.c.l.b16 %v2298
        %v2393 = vunpack.c.h.b16 %v2298
        %v2394 = vunpack.c.l.b16 %v2299
        %v2395 = vunpack.c.h.b16 %v2299
        %v2396 = vunpack.c.l.b16 %v2300
        %v2397 = vunpack.c.h.b16 %v2300
        %v2398 = vunpack.c.l.b16 %v2301
        %v2399 = vunpack.c.h.b16 %v2301
        %v2400 = vunpack.c.l.b16 %v2302
        %v2401 = vunpack.c.h.b16 %v2302
        %v2402 = vpack.c.b16 %v2342, %v2338
        %v2403 = vpack.c.b16 %v2343, %v2339
        %v2404 = vpack.c.b16 %v2344, %v2340
        %v2405 = vpack.c.b16 %v2345, %v2341
        %v2406 = vpack.c.b16 %v2350, %v2346
        %v2407 = vpack.c.b16 %v2351, %v2347
        %v2408 = vpack.c.b16 %v2352, %v2348
        %v2409 = vpack.c.b16 %v2353, %v2349
        %v2410 = vpack.c.b16 %v2358, %v2354
        %v2411 = vpack.c.b16 %v2359, %v2355
        %v2412 = vpack.c.b16 %v2360, %v2356
        %v2413 = vpack.c.b16 %v2361, %v2357
        %v2414 = vpack.c.b16 %v2366, %v2362
        %v2415 = vpack.c.b16 %v2367, %v2363
        %v2416 = vpack.c.b16 %v2368, %v2364
        %v2417 = vpack.c.b16 %v2369, %v2365
        %v2418 = vpack.c.b16 %v2374, %v2370
        %v2419 = vpack.c.b16 %v2375, %v2371
        %v2420 = vpack.c.b16 %v2376, %v2372
        %v2421 = vpack.c.b16 %v2377, %v2373
        %v2422 = vpack.c.b16 %v2382, %v2378
        %v2423 = vpack.c.b16 %v2383, %v2379
        %v2424 = vpack.c.b16 %v2384, %v2380
        %v2425 = vpack.c.b16 %v2385, %v2381
        %v2426 = vpack.c.b16 %v2390, %v2386
        %v2427 = vpack.c.b16 %v2391, %v2387
        %v2428 = vpack.c.b16 %v2392, %v2388
        %v2429 = vpack.c.b16 %v2393, %v2389
        %v2430 = vpack.c.b16 %v2398, %v2394
        %v2431 = vpack.c.b16 %v2399, %v2395
        %v2432 = vpack.c.b16 %v2400, %v2396
        %v2433 = vpack.c.b16 %v2401, %v2397
        %v2467 = vcombine.high %v2305, %v2305
        %v2469 = vunpack.c.l.s4 1983009808
        %v2470 = vunpack.c.0.s8 %v2469
        %v2471 = vlaneseq
        %v2472 = vshrl.u32 %v2471, 7
        %v2473 = vsub.s32 %v2470, %v2472
        %v2474 = vrot.slane %v2305, %v2473
        %v2476 = vunpack.c.l.s4 1983009808
        %v2477 = vunpack.c.0.s8 %v2476
        %v2478 = vlaneseq
        %v2479 = vshrl.u32 %v2478, 7
        %v2480 = vsub.s32 %v2477, %v2479
        %v2481 = vrot.slane %v2467, %v2480
        %v2482 = vcombine.high %v2474, %v2474
        %v2483 = vcombine.high %v2481, %v2481
        %2488 = vmatprep.subr.bf16.mxu0 %v2403
        %2489 = vmatpush1.bf16.msra.mxu0 %v2402
        %2490 = vmatprep.subr.bf16.mxu0 %v2407
        %2491 = vmatpush1.bf16.msra.mxu0 %v2406
        %2492 = vmatprep.subr.bf16.mxu0 %v2411
        %2493 = vmatpush1.bf16.msra.mxu0 %v2410
        %2494 = vmatprep.subr.bf16.mxu0 %v2415
        %2495 = vmatpush1.bf16.msra.mxu0 %v2414
        %2496 = vmatprep.subr.bf16.mxu0 %v2419
        %2497 = vmatpush1.bf16.msra.mxu0 %v2418
        %2498 = vmatprep.subr.bf16.mxu0 %v2423
        %2499 = vmatpush1.bf16.msra.mxu0 %v2422
        %2500 = vmatprep.subr.bf16.mxu0 %v2427
        %2501 = vmatpush1.bf16.msra.mxu0 %v2426
        %2502 = vmatprep.subr.bf16.mxu0 %v2431
        %2503 = vmatpush1.bf16.msra.mxu0 %v2430
        %2504 = vmatprep.subr.bf16.mxu0 0
        %2505 = vmatpush1.bf16.msra.mxu0 0
        %2506 = vmatprep.subr.bf16.mxu0 0
        %2507 = vmatpush1.bf16.msra.mxu0 0
        %2508 = vmatprep.subr.bf16.mxu0 0
        %2509 = vmatpush1.bf16.msra.mxu0 0
        %2510 = vmatprep.subr.bf16.mxu0 0
        %2511 = vmatpush1.bf16.msra.mxu0 0
        %2512 = vmatprep.subr.bf16.mxu0 0
        %2513 = vmatpush1.bf16.msra.mxu0 0
        %2514 = vmatprep.subr.bf16.mxu0 0
        %2515 = vmatpush1.bf16.msra.mxu0 0
        %2516 = vmatprep.subr.bf16.mxu0 0
        %2517 = vmatpush1.bf16.msra.mxu0 0
        %2518 = vmatprep.subr.bf16.mxu0 0
        %2519 = vmatpush1.bf16.msra.mxu0 0
        %2520 = vmatprep.mubr.bf16.mxu0 0
        %2521 = vmatmul.mubr.bf16.gmra.mrb[0].mxu0 %v2265
        %v2522 = vpop.f32.mrb[0].mxu0
        %v2523 = vadd.f32 %v2474, %v2522
        %v2524 = vpop.f32.mrb[0].mxu0
        %v2525 = vadd.f32 %v2482, %v2524
        %v2526 = vpop.f32.mrb[0].mxu0
        %v2527 = vpop.f32.mrb[0].mxu0
        %2528 = vdwg.mxu0
        %2529 = vmatprep.subr.bf16.mxu0 %v2405
        %2530 = vmatpush1.bf16.msra.mxu0 %v2404
        %2531 = vmatprep.subr.bf16.mxu0 %v2409
        %2532 = vmatpush1.bf16.msra.mxu0 %v2408
        %2533 = vmatprep.subr.bf16.mxu0 %v2413
        %2534 = vmatpush1.bf16.msra.mxu0 %v2412
        %2535 = vmatprep.subr.bf16.mxu0 %v2417
        %2536 = vmatpush1.bf16.msra.mxu0 %v2416
        %2537 = vmatprep.subr.bf16.mxu0 %v2421
        %2538 = vmatpush1.bf16.msra.mxu0 %v2420
        %2539 = vmatprep.subr.bf16.mxu0 %v2425
        %2540 = vmatpush1.bf16.msra.mxu0 %v2424
        %2541 = vmatprep.subr.bf16.mxu0 %v2429
        %2542 = vmatpush1.bf16.msra.mxu0 %v2428
        %2543 = vmatprep.subr.bf16.mxu0 %v2433
        %2544 = vmatpush1.bf16.msra.mxu0 %v2432
        %2545 = vmatprep.subr.bf16.mxu0 0
        %2546 = vmatpush1.bf16.msra.mxu0 0
        %2547 = vmatprep.subr.bf16.mxu0 0
        %2548 = vmatpush1.bf16.msra.mxu0 0
        %2549 = vmatprep.subr.bf16.mxu0 0
        %2550 = vmatpush1.bf16.msra.mxu0 0
        %2551 = vmatprep.subr.bf16.mxu0 0
        %2552 = vmatpush1.bf16.msra.mxu0 0
        %2553 = vmatprep.subr.bf16.mxu0 0
        %2554 = vmatpush1.bf16.msra.mxu0 0
        %2555 = vmatprep.subr.bf16.mxu0 0
        %2556 = vmatpush1.bf16.msra.mxu0 0
        %2557 = vmatprep.subr.bf16.mxu0 0
        %2558 = vmatpush1.bf16.msra.mxu0 0
        %2559 = vmatprep.subr.bf16.mxu0 0
        %2560 = vmatpush1.bf16.msra.mxu0 0
        %2561 = vmatprep.mubr.bf16.mxu0 0
        %2562 = vmatmul.mubr.bf16.gmra.mrb[0].mxu0 %v2265
        %v2563 = vpop.f32.mrb[0].mxu0
        %v2564 = vadd.f32 %v2481, %v2563
        %v2565 = vpop.f32.mrb[0].mxu0
        %v2566 = vadd.f32 %v2483, %v2565
        %v2567 = vpop.f32.mrb[0].mxu0
        %v2568 = vpop.f32.mrb[0].mxu0
        %2569 = vdwg.mxu0
        %v2570 = vld [vmem:[#allocation8] sm:$0xff]
        %v2571 = vld [vmem:[#allocation8 + $0x8] sm:$0xff]
        %v2572 = vld [vmem:[#allocation8 + $0x10] sm:$0xff]
        %v2573 = vld [vmem:[#allocation8 + $0x18] sm:$0xff]
        %v2574 = vld [vmem:[#allocation8 + $0x20] sm:$0xff]
        %v2575 = vld [vmem:[#allocation8 + $0x28] sm:$0xff]
        %v2576 = vld [vmem:[#allocation8 + $0x30] sm:$0xff]
        %v2577 = vld [vmem:[#allocation8 + $0x38] sm:$0xff]
        %v2578 = vld [vmem:[#allocation8 + $0x40] sm:$0xff]
        %v2579 = vld [vmem:[#allocation8 + $0x48] sm:$0xff]
        %v2580 = vld [vmem:[#allocation8 + $0x50] sm:$0xff]
        %v2581 = vld [vmem:[#allocation8 + $0x58] sm:$0xff]
        %v2582 = vld [vmem:[#allocation8 + $0x60] sm:$0xff]
        %v2583 = vld [vmem:[#allocation8 + $0x68] sm:$0xff]
        %v2584 = vld [vmem:[#allocation8 + $0x70] sm:$0xff]
        %v2585 = vld [vmem:[#allocation8 + $0x78] sm:$0xff]
        %v2586 = vld [vmem:[#allocation8 + $0x80] sm:$0xff]
        %v2587 = vld [vmem:[#allocation8 + $0x88] sm:$0xff]
        %v2588 = vld [vmem:[#allocation8 + $0x90] sm:$0xff]
        %v2589 = vld [vmem:[#allocation8 + $0x98] sm:$0xff]
        %v2590 = vld [vmem:[#allocation8 + $0xa0] sm:$0xff]
        %v2591 = vld [vmem:[#allocation8 + $0xa8] sm:$0xff]
        %v2592 = vld [vmem:[#allocation8 + $0xb0] sm:$0xff]
        %v2593 = vld [vmem:[#allocation8 + $0xb8] sm:$0xff]
        %v2594 = vld [vmem:[#allocation8 + $0xc0] sm:$0xff]
        %v2595 = vld [vmem:[#allocation8 + $0xc8] sm:$0xff]
        %v2596 = vld [vmem:[#allocation8 + $0xd0] sm:$0xff]
        %v2597 = vld [vmem:[#allocation8 + $0xd8] sm:$0xff]
        %v2598 = vld [vmem:[#allocation8 + $0xe0] sm:$0xff]
        %v2599 = vld [vmem:[#allocation8 + $0xe8] sm:$0xff]
        %v2600 = vld [vmem:[#allocation8 + $0xf0] sm:$0xff]
        %v2601 = vld [vmem:[#allocation8 + $0xf8] sm:$0xff]
        %v2602 = vld [vmem:[%s287] sm:$0xf]
        %v2603 = vunpack.c.l.bf16 %v2602
        %v2636 = vunpack.c.l.b16 %v2570
        %v2637 = vunpack.c.h.b16 %v2570
        %v2638 = vunpack.c.l.b16 %v2571
        %v2639 = vunpack.c.h.b16 %v2571
        %v2640 = vunpack.c.l.b16 %v2572
        %v2641 = vunpack.c.h.b16 %v2572
        %v2642 = vunpack.c.l.b16 %v2573
        %v2643 = vunpack.c.h.b16 %v2573
        %v2644 = vunpack.c.l.b16 %v2574
        %v2645 = vunpack.c.h.b16 %v2574
        %v2646 = vunpack.c.l.b16 %v2575
        %v2647 = vunpack.c.h.b16 %v2575
        %v2648 = vunpack.c.l.b16 %v2576
        %v2649 = vunpack.c.h.b16 %v2576
        %v2650 = vunpack.c.l.b16 %v2577
        %v2651 = vunpack.c.h.b16 %v2577
        %v2652 = vunpack.c.l.b16 %v2578
        %v2653 = vunpack.c.h.b16 %v2578
        %v2654 = vunpack.c.l.b16 %v2579
        %v2655 = vunpack.c.h.b16 %v2579
        %v2656 = vunpack.c.l.b16 %v2580
        %v2657 = vunpack.c.h.b16 %v2580
        %v2658 = vunpack.c.l.b16 %v2581
        %v2659 = vunpack.c.h.b16 %v2581
        %v2660 = vunpack.c.l.b16 %v2582
        %v2661 = vunpack.c.h.b16 %v2582
        %v2662 = vunpack.c.l.b16 %v2583
        %v2663 = vunpack.c.h.b16 %v2583
        %v2664 = vunpack.c.l.b16 %v2584
        %v2665 = vunpack.c.h.b16 %v2584
        %v2666 = vunpack.c.l.b16 %v2585
        %v2667 = vunpack.c.h.b16 %v2585
        %v2668 = vunpack.c.l.b16 %v2586
        %v2669 = vunpack.c.h.b16 %v2586
        %v2670 = vunpack.c.l.b16 %v2587
        %v2671 = vunpack.c.h.b16 %v2587
        %v2672 = vunpack.c.l.b16 %v2588
        %v2673 = vunpack.c.h.b16 %v2588
        %v2674 = vunpack.c.l.b16 %v2589
        %v2675 = vunpack.c.h.b16 %v2589
        %v2676 = vunpack.c.l.b16 %v2590
        %v2677 = vunpack.c.h.b16 %v2590
        %v2678 = vunpack.c.l.b16 %v2591
        %v2679 = vunpack.c.h.b16 %v2591
        %v2680 = vunpack.c.l.b16 %v2592
        %v2681 = vunpack.c.h.b16 %v2592
        %v2682 = vunpack.c.l.b16 %v2593
        %v2683 = vunpack.c.h.b16 %v2593
        %v2684 = vunpack.c.l.b16 %v2594
        %v2685 = vunpack.c.h.b16 %v2594
        %v2686 = vunpack.c.l.b16 %v2595
        %v2687 = vunpack.c.h.b16 %v2595
        %v2688 = vunpack.c.l.b16 %v2596
        %v2689 = vunpack.c.h.b16 %v2596
        %v2690 = vunpack.c.l.b16 %v2597
        %v2691 = vunpack.c.h.b16 %v2597
        %v2692 = vunpack.c.l.b16 %v2598
        %v2693 = vunpack.c.h.b16 %v2598
        %v2694 = vunpack.c.l.b16 %v2599
        %v2695 = vunpack.c.h.b16 %v2599
        %v2696 = vunpack.c.l.b16 %v2600
        %v2697 = vunpack.c.h.b16 %v2600
        %v2698 = vunpack.c.l.b16 %v2601
        %v2699 = vunpack.c.h.b16 %v2601
        %v2700 = vpack.c.b16 %v2640, %v2636
        %v2701 = vpack.c.b16 %v2641, %v2637
        %v2702 = vpack.c.b16 %v2642, %v2638
        %v2703 = vpack.c.b16 %v2643, %v2639
        %v2704 = vpack.c.b16 %v2648, %v2644
        %v2705 = vpack.c.b16 %v2649, %v2645
        %v2706 = vpack.c.b16 %v2650, %v2646
        %v2707 = vpack.c.b16 %v2651, %v2647
        %v2708 = vpack.c.b16 %v2656, %v2652
        %v2709 = vpack.c.b16 %v2657, %v2653
        %v2710 = vpack.c.b16 %v2658, %v2654
        %v2711 = vpack.c.b16 %v2659, %v2655
        %v2712 = vpack.c.b16 %v2664, %v2660
        %v2713 = vpack.c.b16 %v2665, %v2661
        %v2714 = vpack.c.b16 %v2666, %v2662
        %v2715 = vpack.c.b16 %v2667, %v2663
        %v2716 = vpack.c.b16 %v2672, %v2668
        %v2717 = vpack.c.b16 %v2673, %v2669
        %v2718 = vpack.c.b16 %v2674, %v2670
        %v2719 = vpack.c.b16 %v2675, %v2671
        %v2720 = vpack.c.b16 %v2680, %v2676
        %v2721 = vpack.c.b16 %v2681, %v2677
        %v2722 = vpack.c.b16 %v2682, %v2678
        %v2723 = vpack.c.b16 %v2683, %v2679
        %v2724 = vpack.c.b16 %v2688, %v2684
        %v2725 = vpack.c.b16 %v2689, %v2685
        %v2726 = vpack.c.b16 %v2690, %v2686
        %v2727 = vpack.c.b16 %v2691, %v2687
        %v2728 = vpack.c.b16 %v2696, %v2692
        %v2729 = vpack.c.b16 %v2697, %v2693
        %v2730 = vpack.c.b16 %v2698, %v2694
        %v2731 = vpack.c.b16 %v2699, %v2695
        %v2765 = vcombine.high %v2603, %v2603
        %v2767 = vunpack.c.l.s4 1983009808
        %v2768 = vunpack.c.0.s8 %v2767
        %v2769 = vlaneseq
        %v2770 = vshrl.u32 %v2769, 7
        %v2771 = vsub.s32 %v2768, %v2770
        %v2772 = vrot.slane %v2603, %v2771
        %v2774 = vunpack.c.l.s4 1983009808
        %v2775 = vunpack.c.0.s8 %v2774
        %v2776 = vlaneseq
        %v2777 = vshrl.u32 %v2776, 7
        %v2778 = vsub.s32 %v2775, %v2777
        %v2779 = vrot.slane %v2765, %v2778
        %v2780 = vcombine.high %v2772, %v2772
        %v2781 = vcombine.high %v2779, %v2779
        %2786 = vmatprep.subr.bf16.mxu0 %v2701
        %2787 = vmatpush1.bf16.msra.mxu0 %v2700
        %2788 = vmatprep.subr.bf16.mxu0 %v2705
        %2789 = vmatpush1.bf16.msra.mxu0 %v2704
        %2790 = vmatprep.subr.bf16.mxu0 %v2709
        %2791 = vmatpush1.bf16.msra.mxu0 %v2708
        %2792 = vmatprep.subr.bf16.mxu0 %v2713
        %2793 = vmatpush1.bf16.msra.mxu0 %v2712
        %2794 = vmatprep.subr.bf16.mxu0 %v2717
        %2795 = vmatpush1.bf16.msra.mxu0 %v2716
        %2796 = vmatprep.subr.bf16.mxu0 %v2721
        %2797 = vmatpush1.bf16.msra.mxu0 %v2720
        %2798 = vmatprep.subr.bf16.mxu0 %v2725
        %2799 = vmatpush1.bf16.msra.mxu0 %v2724
        %2800 = vmatprep.subr.bf16.mxu0 %v2729
        %2801 = vmatpush1.bf16.msra.mxu0 %v2728
        %2802 = vmatprep.subr.bf16.mxu0 0
        %2803 = vmatpush1.bf16.msra.mxu0 0
        %2804 = vmatprep.subr.bf16.mxu0 0
        %2805 = vmatpush1.bf16.msra.mxu0 0
        %2806 = vmatprep.subr.bf16.mxu0 0
        %2807 = vmatpush1.bf16.msra.mxu0 0
        %2808 = vmatprep.subr.bf16.mxu0 0
        %2809 = vmatpush1.bf16.msra.mxu0 0
        %2810 = vmatprep.subr.bf16.mxu0 0
        %2811 = vmatpush1.bf16.msra.mxu0 0
        %2812 = vmatprep.subr.bf16.mxu0 0
        %2813 = vmatpush1.bf16.msra.mxu0 0
        %2814 = vmatprep.subr.bf16.mxu0 0
        %2815 = vmatpush1.bf16.msra.mxu0 0
        %2816 = vmatprep.subr.bf16.mxu0 0
        %2817 = vmatpush1.bf16.msra.mxu0 0
        %2818 = vmatprep.mubr.bf16.mxu0 0
        %2819 = vmatmul.mubr.bf16.gmra.mrb[0].mxu0 %v2268
        %v2820 = vpop.f32.mrb[0].mxu0
        %v2821 = vadd.f32 %v2772, %v2820
        %v2822 = vpop.f32.mrb[0].mxu0
        %v2823 = vadd.f32 %v2780, %v2822
        %v2824 = vpop.f32.mrb[0].mxu0
        %v2825 = vpop.f32.mrb[0].mxu0
        %2826 = vdwg.mxu0
        %2827 = vmatprep.subr.bf16.mxu0 %v2703
        %2828 = vmatpush1.bf16.msra.mxu0 %v2702
        %2829 = vmatprep.subr.bf16.mxu0 %v2707
        %2830 = vmatpush1.bf16.msra.mxu0 %v2706
        %2831 = vmatprep.subr.bf16.mxu0 %v2711
        %2832 = vmatpush1.bf16.msra.mxu0 %v2710
        %2833 = vmatprep.subr.bf16.mxu0 %v2715
        %2834 = vmatpush1.bf16.msra.mxu0 %v2714
        %2835 = vmatprep.subr.bf16.mxu0 %v2719
        %2836 = vmatpush1.bf16.msra.mxu0 %v2718
        %2837 = vmatprep.subr.bf16.mxu0 %v2723
        %2838 = vmatpush1.bf16.msra.mxu0 %v2722
        %2839 = vmatprep.subr.bf16.mxu0 %v2727
        %2840 = vmatpush1.bf16.msra.mxu0 %v2726
        %2841 = vmatprep.subr.bf16.mxu0 %v2731
        %2842 = vmatpush1.bf16.msra.mxu0 %v2730
        %2843 = vmatprep.subr.bf16.mxu0 0
        %2844 = vmatpush1.bf16.msra.mxu0 0
        %2845 = vmatprep.subr.bf16.mxu0 0
        %2846 = vmatpush1.bf16.msra.mxu0 0
        %2847 = vmatprep.subr.bf16.mxu0 0
        %2848 = vmatpush1.bf16.msra.mxu0 0
        %2849 = vmatprep.subr.bf16.mxu0 0
        %2850 = vmatpush1.bf16.msra.mxu0 0
        %2851 = vmatprep.subr.bf16.mxu0 0
        %2852 = vmatpush1.bf16.msra.mxu0 0
        %2853 = vmatprep.subr.bf16.mxu0 0
        %2854 = vmatpush1.bf16.msra.mxu0 0
        %2855 = vmatprep.subr.bf16.mxu0 0
        %2856 = vmatpush1.bf16.msra.mxu0 0
        %2857 = vmatprep.subr.bf16.mxu0 0
        %2858 = vmatpush1.bf16.msra.mxu0 0
        %2859 = vmatprep.mubr.bf16.mxu0 0
        %2860 = vmatmul.mubr.bf16.gmra.mrb[0].mxu0 %v2268
        %v2861 = vpop.f32.mrb[0].mxu0
        %v2862 = vadd.f32 %v2779, %v2861
        %v2863 = vpop.f32.mrb[0].mxu0
        %v2864 = vadd.f32 %v2781, %v2863
        %v2865 = vpop.f32.mrb[0].mxu0
        %v2866 = vpop.f32.mrb[0].mxu0
        %2867 = vdwg.mxu0
        %v2868 = vxor.u32 %v2523, 2147483648
        %v2869 = vxor.u32 %v2525, 2147483648
        %v2870 = vxor.u32 %v2564, 2147483648
        %v2871 = vmul.f32 %v2868, 1.442695
        %v2872 = vpow.pop %v2871
        %v2873 = vmul.f32 %v2869, 1.442695
        %v2874 = vpow.pop %v2873
        %v2875 = vmul.f32 %v2870, 1.442695
        %v2876 = vpow.pop %v2875
        %v2877 = vadd.f32 %v2872, 1.0
        %v2878 = vadd.f32 %v2874, 1.0
        %v2879 = vadd.f32 %v2876, 1.0
        %v2880 = vrcp.pop %v2877
        %v2881 = vmul.f32 1.0, %v2880
        %v2882 = vrcp.pop %v2878
        %v2883 = vmul.f32 1.0, %v2882
        %v2884 = vrcp.pop %v2879
        %v2885 = vmul.f32 1.0, %v2884
        %v2886 = vtanh.pop %v2566
        %v2887 = vmul.f32 %v2883, %v2238
        %v2888 = vmul.f32 %v2881, %v2886
        %v2889 = vadd.f32 %v2887, %v2888
        %v2890 = vtanh.pop %v2889
        %v2891 = vmul.f32 %v2885, %v2890
        %v2892 = vxor.u32 %v2821, 2147483648
        %v2893 = vxor.u32 %v2823, 2147483648
        %v2894 = vxor.u32 %v2862, 2147483648
        %v2895 = vmul.f32 %v2892, 1.442695
        %v2896 = vpow.pop %v2895
        %v2897 = vmul.f32 %v2893, 1.442695
        %v2898 = vpow.pop %v2897
        %v2899 = vmul.f32 %v2894, 1.442695
        %v2900 = vpow.pop %v2899
        %v2901 = vadd.f32 %v2896, 1.0
        %v2902 = vadd.f32 %v2898, 1.0
        %v2903 = vadd.f32 %v2900, 1.0
        %v2904 = vrcp.pop %v2901
        %v2905 = vmul.f32 1.0, %v2904
        %v2906 = vrcp.pop %v2902
        %v2907 = vmul.f32 1.0, %v2906
        %v2908 = vrcp.pop %v2903
        %v2909 = vmul.f32 1.0, %v2908
        %v2910 = vtanh.pop %v2864
        %v2911 = vmul.f32 %v2907, %v2262
        %v2912 = vmul.f32 %v2905, %v2910
        %v2913 = vadd.f32 %v2911, %v2912
        %v2914 = vtanh.pop %v2913
        %v2915 = vmul.f32 %v2909, %v2914
        %v2916 = vpack.c.bf16 %v2891, %v2891
        %s2917 = scalar_lea.vmem %s293, 3
        %2918 = vst [vmem:[%s2917] sm:$0x1] %v2916
        %v2919 = vpack.c.bf16 %v2915, %v2915
        %2920 = vst [vmem:[%s299] sm:$0x1] %v2919
        %2921 = vst [vmem:[#allocation2] sm:$0x3] %v2891
        %2922 = vst [vmem:[#allocation3] sm:$0x3] %v2889
        %2923 = vst [vmem:[#allocation4] sm:$0x3] %v2915
        %2924 = vst [vmem:[#allocation5] sm:$0x3] %v2913
        %s2925 = smul.u32 4, %s19
        %p2926 = scmp.lt.s32.totalorder %s2925, 7
        %s2927 = scalar_select %p2926, %s2925, 7
        %s2928 = scalar_lea.vmem %s4, %s2927
        %s2929 = ssub.s32 1, %s19
        %s2930 = smul.u32 4, %s2929
        %p2931 = scmp.lt.s32.totalorder %s2930, 7
        %s2932 = scalar_select %p2931, %s2930, 7
        %s2933 = scalar_lea.vmem %s5, %s2932
        // Predicated region
        $region49: #{basic_lstm_forward.6} parent=35 // pred_check
          %p2934 = pneg %p133
        $region50: #{basic_lstm_forward.6} parent=35 // pred_check_branch
          %2936 = sbr.rel (%p2934) target = $region52
        $region51: #{basic_lstm_forward.6} parent=35 // pred_region
          %s2937 = smul.u32 4, %s19
        $region52: #{basic_lstm_forward.6} parent=35 // pred_fallthru
          _
        // Predicated region
        $region53: #{basic_lstm_forward.6} parent=35 // pred_check
          %p2938 = pneg %p161
        $region54: #{basic_lstm_forward.6} parent=35 // pred_check_branch
          %2940 = sbr.rel (%p2938) target = $region56
        $region55: #{basic_lstm_forward.6} parent=35 // pred_region
          %s2941 = ssub.s32 1, %s19
          %s2942 = smul.u32 4, %s2941
        $region56: #{basic_lstm_forward.6} parent=35 // pred_fallthru
          _
      $region36: #{basic_lstm_forward.6} parent=5 // pred_fallthru
        _
      %p2943 = scmp.le.s32.totalorder 2, %s14
      // Predicated region
      $region57: #{basic_lstm_forward.6} parent=5 // pred_check
        %p2944 = pneg %p2943
      $region58: #{basic_lstm_forward.6} parent=5 // pred_check_branch
        %2946 = sbr.rel (%p2944) target = $region60
      $region59: #{basic_lstm_forward.6} parent=5 // pred_region
        %s2947 = ssub.s32 %s14, 2
        // Predicated region
        $region61: #{basic_lstm_forward.6} parent=59 // pred_check
          %p2948 = pneg %p139
        $region62: #{basic_lstm_forward.6} parent=59 // pred_check_branch
          %2950 = sbr.rel (%p2948) target = $region64
        $region63: #{basic_lstm_forward.6} parent=59 // pred_region
          %s2951 = smul.u32 4, %s20
          %p2952 = scmp.lt.s32.totalorder %s2951, 7
          %s2953 = scalar_select %p2952, %s2951, 7
          %s2954 = scalar_lea.vmem %s4, %s2953
        $region64: #{basic_lstm_forward.6} parent=59 // pred_fallthru
          _
        // Predicated region
        $region65: #{basic_lstm_forward.6} parent=59 // pred_check
          %p2955 = pneg %p167
        $region66: #{basic_lstm_forward.6} parent=59 // pred_check_branch
          %2957 = sbr.rel (%p2955) target = $region68
        $region67: #{basic_lstm_forward.6} parent=59 // pred_region
          %s2958 = ssub.s32 1, %s20
          %s2959 = smul.u32 4, %s2958
          %p2960 = scmp.lt.s32.totalorder %s2959, 7
          %s2961 = scalar_select %p2960, %s2959, 7
          %s2962 = scalar_lea.vmem %s5, %s2961
        $region68: #{basic_lstm_forward.6} parent=59 // pred_fallthru
          _
      $region60: #{basic_lstm_forward.6} parent=5 // pred_fallthru
        _
    $region6: #{basic_lstm_forward.6} parent=1 // loop_footer
      %s18 = sadd.s32 1, %s14
    $region7: #{basic_lstm_forward.6} parent=1 // loop_footer_branch
      %13 = sbr.rel target = $region3
    $region8: #{basic_lstm_forward.6} parent=1 // loop_exit
      _
    %2963 = vsyncpa [#allocation7], 1
    %s2964 = scalar_lea.sflag [#allocation7], 1
    %2965 = vsyncpa %s2964, 1
    %2966 = vsyncpa [#allocation9], 1

// kernel: basic_lstm_forward.8
$region0: #{basic_lstm_forward.8}
  #allocation0 [shape = 'u32[]', space=smem, size = 0x4, offset = 0x4, fixed_abs, tag = 'smem constant byte address 0x4 - core index']
  #allocation1 [shape = 'u32[144,128]{1,0:T(1,128)}', space=vmem, size = 0x12000, scoped, tag = 'internal scratch']
  #allocation2 [shape = 'f32[2,128]{1,0:T(2,128)}', space=vmem, size = 0x400, scoped, tag = 'scratch operand']
  #allocation3 [shape = 'f32[2,128]{1,0:T(2,128)}', space=vmem, size = 0x400, scoped, tag = 'scratch operand']
  #allocation4 [shape = 'f32[2,128]{1,0:T(2,128)}', space=vmem, size = 0x400, scoped, tag = 'scratch operand']
  #allocation5 [shape = 'f32[2,128]{1,0:T(2,128)}', space=vmem, size = 0x400, scoped, tag = 'scratch operand']
  %s0 = inlined_call_operand.vmem [shape: bf16[8,2,512], index: 0, kind: input, shape index: {}]
  %s1 = inlined_call_operand.vmem [shape: bf16[8,2,512], index: 1, kind: input, shape index: {}]
  %s2 = inlined_call_operand.vmem [shape: bf16[128,512], index: 2, kind: input, shape index: {}]
  %s3 = inlined_call_operand.vmem [shape: bf16[128,512], index: 3, kind: input, shape index: {}]
  %s4 = inlined_call_operand.vmem [shape: bf16[8,2,128], index: 4, kind: output, shape index: {0}]
  %s5 = inlined_call_operand.vmem [shape: bf16[8,2,128], index: 5, kind: output, shape index: {1}]
  %6 = xla_tuple %s4, %s5
  %s7 = sld [smem:[#allocation0]]
  $region61: #{basic_lstm_forward.8} parent=0
    _
  %s9 = ssub.s32 1, %s7
  %s10 = scalar_select 0, %s9, %s7
  loop: start=0, step=1, limit=4
  $region2: #{basic_lstm_forward.8} parent=0 // loop_pre_header
    _
  $region3: #{basic_lstm_forward.8} parent=0 // loop_header
    %s12 = sphi 0, %s16
    %p13 = scmp.ge.s32.totalorder %s12, 4
    %s22 = sphi 0, %s24
    %s25 = sphi 0, %s22
    %s26 = sphi 0, %s25
    %s42 = sphi 0, %s26
    %s50 = sphi 0, %s52
    %s53 = sphi 0, %s50
    %s54 = sphi 0, %s53
    %s70 = sphi 0, %s54
    %s74 = sphi 0, %s74
    %s76 = sphi 0, %s74
    %s77 = sphi 0, %s76
    %s91 = sphi 0, %s77
    %s95 = sphi 0, %s95
    %s97 = sphi 0, %s95
    %s98 = sphi 0, %s97
    %s112 = sphi 0, %s98
    %s118 = sphi 0, %s120
    %s121 = sphi 0, %s118
    %s122 = sphi 0, %s121
    %s138 = sphi 0, %s122
    %s146 = sphi 0, %s148
    %s149 = sphi 0, %s146
    %s150 = sphi 0, %s149
    %s166 = sphi 0, %s150
  $region4: #{basic_lstm_forward.8} parent=0 // loop_header_branch
    %15 = sbr.rel (%p13) target = $region8
  $region5: #{basic_lstm_forward.8} parent=0 // loop_body
    %s17 = ssub.s32 %s12, 1
    %s18 = ssub.s32 %s12, 2
    %s19 = sadd.s32 %s12, 1
    %s20 = ssub.s32 %s12, %s19
    %p21 = scmp.eq.s32.totalorder %s20, 0
    %s23 = sadd.s32 %s22, 1
    %s24 = scalar_select %p21, %s22, %s23
    %p27 = pneg %p21
    %p28 = scmp.eq.s32.totalorder %s12, 1
    %p29 = por %p27, %p28
    %p30 = scmp.ne.s32.totalorder %s22, %s25
    %p31 = scmp.eq.s32.totalorder %s12, 0
    %p32 = por %p30, %p31
    %p33 = scmp.ne.s32.totalorder %s22, %s25
    %p34 = scmp.eq.s32.totalorder %s17, 1
    %p35 = por %p33, %p34
    %p36 = scmp.ne.s32.totalorder %s25, %s26
    %p37 = scmp.eq.s32.totalorder %s17, 0
    %p38 = por %p36, %p37
    %p39 = scmp.ne.s32.totalorder %s25, %s26
    %p40 = scmp.eq.s32.totalorder %s18, 1
    %p41 = por %p39, %p40
    %p43 = scmp.ne.s32.totalorder %s26, %s42
    %p44 = scmp.eq.s32.totalorder %s18, 0
    %p45 = por %p43, %p44
    %s46 = ssub.s32 1, %s12
    %s47 = ssub.s32 1, %s19
    %s48 = ssub.s32 %s46, %s47
    %p49 = scmp.eq.s32.totalorder %s48, 0
    %s51 = sadd.s32 %s50, 1
    %s52 = scalar_select %p49, %s50, %s51
    %p55 = pneg %p49
    %p56 = scmp.eq.s32.totalorder %s12, 1
    %p57 = por %p55, %p56
    %p58 = scmp.ne.s32.totalorder %s50, %s53
    %p59 = scmp.eq.s32.totalorder %s12, 0
    %p60 = por %p58, %p59
    %p61 = scmp.ne.s32.totalorder %s50, %s53
    %p62 = scmp.eq.s32.totalorder %s17, 1
    %p63 = por %p61, %p62
    %p64 = scmp.ne.s32.totalorder %s53, %s54
    %p65 = scmp.eq.s32.totalorder %s17, 0
    %p66 = por %p64, %p65
    %p67 = scmp.ne.s32.totalorder %s53, %s54
    %p68 = scmp.eq.s32.totalorder %s18, 1
    %p69 = por %p67, %p68
    %p71 = scmp.ne.s32.totalorder %s54, %s70
    %p72 = scmp.eq.s32.totalorder %s18, 0
    %p73 = por %p71, %p72
    %s75 = sadd.s32 %s74, 1
    %p78 = scmp.eq.s32.totalorder %s12, 1
    %p79 = scmp.ne.s32.totalorder %s74, %s76
    %p80 = scmp.eq.s32.totalorder %s12, 0
    %p81 = por %p79, %p80
    %p82 = scmp.ne.s32.totalorder %s74, %s76
    %p83 = scmp.eq.s32.totalorder %s17, 1
    %p84 = por %p82, %p83
    %p85 = scmp.ne.s32.totalorder %s76, %s77
    %p86 = scmp.eq.s32.totalorder %s17, 0
    %p87 = por %p85, %p86
    %p88 = scmp.ne.s32.totalorder %s76, %s77
    %p89 = scmp.eq.s32.totalorder %s18, 1
    %p90 = por %p88, %p89
    %p92 = scmp.ne.s32.totalorder %s77, %s91
    %p93 = scmp.eq.s32.totalorder %s18, 0
    %p94 = por %p92, %p93
    %s96 = sadd.s32 %s95, 1
    %p99 = scmp.eq.s32.totalorder %s12, 1
    %p100 = scmp.ne.s32.totalorder %s95, %s97
    %p101 = scmp.eq.s32.totalorder %s12, 0
    %p102 = por %p100, %p101
    %p103 = scmp.ne.s32.totalorder %s95, %s97
    %p104 = scmp.eq.s32.totalorder %s17, 1
    %p105 = por %p103, %p104
    %p106 = scmp.ne.s32.totalorder %s97, %s98
    %p107 = scmp.eq.s32.totalorder %s17, 0
    %p108 = por %p106, %p107
    %p109 = scmp.ne.s32.totalorder %s97, %s98
    %p110 = scmp.eq.s32.totalorder %s18, 1
    %p111 = por %p109, %p110
    %p113 = scmp.ne.s32.totalorder %s98, %s112
    %p114 = scmp.eq.s32.totalorder %s18, 0
    %p115 = por %p113, %p114
    %s116 = ssub.s32 %s12, %s19
    %p117 = scmp.eq.s32.totalorder %s116, 0
    %s119 = sadd.s32 %s118, 1
    %s120 = scalar_select %p117, %s118, %s119
    %p123 = pneg %p117
    %p124 = scmp.eq.s32.totalorder %s12, 1
    %p125 = por %p123, %p124
    %p126 = scmp.ne.s32.totalorder %s118, %s121
    %p127 = scmp.eq.s32.totalorder %s12, 0
    %p128 = por %p126, %p127
    %p129 = scmp.ne.s32.totalorder %s118, %s121
    %p130 = scmp.eq.s32.totalorder %s17, 1
    %p131 = por %p129, %p130
    %p132 = scmp.ne.s32.totalorder %s121, %s122
    %p133 = scmp.eq.s32.totalorder %s17, 0
    %p134 = por %p132, %p133
    %p135 = scmp.ne.s32.totalorder %s121, %s122
    %p136 = scmp.eq.s32.totalorder %s18, 1
    %p137 = por %p135, %p136
    %p139 = scmp.ne.s32.totalorder %s122, %s138
    %p140 = scmp.eq.s32.totalorder %s18, 0
    %p141 = por %p139, %p140
    %s142 = ssub.s32 1, %s12
    %s143 = ssub.s32 1, %s19
    %s144 = ssub.s32 %s142, %s143
    %p145 = scmp.eq.s32.totalorder %s144, 0
    %s147 = sadd.s32 %s146, 1
    %s148 = scalar_select %p145, %s146, %s147
    %p151 = pneg %p145
    %p152 = scmp.eq.s32.totalorder %s12, 1
    %p153 = por %p151, %p152
    %p154 = scmp.ne.s32.totalorder %s146, %s149
    %p155 = scmp.eq.s32.totalorder %s12, 0
    %p156 = por %p154, %p155
    %p157 = scmp.ne.s32.totalorder %s146, %s149
    %p158 = scmp.eq.s32.totalorder %s17, 1
    %p159 = por %p157, %p158
    %p160 = scmp.ne.s32.totalorder %s149, %s150
    %p161 = scmp.eq.s32.totalorder %s17, 0
    %p162 = por %p160, %p161
    %p163 = scmp.ne.s32.totalorder %s149, %s150
    %p164 = scmp.eq.s32.totalorder %s18, 1
    %p165 = por %p163, %p164
    %p167 = scmp.ne.s32.totalorder %s150, %s166
    %p168 = scmp.eq.s32.totalorder %s18, 0
    %p169 = por %p167, %p168
    %p170 = scmp.le.s32.totalorder 1, %s12
    %p171 = scmp.lt.s32.totalorder %s12, 3
    %p172 = pnand %p170, %p171
    %p173 = pneg %p172
    // Predicated region
    $region9: #{basic_lstm_forward.8} parent=5 // pred_check
      _
    $region10: #{basic_lstm_forward.8} parent=5 // pred_check_branch
      %175 = sbr.rel (%p172) target = $region12
    $region11: #{basic_lstm_forward.8} parent=5 // pred_region
      %s176 = ssub.s32 %s12, 1
      // Predicated region
      $region13: #{basic_lstm_forward.8} parent=11 // pred_check
        %p177 = pneg %p87
      $region14: #{basic_lstm_forward.8} parent=11 // pred_check_branch
        %179 = sbr.rel (%p177) target = $region16
      $region15: #{basic_lstm_forward.8} parent=11 // pred_region
        _
      $region16: #{basic_lstm_forward.8} parent=11 // pred_fallthru
        _
      // Predicated region
      $region17: #{basic_lstm_forward.8} parent=11 // pred_check
        %p180 = pneg %p108
      $region18: #{basic_lstm_forward.8} parent=11 // pred_check_branch
        %182 = sbr.rel (%p180) target = $region20
      $region19: #{basic_lstm_forward.8} parent=11 // pred_region
        _
      $region20: #{basic_lstm_forward.8} parent=11 // pred_fallthru
        _
    $region12: #{basic_lstm_forward.8} parent=5 // pred_fallthru
      _
    %p183 = scmp.lt.s32.totalorder %s12, 2
    // Predicated region
    $region21: #{basic_lstm_forward.8} parent=5 // pred_check
      %p184 = pneg %p183
    $region22: #{basic_lstm_forward.8} parent=5 // pred_check_branch
      %186 = sbr.rel (%p184) target = $region24
    $region23: #{basic_lstm_forward.8} parent=5 // pred_region
      // Predicated region
      $region25: #{basic_lstm_forward.8} parent=23 // pred_check
        %p187 = pneg %p32
      $region26: #{basic_lstm_forward.8} parent=23 // pred_check_branch
        %189 = sbr.rel (%p187) target = $region28
      $region27: #{basic_lstm_forward.8} parent=23 // pred_region
        %s190 = smul.u32 4, %s12
        %p191 = scmp.lt.s32.totalorder %s190, 7
        %s192 = scalar_select %p191, %s190, 7
        %s193 = smul.addr %s192, 4
        %s194 = scalar_lea.vmem %s0, %s193
        %s195 = smul.u32 4, %s12
      $region28: #{basic_lstm_forward.8} parent=23 // pred_fallthru
        _
      // Predicated region
      $region29: #{basic_lstm_forward.8} parent=23 // pred_check
        %p196 = pneg %p60
      $region30: #{basic_lstm_forward.8} parent=23 // pred_check_branch
        %198 = sbr.rel (%p196) target = $region32
      $region31: #{basic_lstm_forward.8} parent=23 // pred_region
        %s199 = ssub.s32 1, %s12
        %s200 = smul.u32 4, %s199
        %p201 = scmp.lt.s32.totalorder %s200, 7
        %s202 = scalar_select %p201, %s200, 7
        %s203 = smul.addr %s202, 4
        %s204 = scalar_lea.vmem %s1, %s203
        %s205 = ssub.s32 1, %s12
        %s206 = smul.u32 4, %s205
      $region32: #{basic_lstm_forward.8} parent=23 // pred_fallthru
        _
    $region24: #{basic_lstm_forward.8} parent=5 // pred_fallthru
      _
    %p207 = scmp.le.s32.totalorder 1, %s12
    %p208 = scmp.lt.s32.totalorder %s12, 3
    %p209 = pnand %p207, %p208
    %p210 = pneg %p209
    // Predicated region
    $region33: #{basic_lstm_forward.8} parent=5 // pred_check
      _
    $region34: #{basic_lstm_forward.8} parent=5 // pred_check_branch
      %212 = sbr.rel (%p209) target = $region36
    $region35: #{basic_lstm_forward.8} parent=5 // pred_region
      %s213 = ssub.s32 %s12, 1
      %s214 = smul.u32 4, %s17
      %p215 = scmp.lt.s32.totalorder %s214, 7
      %s216 = scalar_select %p215, %s214, 7
      %s217 = smul.addr %s216, 4
      %s218 = scalar_lea.vmem %s0, %s217
      %p219 = pneg %p38
      %p220 = pneg %p35
      %s221 = ssub.s32 1, %s17
      %s222 = smul.u32 4, %s221
      %p223 = scmp.lt.s32.totalorder %s222, 7
      %s224 = scalar_select %p223, %s222, 7
      %s225 = smul.addr %s224, 4
      %s226 = scalar_lea.vmem %s1, %s225
      %p227 = pneg %p66
      %p228 = pneg %p63
      %p229 = pneg %p87
      %p230 = pneg %p84
      %p231 = pneg %p108
      %p232 = pneg %p105
      %p233 = pneg %p134
      %p234 = pneg %p131
      %s235 = smul.u32 4, %s17
      %p236 = scmp.lt.s32.totalorder %s235, 7
      %s237 = scalar_select %p236, %s235, 7
      %s238 = scalar_lea.vmem %s4, %s237
      %p239 = pneg %p162
      %p240 = pneg %p159
      %s241 = ssub.s32 1, %s17
      %s242 = smul.u32 4, %s241
      %p243 = scmp.lt.s32.totalorder %s242, 7
      %s244 = scalar_select %p243, %s242, 7
      %s245 = scalar_lea.vmem %s5, %s244
      %s246 = smul.u32 4, %s17
      %p247 = scmp.lt.s32.totalorder %s246, 7
      %s248 = scalar_select %p247, %s246, 7
      %s249 = smul.addr %s248, 4
      %s250 = scalar_lea.vmem %s0, %s249
      %s251 = smul.u32 4, %s17
      %s252 = ssub.s32 1, %s17
      %s253 = smul.u32 4, %s252
      %p254 = scmp.lt.s32.totalorder %s253, 7
      %s255 = scalar_select %p254, %s253, 7
      %s256 = smul.addr %s255, 4
      %s257 = scalar_lea.vmem %s1, %s256
      %s258 = ssub.s32 1, %s17
      %s259 = smul.u32 4, %s258
      %s260 = smul.u32 4, %s17
      %p261 = scmp.lt.s32.totalorder %s260, 7
      %s262 = scalar_select %p261, %s260, 7
      %s263 = scalar_lea.vmem %s4, %s262
      %s264 = smul.u32 4, %s17
      %s265 = ssub.s32 1, %s17
      %s266 = smul.u32 4, %s265
      %p267 = scmp.lt.s32.totalorder %s266, 7
      %s268 = scalar_select %p267, %s266, 7
      %s269 = scalar_lea.vmem %s5, %s268
      %s270 = ssub.s32 1, %s17
      %s271 = smul.u32 4, %s270
      %p273 = scmp.eq.s32.totalorder %s17, 0
      // Predicated region
      $region37: #{basic_lstm_forward.8} parent=35 // pred_check
        %p274 = pneg %p273
      $region38: #{basic_lstm_forward.8} parent=35 // pred_check_branch
        %276 = sbr.rel (%p274) target = $region40
      $region39: #{basic_lstm_forward.8} parent=35 // pred_region
        %277 = vst [vmem:[#allocation2] sm:$0x3] 0.0
        %278 = vst [vmem:[#allocation3] sm:$0x3] 0.0
        %279 = vst [vmem:[#allocation4] sm:$0x3] 0.0
        %280 = vst [vmem:[#allocation5] sm:$0x3] 0.0
      $region40: #{basic_lstm_forward.8} parent=35 // pred_fallthru
        _
      %v281 = vld [vmem:[#allocation2] sm:$0x3]
      %v282 = vld [vmem:[#allocation3] sm:$0x3]
      %v283 = vld [vmem:[#allocation4] sm:$0x3]
      %v284 = vld [vmem:[#allocation5] sm:$0x3]
      %v285 = vpack.c.bf16 %v281, %v281
      %v286 = vld [vmem:[%s2] sm:$0xff]
      %v287 = vld [vmem:[%s2 + $0x8] sm:$0xff]
      %v288 = vld [vmem:[%s2 + $0x10] sm:$0xff]
      %v289 = vld [vmem:[%s2 + $0x18] sm:$0xff]
      %v290 = vld [vmem:[%s2 + $0x20] sm:$0xff]
      %v291 = vld [vmem:[%s2 + $0x28] sm:$0xff]
      %v292 = vld [vmem:[%s2 + $0x30] sm:$0xff]
      %v293 = vld [vmem:[%s2 + $0x38] sm:$0xff]
      %v294 = vld [vmem:[%s2 + $0x40] sm:$0xff]
      %v295 = vld [vmem:[%s2 + $0x48] sm:$0xff]
      %v296 = vld [vmem:[%s2 + $0x50] sm:$0xff]
      %v297 = vld [vmem:[%s2 + $0x58] sm:$0xff]
      %v298 = vld [vmem:[%s2 + $0x60] sm:$0xff]
      %v299 = vld [vmem:[%s2 + $0x68] sm:$0xff]
      %v300 = vld [vmem:[%s2 + $0x70] sm:$0xff]
      %v301 = vld [vmem:[%s2 + $0x78] sm:$0xff]
      %v302 = vld [vmem:[%s2 + $0x80] sm:$0xff]
      %v303 = vld [vmem:[%s2 + $0x88] sm:$0xff]
      %v304 = vld [vmem:[%s2 + $0x90] sm:$0xff]
      %v305 = vld [vmem:[%s2 + $0x98] sm:$0xff]
      %v306 = vld [vmem:[%s2 + $0xa0] sm:$0xff]
      %v307 = vld [vmem:[%s2 + $0xa8] sm:$0xff]
      %v308 = vld [vmem:[%s2 + $0xb0] sm:$0xff]
      %v309 = vld [vmem:[%s2 + $0xb8] sm:$0xff]
      %v310 = vld [vmem:[%s2 + $0xc0] sm:$0xff]
      %v311 = vld [vmem:[%s2 + $0xc8] sm:$0xff]
      %v312 = vld [vmem:[%s2 + $0xd0] sm:$0xff]
      %v313 = vld [vmem:[%s2 + $0xd8] sm:$0xff]
      %v314 = vld [vmem:[%s2 + $0xe0] sm:$0xff]
      %v315 = vld [vmem:[%s2 + $0xe8] sm:$0xff]
      %v316 = vld [vmem:[%s2 + $0xf0] sm:$0xff]
      %v317 = vld [vmem:[%s2 + $0xf8] sm:$0xff]
      %v318 = vld [vmem:[%s250] sm:$0xf]
      %v319 = vunpack.c.l.bf16 %v318
      %v352 = vunpack.c.l.b16 %v286
      %v353 = vunpack.c.h.b16 %v286
      %v354 = vunpack.c.l.b16 %v287
      %v355 = vunpack.c.h.b16 %v287
      %v356 = vunpack.c.l.b16 %v288
      %v357 = vunpack.c.h.b16 %v288
      %v358 = vunpack.c.l.b16 %v289
      %v359 = vunpack.c.h.b16 %v289
      %v360 = vunpack.c.l.b16 %v290
      %v361 = vunpack.c.h.b16 %v290
      %v362 = vunpack.c.l.b16 %v291
      %v363 = vunpack.c.h.b16 %v291
      %v364 = vunpack.c.l.b16 %v292
      %v365 = vunpack.c.h.b16 %v292
      %v366 = vunpack.c.l.b16 %v293
      %v367 = vunpack.c.h.b16 %v293
      %v368 = vunpack.c.l.b16 %v294
      %v369 = vunpack.c.h.b16 %v294
      %v370 = vunpack.c.l.b16 %v295
      %v371 = vunpack.c.h.b16 %v295
      %v372 = vunpack.c.l.b16 %v296
      %v373 = vunpack.c.h.b16 %v296
      %v374 = vunpack.c.l.b16 %v297
      %v375 = vunpack.c.h.b16 %v297
      %v376 = vunpack.c.l.b16 %v298
      %v377 = vunpack.c.h.b16 %v298
      %v378 = vunpack.c.l.b16 %v299
      %v379 = vunpack.c.h.b16 %v299
      %v380 = vunpack.c.l.b16 %v300
      %v381 = vunpack.c.h.b16 %v300
      %v382 = vunpack.c.l.b16 %v301
      %v383 = vunpack.c.h.b16 %v301
      %v384 = vunpack.c.l.b16 %v302
      %v385 = vunpack.c.h.b16 %v302
      %v386 = vunpack.c.l.b16 %v303
      %v387 = vunpack.c.h.b16 %v303
      %v388 = vunpack.c.l.b16 %v304
      %v389 = vunpack.c.h.b16 %v304
      %v390 = vunpack.c.l.b16 %v305
      %v391 = vunpack.c.h.b16 %v305
      %v392 = vunpack.c.l.b16 %v306
      %v393 = vunpack.c.h.b16 %v306
      %v394 = vunpack.c.l.b16 %v307
      %v395 = vunpack.c.h.b16 %v307
      %v396 = vunpack.c.l.b16 %v308
      %v397 = vunpack.c.h.b16 %v308
      %v398 = vunpack.c.l.b16 %v309
      %v399 = vunpack.c.h.b16 %v309
      %v400 = vunpack.c.l.b16 %v310
      %v401 = vunpack.c.h.b16 %v310
      %v402 = vunpack.c.l.b16 %v311
      %v403 = vunpack.c.h.b16 %v311
      %v404 = vunpack.c.l.b16 %v312
      %v405 = vunpack.c.h.b16 %v312
      %v406 = vunpack.c.l.b16 %v313
      %v407 = vunpack.c.h.b16 %v313
      %v408 = vunpack.c.l.b16 %v314
      %v409 = vunpack.c.h.b16 %v314
      %v410 = vunpack.c.l.b16 %v315
      %v411 = vunpack.c.h.b16 %v315
      %v412 = vunpack.c.l.b16 %v316
      %v413 = vunpack.c.h.b16 %v316
      %v414 = vunpack.c.l.b16 %v317
      %v415 = vunpack.c.h.b16 %v317
      %v416 = vpack.c.b16 %v356, %v352
      %v417 = vpack.c.b16 %v357, %v353
      %v418 = vpack.c.b16 %v358, %v354
      %v419 = vpack.c.b16 %v359, %v355
      %v420 = vpack.c.b16 %v364, %v360
      %v421 = vpack.c.b16 %v365, %v361
      %v422 = vpack.c.b16 %v366, %v362
      %v423 = vpack.c.b16 %v367, %v363
      %v424 = vpack.c.b16 %v372, %v368
      %v425 = vpack.c.b16 %v373, %v369
      %v426 = vpack.c.b16 %v374, %v370
      %v427 = vpack.c.b16 %v375, %v371
      %v428 = vpack.c.b16 %v380, %v376
      %v429 = vpack.c.b16 %v381, %v377
      %v430 = vpack.c.b16 %v382, %v378
      %v431 = vpack.c.b16 %v383, %v379
      %v432 = vpack.c.b16 %v388, %v384
      %v433 = vpack.c.b16 %v389, %v385
      %v434 = vpack.c.b16 %v390, %v386
      %v435 = vpack.c.b16 %v391, %v387
      %v436 = vpack.c.b16 %v396, %v392
      %v437 = vpack.c.b16 %v397, %v393
      %v438 = vpack.c.b16 %v398, %v394
      %v439 = vpack.c.b16 %v399, %v395
      %v440 = vpack.c.b16 %v404, %v400
      %v441 = vpack.c.b16 %v405, %v401
      %v442 = vpack.c.b16 %v406, %v402
      %v443 = vpack.c.b16 %v407, %v403
      %v444 = vpack.c.b16 %v412, %v408
      %v445 = vpack.c.b16 %v413, %v409
      %v446 = vpack.c.b16 %v414, %v410
      %v447 = vpack.c.b16 %v415, %v411
      %v481 = vcombine.high %v319, %v319
      %v483 = vunpack.c.l.s4 1983009808
      %v484 = vunpack.c.0.s8 %v483
      %v485 = vlaneseq
      %v486 = vshrl.u32 %v485, 7
      %v487 = vsub.s32 %v484, %v486
      %v488 = vrot.slane %v319, %v487
      %v490 = vunpack.c.l.s4 1983009808
      %v491 = vunpack.c.0.s8 %v490
      %v492 = vlaneseq
      %v493 = vshrl.u32 %v492, 7
      %v494 = vsub.s32 %v491, %v493
      %v495 = vrot.slane %v481, %v494
      %v496 = vcombine.high %v488, %v488
      %v497 = vcombine.high %v495, %v495
      %502 = vmatprep.subr.bf16.mxu0 %v417
      %503 = vmatpush1.bf16.msra.mxu0 %v416
      %504 = vmatprep.subr.bf16.mxu0 %v421
      %505 = vmatpush1.bf16.msra.mxu0 %v420
      %506 = vmatprep.subr.bf16.mxu0 %v425
      %507 = vmatpush1.bf16.msra.mxu0 %v424
      %508 = vmatprep.subr.bf16.mxu0 %v429
      %509 = vmatpush1.bf16.msra.mxu0 %v428
      %510 = vmatprep.subr.bf16.mxu0 %v433
      %511 = vmatpush1.bf16.msra.mxu0 %v432
      %512 = vmatprep.subr.bf16.mxu0 %v437
      %513 = vmatpush1.bf16.msra.mxu0 %v436
      %514 = vmatprep.subr.bf16.mxu0 %v441
      %515 = vmatpush1.bf16.msra.mxu0 %v440
      %516 = vmatprep.subr.bf16.mxu0 %v445
      %517 = vmatpush1.bf16.msra.mxu0 %v444
      %518 = vmatprep.subr.bf16.mxu0 0
      %519 = vmatpush1.bf16.msra.mxu0 0
      %520 = vmatprep.subr.bf16.mxu0 0
      %521 = vmatpush1.bf16.msra.mxu0 0
      %522 = vmatprep.subr.bf16.mxu0 0
      %523 = vmatpush1.bf16.msra.mxu0 0
      %524 = vmatprep.subr.bf16.mxu0 0
      %525 = vmatpush1.bf16.msra.mxu0 0
      %526 = vmatprep.subr.bf16.mxu0 0
      %527 = vmatpush1.bf16.msra.mxu0 0
      %528 = vmatprep.subr.bf16.mxu0 0
      %529 = vmatpush1.bf16.msra.mxu0 0
      %530 = vmatprep.subr.bf16.mxu0 0
      %531 = vmatpush1.bf16.msra.mxu0 0
      %532 = vmatprep.subr.bf16.mxu0 0
      %533 = vmatpush1.bf16.msra.mxu0 0
      %534 = vmatprep.mubr.bf16.mxu0 0
      %535 = vmatmul.mubr.bf16.gmra.mrb[0].mxu0 %v285
      %v536 = vpop.f32.mrb[0].mxu0
      %v537 = vadd.f32 %v488, %v536
      %v538 = vpop.f32.mrb[0].mxu0
      %v539 = vadd.f32 %v496, %v538
      %v540 = vpop.f32.mrb[0].mxu0
      %v541 = vpop.f32.mrb[0].mxu0
      %542 = vdwg.mxu0
      %543 = vmatprep.subr.bf16.mxu0 %v419
      %544 = vmatpush1.bf16.msra.mxu0 %v418
      %545 = vmatprep.subr.bf16.mxu0 %v423
      %546 = vmatpush1.bf16.msra.mxu0 %v422
      %547 = vmatprep.subr.bf16.mxu0 %v427
      %548 = vmatpush1.bf16.msra.mxu0 %v426
      %549 = vmatprep.subr.bf16.mxu0 %v431
      %550 = vmatpush1.bf16.msra.mxu0 %v430
      %551 = vmatprep.subr.bf16.mxu0 %v435
      %552 = vmatpush1.bf16.msra.mxu0 %v434
      %553 = vmatprep.subr.bf16.mxu0 %v439
      %554 = vmatpush1.bf16.msra.mxu0 %v438
      %555 = vmatprep.subr.bf16.mxu0 %v443
      %556 = vmatpush1.bf16.msra.mxu0 %v442
      %557 = vmatprep.subr.bf16.mxu0 %v447
      %558 = vmatpush1.bf16.msra.mxu0 %v446
      %559 = vmatprep.subr.bf16.mxu0 0
      %560 = vmatpush1.bf16.msra.mxu0 0
      %561 = vmatprep.subr.bf16.mxu0 0
      %562 = vmatpush1.bf16.msra.mxu0 0
      %563 = vmatprep.subr.bf16.mxu0 0
      %564 = vmatpush1.bf16.msra.mxu0 0
      %565 = vmatprep.subr.bf16.mxu0 0
      %566 = vmatpush1.bf16.msra.mxu0 0
      %567 = vmatprep.subr.bf16.mxu0 0
      %568 = vmatpush1.bf16.msra.mxu0 0
      %569 = vmatprep.subr.bf16.mxu0 0
      %570 = vmatpush1.bf16.msra.mxu0 0
      %571 = vmatprep.subr.bf16.mxu0 0
      %572 = vmatpush1.bf16.msra.mxu0 0
      %573 = vmatprep.subr.bf16.mxu0 0
      %574 = vmatpush1.bf16.msra.mxu0 0
      %575 = vmatprep.mubr.bf16.mxu0 0
      %576 = vmatmul.mubr.bf16.gmra.mrb[0].mxu0 %v285
      %v577 = vpop.f32.mrb[0].mxu0
      %v578 = vadd.f32 %v495, %v577
      %v579 = vpop.f32.mrb[0].mxu0
      %v580 = vadd.f32 %v497, %v579
      %v581 = vpop.f32.mrb[0].mxu0
      %v582 = vpop.f32.mrb[0].mxu0
      %583 = vdwg.mxu0
      %v584 = vpack.c.bf16 %v283, %v283
      %v585 = vld [vmem:[%s3] sm:$0xff]
      %v586 = vld [vmem:[%s3 + $0x8] sm:$0xff]
      %v587 = vld [vmem:[%s3 + $0x10] sm:$0xff]
      %v588 = vld [vmem:[%s3 + $0x18] sm:$0xff]
      %v589 = vld [vmem:[%s3 + $0x20] sm:$0xff]
      %v590 = vld [vmem:[%s3 + $0x28] sm:$0xff]
      %v591 = vld [vmem:[%s3 + $0x30] sm:$0xff]
      %v592 = vld [vmem:[%s3 + $0x38] sm:$0xff]
      %v593 = vld [vmem:[%s3 + $0x40] sm:$0xff]
      %v594 = vld [vmem:[%s3 + $0x48] sm:$0xff]
      %v595 = vld [vmem:[%s3 + $0x50] sm:$0xff]
      %v596 = vld [vmem:[%s3 + $0x58] sm:$0xff]
      %v597 = vld [vmem:[%s3 + $0x60] sm:$0xff]
      %v598 = vld [vmem:[%s3 + $0x68] sm:$0xff]
      %v599 = vld [vmem:[%s3 + $0x70] sm:$0xff]
      %v600 = vld [vmem:[%s3 + $0x78] sm:$0xff]
      %v601 = vld [vmem:[%s3 + $0x80] sm:$0xff]
      %v602 = vld [vmem:[%s3 + $0x88] sm:$0xff]
      %v603 = vld [vmem:[%s3 + $0x90] sm:$0xff]
      %v604 = vld [vmem:[%s3 + $0x98] sm:$0xff]
      %v605 = vld [vmem:[%s3 + $0xa0] sm:$0xff]
      %v606 = vld [vmem:[%s3 + $0xa8] sm:$0xff]
      %v607 = vld [vmem:[%s3 + $0xb0] sm:$0xff]
      %v608 = vld [vmem:[%s3 + $0xb8] sm:$0xff]
      %v609 = vld [vmem:[%s3 + $0xc0] sm:$0xff]
      %v610 = vld [vmem:[%s3 + $0xc8] sm:$0xff]
      %v611 = vld [vmem:[%s3 + $0xd0] sm:$0xff]
      %v612 = vld [vmem:[%s3 + $0xd8] sm:$0xff]
      %v613 = vld [vmem:[%s3 + $0xe0] sm:$0xff]
      %v614 = vld [vmem:[%s3 + $0xe8] sm:$0xff]
      %v615 = vld [vmem:[%s3 + $0xf0] sm:$0xff]
      %v616 = vld [vmem:[%s3 + $0xf8] sm:$0xff]
      %s617 = scalar_lea.vmem %s257, 12
      %v618 = vld [vmem:[%s617] sm:$0xf]
      %v619 = vunpack.c.l.bf16 %v618
      %v652 = vunpack.c.l.b16 %v585
      %v653 = vunpack.c.h.b16 %v585
      %v654 = vunpack.c.l.b16 %v586
      %v655 = vunpack.c.h.b16 %v586
      %v656 = vunpack.c.l.b16 %v587
      %v657 = vunpack.c.h.b16 %v587
      %v658 = vunpack.c.l.b16 %v588
      %v659 = vunpack.c.h.b16 %v588
      %v660 = vunpack.c.l.b16 %v589
      %v661 = vunpack.c.h.b16 %v589
      %v662 = vunpack.c.l.b16 %v590
      %v663 = vunpack.c.h.b16 %v590
      %v664 = vunpack.c.l.b16 %v591
      %v665 = vunpack.c.h.b16 %v591
      %v666 = vunpack.c.l.b16 %v592
      %v667 = vunpack.c.h.b16 %v592
      %v668 = vunpack.c.l.b16 %v593
      %v669 = vunpack.c.h.b16 %v593
      %v670 = vunpack.c.l.b16 %v594
      %v671 = vunpack.c.h.b16 %v594
      %v672 = vunpack.c.l.b16 %v595
      %v673 = vunpack.c.h.b16 %v595
      %v674 = vunpack.c.l.b16 %v596
      %v675 = vunpack.c.h.b16 %v596
      %v676 = vunpack.c.l.b16 %v597
      %v677 = vunpack.c.h.b16 %v597
      %v678 = vunpack.c.l.b16 %v598
      %v679 = vunpack.c.h.b16 %v598
      %v680 = vunpack.c.l.b16 %v599
      %v681 = vunpack.c.h.b16 %v599
      %v682 = vunpack.c.l.b16 %v600
      %v683 = vunpack.c.h.b16 %v600
      %v684 = vunpack.c.l.b16 %v601
      %v685 = vunpack.c.h.b16 %v601
      %v686 = vunpack.c.l.b16 %v602
      %v687 = vunpack.c.h.b16 %v602
      %v688 = vunpack.c.l.b16 %v603
      %v689 = vunpack.c.h.b16 %v603
      %v690 = vunpack.c.l.b16 %v604
      %v691 = vunpack.c.h.b16 %v604
      %v692 = vunpack.c.l.b16 %v605
      %v693 = vunpack.c.h.b16 %v605
      %v694 = vunpack.c.l.b16 %v606
      %v695 = vunpack.c.h.b16 %v606
      %v696 = vunpack.c.l.b16 %v607
      %v697 = vunpack.c.h.b16 %v607
      %v698 = vunpack.c.l.b16 %v608
      %v699 = vunpack.c.h.b16 %v608
      %v700 = vunpack.c.l.b16 %v609
      %v701 = vunpack.c.h.b16 %v609
      %v702 = vunpack.c.l.b16 %v610
      %v703 = vunpack.c.h.b16 %v610
      %v704 = vunpack.c.l.b16 %v611
      %v705 = vunpack.c.h.b16 %v611
      %v706 = vunpack.c.l.b16 %v612
      %v707 = vunpack.c.h.b16 %v612
      %v708 = vunpack.c.l.b16 %v613
      %v709 = vunpack.c.h.b16 %v613
      %v710 = vunpack.c.l.b16 %v614
      %v711 = vunpack.c.h.b16 %v614
      %v712 = vunpack.c.l.b16 %v615
      %v713 = vunpack.c.h.b16 %v615
      %v714 = vunpack.c.l.b16 %v616
      %v715 = vunpack.c.h.b16 %v616
      %v716 = vpack.c.b16 %v656, %v652
      %v717 = vpack.c.b16 %v657, %v653
      %v718 = vpack.c.b16 %v658, %v654
      %v719 = vpack.c.b16 %v659, %v655
      %v720 = vpack.c.b16 %v664, %v660
      %v721 = vpack.c.b16 %v665, %v661
      %v722 = vpack.c.b16 %v666, %v662
      %v723 = vpack.c.b16 %v667, %v663
      %v724 = vpack.c.b16 %v672, %v668
      %v725 = vpack.c.b16 %v673, %v669
      %v726 = vpack.c.b16 %v674, %v670
      %v727 = vpack.c.b16 %v675, %v671
      %v728 = vpack.c.b16 %v680, %v676
      %v729 = vpack.c.b16 %v681, %v677
      %v730 = vpack.c.b16 %v682, %v678
      %v731 = vpack.c.b16 %v683, %v679
      %v732 = vpack.c.b16 %v688, %v684
      %v733 = vpack.c.b16 %v689, %v685
      %v734 = vpack.c.b16 %v690, %v686
      %v735 = vpack.c.b16 %v691, %v687
      %v736 = vpack.c.b16 %v696, %v692
      %v737 = vpack.c.b16 %v697, %v693
      %v738 = vpack.c.b16 %v698, %v694
      %v739 = vpack.c.b16 %v699, %v695
      %v740 = vpack.c.b16 %v704, %v700
      %v741 = vpack.c.b16 %v705, %v701
      %v742 = vpack.c.b16 %v706, %v702
      %v743 = vpack.c.b16 %v707, %v703
      %v744 = vpack.c.b16 %v712, %v708
      %v745 = vpack.c.b16 %v713, %v709
      %v746 = vpack.c.b16 %v714, %v710
      %v747 = vpack.c.b16 %v715, %v711
      %v781 = vcombine.high %v619, %v619
      %v783 = vunpack.c.l.s4 1983009808
      %v784 = vunpack.c.0.s8 %v783
      %v785 = vlaneseq
      %v786 = vshrl.u32 %v785, 7
      %v787 = vsub.s32 %v784, %v786
      %v788 = vrot.slane %v619, %v787
      %v790 = vunpack.c.l.s4 1983009808
      %v791 = vunpack.c.0.s8 %v790
      %v792 = vlaneseq
      %v793 = vshrl.u32 %v792, 7
      %v794 = vsub.s32 %v791, %v793
      %v795 = vrot.slane %v781, %v794
      %v796 = vcombine.high %v788, %v788
      %v797 = vcombine.high %v795, %v795
      %802 = vmatprep.subr.bf16.mxu0 %v717
      %803 = vmatpush1.bf16.msra.mxu0 %v716
      %804 = vmatprep.subr.bf16.mxu0 %v721
      %805 = vmatpush1.bf16.msra.mxu0 %v720
      %806 = vmatprep.subr.bf16.mxu0 %v725
      %807 = vmatpush1.bf16.msra.mxu0 %v724
      %808 = vmatprep.subr.bf16.mxu0 %v729
      %809 = vmatpush1.bf16.msra.mxu0 %v728
      %810 = vmatprep.subr.bf16.mxu0 %v733
      %811 = vmatpush1.bf16.msra.mxu0 %v732
      %812 = vmatprep.subr.bf16.mxu0 %v737
      %813 = vmatpush1.bf16.msra.mxu0 %v736
      %814 = vmatprep.subr.bf16.mxu0 %v741
      %815 = vmatpush1.bf16.msra.mxu0 %v740
      %816 = vmatprep.subr.bf16.mxu0 %v745
      %817 = vmatpush1.bf16.msra.mxu0 %v744
      %818 = vmatprep.subr.bf16.mxu0 0
      %819 = vmatpush1.bf16.msra.mxu0 0
      %820 = vmatprep.subr.bf16.mxu0 0
      %821 = vmatpush1.bf16.msra.mxu0 0
      %822 = vmatprep.subr.bf16.mxu0 0
      %823 = vmatpush1.bf16.msra.mxu0 0
      %824 = vmatprep.subr.bf16.mxu0 0
      %825 = vmatpush1.bf16.msra.mxu0 0
      %826 = vmatprep.subr.bf16.mxu0 0
      %827 = vmatpush1.bf16.msra.mxu0 0
      %828 = vmatprep.subr.bf16.mxu0 0
      %829 = vmatpush1.bf16.msra.mxu0 0
      %830 = vmatprep.subr.bf16.mxu0 0
      %831 = vmatpush1.bf16.msra.mxu0 0
      %832 = vmatprep.subr.bf16.mxu0 0
      %833 = vmatpush1.bf16.msra.mxu0 0
      %834 = vmatprep.mubr.bf16.mxu0 0
      %835 = vmatmul.mubr.bf16.gmra.mrb[0].mxu0 %v584
      %v836 = vpop.f32.mrb[0].mxu0
      %v837 = vadd.f32 %v788, %v836
      %v838 = vpop.f32.mrb[0].mxu0
      %v839 = vadd.f32 %v796, %v838
      %v840 = vpop.f32.mrb[0].mxu0
      %v841 = vpop.f32.mrb[0].mxu0
      %842 = vdwg.mxu0
      %843 = vmatprep.subr.bf16.mxu0 %v719
      %844 = vmatpush1.bf16.msra.mxu0 %v718
      %845 = vmatprep.subr.bf16.mxu0 %v723
      %846 = vmatpush1.bf16.msra.mxu0 %v722
      %847 = vmatprep.subr.bf16.mxu0 %v727
      %848 = vmatpush1.bf16.msra.mxu0 %v726
      %849 = vmatprep.subr.bf16.mxu0 %v731
      %850 = vmatpush1.bf16.msra.mxu0 %v730
      %851 = vmatprep.subr.bf16.mxu0 %v735
      %852 = vmatpush1.bf16.msra.mxu0 %v734
      %853 = vmatprep.subr.bf16.mxu0 %v739
      %854 = vmatpush1.bf16.msra.mxu0 %v738
      %855 = vmatprep.subr.bf16.mxu0 %v743
      %856 = vmatpush1.bf16.msra.mxu0 %v742
      %857 = vmatprep.subr.bf16.mxu0 %v747
      %858 = vmatpush1.bf16.msra.mxu0 %v746
      %859 = vmatprep.subr.bf16.mxu0 0
      %860 = vmatpush1.bf16.msra.mxu0 0
      %861 = vmatprep.subr.bf16.mxu0 0
      %862 = vmatpush1.bf16.msra.mxu0 0
      %863 = vmatprep.subr.bf16.mxu0 0
      %864 = vmatpush1.bf16.msra.mxu0 0
      %865 = vmatprep.subr.bf16.mxu0 0
      %866 = vmatpush1.bf16.msra.mxu0 0
      %867 = vmatprep.subr.bf16.mxu0 0
      %868 = vmatpush1.bf16.msra.mxu0 0
      %869 = vmatprep.subr.bf16.mxu0 0
      %870 = vmatpush1.bf16.msra.mxu0 0
      %871 = vmatprep.subr.bf16.mxu0 0
      %872 = vmatpush1.bf16.msra.mxu0 0
      %873 = vmatprep.subr.bf16.mxu0 0
      %874 = vmatpush1.bf16.msra.mxu0 0
      %875 = vmatprep.mubr.bf16.mxu0 0
      %876 = vmatmul.mubr.bf16.gmra.mrb[0].mxu0 %v584
      %v877 = vpop.f32.mrb[0].mxu0
      %v878 = vadd.f32 %v795, %v877
      %v879 = vpop.f32.mrb[0].mxu0
      %v880 = vadd.f32 %v797, %v879
      %v881 = vpop.f32.mrb[0].mxu0
      %v882 = vpop.f32.mrb[0].mxu0
      %883 = vdwg.mxu0
      %v884 = vxor.u32 %v537, 2147483648
      %v885 = vxor.u32 %v539, 2147483648
      %v886 = vxor.u32 %v578, 2147483648
      %v887 = vmul.f32 %v884, 1.442695
      %v888 = vpow.pop %v887
      %v889 = vmul.f32 %v885, 1.442695
      %v890 = vpow.pop %v889
      %v891 = vmul.f32 %v886, 1.442695
      %v892 = vpow.pop %v891
      %v893 = vadd.f32 %v888, 1.0
      %v894 = vadd.f32 %v890, 1.0
      %v895 = vadd.f32 %v892, 1.0
      %v896 = vrcp.pop %v893
      %v897 = vmul.f32 1.0, %v896
      %v898 = vrcp.pop %v894
      %v899 = vmul.f32 1.0, %v898
      %v900 = vrcp.pop %v895
      %v901 = vmul.f32 1.0, %v900
      %v902 = vtanh.pop %v580
      %v903 = vmul.f32 %v899, %v282
      %v904 = vmul.f32 %v897, %v902
      %v905 = vadd.f32 %v903, %v904
      %v906 = vtanh.pop %v905
      %v907 = vmul.f32 %v901, %v906
      %v908 = vxor.u32 %v837, 2147483648
      %v909 = vxor.u32 %v839, 2147483648
      %v910 = vxor.u32 %v878, 2147483648
      %v911 = vmul.f32 %v908, 1.442695
      %v912 = vpow.pop %v911
      %v913 = vmul.f32 %v909, 1.442695
      %v914 = vpow.pop %v913
      %v915 = vmul.f32 %v910, 1.442695
      %v916 = vpow.pop %v915
      %v917 = vadd.f32 %v912, 1.0
      %v918 = vadd.f32 %v914, 1.0
      %v919 = vadd.f32 %v916, 1.0
      %v920 = vrcp.pop %v917
      %v921 = vmul.f32 1.0, %v920
      %v922 = vrcp.pop %v918
      %v923 = vmul.f32 1.0, %v922
      %v924 = vrcp.pop %v919
      %v925 = vmul.f32 1.0, %v924
      %v926 = vtanh.pop %v880
      %v927 = vmul.f32 %v923, %v284
      %v928 = vmul.f32 %v921, %v926
      %v929 = vadd.f32 %v927, %v928
      %v930 = vtanh.pop %v929
      %v931 = vmul.f32 %v925, %v930
      %v932 = vpack.c.bf16 %v907, %v907
      %933 = vst [vmem:[%s263] sm:$0x1] %v932
      %v934 = vpack.c.bf16 %v931, %v931
      %s935 = scalar_lea.vmem %s269, 3
      %936 = vst [vmem:[%s935] sm:$0x1] %v934
      %v937 = vld [vmem:[%s2] sm:$0xff]
      %v938 = vld [vmem:[%s2 + $0x8] sm:$0xff]
      %v939 = vld [vmem:[%s2 + $0x10] sm:$0xff]
      %v940 = vld [vmem:[%s2 + $0x18] sm:$0xff]
      %v941 = vld [vmem:[%s2 + $0x20] sm:$0xff]
      %v942 = vld [vmem:[%s2 + $0x28] sm:$0xff]
      %v943 = vld [vmem:[%s2 + $0x30] sm:$0xff]
      %v944 = vld [vmem:[%s2 + $0x38] sm:$0xff]
      %v945 = vld [vmem:[%s2 + $0x40] sm:$0xff]
      %v946 = vld [vmem:[%s2 + $0x48] sm:$0xff]
      %v947 = vld [vmem:[%s2 + $0x50] sm:$0xff]
      %v948 = vld [vmem:[%s2 + $0x58] sm:$0xff]
      %v949 = vld [vmem:[%s2 + $0x60] sm:$0xff]
      %v950 = vld [vmem:[%s2 + $0x68] sm:$0xff]
      %v951 = vld [vmem:[%s2 + $0x70] sm:$0xff]
      %v952 = vld [vmem:[%s2 + $0x78] sm:$0xff]
      %v953 = vld [vmem:[%s2 + $0x80] sm:$0xff]
      %v954 = vld [vmem:[%s2 + $0x88] sm:$0xff]
      %v955 = vld [vmem:[%s2 + $0x90] sm:$0xff]
      %v956 = vld [vmem:[%s2 + $0x98] sm:$0xff]
      %v957 = vld [vmem:[%s2 + $0xa0] sm:$0xff]
      %v958 = vld [vmem:[%s2 + $0xa8] sm:$0xff]
      %v959 = vld [vmem:[%s2 + $0xb0] sm:$0xff]
      %v960 = vld [vmem:[%s2 + $0xb8] sm:$0xff]
      %v961 = vld [vmem:[%s2 + $0xc0] sm:$0xff]
      %v962 = vld [vmem:[%s2 + $0xc8] sm:$0xff]
      %v963 = vld [vmem:[%s2 + $0xd0] sm:$0xff]
      %v964 = vld [vmem:[%s2 + $0xd8] sm:$0xff]
      %v965 = vld [vmem:[%s2 + $0xe0] sm:$0xff]
      %v966 = vld [vmem:[%s2 + $0xe8] sm:$0xff]
      %v967 = vld [vmem:[%s2 + $0xf0] sm:$0xff]
      %v968 = vld [vmem:[%s2 + $0xf8] sm:$0xff]
      %s969 = scalar_lea.vmem %s250, 4
      %v970 = vld [vmem:[%s969] sm:$0xf]
      %v971 = vunpack.c.l.bf16 %v970
      %v1004 = vunpack.c.l.b16 %v937
      %v1005 = vunpack.c.h.b16 %v937
      %v1006 = vunpack.c.l.b16 %v938
      %v1007 = vunpack.c.h.b16 %v938
      %v1008 = vunpack.c.l.b16 %v939
      %v1009 = vunpack.c.h.b16 %v939
      %v1010 = vunpack.c.l.b16 %v940
      %v1011 = vunpack.c.h.b16 %v940
      %v1012 = vunpack.c.l.b16 %v941
      %v1013 = vunpack.c.h.b16 %v941
      %v1014 = vunpack.c.l.b16 %v942
      %v1015 = vunpack.c.h.b16 %v942
      %v1016 = vunpack.c.l.b16 %v943
      %v1017 = vunpack.c.h.b16 %v943
      %v1018 = vunpack.c.l.b16 %v944
      %v1019 = vunpack.c.h.b16 %v944
      %v1020 = vunpack.c.l.b16 %v945
      %v1021 = vunpack.c.h.b16 %v945
      %v1022 = vunpack.c.l.b16 %v946
      %v1023 = vunpack.c.h.b16 %v946
      %v1024 = vunpack.c.l.b16 %v947
      %v1025 = vunpack.c.h.b16 %v947
      %v1026 = vunpack.c.l.b16 %v948
      %v1027 = vunpack.c.h.b16 %v948
      %v1028 = vunpack.c.l.b16 %v949
      %v1029 = vunpack.c.h.b16 %v949
      %v1030 = vunpack.c.l.b16 %v950
      %v1031 = vunpack.c.h.b16 %v950
      %v1032 = vunpack.c.l.b16 %v951
      %v1033 = vunpack.c.h.b16 %v951
      %v1034 = vunpack.c.l.b16 %v952
      %v1035 = vunpack.c.h.b16 %v952
      %v1036 = vunpack.c.l.b16 %v953
      %v1037 = vunpack.c.h.b16 %v953
      %v1038 = vunpack.c.l.b16 %v954
      %v1039 = vunpack.c.h.b16 %v954
      %v1040 = vunpack.c.l.b16 %v955
      %v1041 = vunpack.c.h.b16 %v955
      %v1042 = vunpack.c.l.b16 %v956
      %v1043 = vunpack.c.h.b16 %v956
      %v1044 = vunpack.c.l.b16 %v957
      %v1045 = vunpack.c.h.b16 %v957
      %v1046 = vunpack.c.l.b16 %v958
      %v1047 = vunpack.c.h.b16 %v958
      %v1048 = vunpack.c.l.b16 %v959
      %v1049 = vunpack.c.h.b16 %v959
      %v1050 = vunpack.c.l.b16 %v960
      %v1051 = vunpack.c.h.b16 %v960
      %v1052 = vunpack.c.l.b16 %v961
      %v1053 = vunpack.c.h.b16 %v961
      %v1054 = vunpack.c.l.b16 %v962
      %v1055 = vunpack.c.h.b16 %v962
      %v1056 = vunpack.c.l.b16 %v963
      %v1057 = vunpack.c.h.b16 %v963
      %v1058 = vunpack.c.l.b16 %v964
      %v1059 = vunpack.c.h.b16 %v964
      %v1060 = vunpack.c.l.b16 %v965
      %v1061 = vunpack.c.h.b16 %v965
      %v1062 = vunpack.c.l.b16 %v966
      %v1063 = vunpack.c.h.b16 %v966
      %v1064 = vunpack.c.l.b16 %v967
      %v1065 = vunpack.c.h.b16 %v967
      %v1066 = vunpack.c.l.b16 %v968
      %v1067 = vunpack.c.h.b16 %v968
      %v1068 = vpack.c.b16 %v1008, %v1004
      %v1069 = vpack.c.b16 %v1009, %v1005
      %v1070 = vpack.c.b16 %v1010, %v1006
      %v1071 = vpack.c.b16 %v1011, %v1007
      %v1072 = vpack.c.b16 %v1016, %v1012
      %v1073 = vpack.c.b16 %v1017, %v1013
      %v1074 = vpack.c.b16 %v1018, %v1014
      %v1075 = vpack.c.b16 %v1019, %v1015
      %v1076 = vpack.c.b16 %v1024, %v1020
      %v1077 = vpack.c.b16 %v1025, %v1021
      %v1078 = vpack.c.b16 %v1026, %v1022
      %v1079 = vpack.c.b16 %v1027, %v1023
      %v1080 = vpack.c.b16 %v1032, %v1028
      %v1081 = vpack.c.b16 %v1033, %v1029
      %v1082 = vpack.c.b16 %v1034, %v1030
      %v1083 = vpack.c.b16 %v1035, %v1031
      %v1084 = vpack.c.b16 %v1040, %v1036
      %v1085 = vpack.c.b16 %v1041, %v1037
      %v1086 = vpack.c.b16 %v1042, %v1038
      %v1087 = vpack.c.b16 %v1043, %v1039
      %v1088 = vpack.c.b16 %v1048, %v1044
      %v1089 = vpack.c.b16 %v1049, %v1045
      %v1090 = vpack.c.b16 %v1050, %v1046
      %v1091 = vpack.c.b16 %v1051, %v1047
      %v1092 = vpack.c.b16 %v1056, %v1052
      %v1093 = vpack.c.b16 %v1057, %v1053
      %v1094 = vpack.c.b16 %v1058, %v1054
      %v1095 = vpack.c.b16 %v1059, %v1055
      %v1096 = vpack.c.b16 %v1064, %v1060
      %v1097 = vpack.c.b16 %v1065, %v1061
      %v1098 = vpack.c.b16 %v1066, %v1062
      %v1099 = vpack.c.b16 %v1067, %v1063
      %v1133 = vcombine.high %v971, %v971
      %v1135 = vunpack.c.l.s4 1983009808
      %v1136 = vunpack.c.0.s8 %v1135
      %v1137 = vlaneseq
      %v1138 = vshrl.u32 %v1137, 7
      %v1139 = vsub.s32 %v1136, %v1138
      %v1140 = vrot.slane %v971, %v1139
      %v1142 = vunpack.c.l.s4 1983009808
      %v1143 = vunpack.c.0.s8 %v1142
      %v1144 = vlaneseq
      %v1145 = vshrl.u32 %v1144, 7
      %v1146 = vsub.s32 %v1143, %v1145
      %v1147 = vrot.slane %v1133, %v1146
      %v1148 = vcombine.high %v1140, %v1140
      %v1149 = vcombine.high %v1147, %v1147
      %1154 = vmatprep.subr.bf16.mxu0 %v1069
      %1155 = vmatpush1.bf16.msra.mxu0 %v1068
      %1156 = vmatprep.subr.bf16.mxu0 %v1073
      %1157 = vmatpush1.bf16.msra.mxu0 %v1072
      %1158 = vmatprep.subr.bf16.mxu0 %v1077
      %1159 = vmatpush1.bf16.msra.mxu0 %v1076
      %1160 = vmatprep.subr.bf16.mxu0 %v1081
      %1161 = vmatpush1.bf16.msra.mxu0 %v1080
      %1162 = vmatprep.subr.bf16.mxu0 %v1085
      %1163 = vmatpush1.bf16.msra.mxu0 %v1084
      %1164 = vmatprep.subr.bf16.mxu0 %v1089
      %1165 = vmatpush1.bf16.msra.mxu0 %v1088
      %1166 = vmatprep.subr.bf16.mxu0 %v1093
      %1167 = vmatpush1.bf16.msra.mxu0 %v1092
      %1168 = vmatprep.subr.bf16.mxu0 %v1097
      %1169 = vmatpush1.bf16.msra.mxu0 %v1096
      %1170 = vmatprep.subr.bf16.mxu0 0
      %1171 = vmatpush1.bf16.msra.mxu0 0
      %1172 = vmatprep.subr.bf16.mxu0 0
      %1173 = vmatpush1.bf16.msra.mxu0 0
      %1174 = vmatprep.subr.bf16.mxu0 0
      %1175 = vmatpush1.bf16.msra.mxu0 0
      %1176 = vmatprep.subr.bf16.mxu0 0
      %1177 = vmatpush1.bf16.msra.mxu0 0
      %1178 = vmatprep.subr.bf16.mxu0 0
      %1179 = vmatpush1.bf16.msra.mxu0 0
      %1180 = vmatprep.subr.bf16.mxu0 0
      %1181 = vmatpush1.bf16.msra.mxu0 0
      %1182 = vmatprep.subr.bf16.mxu0 0
      %1183 = vmatpush1.bf16.msra.mxu0 0
      %1184 = vmatprep.subr.bf16.mxu0 0
      %1185 = vmatpush1.bf16.msra.mxu0 0
      %1186 = vmatprep.mubr.bf16.mxu0 0
      %1187 = vmatmul.mubr.bf16.gmra.mrb[0].mxu0 %v932
      %v1188 = vpop.f32.mrb[0].mxu0
      %v1189 = vadd.f32 %v1140, %v1188
      %v1190 = vpop.f32.mrb[0].mxu0
      %v1191 = vadd.f32 %v1148, %v1190
      %v1192 = vpop.f32.mrb[0].mxu0
      %v1193 = vpop.f32.mrb[0].mxu0
      %1194 = vdwg.mxu0
      %1195 = vmatprep.subr.bf16.mxu0 %v1071
      %1196 = vmatpush1.bf16.msra.mxu0 %v1070
      %1197 = vmatprep.subr.bf16.mxu0 %v1075
      %1198 = vmatpush1.bf16.msra.mxu0 %v1074
      %1199 = vmatprep.subr.bf16.mxu0 %v1079
      %1200 = vmatpush1.bf16.msra.mxu0 %v1078
      %1201 = vmatprep.subr.bf16.mxu0 %v1083
      %1202 = vmatpush1.bf16.msra.mxu0 %v1082
      %1203 = vmatprep.subr.bf16.mxu0 %v1087
      %1204 = vmatpush1.bf16.msra.mxu0 %v1086
      %1205 = vmatprep.subr.bf16.mxu0 %v1091
      %1206 = vmatpush1.bf16.msra.mxu0 %v1090
      %1207 = vmatprep.subr.bf16.mxu0 %v1095
      %1208 = vmatpush1.bf16.msra.mxu0 %v1094
      %1209 = vmatprep.subr.bf16.mxu0 %v1099
      %1210 = vmatpush1.bf16.msra.mxu0 %v1098
      %1211 = vmatprep.subr.bf16.mxu0 0
      %1212 = vmatpush1.bf16.msra.mxu0 0
      %1213 = vmatprep.subr.bf16.mxu0 0
      %1214 = vmatpush1.bf16.msra.mxu0 0
      %1215 = vmatprep.subr.bf16.mxu0 0
      %1216 = vmatpush1.bf16.msra.mxu0 0
      %1217 = vmatprep.subr.bf16.mxu0 0
      %1218 = vmatpush1.bf16.msra.mxu0 0
      %1219 = vmatprep.subr.bf16.mxu0 0
      %1220 = vmatpush1.bf16.msra.mxu0 0
      %1221 = vmatprep.subr.bf16.mxu0 0
      %1222 = vmatpush1.bf16.msra.mxu0 0
      %1223 = vmatprep.subr.bf16.mxu0 0
      %1224 = vmatpush1.bf16.msra.mxu0 0
      %1225 = vmatprep.subr.bf16.mxu0 0
      %1226 = vmatpush1.bf16.msra.mxu0 0
      %1227 = vmatprep.mubr.bf16.mxu0 0
      %1228 = vmatmul.mubr.bf16.gmra.mrb[0].mxu0 %v932
      %v1229 = vpop.f32.mrb[0].mxu0
      %v1230 = vadd.f32 %v1147, %v1229
      %v1231 = vpop.f32.mrb[0].mxu0
      %v1232 = vadd.f32 %v1149, %v1231
      %v1233 = vpop.f32.mrb[0].mxu0
      %v1234 = vpop.f32.mrb[0].mxu0
      %1235 = vdwg.mxu0
      %v1236 = vld [vmem:[%s3] sm:$0xff]
      %v1237 = vld [vmem:[%s3 + $0x8] sm:$0xff]
      %v1238 = vld [vmem:[%s3 + $0x10] sm:$0xff]
      %v1239 = vld [vmem:[%s3 + $0x18] sm:$0xff]
      %v1240 = vld [vmem:[%s3 + $0x20] sm:$0xff]
      %v1241 = vld [vmem:[%s3 + $0x28] sm:$0xff]
      %v1242 = vld [vmem:[%s3 + $0x30] sm:$0xff]
      %v1243 = vld [vmem:[%s3 + $0x38] sm:$0xff]
      %v1244 = vld [vmem:[%s3 + $0x40] sm:$0xff]
      %v1245 = vld [vmem:[%s3 + $0x48] sm:$0xff]
      %v1246 = vld [vmem:[%s3 + $0x50] sm:$0xff]
      %v1247 = vld [vmem:[%s3 + $0x58] sm:$0xff]
      %v1248 = vld [vmem:[%s3 + $0x60] sm:$0xff]
      %v1249 = vld [vmem:[%s3 + $0x68] sm:$0xff]
      %v1250 = vld [vmem:[%s3 + $0x70] sm:$0xff]
      %v1251 = vld [vmem:[%s3 + $0x78] sm:$0xff]
      %v1252 = vld [vmem:[%s3 + $0x80] sm:$0xff]
      %v1253 = vld [vmem:[%s3 + $0x88] sm:$0xff]
      %v1254 = vld [vmem:[%s3 + $0x90] sm:$0xff]
      %v1255 = vld [vmem:[%s3 + $0x98] sm:$0xff]
      %v1256 = vld [vmem:[%s3 + $0xa0] sm:$0xff]
      %v1257 = vld [vmem:[%s3 + $0xa8] sm:$0xff]
      %v1258 = vld [vmem:[%s3 + $0xb0] sm:$0xff]
      %v1259 = vld [vmem:[%s3 + $0xb8] sm:$0xff]
      %v1260 = vld [vmem:[%s3 + $0xc0] sm:$0xff]
      %v1261 = vld [vmem:[%s3 + $0xc8] sm:$0xff]
      %v1262 = vld [vmem:[%s3 + $0xd0] sm:$0xff]
      %v1263 = vld [vmem:[%s3 + $0xd8] sm:$0xff]
      %v1264 = vld [vmem:[%s3 + $0xe0] sm:$0xff]
      %v1265 = vld [vmem:[%s3 + $0xe8] sm:$0xff]
      %v1266 = vld [vmem:[%s3 + $0xf0] sm:$0xff]
      %v1267 = vld [vmem:[%s3 + $0xf8] sm:$0xff]
      %s1268 = scalar_lea.vmem %s257, 8
      %v1269 = vld [vmem:[%s1268] sm:$0xf]
      %v1270 = vunpack.c.l.bf16 %v1269
      %v1303 = vunpack.c.l.b16 %v1236
      %v1304 = vunpack.c.h.b16 %v1236
      %v1305 = vunpack.c.l.b16 %v1237
      %v1306 = vunpack.c.h.b16 %v1237
      %v1307 = vunpack.c.l.b16 %v1238
      %v1308 = vunpack.c.h.b16 %v1238
      %v1309 = vunpack.c.l.b16 %v1239
      %v1310 = vunpack.c.h.b16 %v1239
      %v1311 = vunpack.c.l.b16 %v1240
      %v1312 = vunpack.c.h.b16 %v1240
      %v1313 = vunpack.c.l.b16 %v1241
      %v1314 = vunpack.c.h.b16 %v1241
      %v1315 = vunpack.c.l.b16 %v1242
      %v1316 = vunpack.c.h.b16 %v1242
      %v1317 = vunpack.c.l.b16 %v1243
      %v1318 = vunpack.c.h.b16 %v1243
      %v1319 = vunpack.c.l.b16 %v1244
      %v1320 = vunpack.c.h.b16 %v1244
      %v1321 = vunpack.c.l.b16 %v1245
      %v1322 = vunpack.c.h.b16 %v1245
      %v1323 = vunpack.c.l.b16 %v1246
      %v1324 = vunpack.c.h.b16 %v1246
      %v1325 = vunpack.c.l.b16 %v1247
      %v1326 = vunpack.c.h.b16 %v1247
      %v1327 = vunpack.c.l.b16 %v1248
      %v1328 = vunpack.c.h.b16 %v1248
      %v1329 = vunpack.c.l.b16 %v1249
      %v1330 = vunpack.c.h.b16 %v1249
      %v1331 = vunpack.c.l.b16 %v1250
      %v1332 = vunpack.c.h.b16 %v1250
      %v1333 = vunpack.c.l.b16 %v1251
      %v1334 = vunpack.c.h.b16 %v1251
      %v1335 = vunpack.c.l.b16 %v1252
      %v1336 = vunpack.c.h.b16 %v1252
      %v1337 = vunpack.c.l.b16 %v1253
      %v1338 = vunpack.c.h.b16 %v1253
      %v1339 = vunpack.c.l.b16 %v1254
      %v1340 = vunpack.c.h.b16 %v1254
      %v1341 = vunpack.c.l.b16 %v1255
      %v1342 = vunpack.c.h.b16 %v1255
      %v1343 = vunpack.c.l.b16 %v1256
      %v1344 = vunpack.c.h.b16 %v1256
      %v1345 = vunpack.c.l.b16 %v1257
      %v1346 = vunpack.c.h.b16 %v1257
      %v1347 = vunpack.c.l.b16 %v1258
      %v1348 = vunpack.c.h.b16 %v1258
      %v1349 = vunpack.c.l.b16 %v1259
      %v1350 = vunpack.c.h.b16 %v1259
      %v1351 = vunpack.c.l.b16 %v1260
      %v1352 = vunpack.c.h.b16 %v1260
      %v1353 = vunpack.c.l.b16 %v1261
      %v1354 = vunpack.c.h.b16 %v1261
      %v1355 = vunpack.c.l.b16 %v1262
      %v1356 = vunpack.c.h.b16 %v1262
      %v1357 = vunpack.c.l.b16 %v1263
      %v1358 = vunpack.c.h.b16 %v1263
      %v1359 = vunpack.c.l.b16 %v1264
      %v1360 = vunpack.c.h.b16 %v1264
      %v1361 = vunpack.c.l.b16 %v1265
      %v1362 = vunpack.c.h.b16 %v1265
      %v1363 = vunpack.c.l.b16 %v1266
      %v1364 = vunpack.c.h.b16 %v1266
      %v1365 = vunpack.c.l.b16 %v1267
      %v1366 = vunpack.c.h.b16 %v1267
      %v1367 = vpack.c.b16 %v1307, %v1303
      %v1368 = vpack.c.b16 %v1308, %v1304
      %v1369 = vpack.c.b16 %v1309, %v1305
      %v1370 = vpack.c.b16 %v1310, %v1306
      %v1371 = vpack.c.b16 %v1315, %v1311
      %v1372 = vpack.c.b16 %v1316, %v1312
      %v1373 = vpack.c.b16 %v1317, %v1313
      %v1374 = vpack.c.b16 %v1318, %v1314
      %v1375 = vpack.c.b16 %v1323, %v1319
      %v1376 = vpack.c.b16 %v1324, %v1320
      %v1377 = vpack.c.b16 %v1325, %v1321
      %v1378 = vpack.c.b16 %v1326, %v1322
      %v1379 = vpack.c.b16 %v1331, %v1327
      %v1380 = vpack.c.b16 %v1332, %v1328
      %v1381 = vpack.c.b16 %v1333, %v1329
      %v1382 = vpack.c.b16 %v1334, %v1330
      %v1383 = vpack.c.b16 %v1339, %v1335
      %v1384 = vpack.c.b16 %v1340, %v1336
      %v1385 = vpack.c.b16 %v1341, %v1337
      %v1386 = vpack.c.b16 %v1342, %v1338
      %v1387 = vpack.c.b16 %v1347, %v1343
      %v1388 = vpack.c.b16 %v1348, %v1344
      %v1389 = vpack.c.b16 %v1349, %v1345
      %v1390 = vpack.c.b16 %v1350, %v1346
      %v1391 = vpack.c.b16 %v1355, %v1351
      %v1392 = vpack.c.b16 %v1356, %v1352
      %v1393 = vpack.c.b16 %v1357, %v1353
      %v1394 = vpack.c.b16 %v1358, %v1354
      %v1395 = vpack.c.b16 %v1363, %v1359
      %v1396 = vpack.c.b16 %v1364, %v1360
      %v1397 = vpack.c.b16 %v1365, %v1361
      %v1398 = vpack.c.b16 %v1366, %v1362
      %v1432 = vcombine.high %v1270, %v1270
      %v1434 = vunpack.c.l.s4 1983009808
      %v1435 = vunpack.c.0.s8 %v1434
      %v1436 = vlaneseq
      %v1437 = vshrl.u32 %v1436, 7
      %v1438 = vsub.s32 %v1435, %v1437
      %v1439 = vrot.slane %v1270, %v1438
      %v1441 = vunpack.c.l.s4 1983009808
      %v1442 = vunpack.c.0.s8 %v1441
      %v1443 = vlaneseq
      %v1444 = vshrl.u32 %v1443, 7
      %v1445 = vsub.s32 %v1442, %v1444
      %v1446 = vrot.slane %v1432, %v1445
      %v1447 = vcombine.high %v1439, %v1439
      %v1448 = vcombine.high %v1446, %v1446
      %1453 = vmatprep.subr.bf16.mxu0 %v1368
      %1454 = vmatpush1.bf16.msra.mxu0 %v1367
      %1455 = vmatprep.subr.bf16.mxu0 %v1372
      %1456 = vmatpush1.bf16.msra.mxu0 %v1371
      %1457 = vmatprep.subr.bf16.mxu0 %v1376
      %1458 = vmatpush1.bf16.msra.mxu0 %v1375
      %1459 = vmatprep.subr.bf16.mxu0 %v1380
      %1460 = vmatpush1.bf16.msra.mxu0 %v1379
      %1461 = vmatprep.subr.bf16.mxu0 %v1384
      %1462 = vmatpush1.bf16.msra.mxu0 %v1383
      %1463 = vmatprep.subr.bf16.mxu0 %v1388
      %1464 = vmatpush1.bf16.msra.mxu0 %v1387
      %1465 = vmatprep.subr.bf16.mxu0 %v1392
      %1466 = vmatpush1.bf16.msra.mxu0 %v1391
      %1467 = vmatprep.subr.bf16.mxu0 %v1396
      %1468 = vmatpush1.bf16.msra.mxu0 %v1395
      %1469 = vmatprep.subr.bf16.mxu0 0
      %1470 = vmatpush1.bf16.msra.mxu0 0
      %1471 = vmatprep.subr.bf16.mxu0 0
      %1472 = vmatpush1.bf16.msra.mxu0 0
      %1473 = vmatprep.subr.bf16.mxu0 0
      %1474 = vmatpush1.bf16.msra.mxu0 0
      %1475 = vmatprep.subr.bf16.mxu0 0
      %1476 = vmatpush1.bf16.msra.mxu0 0
      %1477 = vmatprep.subr.bf16.mxu0 0
      %1478 = vmatpush1.bf16.msra.mxu0 0
      %1479 = vmatprep.subr.bf16.mxu0 0
      %1480 = vmatpush1.bf16.msra.mxu0 0
      %1481 = vmatprep.subr.bf16.mxu0 0
      %1482 = vmatpush1.bf16.msra.mxu0 0
      %1483 = vmatprep.subr.bf16.mxu0 0
      %1484 = vmatpush1.bf16.msra.mxu0 0
      %1485 = vmatprep.mubr.bf16.mxu0 0
      %1486 = vmatmul.mubr.bf16.gmra.mrb[0].mxu0 %v934
      %v1487 = vpop.f32.mrb[0].mxu0
      %v1488 = vadd.f32 %v1439, %v1487
      %v1489 = vpop.f32.mrb[0].mxu0
      %v1490 = vadd.f32 %v1447, %v1489
      %v1491 = vpop.f32.mrb[0].mxu0
      %v1492 = vpop.f32.mrb[0].mxu0
      %1493 = vdwg.mxu0
      %1494 = vmatprep.subr.bf16.mxu0 %v1370
      %1495 = vmatpush1.bf16.msra.mxu0 %v1369
      %1496 = vmatprep.subr.bf16.mxu0 %v1374
      %1497 = vmatpush1.bf16.msra.mxu0 %v1373
      %1498 = vmatprep.subr.bf16.mxu0 %v1378
      %1499 = vmatpush1.bf16.msra.mxu0 %v1377
      %1500 = vmatprep.subr.bf16.mxu0 %v1382
      %1501 = vmatpush1.bf16.msra.mxu0 %v1381
      %1502 = vmatprep.subr.bf16.mxu0 %v1386
      %1503 = vmatpush1.bf16.msra.mxu0 %v1385
      %1504 = vmatprep.subr.bf16.mxu0 %v1390
      %1505 = vmatpush1.bf16.msra.mxu0 %v1389
      %1506 = vmatprep.subr.bf16.mxu0 %v1394
      %1507 = vmatpush1.bf16.msra.mxu0 %v1393
      %1508 = vmatprep.subr.bf16.mxu0 %v1398
      %1509 = vmatpush1.bf16.msra.mxu0 %v1397
      %1510 = vmatprep.subr.bf16.mxu0 0
      %1511 = vmatpush1.bf16.msra.mxu0 0
      %1512 = vmatprep.subr.bf16.mxu0 0
      %1513 = vmatpush1.bf16.msra.mxu0 0
      %1514 = vmatprep.subr.bf16.mxu0 0
      %1515 = vmatpush1.bf16.msra.mxu0 0
      %1516 = vmatprep.subr.bf16.mxu0 0
      %1517 = vmatpush1.bf16.msra.mxu0 0
      %1518 = vmatprep.subr.bf16.mxu0 0
      %1519 = vmatpush1.bf16.msra.mxu0 0
      %1520 = vmatprep.subr.bf16.mxu0 0
      %1521 = vmatpush1.bf16.msra.mxu0 0
      %1522 = vmatprep.subr.bf16.mxu0 0
      %1523 = vmatpush1.bf16.msra.mxu0 0
      %1524 = vmatprep.subr.bf16.mxu0 0
      %1525 = vmatpush1.bf16.msra.mxu0 0
      %1526 = vmatprep.mubr.bf16.mxu0 0
      %1527 = vmatmul.mubr.bf16.gmra.mrb[0].mxu0 %v934
      %v1528 = vpop.f32.mrb[0].mxu0
      %v1529 = vadd.f32 %v1446, %v1528
      %v1530 = vpop.f32.mrb[0].mxu0
      %v1531 = vadd.f32 %v1448, %v1530
      %v1532 = vpop.f32.mrb[0].mxu0
      %v1533 = vpop.f32.mrb[0].mxu0
      %1534 = vdwg.mxu0
      %v1535 = vxor.u32 %v1189, 2147483648
      %v1536 = vxor.u32 %v1191, 2147483648
      %v1537 = vxor.u32 %v1230, 2147483648
      %v1538 = vmul.f32 %v1535, 1.442695
      %v1539 = vpow.pop %v1538
      %v1540 = vmul.f32 %v1536, 1.442695
      %v1541 = vpow.pop %v1540
      %v1542 = vmul.f32 %v1537, 1.442695
      %v1543 = vpow.pop %v1542
      %v1544 = vadd.f32 %v1539, 1.0
      %v1545 = vadd.f32 %v1541, 1.0
      %v1546 = vadd.f32 %v1543, 1.0
      %v1547 = vrcp.pop %v1544
      %v1548 = vmul.f32 1.0, %v1547
      %v1549 = vrcp.pop %v1545
      %v1550 = vmul.f32 1.0, %v1549
      %v1551 = vrcp.pop %v1546
      %v1552 = vmul.f32 1.0, %v1551
      %v1553 = vtanh.pop %v1232
      %v1554 = vmul.f32 %v1550, %v905
      %v1555 = vmul.f32 %v1548, %v1553
      %v1556 = vadd.f32 %v1554, %v1555
      %v1557 = vtanh.pop %v1556
      %v1558 = vmul.f32 %v1552, %v1557
      %v1559 = vxor.u32 %v1488, 2147483648
      %v1560 = vxor.u32 %v1490, 2147483648
      %v1561 = vxor.u32 %v1529, 2147483648
      %v1562 = vmul.f32 %v1559, 1.442695
      %v1563 = vpow.pop %v1562
      %v1564 = vmul.f32 %v1560, 1.442695
      %v1565 = vpow.pop %v1564
      %v1566 = vmul.f32 %v1561, 1.442695
      %v1567 = vpow.pop %v1566
      %v1568 = vadd.f32 %v1563, 1.0
      %v1569 = vadd.f32 %v1565, 1.0
      %v1570 = vadd.f32 %v1567, 1.0
      %v1571 = vrcp.pop %v1568
      %v1572 = vmul.f32 1.0, %v1571
      %v1573 = vrcp.pop %v1569
      %v1574 = vmul.f32 1.0, %v1573
      %v1575 = vrcp.pop %v1570
      %v1576 = vmul.f32 1.0, %v1575
      %v1577 = vtanh.pop %v1531
      %v1578 = vmul.f32 %v1574, %v929
      %v1579 = vmul.f32 %v1572, %v1577
      %v1580 = vadd.f32 %v1578, %v1579
      %v1581 = vtanh.pop %v1580
      %v1582 = vmul.f32 %v1576, %v1581
      %v1583 = vpack.c.bf16 %v1558, %v1558
      %s1584 = scalar_lea.vmem %s263, 1
      %1585 = vst [vmem:[%s1584] sm:$0x1] %v1583
      %v1586 = vpack.c.bf16 %v1582, %v1582
      %s1587 = scalar_lea.vmem %s269, 2
      %1588 = vst [vmem:[%s1587] sm:$0x1] %v1586
      %v1589 = vld [vmem:[%s2] sm:$0xff]
      %v1590 = vld [vmem:[%s2 + $0x8] sm:$0xff]
      %v1591 = vld [vmem:[%s2 + $0x10] sm:$0xff]
      %v1592 = vld [vmem:[%s2 + $0x18] sm:$0xff]
      %v1593 = vld [vmem:[%s2 + $0x20] sm:$0xff]
      %v1594 = vld [vmem:[%s2 + $0x28] sm:$0xff]
      %v1595 = vld [vmem:[%s2 + $0x30] sm:$0xff]
      %v1596 = vld [vmem:[%s2 + $0x38] sm:$0xff]
      %v1597 = vld [vmem:[%s2 + $0x40] sm:$0xff]
      %v1598 = vld [vmem:[%s2 + $0x48] sm:$0xff]
      %v1599 = vld [vmem:[%s2 + $0x50] sm:$0xff]
      %v1600 = vld [vmem:[%s2 + $0x58] sm:$0xff]
      %v1601 = vld [vmem:[%s2 + $0x60] sm:$0xff]
      %v1602 = vld [vmem:[%s2 + $0x68] sm:$0xff]
      %v1603 = vld [vmem:[%s2 + $0x70] sm:$0xff]
      %v1604 = vld [vmem:[%s2 + $0x78] sm:$0xff]
      %v1605 = vld [vmem:[%s2 + $0x80] sm:$0xff]
      %v1606 = vld [vmem:[%s2 + $0x88] sm:$0xff]
      %v1607 = vld [vmem:[%s2 + $0x90] sm:$0xff]
      %v1608 = vld [vmem:[%s2 + $0x98] sm:$0xff]
      %v1609 = vld [vmem:[%s2 + $0xa0] sm:$0xff]
      %v1610 = vld [vmem:[%s2 + $0xa8] sm:$0xff]
      %v1611 = vld [vmem:[%s2 + $0xb0] sm:$0xff]
      %v1612 = vld [vmem:[%s2 + $0xb8] sm:$0xff]
      %v1613 = vld [vmem:[%s2 + $0xc0] sm:$0xff]
      %v1614 = vld [vmem:[%s2 + $0xc8] sm:$0xff]
      %v1615 = vld [vmem:[%s2 + $0xd0] sm:$0xff]
      %v1616 = vld [vmem:[%s2 + $0xd8] sm:$0xff]
      %v1617 = vld [vmem:[%s2 + $0xe0] sm:$0xff]
      %v1618 = vld [vmem:[%s2 + $0xe8] sm:$0xff]
      %v1619 = vld [vmem:[%s2 + $0xf0] sm:$0xff]
      %v1620 = vld [vmem:[%s2 + $0xf8] sm:$0xff]
      %s1621 = scalar_lea.vmem %s250, 8
      %v1622 = vld [vmem:[%s1621] sm:$0xf]
      %v1623 = vunpack.c.l.bf16 %v1622
      %v1656 = vunpack.c.l.b16 %v1589
      %v1657 = vunpack.c.h.b16 %v1589
      %v1658 = vunpack.c.l.b16 %v1590
      %v1659 = vunpack.c.h.b16 %v1590
      %v1660 = vunpack.c.l.b16 %v1591
      %v1661 = vunpack.c.h.b16 %v1591
      %v1662 = vunpack.c.l.b16 %v1592
      %v1663 = vunpack.c.h.b16 %v1592
      %v1664 = vunpack.c.l.b16 %v1593
      %v1665 = vunpack.c.h.b16 %v1593
      %v1666 = vunpack.c.l.b16 %v1594
      %v1667 = vunpack.c.h.b16 %v1594
      %v1668 = vunpack.c.l.b16 %v1595
      %v1669 = vunpack.c.h.b16 %v1595
      %v1670 = vunpack.c.l.b16 %v1596
      %v1671 = vunpack.c.h.b16 %v1596
      %v1672 = vunpack.c.l.b16 %v1597
      %v1673 = vunpack.c.h.b16 %v1597
      %v1674 = vunpack.c.l.b16 %v1598
      %v1675 = vunpack.c.h.b16 %v1598
      %v1676 = vunpack.c.l.b16 %v1599
      %v1677 = vunpack.c.h.b16 %v1599
      %v1678 = vunpack.c.l.b16 %v1600
      %v1679 = vunpack.c.h.b16 %v1600
      %v1680 = vunpack.c.l.b16 %v1601
      %v1681 = vunpack.c.h.b16 %v1601
      %v1682 = vunpack.c.l.b16 %v1602
      %v1683 = vunpack.c.h.b16 %v1602
      %v1684 = vunpack.c.l.b16 %v1603
      %v1685 = vunpack.c.h.b16 %v1603
      %v1686 = vunpack.c.l.b16 %v1604
      %v1687 = vunpack.c.h.b16 %v1604
      %v1688 = vunpack.c.l.b16 %v1605
      %v1689 = vunpack.c.h.b16 %v1605
      %v1690 = vunpack.c.l.b16 %v1606
      %v1691 = vunpack.c.h.b16 %v1606
      %v1692 = vunpack.c.l.b16 %v1607
      %v1693 = vunpack.c.h.b16 %v1607
      %v1694 = vunpack.c.l.b16 %v1608
      %v1695 = vunpack.c.h.b16 %v1608
      %v1696 = vunpack.c.l.b16 %v1609
      %v1697 = vunpack.c.h.b16 %v1609
      %v1698 = vunpack.c.l.b16 %v1610
      %v1699 = vunpack.c.h.b16 %v1610
      %v1700 = vunpack.c.l.b16 %v1611
      %v1701 = vunpack.c.h.b16 %v1611
      %v1702 = vunpack.c.l.b16 %v1612
      %v1703 = vunpack.c.h.b16 %v1612
      %v1704 = vunpack.c.l.b16 %v1613
      %v1705 = vunpack.c.h.b16 %v1613
      %v1706 = vunpack.c.l.b16 %v1614
      %v1707 = vunpack.c.h.b16 %v1614
      %v1708 = vunpack.c.l.b16 %v1615
      %v1709 = vunpack.c.h.b16 %v1615
      %v1710 = vunpack.c.l.b16 %v1616
      %v1711 = vunpack.c.h.b16 %v1616
      %v1712 = vunpack.c.l.b16 %v1617
      %v1713 = vunpack.c.h.b16 %v1617
      %v1714 = vunpack.c.l.b16 %v1618
      %v1715 = vunpack.c.h.b16 %v1618
      %v1716 = vunpack.c.l.b16 %v1619
      %v1717 = vunpack.c.h.b16 %v1619
      %v1718 = vunpack.c.l.b16 %v1620
      %v1719 = vunpack.c.h.b16 %v1620
      %v1720 = vpack.c.b16 %v1660, %v1656
      %v1721 = vpack.c.b16 %v1661, %v1657
      %v1722 = vpack.c.b16 %v1662, %v1658
      %v1723 = vpack.c.b16 %v1663, %v1659
      %v1724 = vpack.c.b16 %v1668, %v1664
      %v1725 = vpack.c.b16 %v1669, %v1665
      %v1726 = vpack.c.b16 %v1670, %v1666
      %v1727 = vpack.c.b16 %v1671, %v1667
      %v1728 = vpack.c.b16 %v1676, %v1672
      %v1729 = vpack.c.b16 %v1677, %v1673
      %v1730 = vpack.c.b16 %v1678, %v1674
      %v1731 = vpack.c.b16 %v1679, %v1675
      %v1732 = vpack.c.b16 %v1684, %v1680
      %v1733 = vpack.c.b16 %v1685, %v1681
      %v1734 = vpack.c.b16 %v1686, %v1682
      %v1735 = vpack.c.b16 %v1687, %v1683
      %v1736 = vpack.c.b16 %v1692, %v1688
      %v1737 = vpack.c.b16 %v1693, %v1689
      %v1738 = vpack.c.b16 %v1694, %v1690
      %v1739 = vpack.c.b16 %v1695, %v1691
      %v1740 = vpack.c.b16 %v1700, %v1696
      %v1741 = vpack.c.b16 %v1701, %v1697
      %v1742 = vpack.c.b16 %v1702, %v1698
      %v1743 = vpack.c.b16 %v1703, %v1699
      %v1744 = vpack.c.b16 %v1708, %v1704
      %v1745 = vpack.c.b16 %v1709, %v1705
      %v1746 = vpack.c.b16 %v1710, %v1706
      %v1747 = vpack.c.b16 %v1711, %v1707
      %v1748 = vpack.c.b16 %v1716, %v1712
      %v1749 = vpack.c.b16 %v1717, %v1713
      %v1750 = vpack.c.b16 %v1718, %v1714
      %v1751 = vpack.c.b16 %v1719, %v1715
      %v1785 = vcombine.high %v1623, %v1623
      %v1787 = vunpack.c.l.s4 1983009808
      %v1788 = vunpack.c.0.s8 %v1787
      %v1789 = vlaneseq
      %v1790 = vshrl.u32 %v1789, 7
      %v1791 = vsub.s32 %v1788, %v1790
      %v1792 = vrot.slane %v1623, %v1791
      %v1794 = vunpack.c.l.s4 1983009808
      %v1795 = vunpack.c.0.s8 %v1794
      %v1796 = vlaneseq
      %v1797 = vshrl.u32 %v1796, 7
      %v1798 = vsub.s32 %v1795, %v1797
      %v1799 = vrot.slane %v1785, %v1798
      %v1800 = vcombine.high %v1792, %v1792
      %v1801 = vcombine.high %v1799, %v1799
      %1806 = vmatprep.subr.bf16.mxu0 %v1721
      %1807 = vmatpush1.bf16.msra.mxu0 %v1720
      %1808 = vmatprep.subr.bf16.mxu0 %v1725
      %1809 = vmatpush1.bf16.msra.mxu0 %v1724
      %1810 = vmatprep.subr.bf16.mxu0 %v1729
      %1811 = vmatpush1.bf16.msra.mxu0 %v1728
      %1812 = vmatprep.subr.bf16.mxu0 %v1733
      %1813 = vmatpush1.bf16.msra.mxu0 %v1732
      %1814 = vmatprep.subr.bf16.mxu0 %v1737
      %1815 = vmatpush1.bf16.msra.mxu0 %v1736
      %1816 = vmatprep.subr.bf16.mxu0 %v1741
      %1817 = vmatpush1.bf16.msra.mxu0 %v1740
      %1818 = vmatprep.subr.bf16.mxu0 %v1745
      %1819 = vmatpush1.bf16.msra.mxu0 %v1744
      %1820 = vmatprep.subr.bf16.mxu0 %v1749
      %1821 = vmatpush1.bf16.msra.mxu0 %v1748
      %1822 = vmatprep.subr.bf16.mxu0 0
      %1823 = vmatpush1.bf16.msra.mxu0 0
      %1824 = vmatprep.subr.bf16.mxu0 0
      %1825 = vmatpush1.bf16.msra.mxu0 0
      %1826 = vmatprep.subr.bf16.mxu0 0
      %1827 = vmatpush1.bf16.msra.mxu0 0
      %1828 = vmatprep.subr.bf16.mxu0 0
      %1829 = vmatpush1.bf16.msra.mxu0 0
      %1830 = vmatprep.subr.bf16.mxu0 0
      %1831 = vmatpush1.bf16.msra.mxu0 0
      %1832 = vmatprep.subr.bf16.mxu0 0
      %1833 = vmatpush1.bf16.msra.mxu0 0
      %1834 = vmatprep.subr.bf16.mxu0 0
      %1835 = vmatpush1.bf16.msra.mxu0 0
      %1836 = vmatprep.subr.bf16.mxu0 0
      %1837 = vmatpush1.bf16.msra.mxu0 0
      %1838 = vmatprep.mubr.bf16.mxu0 0
      %1839 = vmatmul.mubr.bf16.gmra.mrb[0].mxu0 %v1583
      %v1840 = vpop.f32.mrb[0].mxu0
      %v1841 = vadd.f32 %v1792, %v1840
      %v1842 = vpop.f32.mrb[0].mxu0
      %v1843 = vadd.f32 %v1800, %v1842
      %v1844 = vpop.f32.mrb[0].mxu0
      %v1845 = vpop.f32.mrb[0].mxu0
      %1846 = vdwg.mxu0
      %1847 = vmatprep.subr.bf16.mxu0 %v1723
      %1848 = vmatpush1.bf16.msra.mxu0 %v1722
      %1849 = vmatprep.subr.bf16.mxu0 %v1727
      %1850 = vmatpush1.bf16.msra.mxu0 %v1726
      %1851 = vmatprep.subr.bf16.mxu0 %v1731
      %1852 = vmatpush1.bf16.msra.mxu0 %v1730
      %1853 = vmatprep.subr.bf16.mxu0 %v1735
      %1854 = vmatpush1.bf16.msra.mxu0 %v1734
      %1855 = vmatprep.subr.bf16.mxu0 %v1739
      %1856 = vmatpush1.bf16.msra.mxu0 %v1738
      %1857 = vmatprep.subr.bf16.mxu0 %v1743
      %1858 = vmatpush1.bf16.msra.mxu0 %v1742
      %1859 = vmatprep.subr.bf16.mxu0 %v1747
      %1860 = vmatpush1.bf16.msra.mxu0 %v1746
      %1861 = vmatprep.subr.bf16.mxu0 %v1751
      %1862 = vmatpush1.bf16.msra.mxu0 %v1750
      %1863 = vmatprep.subr.bf16.mxu0 0
      %1864 = vmatpush1.bf16.msra.mxu0 0
      %1865 = vmatprep.subr.bf16.mxu0 0
      %1866 = vmatpush1.bf16.msra.mxu0 0
      %1867 = vmatprep.subr.bf16.mxu0 0
      %1868 = vmatpush1.bf16.msra.mxu0 0
      %1869 = vmatprep.subr.bf16.mxu0 0
      %1870 = vmatpush1.bf16.msra.mxu0 0
      %1871 = vmatprep.subr.bf16.mxu0 0
      %1872 = vmatpush1.bf16.msra.mxu0 0
      %1873 = vmatprep.subr.bf16.mxu0 0
      %1874 = vmatpush1.bf16.msra.mxu0 0
      %1875 = vmatprep.subr.bf16.mxu0 0
      %1876 = vmatpush1.bf16.msra.mxu0 0
      %1877 = vmatprep.subr.bf16.mxu0 0
      %1878 = vmatpush1.bf16.msra.mxu0 0
      %1879 = vmatprep.mubr.bf16.mxu0 0
      %1880 = vmatmul.mubr.bf16.gmra.mrb[0].mxu0 %v1583
      %v1881 = vpop.f32.mrb[0].mxu0
      %v1882 = vadd.f32 %v1799, %v1881
      %v1883 = vpop.f32.mrb[0].mxu0
      %v1884 = vadd.f32 %v1801, %v1883
      %v1885 = vpop.f32.mrb[0].mxu0
      %v1886 = vpop.f32.mrb[0].mxu0
      %1887 = vdwg.mxu0
      %v1888 = vld [vmem:[%s3] sm:$0xff]
      %v1889 = vld [vmem:[%s3 + $0x8] sm:$0xff]
      %v1890 = vld [vmem:[%s3 + $0x10] sm:$0xff]
      %v1891 = vld [vmem:[%s3 + $0x18] sm:$0xff]
      %v1892 = vld [vmem:[%s3 + $0x20] sm:$0xff]
      %v1893 = vld [vmem:[%s3 + $0x28] sm:$0xff]
      %v1894 = vld [vmem:[%s3 + $0x30] sm:$0xff]
      %v1895 = vld [vmem:[%s3 + $0x38] sm:$0xff]
      %v1896 = vld [vmem:[%s3 + $0x40] sm:$0xff]
      %v1897 = vld [vmem:[%s3 + $0x48] sm:$0xff]
      %v1898 = vld [vmem:[%s3 + $0x50] sm:$0xff]
      %v1899 = vld [vmem:[%s3 + $0x58] sm:$0xff]
      %v1900 = vld [vmem:[%s3 + $0x60] sm:$0xff]
      %v1901 = vld [vmem:[%s3 + $0x68] sm:$0xff]
      %v1902 = vld [vmem:[%s3 + $0x70] sm:$0xff]
      %v1903 = vld [vmem:[%s3 + $0x78] sm:$0xff]
      %v1904 = vld [vmem:[%s3 + $0x80] sm:$0xff]
      %v1905 = vld [vmem:[%s3 + $0x88] sm:$0xff]
      %v1906 = vld [vmem:[%s3 + $0x90] sm:$0xff]
      %v1907 = vld [vmem:[%s3 + $0x98] sm:$0xff]
      %v1908 = vld [vmem:[%s3 + $0xa0] sm:$0xff]
      %v1909 = vld [vmem:[%s3 + $0xa8] sm:$0xff]
      %v1910 = vld [vmem:[%s3 + $0xb0] sm:$0xff]
      %v1911 = vld [vmem:[%s3 + $0xb8] sm:$0xff]
      %v1912 = vld [vmem:[%s3 + $0xc0] sm:$0xff]
      %v1913 = vld [vmem:[%s3 + $0xc8] sm:$0xff]
      %v1914 = vld [vmem:[%s3 + $0xd0] sm:$0xff]
      %v1915 = vld [vmem:[%s3 + $0xd8] sm:$0xff]
      %v1916 = vld [vmem:[%s3 + $0xe0] sm:$0xff]
      %v1917 = vld [vmem:[%s3 + $0xe8] sm:$0xff]
      %v1918 = vld [vmem:[%s3 + $0xf0] sm:$0xff]
      %v1919 = vld [vmem:[%s3 + $0xf8] sm:$0xff]
      %s1920 = scalar_lea.vmem %s257, 4
      %v1921 = vld [vmem:[%s1920] sm:$0xf]
      %v1922 = vunpack.c.l.bf16 %v1921
      %v1955 = vunpack.c.l.b16 %v1888
      %v1956 = vunpack.c.h.b16 %v1888
      %v1957 = vunpack.c.l.b16 %v1889
      %v1958 = vunpack.c.h.b16 %v1889
      %v1959 = vunpack.c.l.b16 %v1890
      %v1960 = vunpack.c.h.b16 %v1890
      %v1961 = vunpack.c.l.b16 %v1891
      %v1962 = vunpack.c.h.b16 %v1891
      %v1963 = vunpack.c.l.b16 %v1892
      %v1964 = vunpack.c.h.b16 %v1892
      %v1965 = vunpack.c.l.b16 %v1893
      %v1966 = vunpack.c.h.b16 %v1893
      %v1967 = vunpack.c.l.b16 %v1894
      %v1968 = vunpack.c.h.b16 %v1894
      %v1969 = vunpack.c.l.b16 %v1895
      %v1970 = vunpack.c.h.b16 %v1895
      %v1971 = vunpack.c.l.b16 %v1896
      %v1972 = vunpack.c.h.b16 %v1896
      %v1973 = vunpack.c.l.b16 %v1897
      %v1974 = vunpack.c.h.b16 %v1897
      %v1975 = vunpack.c.l.b16 %v1898
      %v1976 = vunpack.c.h.b16 %v1898
      %v1977 = vunpack.c.l.b16 %v1899
      %v1978 = vunpack.c.h.b16 %v1899
      %v1979 = vunpack.c.l.b16 %v1900
      %v1980 = vunpack.c.h.b16 %v1900
      %v1981 = vunpack.c.l.b16 %v1901
      %v1982 = vunpack.c.h.b16 %v1901
      %v1983 = vunpack.c.l.b16 %v1902
      %v1984 = vunpack.c.h.b16 %v1902
      %v1985 = vunpack.c.l.b16 %v1903
      %v1986 = vunpack.c.h.b16 %v1903
      %v1987 = vunpack.c.l.b16 %v1904
      %v1988 = vunpack.c.h.b16 %v1904
      %v1989 = vunpack.c.l.b16 %v1905
      %v1990 = vunpack.c.h.b16 %v1905
      %v1991 = vunpack.c.l.b16 %v1906
      %v1992 = vunpack.c.h.b16 %v1906
      %v1993 = vunpack.c.l.b16 %v1907
      %v1994 = vunpack.c.h.b16 %v1907
      %v1995 = vunpack.c.l.b16 %v1908
      %v1996 = vunpack.c.h.b16 %v1908
      %v1997 = vunpack.c.l.b16 %v1909
      %v1998 = vunpack.c.h.b16 %v1909
      %v1999 = vunpack.c.l.b16 %v1910
      %v2000 = vunpack.c.h.b16 %v1910
      %v2001 = vunpack.c.l.b16 %v1911
      %v2002 = vunpack.c.h.b16 %v1911
      %v2003 = vunpack.c.l.b16 %v1912
      %v2004 = vunpack.c.h.b16 %v1912
      %v2005 = vunpack.c.l.b16 %v1913
      %v2006 = vunpack.c.h.b16 %v1913
      %v2007 = vunpack.c.l.b16 %v1914
      %v2008 = vunpack.c.h.b16 %v1914
      %v2009 = vunpack.c.l.b16 %v1915
      %v2010 = vunpack.c.h.b16 %v1915
      %v2011 = vunpack.c.l.b16 %v1916
      %v2012 = vunpack.c.h.b16 %v1916
      %v2013 = vunpack.c.l.b16 %v1917
      %v2014 = vunpack.c.h.b16 %v1917
      %v2015 = vunpack.c.l.b16 %v1918
      %v2016 = vunpack.c.h.b16 %v1918
      %v2017 = vunpack.c.l.b16 %v1919
      %v2018 = vunpack.c.h.b16 %v1919
      %v2019 = vpack.c.b16 %v1959, %v1955
      %v2020 = vpack.c.b16 %v1960, %v1956
      %v2021 = vpack.c.b16 %v1961, %v1957
      %v2022 = vpack.c.b16 %v1962, %v1958
      %v2023 = vpack.c.b16 %v1967, %v1963
      %v2024 = vpack.c.b16 %v1968, %v1964
      %v2025 = vpack.c.b16 %v1969, %v1965
      %v2026 = vpack.c.b16 %v1970, %v1966
      %v2027 = vpack.c.b16 %v1975, %v1971
      %v2028 = vpack.c.b16 %v1976, %v1972
      %v2029 = vpack.c.b16 %v1977, %v1973
      %v2030 = vpack.c.b16 %v1978, %v1974
      %v2031 = vpack.c.b16 %v1983, %v1979
      %v2032 = vpack.c.b16 %v1984, %v1980
      %v2033 = vpack.c.b16 %v1985, %v1981
      %v2034 = vpack.c.b16 %v1986, %v1982
      %v2035 = vpack.c.b16 %v1991, %v1987
      %v2036 = vpack.c.b16 %v1992, %v1988
      %v2037 = vpack.c.b16 %v1993, %v1989
      %v2038 = vpack.c.b16 %v1994, %v1990
      %v2039 = vpack.c.b16 %v1999, %v1995
      %v2040 = vpack.c.b16 %v2000, %v1996
      %v2041 = vpack.c.b16 %v2001, %v1997
      %v2042 = vpack.c.b16 %v2002, %v1998
      %v2043 = vpack.c.b16 %v2007, %v2003
      %v2044 = vpack.c.b16 %v2008, %v2004
      %v2045 = vpack.c.b16 %v2009, %v2005
      %v2046 = vpack.c.b16 %v2010, %v2006
      %v2047 = vpack.c.b16 %v2015, %v2011
      %v2048 = vpack.c.b16 %v2016, %v2012
      %v2049 = vpack.c.b16 %v2017, %v2013
      %v2050 = vpack.c.b16 %v2018, %v2014
      %v2084 = vcombine.high %v1922, %v1922
      %v2086 = vunpack.c.l.s4 1983009808
      %v2087 = vunpack.c.0.s8 %v2086
      %v2088 = vlaneseq
      %v2089 = vshrl.u32 %v2088, 7
      %v2090 = vsub.s32 %v2087, %v2089
      %v2091 = vrot.slane %v1922, %v2090
      %v2093 = vunpack.c.l.s4 1983009808
      %v2094 = vunpack.c.0.s8 %v2093
      %v2095 = vlaneseq
      %v2096 = vshrl.u32 %v2095, 7
      %v2097 = vsub.s32 %v2094, %v2096
      %v2098 = vrot.slane %v2084, %v2097
      %v2099 = vcombine.high %v2091, %v2091
      %v2100 = vcombine.high %v2098, %v2098
      %2105 = vmatprep.subr.bf16.mxu0 %v2020
      %2106 = vmatpush1.bf16.msra.mxu0 %v2019
      %2107 = vmatprep.subr.bf16.mxu0 %v2024
      %2108 = vmatpush1.bf16.msra.mxu0 %v2023
      %2109 = vmatprep.subr.bf16.mxu0 %v2028
      %2110 = vmatpush1.bf16.msra.mxu0 %v2027
      %2111 = vmatprep.subr.bf16.mxu0 %v2032
      %2112 = vmatpush1.bf16.msra.mxu0 %v2031
      %2113 = vmatprep.subr.bf16.mxu0 %v2036
      %2114 = vmatpush1.bf16.msra.mxu0 %v2035
      %2115 = vmatprep.subr.bf16.mxu0 %v2040
      %2116 = vmatpush1.bf16.msra.mxu0 %v2039
      %2117 = vmatprep.subr.bf16.mxu0 %v2044
      %2118 = vmatpush1.bf16.msra.mxu0 %v2043
      %2119 = vmatprep.subr.bf16.mxu0 %v2048
      %2120 = vmatpush1.bf16.msra.mxu0 %v2047
      %2121 = vmatprep.subr.bf16.mxu0 0
      %2122 = vmatpush1.bf16.msra.mxu0 0
      %2123 = vmatprep.subr.bf16.mxu0 0
      %2124 = vmatpush1.bf16.msra.mxu0 0
      %2125 = vmatprep.subr.bf16.mxu0 0
      %2126 = vmatpush1.bf16.msra.mxu0 0
      %2127 = vmatprep.subr.bf16.mxu0 0
      %2128 = vmatpush1.bf16.msra.mxu0 0
      %2129 = vmatprep.subr.bf16.mxu0 0
      %2130 = vmatpush1.bf16.msra.mxu0 0
      %2131 = vmatprep.subr.bf16.mxu0 0
      %2132 = vmatpush1.bf16.msra.mxu0 0
      %2133 = vmatprep.subr.bf16.mxu0 0
      %2134 = vmatpush1.bf16.msra.mxu0 0
      %2135 = vmatprep.subr.bf16.mxu0 0
      %2136 = vmatpush1.bf16.msra.mxu0 0
      %2137 = vmatprep.mubr.bf16.mxu0 0
      %2138 = vmatmul.mubr.bf16.gmra.mrb[0].mxu0 %v1586
      %v2139 = vpop.f32.mrb[0].mxu0
      %v2140 = vadd.f32 %v2091, %v2139
      %v2141 = vpop.f32.mrb[0].mxu0
      %v2142 = vadd.f32 %v2099, %v2141
      %v2143 = vpop.f32.mrb[0].mxu0
      %v2144 = vpop.f32.mrb[0].mxu0
      %2145 = vdwg.mxu0
      %2146 = vmatprep.subr.bf16.mxu0 %v2022
      %2147 = vmatpush1.bf16.msra.mxu0 %v2021
      %2148 = vmatprep.subr.bf16.mxu0 %v2026
      %2149 = vmatpush1.bf16.msra.mxu0 %v2025
      %2150 = vmatprep.subr.bf16.mxu0 %v2030
      %2151 = vmatpush1.bf16.msra.mxu0 %v2029
      %2152 = vmatprep.subr.bf16.mxu0 %v2034
      %2153 = vmatpush1.bf16.msra.mxu0 %v2033
      %2154 = vmatprep.subr.bf16.mxu0 %v2038
      %2155 = vmatpush1.bf16.msra.mxu0 %v2037
      %2156 = vmatprep.subr.bf16.mxu0 %v2042
      %2157 = vmatpush1.bf16.msra.mxu0 %v2041
      %2158 = vmatprep.subr.bf16.mxu0 %v2046
      %2159 = vmatpush1.bf16.msra.mxu0 %v2045
      %2160 = vmatprep.subr.bf16.mxu0 %v2050
      %2161 = vmatpush1.bf16.msra.mxu0 %v2049
      %2162 = vmatprep.subr.bf16.mxu0 0
      %2163 = vmatpush1.bf16.msra.mxu0 0
      %2164 = vmatprep.subr.bf16.mxu0 0
      %2165 = vmatpush1.bf16.msra.mxu0 0
      %2166 = vmatprep.subr.bf16.mxu0 0
      %2167 = vmatpush1.bf16.msra.mxu0 0
      %2168 = vmatprep.subr.bf16.mxu0 0
      %2169 = vmatpush1.bf16.msra.mxu0 0
      %2170 = vmatprep.subr.bf16.mxu0 0
      %2171 = vmatpush1.bf16.msra.mxu0 0
      %2172 = vmatprep.subr.bf16.mxu0 0
      %2173 = vmatpush1.bf16.msra.mxu0 0
      %2174 = vmatprep.subr.bf16.mxu0 0
      %2175 = vmatpush1.bf16.msra.mxu0 0
      %2176 = vmatprep.subr.bf16.mxu0 0
      %2177 = vmatpush1.bf16.msra.mxu0 0
      %2178 = vmatprep.mubr.bf16.mxu0 0
      %2179 = vmatmul.mubr.bf16.gmra.mrb[0].mxu0 %v1586
      %v2180 = vpop.f32.mrb[0].mxu0
      %v2181 = vadd.f32 %v2098, %v2180
      %v2182 = vpop.f32.mrb[0].mxu0
      %v2183 = vadd.f32 %v2100, %v2182
      %v2184 = vpop.f32.mrb[0].mxu0
      %v2185 = vpop.f32.mrb[0].mxu0
      %2186 = vdwg.mxu0
      %v2187 = vxor.u32 %v1841, 2147483648
      %v2188 = vxor.u32 %v1843, 2147483648
      %v2189 = vxor.u32 %v1882, 2147483648
      %v2190 = vmul.f32 %v2187, 1.442695
      %v2191 = vpow.pop %v2190
      %v2192 = vmul.f32 %v2188, 1.442695
      %v2193 = vpow.pop %v2192
      %v2194 = vmul.f32 %v2189, 1.442695
      %v2195 = vpow.pop %v2194
      %v2196 = vadd.f32 %v2191, 1.0
      %v2197 = vadd.f32 %v2193, 1.0
      %v2198 = vadd.f32 %v2195, 1.0
      %v2199 = vrcp.pop %v2196
      %v2200 = vmul.f32 1.0, %v2199
      %v2201 = vrcp.pop %v2197
      %v2202 = vmul.f32 1.0, %v2201
      %v2203 = vrcp.pop %v2198
      %v2204 = vmul.f32 1.0, %v2203
      %v2205 = vtanh.pop %v1884
      %v2206 = vmul.f32 %v2202, %v1556
      %v2207 = vmul.f32 %v2200, %v2205
      %v2208 = vadd.f32 %v2206, %v2207
      %v2209 = vtanh.pop %v2208
      %v2210 = vmul.f32 %v2204, %v2209
      %v2211 = vxor.u32 %v2140, 2147483648
      %v2212 = vxor.u32 %v2142, 2147483648
      %v2213 = vxor.u32 %v2181, 2147483648
      %v2214 = vmul.f32 %v2211, 1.442695
      %v2215 = vpow.pop %v2214
      %v2216 = vmul.f32 %v2212, 1.442695
      %v2217 = vpow.pop %v2216
      %v2218 = vmul.f32 %v2213, 1.442695
      %v2219 = vpow.pop %v2218
      %v2220 = vadd.f32 %v2215, 1.0
      %v2221 = vadd.f32 %v2217, 1.0
      %v2222 = vadd.f32 %v2219, 1.0
      %v2223 = vrcp.pop %v2220
      %v2224 = vmul.f32 1.0, %v2223
      %v2225 = vrcp.pop %v2221
      %v2226 = vmul.f32 1.0, %v2225
      %v2227 = vrcp.pop %v2222
      %v2228 = vmul.f32 1.0, %v2227
      %v2229 = vtanh.pop %v2183
      %v2230 = vmul.f32 %v2226, %v1580
      %v2231 = vmul.f32 %v2224, %v2229
      %v2232 = vadd.f32 %v2230, %v2231
      %v2233 = vtanh.pop %v2232
      %v2234 = vmul.f32 %v2228, %v2233
      %v2235 = vpack.c.bf16 %v2210, %v2210
      %s2236 = scalar_lea.vmem %s263, 2
      %2237 = vst [vmem:[%s2236] sm:$0x1] %v2235
      %v2238 = vpack.c.bf16 %v2234, %v2234
      %s2239 = scalar_lea.vmem %s269, 1
      %2240 = vst [vmem:[%s2239] sm:$0x1] %v2238
      %v2241 = vld [vmem:[%s2] sm:$0xff]
      %v2242 = vld [vmem:[%s2 + $0x8] sm:$0xff]
      %v2243 = vld [vmem:[%s2 + $0x10] sm:$0xff]
      %v2244 = vld [vmem:[%s2 + $0x18] sm:$0xff]
      %v2245 = vld [vmem:[%s2 + $0x20] sm:$0xff]
      %v2246 = vld [vmem:[%s2 + $0x28] sm:$0xff]
      %v2247 = vld [vmem:[%s2 + $0x30] sm:$0xff]
      %v2248 = vld [vmem:[%s2 + $0x38] sm:$0xff]
      %v2249 = vld [vmem:[%s2 + $0x40] sm:$0xff]
      %v2250 = vld [vmem:[%s2 + $0x48] sm:$0xff]
      %v2251 = vld [vmem:[%s2 + $0x50] sm:$0xff]
      %v2252 = vld [vmem:[%s2 + $0x58] sm:$0xff]
      %v2253 = vld [vmem:[%s2 + $0x60] sm:$0xff]
      %v2254 = vld [vmem:[%s2 + $0x68] sm:$0xff]
      %v2255 = vld [vmem:[%s2 + $0x70] sm:$0xff]
      %v2256 = vld [vmem:[%s2 + $0x78] sm:$0xff]
      %v2257 = vld [vmem:[%s2 + $0x80] sm:$0xff]
      %v2258 = vld [vmem:[%s2 + $0x88] sm:$0xff]
      %v2259 = vld [vmem:[%s2 + $0x90] sm:$0xff]
      %v2260 = vld [vmem:[%s2 + $0x98] sm:$0xff]
      %v2261 = vld [vmem:[%s2 + $0xa0] sm:$0xff]
      %v2262 = vld [vmem:[%s2 + $0xa8] sm:$0xff]
      %v2263 = vld [vmem:[%s2 + $0xb0] sm:$0xff]
      %v2264 = vld [vmem:[%s2 + $0xb8] sm:$0xff]
      %v2265 = vld [vmem:[%s2 + $0xc0] sm:$0xff]
      %v2266 = vld [vmem:[%s2 + $0xc8] sm:$0xff]
      %v2267 = vld [vmem:[%s2 + $0xd0] sm:$0xff]
      %v2268 = vld [vmem:[%s2 + $0xd8] sm:$0xff]
      %v2269 = vld [vmem:[%s2 + $0xe0] sm:$0xff]
      %v2270 = vld [vmem:[%s2 + $0xe8] sm:$0xff]
      %v2271 = vld [vmem:[%s2 + $0xf0] sm:$0xff]
      %v2272 = vld [vmem:[%s2 + $0xf8] sm:$0xff]
      %s2273 = scalar_lea.vmem %s250, 12
      %v2274 = vld [vmem:[%s2273] sm:$0xf]
      %v2275 = vunpack.c.l.bf16 %v2274
      %v2308 = vunpack.c.l.b16 %v2241
      %v2309 = vunpack.c.h.b16 %v2241
      %v2310 = vunpack.c.l.b16 %v2242
      %v2311 = vunpack.c.h.b16 %v2242
      %v2312 = vunpack.c.l.b16 %v2243
      %v2313 = vunpack.c.h.b16 %v2243
      %v2314 = vunpack.c.l.b16 %v2244
      %v2315 = vunpack.c.h.b16 %v2244
      %v2316 = vunpack.c.l.b16 %v2245
      %v2317 = vunpack.c.h.b16 %v2245
      %v2318 = vunpack.c.l.b16 %v2246
      %v2319 = vunpack.c.h.b16 %v2246
      %v2320 = vunpack.c.l.b16 %v2247
      %v2321 = vunpack.c.h.b16 %v2247
      %v2322 = vunpack.c.l.b16 %v2248
      %v2323 = vunpack.c.h.b16 %v2248
      %v2324 = vunpack.c.l.b16 %v2249
      %v2325 = vunpack.c.h.b16 %v2249
      %v2326 = vunpack.c.l.b16 %v2250
      %v2327 = vunpack.c.h.b16 %v2250
      %v2328 = vunpack.c.l.b16 %v2251
      %v2329 = vunpack.c.h.b16 %v2251
      %v2330 = vunpack.c.l.b16 %v2252
      %v2331 = vunpack.c.h.b16 %v2252
      %v2332 = vunpack.c.l.b16 %v2253
      %v2333 = vunpack.c.h.b16 %v2253
      %v2334 = vunpack.c.l.b16 %v2254
      %v2335 = vunpack.c.h.b16 %v2254
      %v2336 = vunpack.c.l.b16 %v2255
      %v2337 = vunpack.c.h.b16 %v2255
      %v2338 = vunpack.c.l.b16 %v2256
      %v2339 = vunpack.c.h.b16 %v2256
      %v2340 = vunpack.c.l.b16 %v2257
      %v2341 = vunpack.c.h.b16 %v2257
      %v2342 = vunpack.c.l.b16 %v2258
      %v2343 = vunpack.c.h.b16 %v2258
      %v2344 = vunpack.c.l.b16 %v2259
      %v2345 = vunpack.c.h.b16 %v2259
      %v2346 = vunpack.c.l.b16 %v2260
      %v2347 = vunpack.c.h.b16 %v2260
      %v2348 = vunpack.c.l.b16 %v2261
      %v2349 = vunpack.c.h.b16 %v2261
      %v2350 = vunpack.c.l.b16 %v2262
      %v2351 = vunpack.c.h.b16 %v2262
      %v2352 = vunpack.c.l.b16 %v2263
      %v2353 = vunpack.c.h.b16 %v2263
      %v2354 = vunpack.c.l.b16 %v2264
      %v2355 = vunpack.c.h.b16 %v2264
      %v2356 = vunpack.c.l.b16 %v2265
      %v2357 = vunpack.c.h.b16 %v2265
      %v2358 = vunpack.c.l.b16 %v2266
      %v2359 = vunpack.c.h.b16 %v2266
      %v2360 = vunpack.c.l.b16 %v2267
      %v2361 = vunpack.c.h.b16 %v2267
      %v2362 = vunpack.c.l.b16 %v2268
      %v2363 = vunpack.c.h.b16 %v2268
      %v2364 = vunpack.c.l.b16 %v2269
      %v2365 = vunpack.c.h.b16 %v2269
      %v2366 = vunpack.c.l.b16 %v2270
      %v2367 = vunpack.c.h.b16 %v2270
      %v2368 = vunpack.c.l.b16 %v2271
      %v2369 = vunpack.c.h.b16 %v2271
      %v2370 = vunpack.c.l.b16 %v2272
      %v2371 = vunpack.c.h.b16 %v2272
      %v2372 = vpack.c.b16 %v2312, %v2308
      %v2373 = vpack.c.b16 %v2313, %v2309
      %v2374 = vpack.c.b16 %v2314, %v2310
      %v2375 = vpack.c.b16 %v2315, %v2311
      %v2376 = vpack.c.b16 %v2320, %v2316
      %v2377 = vpack.c.b16 %v2321, %v2317
      %v2378 = vpack.c.b16 %v2322, %v2318
      %v2379 = vpack.c.b16 %v2323, %v2319
      %v2380 = vpack.c.b16 %v2328, %v2324
      %v2381 = vpack.c.b16 %v2329, %v2325
      %v2382 = vpack.c.b16 %v2330, %v2326
      %v2383 = vpack.c.b16 %v2331, %v2327
      %v2384 = vpack.c.b16 %v2336, %v2332
      %v2385 = vpack.c.b16 %v2337, %v2333
      %v2386 = vpack.c.b16 %v2338, %v2334
      %v2387 = vpack.c.b16 %v2339, %v2335
      %v2388 = vpack.c.b16 %v2344, %v2340
      %v2389 = vpack.c.b16 %v2345, %v2341
      %v2390 = vpack.c.b16 %v2346, %v2342
      %v2391 = vpack.c.b16 %v2347, %v2343
      %v2392 = vpack.c.b16 %v2352, %v2348
      %v2393 = vpack.c.b16 %v2353, %v2349
      %v2394 = vpack.c.b16 %v2354, %v2350
      %v2395 = vpack.c.b16 %v2355, %v2351
      %v2396 = vpack.c.b16 %v2360, %v2356
      %v2397 = vpack.c.b16 %v2361, %v2357
      %v2398 = vpack.c.b16 %v2362, %v2358
      %v2399 = vpack.c.b16 %v2363, %v2359
      %v2400 = vpack.c.b16 %v2368, %v2364
      %v2401 = vpack.c.b16 %v2369, %v2365
      %v2402 = vpack.c.b16 %v2370, %v2366
      %v2403 = vpack.c.b16 %v2371, %v2367
      %v2437 = vcombine.high %v2275, %v2275
      %v2439 = vunpack.c.l.s4 1983009808
      %v2440 = vunpack.c.0.s8 %v2439
      %v2441 = vlaneseq
      %v2442 = vshrl.u32 %v2441, 7
      %v2443 = vsub.s32 %v2440, %v2442
      %v2444 = vrot.slane %v2275, %v2443
      %v2446 = vunpack.c.l.s4 1983009808
      %v2447 = vunpack.c.0.s8 %v2446
      %v2448 = vlaneseq
      %v2449 = vshrl.u32 %v2448, 7
      %v2450 = vsub.s32 %v2447, %v2449
      %v2451 = vrot.slane %v2437, %v2450
      %v2452 = vcombine.high %v2444, %v2444
      %v2453 = vcombine.high %v2451, %v2451
      %2458 = vmatprep.subr.bf16.mxu0 %v2373
      %2459 = vmatpush1.bf16.msra.mxu0 %v2372
      %2460 = vmatprep.subr.bf16.mxu0 %v2377
      %2461 = vmatpush1.bf16.msra.mxu0 %v2376
      %2462 = vmatprep.subr.bf16.mxu0 %v2381
      %2463 = vmatpush1.bf16.msra.mxu0 %v2380
      %2464 = vmatprep.subr.bf16.mxu0 %v2385
      %2465 = vmatpush1.bf16.msra.mxu0 %v2384
      %2466 = vmatprep.subr.bf16.mxu0 %v2389
      %2467 = vmatpush1.bf16.msra.mxu0 %v2388
      %2468 = vmatprep.subr.bf16.mxu0 %v2393
      %2469 = vmatpush1.bf16.msra.mxu0 %v2392
      %2470 = vmatprep.subr.bf16.mxu0 %v2397
      %2471 = vmatpush1.bf16.msra.mxu0 %v2396
      %2472 = vmatprep.subr.bf16.mxu0 %v2401
      %2473 = vmatpush1.bf16.msra.mxu0 %v2400
      %2474 = vmatprep.subr.bf16.mxu0 0
      %2475 = vmatpush1.bf16.msra.mxu0 0
      %2476 = vmatprep.subr.bf16.mxu0 0
      %2477 = vmatpush1.bf16.msra.mxu0 0
      %2478 = vmatprep.subr.bf16.mxu0 0
      %2479 = vmatpush1.bf16.msra.mxu0 0
      %2480 = vmatprep.subr.bf16.mxu0 0
      %2481 = vmatpush1.bf16.msra.mxu0 0
      %2482 = vmatprep.subr.bf16.mxu0 0
      %2483 = vmatpush1.bf16.msra.mxu0 0
      %2484 = vmatprep.subr.bf16.mxu0 0
      %2485 = vmatpush1.bf16.msra.mxu0 0
      %2486 = vmatprep.subr.bf16.mxu0 0
      %2487 = vmatpush1.bf16.msra.mxu0 0
      %2488 = vmatprep.subr.bf16.mxu0 0
      %2489 = vmatpush1.bf16.msra.mxu0 0
      %2490 = vmatprep.mubr.bf16.mxu0 0
      %2491 = vmatmul.mubr.bf16.gmra.mrb[0].mxu0 %v2235
      %v2492 = vpop.f32.mrb[0].mxu0
      %v2493 = vadd.f32 %v2444, %v2492
      %v2494 = vpop.f32.mrb[0].mxu0
      %v2495 = vadd.f32 %v2452, %v2494
      %v2496 = vpop.f32.mrb[0].mxu0
      %v2497 = vpop.f32.mrb[0].mxu0
      %2498 = vdwg.mxu0
      %2499 = vmatprep.subr.bf16.mxu0 %v2375
      %2500 = vmatpush1.bf16.msra.mxu0 %v2374
      %2501 = vmatprep.subr.bf16.mxu0 %v2379
      %2502 = vmatpush1.bf16.msra.mxu0 %v2378
      %2503 = vmatprep.subr.bf16.mxu0 %v2383
      %2504 = vmatpush1.bf16.msra.mxu0 %v2382
      %2505 = vmatprep.subr.bf16.mxu0 %v2387
      %2506 = vmatpush1.bf16.msra.mxu0 %v2386
      %2507 = vmatprep.subr.bf16.mxu0 %v2391
      %2508 = vmatpush1.bf16.msra.mxu0 %v2390
      %2509 = vmatprep.subr.bf16.mxu0 %v2395
      %2510 = vmatpush1.bf16.msra.mxu0 %v2394
      %2511 = vmatprep.subr.bf16.mxu0 %v2399
      %2512 = vmatpush1.bf16.msra.mxu0 %v2398
      %2513 = vmatprep.subr.bf16.mxu0 %v2403
      %2514 = vmatpush1.bf16.msra.mxu0 %v2402
      %2515 = vmatprep.subr.bf16.mxu0 0
      %2516 = vmatpush1.bf16.msra.mxu0 0
      %2517 = vmatprep.subr.bf16.mxu0 0
      %2518 = vmatpush1.bf16.msra.mxu0 0
      %2519 = vmatprep.subr.bf16.mxu0 0
      %2520 = vmatpush1.bf16.msra.mxu0 0
      %2521 = vmatprep.subr.bf16.mxu0 0
      %2522 = vmatpush1.bf16.msra.mxu0 0
      %2523 = vmatprep.subr.bf16.mxu0 0
      %2524 = vmatpush1.bf16.msra.mxu0 0
      %2525 = vmatprep.subr.bf16.mxu0 0
      %2526 = vmatpush1.bf16.msra.mxu0 0
      %2527 = vmatprep.subr.bf16.mxu0 0
      %2528 = vmatpush1.bf16.msra.mxu0 0
      %2529 = vmatprep.subr.bf16.mxu0 0
      %2530 = vmatpush1.bf16.msra.mxu0 0
      %2531 = vmatprep.mubr.bf16.mxu0 0
      %2532 = vmatmul.mubr.bf16.gmra.mrb[0].mxu0 %v2235
      %v2533 = vpop.f32.mrb[0].mxu0
      %v2534 = vadd.f32 %v2451, %v2533
      %v2535 = vpop.f32.mrb[0].mxu0
      %v2536 = vadd.f32 %v2453, %v2535
      %v2537 = vpop.f32.mrb[0].mxu0
      %v2538 = vpop.f32.mrb[0].mxu0
      %2539 = vdwg.mxu0
      %v2540 = vld [vmem:[%s3] sm:$0xff]
      %v2541 = vld [vmem:[%s3 + $0x8] sm:$0xff]
      %v2542 = vld [vmem:[%s3 + $0x10] sm:$0xff]
      %v2543 = vld [vmem:[%s3 + $0x18] sm:$0xff]
      %v2544 = vld [vmem:[%s3 + $0x20] sm:$0xff]
      %v2545 = vld [vmem:[%s3 + $0x28] sm:$0xff]
      %v2546 = vld [vmem:[%s3 + $0x30] sm:$0xff]
      %v2547 = vld [vmem:[%s3 + $0x38] sm:$0xff]
      %v2548 = vld [vmem:[%s3 + $0x40] sm:$0xff]
      %v2549 = vld [vmem:[%s3 + $0x48] sm:$0xff]
      %v2550 = vld [vmem:[%s3 + $0x50] sm:$0xff]
      %v2551 = vld [vmem:[%s3 + $0x58] sm:$0xff]
      %v2552 = vld [vmem:[%s3 + $0x60] sm:$0xff]
      %v2553 = vld [vmem:[%s3 + $0x68] sm:$0xff]
      %v2554 = vld [vmem:[%s3 + $0x70] sm:$0xff]
      %v2555 = vld [vmem:[%s3 + $0x78] sm:$0xff]
      %v2556 = vld [vmem:[%s3 + $0x80] sm:$0xff]
      %v2557 = vld [vmem:[%s3 + $0x88] sm:$0xff]
      %v2558 = vld [vmem:[%s3 + $0x90] sm:$0xff]
      %v2559 = vld [vmem:[%s3 + $0x98] sm:$0xff]
      %v2560 = vld [vmem:[%s3 + $0xa0] sm:$0xff]
      %v2561 = vld [vmem:[%s3 + $0xa8] sm:$0xff]
      %v2562 = vld [vmem:[%s3 + $0xb0] sm:$0xff]
      %v2563 = vld [vmem:[%s3 + $0xb8] sm:$0xff]
      %v2564 = vld [vmem:[%s3 + $0xc0] sm:$0xff]
      %v2565 = vld [vmem:[%s3 + $0xc8] sm:$0xff]
      %v2566 = vld [vmem:[%s3 + $0xd0] sm:$0xff]
      %v2567 = vld [vmem:[%s3 + $0xd8] sm:$0xff]
      %v2568 = vld [vmem:[%s3 + $0xe0] sm:$0xff]
      %v2569 = vld [vmem:[%s3 + $0xe8] sm:$0xff]
      %v2570 = vld [vmem:[%s3 + $0xf0] sm:$0xff]
      %v2571 = vld [vmem:[%s3 + $0xf8] sm:$0xff]
      %v2572 = vld [vmem:[%s257] sm:$0xf]
      %v2573 = vunpack.c.l.bf16 %v2572
      %v2606 = vunpack.c.l.b16 %v2540
      %v2607 = vunpack.c.h.b16 %v2540
      %v2608 = vunpack.c.l.b16 %v2541
      %v2609 = vunpack.c.h.b16 %v2541
      %v2610 = vunpack.c.l.b16 %v2542
      %v2611 = vunpack.c.h.b16 %v2542
      %v2612 = vunpack.c.l.b16 %v2543
      %v2613 = vunpack.c.h.b16 %v2543
      %v2614 = vunpack.c.l.b16 %v2544
      %v2615 = vunpack.c.h.b16 %v2544
      %v2616 = vunpack.c.l.b16 %v2545
      %v2617 = vunpack.c.h.b16 %v2545
      %v2618 = vunpack.c.l.b16 %v2546
      %v2619 = vunpack.c.h.b16 %v2546
      %v2620 = vunpack.c.l.b16 %v2547
      %v2621 = vunpack.c.h.b16 %v2547
      %v2622 = vunpack.c.l.b16 %v2548
      %v2623 = vunpack.c.h.b16 %v2548
      %v2624 = vunpack.c.l.b16 %v2549
      %v2625 = vunpack.c.h.b16 %v2549
      %v2626 = vunpack.c.l.b16 %v2550
      %v2627 = vunpack.c.h.b16 %v2550
      %v2628 = vunpack.c.l.b16 %v2551
      %v2629 = vunpack.c.h.b16 %v2551
      %v2630 = vunpack.c.l.b16 %v2552
      %v2631 = vunpack.c.h.b16 %v2552
      %v2632 = vunpack.c.l.b16 %v2553
      %v2633 = vunpack.c.h.b16 %v2553
      %v2634 = vunpack.c.l.b16 %v2554
      %v2635 = vunpack.c.h.b16 %v2554
      %v2636 = vunpack.c.l.b16 %v2555
      %v2637 = vunpack.c.h.b16 %v2555
      %v2638 = vunpack.c.l.b16 %v2556
      %v2639 = vunpack.c.h.b16 %v2556
      %v2640 = vunpack.c.l.b16 %v2557
      %v2641 = vunpack.c.h.b16 %v2557
      %v2642 = vunpack.c.l.b16 %v2558
      %v2643 = vunpack.c.h.b16 %v2558
      %v2644 = vunpack.c.l.b16 %v2559
      %v2645 = vunpack.c.h.b16 %v2559
      %v2646 = vunpack.c.l.b16 %v2560
      %v2647 = vunpack.c.h.b16 %v2560
      %v2648 = vunpack.c.l.b16 %v2561
      %v2649 = vunpack.c.h.b16 %v2561
      %v2650 = vunpack.c.l.b16 %v2562
      %v2651 = vunpack.c.h.b16 %v2562
      %v2652 = vunpack.c.l.b16 %v2563
      %v2653 = vunpack.c.h.b16 %v2563
      %v2654 = vunpack.c.l.b16 %v2564
      %v2655 = vunpack.c.h.b16 %v2564
      %v2656 = vunpack.c.l.b16 %v2565
      %v2657 = vunpack.c.h.b16 %v2565
      %v2658 = vunpack.c.l.b16 %v2566
      %v2659 = vunpack.c.h.b16 %v2566
      %v2660 = vunpack.c.l.b16 %v2567
      %v2661 = vunpack.c.h.b16 %v2567
      %v2662 = vunpack.c.l.b16 %v2568
      %v2663 = vunpack.c.h.b16 %v2568
      %v2664 = vunpack.c.l.b16 %v2569
      %v2665 = vunpack.c.h.b16 %v2569
      %v2666 = vunpack.c.l.b16 %v2570
      %v2667 = vunpack.c.h.b16 %v2570
      %v2668 = vunpack.c.l.b16 %v2571
      %v2669 = vunpack.c.h.b16 %v2571
      %v2670 = vpack.c.b16 %v2610, %v2606
      %v2671 = vpack.c.b16 %v2611, %v2607
      %v2672 = vpack.c.b16 %v2612, %v2608
      %v2673 = vpack.c.b16 %v2613, %v2609
      %v2674 = vpack.c.b16 %v2618, %v2614
      %v2675 = vpack.c.b16 %v2619, %v2615
      %v2676 = vpack.c.b16 %v2620, %v2616
      %v2677 = vpack.c.b16 %v2621, %v2617
      %v2678 = vpack.c.b16 %v2626, %v2622
      %v2679 = vpack.c.b16 %v2627, %v2623
      %v2680 = vpack.c.b16 %v2628, %v2624
      %v2681 = vpack.c.b16 %v2629, %v2625
      %v2682 = vpack.c.b16 %v2634, %v2630
      %v2683 = vpack.c.b16 %v2635, %v2631
      %v2684 = vpack.c.b16 %v2636, %v2632
      %v2685 = vpack.c.b16 %v2637, %v2633
      %v2686 = vpack.c.b16 %v2642, %v2638
      %v2687 = vpack.c.b16 %v2643, %v2639
      %v2688 = vpack.c.b16 %v2644, %v2640
      %v2689 = vpack.c.b16 %v2645, %v2641
      %v2690 = vpack.c.b16 %v2650, %v2646
      %v2691 = vpack.c.b16 %v2651, %v2647
      %v2692 = vpack.c.b16 %v2652, %v2648
      %v2693 = vpack.c.b16 %v2653, %v2649
      %v2694 = vpack.c.b16 %v2658, %v2654
      %v2695 = vpack.c.b16 %v2659, %v2655
      %v2696 = vpack.c.b16 %v2660, %v2656
      %v2697 = vpack.c.b16 %v2661, %v2657
      %v2698 = vpack.c.b16 %v2666, %v2662
      %v2699 = vpack.c.b16 %v2667, %v2663
      %v2700 = vpack.c.b16 %v2668, %v2664
      %v2701 = vpack.c.b16 %v2669, %v2665
      %v2735 = vcombine.high %v2573, %v2573
      %v2737 = vunpack.c.l.s4 1983009808
      %v2738 = vunpack.c.0.s8 %v2737
      %v2739 = vlaneseq
      %v2740 = vshrl.u32 %v2739, 7
      %v2741 = vsub.s32 %v2738, %v2740
      %v2742 = vrot.slane %v2573, %v2741
      %v2744 = vunpack.c.l.s4 1983009808
      %v2745 = vunpack.c.0.s8 %v2744
      %v2746 = vlaneseq
      %v2747 = vshrl.u32 %v2746, 7
      %v2748 = vsub.s32 %v2745, %v2747
      %v2749 = vrot.slane %v2735, %v2748
      %v2750 = vcombine.high %v2742, %v2742
      %v2751 = vcombine.high %v2749, %v2749
      %2756 = vmatprep.subr.bf16.mxu0 %v2671
      %2757 = vmatpush1.bf16.msra.mxu0 %v2670
      %2758 = vmatprep.subr.bf16.mxu0 %v2675
      %2759 = vmatpush1.bf16.msra.mxu0 %v2674
      %2760 = vmatprep.subr.bf16.mxu0 %v2679
      %2761 = vmatpush1.bf16.msra.mxu0 %v2678
      %2762 = vmatprep.subr.bf16.mxu0 %v2683
      %2763 = vmatpush1.bf16.msra.mxu0 %v2682
      %2764 = vmatprep.subr.bf16.mxu0 %v2687
      %2765 = vmatpush1.bf16.msra.mxu0 %v2686
      %2766 = vmatprep.subr.bf16.mxu0 %v2691
      %2767 = vmatpush1.bf16.msra.mxu0 %v2690
      %2768 = vmatprep.subr.bf16.mxu0 %v2695
      %2769 = vmatpush1.bf16.msra.mxu0 %v2694
      %2770 = vmatprep.subr.bf16.mxu0 %v2699
      %2771 = vmatpush1.bf16.msra.mxu0 %v2698
      %2772 = vmatprep.subr.bf16.mxu0 0
      %2773 = vmatpush1.bf16.msra.mxu0 0
      %2774 = vmatprep.subr.bf16.mxu0 0
      %2775 = vmatpush1.bf16.msra.mxu0 0
      %2776 = vmatprep.subr.bf16.mxu0 0
      %2777 = vmatpush1.bf16.msra.mxu0 0
      %2778 = vmatprep.subr.bf16.mxu0 0
      %2779 = vmatpush1.bf16.msra.mxu0 0
      %2780 = vmatprep.subr.bf16.mxu0 0
      %2781 = vmatpush1.bf16.msra.mxu0 0
      %2782 = vmatprep.subr.bf16.mxu0 0
      %2783 = vmatpush1.bf16.msra.mxu0 0
      %2784 = vmatprep.subr.bf16.mxu0 0
      %2785 = vmatpush1.bf16.msra.mxu0 0
      %2786 = vmatprep.subr.bf16.mxu0 0
      %2787 = vmatpush1.bf16.msra.mxu0 0
      %2788 = vmatprep.mubr.bf16.mxu0 0
      %2789 = vmatmul.mubr.bf16.gmra.mrb[0].mxu0 %v2238
      %v2790 = vpop.f32.mrb[0].mxu0
      %v2791 = vadd.f32 %v2742, %v2790
      %v2792 = vpop.f32.mrb[0].mxu0
      %v2793 = vadd.f32 %v2750, %v2792
      %v2794 = vpop.f32.mrb[0].mxu0
      %v2795 = vpop.f32.mrb[0].mxu0
      %2796 = vdwg.mxu0
      %2797 = vmatprep.subr.bf16.mxu0 %v2673
      %2798 = vmatpush1.bf16.msra.mxu0 %v2672
      %2799 = vmatprep.subr.bf16.mxu0 %v2677
      %2800 = vmatpush1.bf16.msra.mxu0 %v2676
      %2801 = vmatprep.subr.bf16.mxu0 %v2681
      %2802 = vmatpush1.bf16.msra.mxu0 %v2680
      %2803 = vmatprep.subr.bf16.mxu0 %v2685
      %2804 = vmatpush1.bf16.msra.mxu0 %v2684
      %2805 = vmatprep.subr.bf16.mxu0 %v2689
      %2806 = vmatpush1.bf16.msra.mxu0 %v2688
      %2807 = vmatprep.subr.bf16.mxu0 %v2693
      %2808 = vmatpush1.bf16.msra.mxu0 %v2692
      %2809 = vmatprep.subr.bf16.mxu0 %v2697
      %2810 = vmatpush1.bf16.msra.mxu0 %v2696
      %2811 = vmatprep.subr.bf16.mxu0 %v2701
      %2812 = vmatpush1.bf16.msra.mxu0 %v2700
      %2813 = vmatprep.subr.bf16.mxu0 0
      %2814 = vmatpush1.bf16.msra.mxu0 0
      %2815 = vmatprep.subr.bf16.mxu0 0
      %2816 = vmatpush1.bf16.msra.mxu0 0
      %2817 = vmatprep.subr.bf16.mxu0 0
      %2818 = vmatpush1.bf16.msra.mxu0 0
      %2819 = vmatprep.subr.bf16.mxu0 0
      %2820 = vmatpush1.bf16.msra.mxu0 0
      %2821 = vmatprep.subr.bf16.mxu0 0
      %2822 = vmatpush1.bf16.msra.mxu0 0
      %2823 = vmatprep.subr.bf16.mxu0 0
      %2824 = vmatpush1.bf16.msra.mxu0 0
      %2825 = vmatprep.subr.bf16.mxu0 0
      %2826 = vmatpush1.bf16.msra.mxu0 0
      %2827 = vmatprep.subr.bf16.mxu0 0
      %2828 = vmatpush1.bf16.msra.mxu0 0
      %2829 = vmatprep.mubr.bf16.mxu0 0
      %2830 = vmatmul.mubr.bf16.gmra.mrb[0].mxu0 %v2238
      %v2831 = vpop.f32.mrb[0].mxu0
      %v2832 = vadd.f32 %v2749, %v2831
      %v2833 = vpop.f32.mrb[0].mxu0
      %v2834 = vadd.f32 %v2751, %v2833
      %v2835 = vpop.f32.mrb[0].mxu0
      %v2836 = vpop.f32.mrb[0].mxu0
      %2837 = vdwg.mxu0
      %v2838 = vxor.u32 %v2493, 2147483648
      %v2839 = vxor.u32 %v2495, 2147483648
      %v2840 = vxor.u32 %v2534, 2147483648
      %v2841 = vmul.f32 %v2838, 1.442695
      %v2842 = vpow.pop %v2841
      %v2843 = vmul.f32 %v2839, 1.442695
      %v2844 = vpow.pop %v2843
      %v2845 = vmul.f32 %v2840, 1.442695
      %v2846 = vpow.pop %v2845
      %v2847 = vadd.f32 %v2842, 1.0
      %v2848 = vadd.f32 %v2844, 1.0
      %v2849 = vadd.f32 %v2846, 1.0
      %v2850 = vrcp.pop %v2847
      %v2851 = vmul.f32 1.0, %v2850
      %v2852 = vrcp.pop %v2848
      %v2853 = vmul.f32 1.0, %v2852
      %v2854 = vrcp.pop %v2849
      %v2855 = vmul.f32 1.0, %v2854
      %v2856 = vtanh.pop %v2536
      %v2857 = vmul.f32 %v2853, %v2208
      %v2858 = vmul.f32 %v2851, %v2856
      %v2859 = vadd.f32 %v2857, %v2858
      %v2860 = vtanh.pop %v2859
      %v2861 = vmul.f32 %v2855, %v2860
      %v2862 = vxor.u32 %v2791, 2147483648
      %v2863 = vxor.u32 %v2793, 2147483648
      %v2864 = vxor.u32 %v2832, 2147483648
      %v2865 = vmul.f32 %v2862, 1.442695
      %v2866 = vpow.pop %v2865
      %v2867 = vmul.f32 %v2863, 1.442695
      %v2868 = vpow.pop %v2867
      %v2869 = vmul.f32 %v2864, 1.442695
      %v2870 = vpow.pop %v2869
      %v2871 = vadd.f32 %v2866, 1.0
      %v2872 = vadd.f32 %v2868, 1.0
      %v2873 = vadd.f32 %v2870, 1.0
      %v2874 = vrcp.pop %v2871
      %v2875 = vmul.f32 1.0, %v2874
      %v2876 = vrcp.pop %v2872
      %v2877 = vmul.f32 1.0, %v2876
      %v2878 = vrcp.pop %v2873
      %v2879 = vmul.f32 1.0, %v2878
      %v2880 = vtanh.pop %v2834
      %v2881 = vmul.f32 %v2877, %v2232
      %v2882 = vmul.f32 %v2875, %v2880
      %v2883 = vadd.f32 %v2881, %v2882
      %v2884 = vtanh.pop %v2883
      %v2885 = vmul.f32 %v2879, %v2884
      %v2886 = vpack.c.bf16 %v2861, %v2861
      %s2887 = scalar_lea.vmem %s263, 3
      %2888 = vst [vmem:[%s2887] sm:$0x1] %v2886
      %v2889 = vpack.c.bf16 %v2885, %v2885
      %2890 = vst [vmem:[%s269] sm:$0x1] %v2889
      %2891 = vst [vmem:[#allocation2] sm:$0x3] %v2861
      %2892 = vst [vmem:[#allocation3] sm:$0x3] %v2859
      %2893 = vst [vmem:[#allocation4] sm:$0x3] %v2885
      %2894 = vst [vmem:[#allocation5] sm:$0x3] %v2883
      %s2895 = smul.u32 4, %s17
      %p2896 = scmp.lt.s32.totalorder %s2895, 7
      %s2897 = scalar_select %p2896, %s2895, 7
      %s2898 = scalar_lea.vmem %s4, %s2897
      %s2899 = ssub.s32 1, %s17
      %s2900 = smul.u32 4, %s2899
      %p2901 = scmp.lt.s32.totalorder %s2900, 7
      %s2902 = scalar_select %p2901, %s2900, 7
      %s2903 = scalar_lea.vmem %s5, %s2902
      // Predicated region
      $region41: #{basic_lstm_forward.8} parent=35 // pred_check
        %p2904 = pneg %p131
      $region42: #{basic_lstm_forward.8} parent=35 // pred_check_branch
        %2906 = sbr.rel (%p2904) target = $region44
      $region43: #{basic_lstm_forward.8} parent=35 // pred_region
        %s2907 = smul.u32 4, %s17
      $region44: #{basic_lstm_forward.8} parent=35 // pred_fallthru
        _
      // Predicated region
      $region45: #{basic_lstm_forward.8} parent=35 // pred_check
        %p2908 = pneg %p159
      $region46: #{basic_lstm_forward.8} parent=35 // pred_check_branch
        %2910 = sbr.rel (%p2908) target = $region48
      $region47: #{basic_lstm_forward.8} parent=35 // pred_region
        %s2911 = ssub.s32 1, %s17
        %s2912 = smul.u32 4, %s2911
      $region48: #{basic_lstm_forward.8} parent=35 // pred_fallthru
        _
    $region36: #{basic_lstm_forward.8} parent=5 // pred_fallthru
      _
    %p2913 = scmp.le.s32.totalorder 2, %s12
    // Predicated region
    $region49: #{basic_lstm_forward.8} parent=5 // pred_check
      %p2914 = pneg %p2913
    $region50: #{basic_lstm_forward.8} parent=5 // pred_check_branch
      %2916 = sbr.rel (%p2914) target = $region52
    $region51: #{basic_lstm_forward.8} parent=5 // pred_region
      %s2917 = ssub.s32 %s12, 2
      // Predicated region
      $region53: #{basic_lstm_forward.8} parent=51 // pred_check
        %p2918 = pneg %p137
      $region54: #{basic_lstm_forward.8} parent=51 // pred_check_branch
        %2920 = sbr.rel (%p2918) target = $region56
      $region55: #{basic_lstm_forward.8} parent=51 // pred_region
        %s2921 = smul.u32 4, %s18
        %p2922 = scmp.lt.s32.totalorder %s2921, 7
        %s2923 = scalar_select %p2922, %s2921, 7
        %s2924 = scalar_lea.vmem %s4, %s2923
      $region56: #{basic_lstm_forward.8} parent=51 // pred_fallthru
        _
      // Predicated region
      $region57: #{basic_lstm_forward.8} parent=51 // pred_check
        %p2925 = pneg %p165
      $region58: #{basic_lstm_forward.8} parent=51 // pred_check_branch
        %2927 = sbr.rel (%p2925) target = $region60
      $region59: #{basic_lstm_forward.8} parent=51 // pred_region
        %s2928 = ssub.s32 1, %s18
        %s2929 = smul.u32 4, %s2928
        %p2930 = scmp.lt.s32.totalorder %s2929, 7
        %s2931 = scalar_select %p2930, %s2929, 7
        %s2932 = scalar_lea.vmem %s5, %s2931
      $region60: #{basic_lstm_forward.8} parent=51 // pred_fallthru
        _
    $region52: #{basic_lstm_forward.8} parent=5 // pred_fallthru
      _
  $region6: #{basic_lstm_forward.8} parent=0 // loop_footer
    %s16 = sadd.s32 1, %s12
  $region7: #{basic_lstm_forward.8} parent=0 // loop_footer_branch
    %11 = sbr.rel target = $region3
  $region8: #{basic_lstm_forward.8} parent=0 // loop_exit
    _

</llo_original>
